<compile_context>
chip_gen: v6e
topology: v6e:2x2x1
jax: 0.10.0
libtpu: 0.0.40
codegen_flags: <defaults>
</compile_context>

<pallas_src>
import functools

import numpy as np

import jax
import jax.numpy as jnp
from jax import lax
from jax.experimental import pallas as pl
from jax.experimental.pallas import tpu as pltpu

SCALE = 2
NUM_CHANNELS = 1
D, S, M = 56, 12, 4

# (ksize, pad) of the mid_part conv stack (matches the PyTorch __init__).
MID_CFG = [(1, 0)] + [(3, 1)] * M + [(1, 0)]

# Padded-buffer geometry (flattened row-major spatial, channels-major):
#   rows: _R0 (=2) zero-halo rows on top, _RBOT (=3) at the bottom
#   cols: _C0 (=4) zero-halo cols on the left, 4 on the right (>= 2 needed)
_R0, _RBOT, _C0 = 2, 3, 4


def _prelu(y, a):
    return jnp.where(y > 0, y, a * y)


# ----------------------------------------------------------------------------
# Fused FSRCNN kernel: one grid step == one image, activations stay in VMEM.
# ----------------------------------------------------------------------------
def _fsrcnn_kernel(p0_ref, mask_ref,
                   w0_ref, b0_ref, a0_ref,
                   ws_ref, bs_ref, as_ref,
                   wm_ref, bm_ref, am_ref,
                   we_ref, be_ref, ae_ref,
                   wd_ref, bd_ref,
                   o_ref,
                   act_d, act_s1, act_s2, *, H, Wp):
    L = H * Wp                        # length of one written activation slab
    LP = (H + _R0 + _RBOT) * Wp       # full flat buffer length
    OFF = _R0 * Wp + _C0              # flat offset of interior pixel (0, 0)

    # --- halo-only zeroing (complement of the written slab).  In-slab halo
    #     columns are kept zero by the mask-multiplied layer stores below.
    for buf, c in ((act_d, D), (act_s1, S), (act_s2, S)):
        buf[:, 0:OFF] = jnp.zeros((c, OFF), jnp.float32)
        buf[:, OFF + L:LP] = jnp.zeros((c, LP - OFF - L), jnp.float32)

    mask = mask_ref[...]              # (1, L): 1 on real pixels, 0 on halo cols

    # ---- first_part: Conv2d(1, D, 5, pad=2) + PReLU ------------------------
    # Cin == 1: im2col patches (25, L) were built in the wrapper; the whole
    # layer is one lane-dense MXU matmul, consumed directly by the shrink.
    y = jnp.dot(w0_ref[...], p0_ref[0], preferred_element_type=jnp.float32)
    y1 = _prelu(y + b0_ref[...], a0_ref[...])                       # (D, L)

    # ---- mid_part: 1x1 shrink D -> S ---------------------------------------
    y = jnp.dot(ws_ref[...], y1, preferred_element_type=jnp.float32)
    y = _prelu(y + bs_ref[...], as_ref[...]) * mask                 # (S, L)
    act_s1[:, OFF:OFF + L] = y

    # ---- 4 x (3x3 conv S->S + PReLU): 9 taps K-fused into one matmul -------
    off3 = [(_R0 - 1 + kh) * Wp + (_C0 - 1 + kw)
            for kh in range(3) for kw in range(3)]
    src, dst = act_s1, act_s2
    for li in range(M):
        patches = jnp.concatenate([src[:, o:o + L] for o in off3], axis=0)
        y = jnp.dot(wm_ref[li], patches,                            # K = 108
                    preferred_element_type=jnp.float32)
        y = _prelu(y + bm_ref[li], am_ref[li]) * mask               # (S, L)
        dst[:, OFF:OFF + L] = y
        src, dst = dst, src

    # ---- 1x1 expand S -> D --------------------------------------------------
    y = jnp.dot(we_ref[...], src[:, OFF:OFF + L],
                preferred_element_type=jnp.float32)
    y = _prelu(y + be_ref[...], ae_ref[...]) * mask                 # (D, L)
    act_d[:, OFF:OFF + L] = y

    # ---- last_part: ConvTranspose2d(D, 1, 9, s=2, p=4, op=1) ---------------
    # Polyphase decomposition: 25 taps on the original grid, each a
    # (4, D) @ (D, L) dot, accumulated in a traced value (no VMEM RMW).
    off5 = [(_R0 - 2 + th) * Wp + (_C0 - 2 + tw)
            for th in range(5) for tw in range(5)]
    acc = jnp.dot(wd_ref[0], act_d[:, off5[0]:off5[0] + L],
                  preferred_element_type=jnp.float32)
    for t in range(1, 25):
        acc = acc + jnp.dot(wd_ref[t], act_d[:, off5[t]:off5[t] + L],
                            preferred_element_type=jnp.float32)
    o_ref[0] = acc + bd_ref[...]                                    # (4, L)


# ----------------------------------------------------------------------------
# Wrapper: layout plumbing + pallas_call
# ----------------------------------------------------------------------------
def _const_spec(arr):
    zeros = (0,) * arr.ndim
    return pl.BlockSpec(arr.shape, lambda n: zeros)


def fsrcnn_forward(packed, x_nchw):
    """FSRCNN forward.  x_nchw: (N, 1, H, W) f32 -> (N, 1, 2H, 2W) f32."""
    N, C, H, W = x_nchw.shape
    assert C == NUM_CHANNELS
    Wp = W + _C0 + 4                  # padded row pitch (4-col right halo)
    Hp = H + _R0 + _RBOT
    L = H * Wp

    # Wrapper-side im2col for the Cin=1 first conv, channels-major, using the
    # padded row pitch so the first matmul directly produces the slab layout:
    #   p0[n, kh*5+kw, y*Wp + x] = x_pad[n, y + kh - 2, x + kw - 2]
    x2 = x_nchw[:, 0]                                           # (N, H, W)
    xp = jnp.pad(x2, ((0, 0), (2, 2), (2, Wp - W + 2)))
    p0 = jnp.stack([xp[:, kh:kh + H, kw:kw + Wp].reshape(N, L)
                    for kh in range(5) for kw in range(5)], axis=1)

    # Column-validity mask: slab position p = y*Wp + x is a real pixel iff
    # x < W; masked stores keep the in-slab halo columns at zero.
    mask = jnp.asarray((np.arange(L) % Wp < W).astype(np.float32)).reshape(1, L)

    kernel = functools.partial(_fsrcnn_kernel, H=H, Wp=Wp)
    phases = pl.pallas_call(
        kernel,
        out_shape=jax.ShapeDtypeStruct((N, 4, L), jnp.float32),
        grid=(N,),
        in_specs=[
            pl.BlockSpec((1, 25, L), lambda n: (n, 0, 0)),
            _const_spec(mask),
            _const_spec(packed["w0"]), _const_spec(packed["b0"]),
            _const_spec(packed["a0"]),
            _const_spec(packed["ws"]), _const_spec(packed["bs"]),
            _const_spec(packed["as"]),
            _const_spec(packed["wm"]), _const_spec(packed["bm"]),
            _const_spec(packed["am"]),
            _const_spec(packed["we"]), _const_spec(packed["be"]),
            _const_spec(packed["ae"]),
            _const_spec(packed["wd"]), _const_spec(packed["bd"]),
        ],
        out_specs=pl.BlockSpec((1, 4, L), lambda n: (n, 0, 0)),
        scratch_shapes=[
            pltpu.VMEM((D, Hp * Wp), jnp.float32),   # expand out / deconv in
            pltpu.VMEM((S, Hp * Wp), jnp.float32),   # mid ping
            pltpu.VMEM((S, Hp * Wp), jnp.float32),   # mid pong
        ],
        compiler_params=pltpu.CompilerParams(
            dimension_semantics=("parallel",),
            vmem_limit_bytes=64 * 1024 * 1024),
    )(p0, mask,
      packed["w0"], packed["b0"], packed["a0"],
      packed["ws"], packed["bs"], packed["as"],
      packed["wm"], packed["bm"], packed["am"],
      packed["we"], packed["be"], packed["ae"],
      packed["wd"], packed["bd"])

    # Pixel shuffle: phase 2*dr+dc at pixel (y, x) -> output pixel (2y+dr, 2x+dc).
    ph = phases.reshape(N, 2, 2, H, Wp)[:, :, :, :, :W]         # (N,dr,dc,H,W)
    y = ph.transpose(0, 3, 1, 4, 2).reshape(N, SCALE * H, SCALE * W)
    return y[:, None]


# ----------------------------------------------------------------------------
# Parameters (deterministic synthetic) and one-time packing for the kernel
# ----------------------------------------------------------------------------
def init_params(key):
    keys = iter(jax.random.split(key, 16))

    def conv_layer(k, cin, cout):
        kw_, kb_ = jax.random.split(next(keys))
        return {
            "w": 0.1 * jax.random.normal(kw_, (k, k, cin, cout), jnp.float32),
            "b": 0.01 * jax.random.normal(kb_, (cout,), jnp.float32),
            "a": jnp.full((cout,), 0.25, jnp.float32),   # PReLU init = 0.25
        }

    params = {"first": conv_layer(5, NUM_CHANNELS, D)}
    mid = [conv_layer(1, D, S)]
    for _ in range(M):
        mid.append(conv_layer(3, S, S))
    mid.append(conv_layer(1, S, D))
    params["mid"] = mid

    kw_, kb_ = jax.random.split(next(keys))
    params["last"] = {
        # PyTorch ConvTranspose2d weight layout: (Cin, Cout, KH, KW)
        "w": 0.1 * jax.random.normal(kw_, (D, NUM_CHANNELS, 9, 9), jnp.float32),
        "b": 0.01 * jax.random.normal(kb_, (1,), jnp.float32),
    }
    return params


def _polyphase_deconv_weight(w_t):
    """(Cin, 1, 9, 9) ConvTranspose2d weight -> (25, Cin, 4) polyphase taps.

    Tap (th, tw) multiplies input pixel (r-2+th, c-2+tw); output column
    p = 2*dr + dc is the value at output pixel (2r+dr, 2c+dc)."""
    w_np = np.asarray(w_t)
    cin = w_np.shape[0]
    wd = np.zeros((5, 5, cin, 4), np.float32)
    for dr in (0, 1):
        for dc in (0, 1):
            ph = 2 * dr + dc
            for th in range(5):
                if dr == 0:
                    kh = 8 - 2 * th
                else:
                    if th == 0:
                        continue
                    kh = 9 - 2 * th
                for tw in range(5):
                    if dc == 0:
                        kw = 8 - 2 * tw
                    else:
                        if tw == 0:
                            continue
                        kw = 9 - 2 * tw
                    wd[th, tw, :, ph] = w_np[:, 0, kh, kw]
    return jnp.asarray(wd.reshape(25, cin, 4))


def pack_params(params):
    """One-time repacking into channels-major kernel layouts."""
    first, mid, last = params["first"], params["mid"], params["last"]
    # wm[li, cout, (kh*3+kw)*S + cin] = w[kh, kw, cin, cout]
    wm = jnp.stack([jnp.transpose(mid[1 + i]["w"].reshape(9 * S, S))
                    for i in range(M)])
    return {
        "w0": jnp.transpose(first["w"].reshape(25, D)),        # (D, 25)
        "b0": first["b"].reshape(D, 1),
        "a0": first["a"].reshape(D, 1),
        "ws": jnp.transpose(mid[0]["w"].reshape(D, S)),        # (S, D)
        "bs": mid[0]["b"].reshape(S, 1),
        "as": mid[0]["a"].reshape(S, 1),
        "wm": wm,                                              # (M, S, 9*S)
        "bm": jnp.stack([mid[1 + i]["b"].reshape(S, 1) for i in range(M)]),
        "am": jnp.stack([mid[1 + i]["a"].reshape(S, 1) for i in range(M)]),
        "we": jnp.transpose(mid[1 + M]["w"].reshape(S, D)),    # (D, S)
        "be": mid[1 + M]["b"].reshape(D, 1),
        "ae": mid[1 + M]["a"].reshape(D, 1),
        "wd": jnp.transpose(_polyphase_deconv_weight(last["w"]), (0, 2, 1)),
        "bd": jnp.tile(last["b"].reshape(1, 1), (4, 1)),       # (4, 1)
    }


# ----------------------------------------------------------------------------
# Pure-JAX (XLA) reference, HIGHEST precision, for verification only
# ----------------------------------------------------------------------------
def ref_forward(params, x_nchw):
    x = jnp.transpose(x_nchw, (0, 2, 3, 1))
    hi = lax.Precision.HIGHEST

    def conv(x, w, b, pad):
        y = lax.conv_general_dilated(
            x, w, (1, 1), ((pad, pad), (pad, pad)),
            dimension_numbers=("NHWC", "HWIO", "NHWC"), precision=hi)
        return y + b.reshape(1, 1, 1, -1)

    def prelu(y, a):
        return jnp.where(y > 0, y, a.reshape(1, 1, 1, -1) * y)

    fp = params["first"]
    x = prelu(conv(x, fp["w"], fp["b"], 2), fp["a"])
    for layer, (k, p) in zip(params["mid"], MID_CFG):
        x = prelu(conv(x, layer["w"], layer["b"], p), layer["a"])
    lp = params["last"]
    w_hwio = jnp.transpose(lp["w"][:, :, ::-1, ::-1], (2, 3, 0, 1))
    p_lo, p_hi = 9 - 1 - 4, 9 - 1 - 4 + (SCALE - 1)
    y = lax.conv_general_dilated(
        x, w_hwio, (1, 1), ((p_lo, p_hi), (p_lo, p_hi)),
        lhs_dilation=(SCALE, SCALE),
        dimension_numbers=("NHWC", "HWIO", "NHWC"), precision=hi)
    y = y + lp["b"].reshape(1, 1, 1, -1)
    return jnp.transpose(y, (0, 3, 1, 2))


if __name__ == "__main__":
    key = jax.random.PRNGKey(0)
    kp, kx = jax.random.split(key)
    params = init_params(kp)
    packed = pack_params(params)

    x = jax.random.normal(kx, (2, NUM_CHANNELS, 16, 16), jnp.float32)

    fwd = jax.jit(fsrcnn_forward)
    out = fwd(packed, x)
    jax.block_until_ready(out)
    assert out.shape == (2, NUM_CHANNELS, 16 * SCALE, 16 * SCALE), out.shape

    ref = ref_forward(params, x)
    err = float(jnp.max(jnp.abs(out - ref)))
    # tightened 5x vs the previous version (1e-2 -> 2e-3)
    assert jnp.allclose(out, ref, atol=2e-3, rtol=2e-3), err

    print("KERNEL_OK")
</pallas_src>

<mosaic_0001>
module attributes {stable_mosaic.version = 11 : i64} {
  func.func @_fsrcnn_kernel(%arg0: i32, %arg1: memref<1x25x384xf32, #tpu.memory_space<vmem>>, %arg2: memref<1x384xf32, #tpu.memory_space<vmem>>, %arg3: memref<56x25xf32, #tpu.memory_space<vmem>>, %arg4: memref<56x1xf32, #tpu.memory_space<vmem>>, %arg5: memref<56x1xf32, #tpu.memory_space<vmem>>, %arg6: memref<12x56xf32, #tpu.memory_space<vmem>>, %arg7: memref<12x1xf32, #tpu.memory_space<vmem>>, %arg8: memref<12x1xf32, #tpu.memory_space<vmem>>, %arg9: memref<4x12x108xf32, #tpu.memory_space<vmem>>, %arg10: memref<4x12x1xf32, #tpu.memory_space<vmem>>, %arg11: memref<4x12x1xf32, #tpu.memory_space<vmem>>, %arg12: memref<56x12xf32, #tpu.memory_space<vmem>>, %arg13: memref<56x1xf32, #tpu.memory_space<vmem>>, %arg14: memref<56x1xf32, #tpu.memory_space<vmem>>, %arg15: memref<25x4x56xf32, #tpu.memory_space<vmem>>, %arg16: memref<4x1xf32, #tpu.memory_space<vmem>>, %arg17: memref<1x4x384xf32, #tpu.memory_space<vmem>>, %arg18: memref<56x504xf32, #tpu.memory_space<vmem>>, %arg19: memref<12x504xf32, #tpu.memory_space<vmem>>, %arg20: memref<12x504xf32, #tpu.memory_space<vmem>>) attributes {dimension_semantics = [#tpu.dimension_semantics<parallel>], iteration_bounds = array<i64: 2>, scalar_prefetch = 0 : i64, scratch_operands = 3 : i64, tpu.core_type = #tpu.core_type<tc>, window_params = [{transform_indices = @transform_0, window_bounds = array<i64: 1, 25, 384>}, {pipeline_mode = #tpu.pipeline_mode<synchronous>, transform_indices = @transform_1, window_bounds = array<i64: 1, 384>}, {pipeline_mode = #tpu.pipeline_mode<synchronous>, transform_indices = @transform_2, window_bounds = array<i64: 56, 25>}, {pipeline_mode = #tpu.pipeline_mode<synchronous>, transform_indices = @transform_3, window_bounds = array<i64: 56, 1>}, {pipeline_mode = #tpu.pipeline_mode<synchronous>, transform_indices = @transform_4, window_bounds = array<i64: 56, 1>}, {pipeline_mode = #tpu.pipeline_mode<synchronous>, transform_indices = @transform_5, window_bounds = array<i64: 12, 56>}, {pipeline_mode = #tpu.pipeline_mode<synchronous>, transform_indices = @transform_6, window_bounds = array<i64: 12, 1>}, {pipeline_mode = #tpu.pipeline_mode<synchronous>, transform_indices = @transform_7, window_bounds = array<i64: 12, 1>}, {pipeline_mode = #tpu.pipeline_mode<synchronous>, transform_indices = @transform_8, window_bounds = array<i64: 4, 12, 108>}, {pipeline_mode = #tpu.pipeline_mode<synchronous>, transform_indices = @transform_9, window_bounds = array<i64: 4, 12, 1>}, {pipeline_mode = #tpu.pipeline_mode<synchronous>, transform_indices = @transform_10, window_bounds = array<i64: 4, 12, 1>}, {pipeline_mode = #tpu.pipeline_mode<synchronous>, transform_indices = @transform_11, window_bounds = array<i64: 56, 12>}, {pipeline_mode = #tpu.pipeline_mode<synchronous>, transform_indices = @transform_12, window_bounds = array<i64: 56, 1>}, {pipeline_mode = #tpu.pipeline_mode<synchronous>, transform_indices = @transform_13, window_bounds = array<i64: 56, 1>}, {pipeline_mode = #tpu.pipeline_mode<synchronous>, transform_indices = @transform_14, window_bounds = array<i64: 25, 4, 56>}, {pipeline_mode = #tpu.pipeline_mode<synchronous>, transform_indices = @transform_15, window_bounds = array<i64: 4, 1>}, {transform_indices = @transform_16, window_bounds = array<i64: 1, 4, 384>}]} {
    %cst = arith.constant 0.000000e+00 : f32
    %0 = vector.broadcast %cst : f32 to vector<56x52xf32>
    %c0 = arith.constant 0 : index
    %c0_0 = arith.constant 0 : index
    %1 = vector.load %arg18[%c0, %c0_0] : memref<56x504xf32, #tpu.memory_space<vmem>>, vector<56x52xf32>
    tpu.vector_store %arg18[%c0, %c0_0], %0 {strides = array<i32>} : memref<56x504xf32, #tpu.memory_space<vmem>>, vector<56x52xf32>,
    %cst_1 = arith.constant 0.000000e+00 : f32
    %2 = vector.broadcast %cst_1 : f32 to vector<56x68xf32>
    %c0_2 = arith.constant 0 : index
    %c436 = arith.constant 436 : index
    %3 = vector.load %arg18[%c0_2, %c436] : memref<56x504xf32, #tpu.memory_space<vmem>>, vector<56x68xf32>
    tpu.vector_store %arg18[%c0_2, %c436], %2 {strides = array<i32>} : memref<56x504xf32, #tpu.memory_space<vmem>>, vector<56x68xf32>,
    %cst_3 = arith.constant 0.000000e+00 : f32
    %4 = vector.broadcast %cst_3 : f32 to vector<12x52xf32>
    %c0_4 = arith.constant 0 : index
    %c0_5 = arith.constant 0 : index
    %5 = vector.load %arg19[%c0_4, %c0_5] : memref<12x504xf32, #tpu.memory_space<vmem>>, vector<12x52xf32>
    tpu.vector_store %arg19[%c0_4, %c0_5], %4 {strides = array<i32>} : memref<12x504xf32, #tpu.memory_space<vmem>>, vector<12x52xf32>,
    %cst_6 = arith.constant 0.000000e+00 : f32
    %6 = vector.broadcast %cst_6 : f32 to vector<12x68xf32>
    %c0_7 = arith.constant 0 : index
    %c436_8 = arith.constant 436 : index
    %7 = vector.load %arg19[%c0_7, %c436_8] : memref<12x504xf32, #tpu.memory_space<vmem>>, vector<12x68xf32>
    tpu.vector_store %arg19[%c0_7, %c436_8], %6 {strides = array<i32>} : memref<12x504xf32, #tpu.memory_space<vmem>>, vector<12x68xf32>,
    %cst_9 = arith.constant 0.000000e+00 : f32
    %8 = vector.broadcast %cst_9 : f32 to vector<12x52xf32>
    %c0_10 = arith.constant 0 : index
    %c0_11 = arith.constant 0 : index
    %9 = vector.load %arg20[%c0_10, %c0_11] : memref<12x504xf32, #tpu.memory_space<vmem>>, vector<12x52xf32>
    tpu.vector_store %arg20[%c0_10, %c0_11], %8 {strides = array<i32>} : memref<12x504xf32, #tpu.memory_space<vmem>>, vector<12x52xf32>,
    %cst_12 = arith.constant 0.000000e+00 : f32
    %10 = vector.broadcast %cst_12 : f32 to vector<12x68xf32>
    %c0_13 = arith.constant 0 : index
    %c436_14 = arith.constant 436 : index
    %11 = vector.load %arg20[%c0_13, %c436_14] : memref<12x504xf32, #tpu.memory_space<vmem>>, vector<12x68xf32>
    tpu.vector_store %arg20[%c0_13, %c436_14], %10 {strides = array<i32>} : memref<12x504xf32, #tpu.memory_space<vmem>>, vector<12x68xf32>,
    %c0_15 = arith.constant 0 : index
    %c0_16 = arith.constant 0 : index
    %12 = vector.load %arg2[%c0_15, %c0_16] : memref<1x384xf32, #tpu.memory_space<vmem>>, vector<1x384xf32>
    %c0_17 = arith.constant 0 : index
    %c0_18 = arith.constant 0 : index
    %13 = vector.load %arg3[%c0_17, %c0_18] : memref<56x25xf32, #tpu.memory_space<vmem>>, vector<56x25xf32>
    %c0_19 = arith.constant 0 : index
    %c0_20 = arith.constant 0 : index
    %c0_21 = arith.constant 0 : index
    %14 = vector.load %arg1[%c0_19, %c0_20, %c0_21] : memref<1x25x384xf32, #tpu.memory_space<vmem>>, vector<1x25x384xf32>
    %15 = vector.shape_cast %14 : vector<1x25x384xf32> to vector<25x384xf32>
    %cst_22 = arith.constant dense<0.000000e+00> : vector<56x384xf32>
    %16 = tpu.matmul %13, %15, %cst_22 {dimension_numbers = #tpu.dot_dimension_numbers<[1], [0], [0], [1], [0, 0, 1, 1], [], []>} : vector<56x25xf32>, vector<25x384xf32>, vector<56x384xf32> -> vector<56x384xf32>
    %c0_23 = arith.constant 0 : index
    %c0_24 = arith.constant 0 : index
    %17 = vector.load %arg4[%c0_23, %c0_24] : memref<56x1xf32, #tpu.memory_space<vmem>>, vector<56x1xf32>
    %18 = vector.broadcast %17 : vector<56x1xf32> to vector<56x384xf32>
    %19 = arith.addf %16, %18 : vector<56x384xf32>
    %c0_25 = arith.constant 0 : index
    %c0_26 = arith.constant 0 : index
    %20 = vector.load %arg5[%c0_25, %c0_26] : memref<56x1xf32, #tpu.memory_space<vmem>>, vector<56x1xf32>
    %cst_27 = arith.constant 0.000000e+00 : f32
    %21 = vector.broadcast %cst_27 : f32 to vector<56x384xf32>
    %22 = arith.cmpf ogt, %19, %21 : vector<56x384xf32>
    %23 = vector.broadcast %20 : vector<56x1xf32> to vector<56x384xf32>
    %24 = arith.mulf %23, %19 : vector<56x384xf32>
    %25 = arith.select %22, %19, %24 : vector<56x384xi1>, vector<56x384xf32>
    %c0_28 = arith.constant 0 : index
    %c0_29 = arith.constant 0 : index
    %26 = vector.load %arg6[%c0_28, %c0_29] : memref<12x56xf32, #tpu.memory_space<vmem>>, vector<12x56xf32>
    %cst_30 = arith.constant dense<0.000000e+00> : vector<12x384xf32>
    %27 = tpu.matmul %26, %25, %cst_30 {dimension_numbers = #tpu.dot_dimension_numbers<[1], [0], [0], [1], [0, 0, 1, 1], [], []>} : vector<12x56xf32>, vector<56x384xf32>, vector<12x384xf32> -> vector<12x384xf32>
    %c0_31 = arith.constant 0 : index
    %c0_32 = arith.constant 0 : index
    %28 = vector.load %arg7[%c0_31, %c0_32] : memref<12x1xf32, #tpu.memory_space<vmem>>, vector<12x1xf32>
    %29 = vector.broadcast %28 : vector<12x1xf32> to vector<12x384xf32>
    %30 = arith.addf %27, %29 : vector<12x384xf32>
    %c0_33 = arith.constant 0 : index
    %c0_34 = arith.constant 0 : index
    %31 = vector.load %arg8[%c0_33, %c0_34] : memref<12x1xf32, #tpu.memory_space<vmem>>, vector<12x1xf32>
    %cst_35 = arith.constant 0.000000e+00 : f32
    %32 = vector.broadcast %cst_35 : f32 to vector<12x384xf32>
    %33 = arith.cmpf ogt, %30, %32 : vector<12x384xf32>
    %34 = vector.broadcast %31 : vector<12x1xf32> to vector<12x384xf32>
    %35 = arith.mulf %34, %30 : vector<12x384xf32>
    %36 = arith.select %33, %30, %35 : vector<12x384xi1>, vector<12x384xf32>
    %37 = vector.broadcast %12 : vector<1x384xf32> to vector<12x384xf32>
    %38 = arith.mulf %36, %37 : vector<12x384xf32>
    %c0_36 = arith.constant 0 : index
    %c52 = arith.constant 52 : index
    %39 = vector.load %arg19[%c0_36, %c52] : memref<12x504xf32, #tpu.memory_space<vmem>>, vector<12x384xf32>
    tpu.vector_store %arg19[%c0_36, %c52], %38 {strides = array<i32>} : memref<12x504xf32, #tpu.memory_space<vmem>>, vector<12x384xf32>,
    %c0_37 = arith.constant 0 : index
    %c27 = arith.constant 27 : index
    %40 = vector.load %arg19[%c0_37, %c27] : memref<12x504xf32, #tpu.memory_space<vmem>>, vector<12x384xf32>
    %c0_38 = arith.constant 0 : index
    %c28 = arith.constant 28 : index
    %41 = vector.load %arg19[%c0_38, %c28] : memref<12x504xf32, #tpu.memory_space<vmem>>, vector<12x384xf32>
    %c0_39 = arith.constant 0 : index
    %c29 = arith.constant 29 : index
    %42 = vector.load %arg19[%c0_39, %c29] : memref<12x504xf32, #tpu.memory_space<vmem>>, vector<12x384xf32>
    %c0_40 = arith.constant 0 : index
    %c51 = arith.constant 51 : index
    %43 = vector.load %arg19[%c0_40, %c51] : memref<12x504xf32, #tpu.memory_space<vmem>>, vector<12x384xf32>
    %c0_41 = arith.constant 0 : index
    %c52_42 = arith.constant 52 : index
    %44 = vector.load %arg19[%c0_41, %c52_42] : memref<12x504xf32, #tpu.memory_space<vmem>>, vector<12x384xf32>
    %c0_43 = arith.constant 0 : index
    %c53 = arith.constant 53 : index
    %45 = vector.load %arg19[%c0_43, %c53] : memref<12x504xf32, #tpu.memory_space<vmem>>, vector<12x384xf32>
    %c0_44 = arith.constant 0 : index
    %c75 = arith.constant 75 : index
    %46 = vector.load %arg19[%c0_44, %c75] : memref<12x504xf32, #tpu.memory_space<vmem>>, vector<12x384xf32>
    %c0_45 = arith.constant 0 : index
    %c76 = arith.constant 76 : index
    %47 = vector.load %arg19[%c0_45, %c76] : memref<12x504xf32, #tpu.memory_space<vmem>>, vector<12x384xf32>
    %c0_46 = arith.constant 0 : index
    %c77 = arith.constant 77 : index
    %48 = vector.load %arg19[%c0_46, %c77] : memref<12x504xf32, #tpu.memory_space<vmem>>, vector<12x384xf32>
    %49 = tpu.concatenate %40, %41, %42, %43, %44, %45, %46, %47, %48 in 0 : vector<12x384xf32>, vector<12x384xf32>, vector<12x384xf32>, vector<12x384xf32>, vector<12x384xf32>, vector<12x384xf32>, vector<12x384xf32>, vector<12x384xf32>, vector<12x384xf32> -> vector<108x384xf32>
    %c0_47 = arith.constant 0 : index
    %c0_48 = arith.constant 0 : index
    %c0_49 = arith.constant 0 : index
    %50 = vector.load %arg9[%c0_47, %c0_48, %c0_49] : memref<4x12x108xf32, #tpu.memory_space<vmem>>, vector<1x12x108xf32>
    %51 = vector.shape_cast %50 : vector<1x12x108xf32> to vector<12x108xf32>
    %cst_50 = arith.constant dense<0.000000e+00> : vector<12x384xf32>
    %52 = tpu.matmul %51, %49, %cst_50 {dimension_numbers = #tpu.dot_dimension_numbers<[1], [0], [0], [1], [0, 0, 1, 1], [], []>} : vector<12x108xf32>, vector<108x384xf32>, vector<12x384xf32> -> vector<12x384xf32>
    %c0_51 = arith.constant 0 : index
    %c0_52 = arith.constant 0 : index
    %c0_53 = arith.constant 0 : index
    %53 = vector.load %arg10[%c0_51, %c0_52, %c0_53] : memref<4x12x1xf32, #tpu.memory_space<vmem>>, vector<1x12x1xf32>
    %54 = vector.shape_cast %53 : vector<1x12x1xf32> to vector<12x1xf32>
    %55 = vector.broadcast %54 : vector<12x1xf32> to vector<12x384xf32>
    %56 = arith.addf %52, %55 : vector<12x384xf32>
    %c0_54 = arith.constant 0 : index
    %c0_55 = arith.constant 0 : index
    %c0_56 = arith.constant 0 : index
    %57 = vector.load %arg11[%c0_54, %c0_55, %c0_56] : memref<4x12x1xf32, #tpu.memory_space<vmem>>, vector<1x12x1xf32>
    %58 = vector.shape_cast %57 : vector<1x12x1xf32> to vector<12x1xf32>
    %cst_57 = arith.constant 0.000000e+00 : f32
    %59 = vector.broadcast %cst_57 : f32 to vector<12x384xf32>
    %60 = arith.cmpf ogt, %56, %59 : vector<12x384xf32>
    %61 = vector.broadcast %58 : vector<12x1xf32> to vector<12x384xf32>
    %62 = arith.mulf %61, %56 : vector<12x384xf32>
    %63 = arith.select %60, %56, %62 : vector<12x384xi1>, vector<12x384xf32>
    %64 = vector.broadcast %12 : vector<1x384xf32> to vector<12x384xf32>
    %65 = arith.mulf %63, %64 : vector<12x384xf32>
    %c0_58 = arith.constant 0 : index
    %c52_59 = arith.constant 52 : index
    %66 = vector.load %arg20[%c0_58, %c52_59] : memref<12x504xf32, #tpu.memory_space<vmem>>, vector<12x384xf32>
    tpu.vector_store %arg20[%c0_58, %c52_59], %65 {strides = array<i32>} : memref<12x504xf32, #tpu.memory_space<vmem>>, vector<12x384xf32>,
    %c0_60 = arith.constant 0 : index
    %c27_61 = arith.constant 27 : index
    %67 = vector.load %arg20[%c0_60, %c27_61] : memref<12x504xf32, #tpu.memory_space<vmem>>, vector<12x384xf32>
    %c0_62 = arith.constant 0 : index
    %c28_63 = arith.constant 28 : index
    %68 = vector.load %arg20[%c0_62, %c28_63] : memref<12x504xf32, #tpu.memory_space<vmem>>, vector<12x384xf32>
    %c0_64 = arith.constant 0 : index
    %c29_65 = arith.constant 29 : index
    %69 = vector.load %arg20[%c0_64, %c29_65] : memref<12x504xf32, #tpu.memory_space<vmem>>, vector<12x384xf32>
    %c0_66 = arith.constant 0 : index
    %c51_67 = arith.constant 51 : index
    %70 = vector.load %arg20[%c0_66, %c51_67] : memref<12x504xf32, #tpu.memory_space<vmem>>, vector<12x384xf32>
    %c0_68 = arith.constant 0 : index
    %c52_69 = arith.constant 52 : index
    %71 = vector.load %arg20[%c0_68, %c52_69] : memref<12x504xf32, #tpu.memory_space<vmem>>, vector<12x384xf32>
    %c0_70 = arith.constant 0 : index
    %c53_71 = arith.constant 53 : index
    %72 = vector.load %arg20[%c0_70, %c53_71] : memref<12x504xf32, #tpu.memory_space<vmem>>, vector<12x384xf32>
    %c0_72 = arith.constant 0 : index
    %c75_73 = arith.constant 75 : index
    %73 = vector.load %arg20[%c0_72, %c75_73] : memref<12x504xf32, #tpu.memory_space<vmem>>, vector<12x384xf32>
    %c0_74 = arith.constant 0 : index
    %c76_75 = arith.constant 76 : index
    %74 = vector.load %arg20[%c0_74, %c76_75] : memref<12x504xf32, #tpu.memory_space<vmem>>, vector<12x384xf32>
    %c0_76 = arith.constant 0 : index
    %c77_77 = arith.constant 77 : index
    %75 = vector.load %arg20[%c0_76, %c77_77] : memref<12x504xf32, #tpu.memory_space<vmem>>, vector<12x384xf32>
    %76 = tpu.concatenate %67, %68, %69, %70, %71, %72, %73, %74, %75 in 0 : vector<12x384xf32>, vector<12x384xf32>, vector<12x384xf32>, vector<12x384xf32>, vector<12x384xf32>, vector<12x384xf32>, vector<12x384xf32>, vector<12x384xf32>, vector<12x384xf32> -> vector<108x384xf32>
    %c1 = arith.constant 1 : index
    %c0_78 = arith.constant 0 : index
    %c0_79 = arith.constant 0 : index
    %77 = vector.load %arg9[%c1, %c0_78, %c0_79] : memref<4x12x108xf32, #tpu.memory_space<vmem>>, vector<1x12x108xf32>
    %78 = vector.shape_cast %77 : vector<1x12x108xf32> to vector<12x108xf32>
    %cst_80 = arith.constant dense<0.000000e+00> : vector<12x384xf32>
    %79 = tpu.matmul %78, %76, %cst_80 {dimension_numbers = #tpu.dot_dimension_numbers<[1], [0], [0], [1], [0, 0, 1, 1], [], []>} : vector<12x108xf32>, vector<108x384xf32>, vector<12x384xf32> -> vector<12x384xf32>
    %c1_81 = arith.constant 1 : index
    %c0_82 = arith.constant 0 : index
    %c0_83 = arith.constant 0 : index
    %80 = vector.load %arg10[%c1_81, %c0_82, %c0_83] : memref<4x12x1xf32, #tpu.memory_space<vmem>>, vector<1x12x1xf32>
    %81 = vector.shape_cast %80 : vector<1x12x1xf32> to vector<12x1xf32>
    %82 = vector.broadcast %81 : vector<12x1xf32> to vector<12x384xf32>
    %83 = arith.addf %79, %82 : vector<12x384xf32>
    %c1_84 = arith.constant 1 : index
    %c0_85 = arith.constant 0 : index
    %c0_86 = arith.constant 0 : index
    %84 = vector.load %arg11[%c1_84, %c0_85, %c0_86] : memref<4x12x1xf32, #tpu.memory_space<vmem>>, vector<1x12x1xf32>
    %85 = vector.shape_cast %84 : vector<1x12x1xf32> to vector<12x1xf32>
    %cst_87 = arith.constant 0.000000e+00 : f32
    %86 = vector.broadcast %cst_87 : f32 to vector<12x384xf32>
    %87 = arith.cmpf ogt, %83, %86 : vector<12x384xf32>
    %88 = vector.broadcast %85 : vector<12x1xf32> to vector<12x384xf32>
    %89 = arith.mulf %88, %83 : vector<12x384xf32>
    %90 = arith.select %87, %83, %89 : vector<12x384xi1>, vector<12x384xf32>
    %91 = vector.broadcast %12 : vector<1x384xf32> to vector<12x384xf32>
    %92 = arith.mulf %90, %91 : vector<12x384xf32>
    %c0_88 = arith.constant 0 : index
    %c52_89 = arith.constant 52 : index
    %93 = vector.load %arg19[%c0_88, %c52_89] : memref<12x504xf32, #tpu.memory_space<vmem>>, vector<12x384xf32>
    tpu.vector_store %arg19[%c0_88, %c52_89], %92 {strides = array<i32>} : memref<12x504xf32, #tpu.memory_space<vmem>>, vector<12x384xf32>,
    %c0_90 = arith.constant 0 : index
    %c27_91 = arith.constant 27 : index
    %94 = vector.load %arg19[%c0_90, %c27_91] : memref<12x504xf32, #tpu.memory_space<vmem>>, vector<12x384xf32>
    %c0_92 = arith.constant 0 : index
    %c28_93 = arith.constant 28 : index
    %95 = vector.load %arg19[%c0_92, %c28_93] : memref<12x504xf32, #tpu.memory_space<vmem>>, vector<12x384xf32>
    %c0_94 = arith.constant 0 : index
    %c29_95 = arith.constant 29 : index
    %96 = vector.load %arg19[%c0_94, %c29_95] : memref<12x504xf32, #tpu.memory_space<vmem>>, vector<12x384xf32>
    %c0_96 = arith.constant 0 : index
    %c51_97 = arith.constant 51 : index
    %97 = vector.load %arg19[%c0_96, %c51_97] : memref<12x504xf32, #tpu.memory_space<vmem>>, vector<12x384xf32>
    %c0_98 = arith.constant 0 : index
    %c52_99 = arith.constant 52 : index
    %98 = vector.load %arg19[%c0_98, %c52_99] : memref<12x504xf32, #tpu.memory_space<vmem>>, vector<12x384xf32>
    %c0_100 = arith.constant 0 : index
    %c53_101 = arith.constant 53 : index
    %99 = vector.load %arg19[%c0_100, %c53_101] : memref<12x504xf32, #tpu.memory_space<vmem>>, vector<12x384xf32>
    %c0_102 = arith.constant 0 : index
    %c75_103 = arith.constant 75 : index
    %100 = vector.load %arg19[%c0_102, %c75_103] : memref<12x504xf32, #tpu.memory_space<vmem>>, vector<12x384xf32>
    %c0_104 = arith.constant 0 : index
    %c76_105 = arith.constant 76 : index
    %101 = vector.load %arg19[%c0_104, %c76_105] : memref<12x504xf32, #tpu.memory_space<vmem>>, vector<12x384xf32>
    %c0_106 = arith.constant 0 : index
    %c77_107 = arith.constant 77 : index
    %102 = vector.load %arg19[%c0_106, %c77_107] : memref<12x504xf32, #tpu.memory_space<vmem>>, vector<12x384xf32>
    %103 = tpu.concatenate %94, %95, %96, %97, %98, %99, %100, %101, %102 in 0 : vector<12x384xf32>, vector<12x384xf32>, vector<12x384xf32>, vector<12x384xf32>, vector<12x384xf32>, vector<12x384xf32>, vector<12x384xf32>, vector<12x384xf32>, vector<12x384xf32> -> vector<108x384xf32>
    %c2 = arith.constant 2 : index
    %c0_108 = arith.constant 0 : index
    %c0_109 = arith.constant 0 : index
    %104 = vector.load %arg9[%c2, %c0_108, %c0_109] : memref<4x12x108xf32, #tpu.memory_space<vmem>>, vector<1x12x108xf32>
    %105 = vector.shape_cast %104 : vector<1x12x108xf32> to vector<12x108xf32>
    %cst_110 = arith.constant dense<0.000000e+00> : vector<12x384xf32>
    %106 = tpu.matmul %105, %103, %cst_110 {dimension_numbers = #tpu.dot_dimension_numbers<[1], [0], [0], [1], [0, 0, 1, 1], [], []>} : vector<12x108xf32>, vector<108x384xf32>, vector<12x384xf32> -> vector<12x384xf32>
    %c2_111 = arith.constant 2 : index
    %c0_112 = arith.constant 0 : index
    %c0_113 = arith.constant 0 : index
    %107 = vector.load %arg10[%c2_111, %c0_112, %c0_113] : memref<4x12x1xf32, #tpu.memory_space<vmem>>, vector<1x12x1xf32>
    %108 = vector.shape_cast %107 : vector<1x12x1xf32> to vector<12x1xf32>
    %109 = vector.broadcast %108 : vector<12x1xf32> to vector<12x384xf32>
    %110 = arith.addf %106, %109 : vector<12x384xf32>
    %c2_114 = arith.constant 2 : index
    %c0_115 = arith.constant 0 : index
    %c0_116 = arith.constant 0 : index
    %111 = vector.load %arg11[%c2_114, %c0_115, %c0_116] : memref<4x12x1xf32, #tpu.memory_space<vmem>>, vector<1x12x1xf32>
    %112 = vector.shape_cast %111 : vector<1x12x1xf32> to vector<12x1xf32>
    %cst_117 = arith.constant 0.000000e+00 : f32
    %113 = vector.broadcast %cst_117 : f32 to vector<12x384xf32>
    %114 = arith.cmpf ogt, %110, %113 : vector<12x384xf32>
    %115 = vector.broadcast %112 : vector<12x1xf32> to vector<12x384xf32>
    %116 = arith.mulf %115, %110 : vector<12x384xf32>
    %117 = arith.select %114, %110, %116 : vector<12x384xi1>, vector<12x384xf32>
    %118 = vector.broadcast %12 : vector<1x384xf32> to vector<12x384xf32>
    %119 = arith.mulf %117, %118 : vector<12x384xf32>
    %c0_118 = arith.constant 0 : index
    %c52_119 = arith.constant 52 : index
    %120 = vector.load %arg20[%c0_118, %c52_119] : memref<12x504xf32, #tpu.memory_space<vmem>>, vector<12x384xf32>
    tpu.vector_store %arg20[%c0_118, %c52_119], %119 {strides = array<i32>} : memref<12x504xf32, #tpu.memory_space<vmem>>, vector<12x384xf32>,
    %c0_120 = arith.constant 0 : index
    %c27_121 = arith.constant 27 : index
    %121 = vector.load %arg20[%c0_120, %c27_121] : memref<12x504xf32, #tpu.memory_space<vmem>>, vector<12x384xf32>
    %c0_122 = arith.constant 0 : index
    %c28_123 = arith.constant 28 : index
    %122 = vector.load %arg20[%c0_122, %c28_123] : memref<12x504xf32, #tpu.memory_space<vmem>>, vector<12x384xf32>
    %c0_124 = arith.constant 0 : index
    %c29_125 = arith.constant 29 : index
    %123 = vector.load %arg20[%c0_124, %c29_125] : memref<12x504xf32, #tpu.memory_space<vmem>>, vector<12x384xf32>
    %c0_126 = arith.constant 0 : index
    %c51_127 = arith.constant 51 : index
    %124 = vector.load %arg20[%c0_126, %c51_127] : memref<12x504xf32, #tpu.memory_space<vmem>>, vector<12x384xf32>
    %c0_128 = arith.constant 0 : index
    %c52_129 = arith.constant 52 : index
    %125 = vector.load %arg20[%c0_128, %c52_129] : memref<12x504xf32, #tpu.memory_space<vmem>>, vector<12x384xf32>
    %c0_130 = arith.constant 0 : index
    %c53_131 = arith.constant 53 : index
    %126 = vector.load %arg20[%c0_130, %c53_131] : memref<12x504xf32, #tpu.memory_space<vmem>>, vector<12x384xf32>
    %c0_132 = arith.constant 0 : index
    %c75_133 = arith.constant 75 : index
    %127 = vector.load %arg20[%c0_132, %c75_133] : memref<12x504xf32, #tpu.memory_space<vmem>>, vector<12x384xf32>
    %c0_134 = arith.constant 0 : index
    %c76_135 = arith.constant 76 : index
    %128 = vector.load %arg20[%c0_134, %c76_135] : memref<12x504xf32, #tpu.memory_space<vmem>>, vector<12x384xf32>
    %c0_136 = arith.constant 0 : index
    %c77_137 = arith.constant 77 : index
    %129 = vector.load %arg20[%c0_136, %c77_137] : memref<12x504xf32, #tpu.memory_space<vmem>>, vector<12x384xf32>
    %130 = tpu.concatenate %121, %122, %123, %124, %125, %126, %127, %128, %129 in 0 : vector<12x384xf32>, vector<12x384xf32>, vector<12x384xf32>, vector<12x384xf32>, vector<12x384xf32>, vector<12x384xf32>, vector<12x384xf32>, vector<12x384xf32>, vector<12x384xf32> -> vector<108x384xf32>
    %c3 = arith.constant 3 : index
    %c0_138 = arith.constant 0 : index
    %c0_139 = arith.constant 0 : index
    %131 = vector.load %arg9[%c3, %c0_138, %c0_139] : memref<4x12x108xf32, #tpu.memory_space<vmem>>, vector<1x12x108xf32>
    %132 = vector.shape_cast %131 : vector<1x12x108xf32> to vector<12x108xf32>
    %cst_140 = arith.constant dense<0.000000e+00> : vector<12x384xf32>
    %133 = tpu.matmul %132, %130, %cst_140 {dimension_numbers = #tpu.dot_dimension_numbers<[1], [0], [0], [1], [0, 0, 1, 1], [], []>} : vector<12x108xf32>, vector<108x384xf32>, vector<12x384xf32> -> vector<12x384xf32>
    %c3_141 = arith.constant 3 : index
    %c0_142 = arith.constant 0 : index
    %c0_143 = arith.constant 0 : index
    %134 = vector.load %arg10[%c3_141, %c0_142, %c0_143] : memref<4x12x1xf32, #tpu.memory_space<vmem>>, vector<1x12x1xf32>
    %135 = vector.shape_cast %134 : vector<1x12x1xf32> to vector<12x1xf32>
    %136 = vector.broadcast %135 : vector<12x1xf32> to vector<12x384xf32>
    %137 = arith.addf %133, %136 : vector<12x384xf32>
    %c3_144 = arith.constant 3 : index
    %c0_145 = arith.constant 0 : index
    %c0_146 = arith.constant 0 : index
    %138 = vector.load %arg11[%c3_144, %c0_145, %c0_146] : memref<4x12x1xf32, #tpu.memory_space<vmem>>, vector<1x12x1xf32>
    %139 = vector.shape_cast %138 : vector<1x12x1xf32> to vector<12x1xf32>
    %cst_147 = arith.constant 0.000000e+00 : f32
    %140 = vector.broadcast %cst_147 : f32 to vector<12x384xf32>
    %141 = arith.cmpf ogt, %137, %140 : vector<12x384xf32>
    %142 = vector.broadcast %139 : vector<12x1xf32> to vector<12x384xf32>
    %143 = arith.mulf %142, %137 : vector<12x384xf32>
    %144 = arith.select %141, %137, %143 : vector<12x384xi1>, vector<12x384xf32>
    %145 = vector.broadcast %12 : vector<1x384xf32> to vector<12x384xf32>
    %146 = arith.mulf %144, %145 : vector<12x384xf32>
    %c0_148 = arith.constant 0 : index
    %c52_149 = arith.constant 52 : index
    %147 = vector.load %arg19[%c0_148, %c52_149] : memref<12x504xf32, #tpu.memory_space<vmem>>, vector<12x384xf32>
    tpu.vector_store %arg19[%c0_148, %c52_149], %146 {strides = array<i32>} : memref<12x504xf32, #tpu.memory_space<vmem>>, vector<12x384xf32>,
    %c0_150 = arith.constant 0 : index
    %c0_151 = arith.constant 0 : index
    %148 = vector.load %arg12[%c0_150, %c0_151] : memref<56x12xf32, #tpu.memory_space<vmem>>, vector<56x12xf32>
    %c0_152 = arith.constant 0 : index
    %c52_153 = arith.constant 52 : index
    %149 = vector.load %arg19[%c0_152, %c52_153] : memref<12x504xf32, #tpu.memory_space<vmem>>, vector<12x384xf32>
    %cst_154 = arith.constant dense<0.000000e+00> : vector<56x384xf32>
    %150 = tpu.matmul %148, %149, %cst_154 {dimension_numbers = #tpu.dot_dimension_numbers<[1], [0], [0], [1], [0, 0, 1, 1], [], []>} : vector<56x12xf32>, vector<12x384xf32>, vector<56x384xf32> -> vector<56x384xf32>
    %c0_155 = arith.constant 0 : index
    %c0_156 = arith.constant 0 : index
    %151 = vector.load %arg13[%c0_155, %c0_156] : memref<56x1xf32, #tpu.memory_space<vmem>>, vector<56x1xf32>
    %152 = vector.broadcast %151 : vector<56x1xf32> to vector<56x384xf32>
    %153 = arith.addf %150, %152 : vector<56x384xf32>
    %c0_157 = arith.constant 0 : index
    %c0_158 = arith.constant 0 : index
    %154 = vector.load %arg14[%c0_157, %c0_158] : memref<56x1xf32, #tpu.memory_space<vmem>>, vector<56x1xf32>
    %cst_159 = arith.constant 0.000000e+00 : f32
    %155 = vector.broadcast %cst_159 : f32 to vector<56x384xf32>
    %156 = arith.cmpf ogt, %153, %155 : vector<56x384xf32>
    %157 = vector.broadcast %154 : vector<56x1xf32> to vector<56x384xf32>
    %158 = arith.mulf %157, %153 : vector<56x384xf32>
    %159 = arith.select %156, %153, %158 : vector<56x384xi1>, vector<56x384xf32>
    %160 = vector.broadcast %12 : vector<1x384xf32> to vector<56x384xf32>
    %161 = arith.mulf %159, %160 : vector<56x384xf32>
    %c0_160 = arith.constant 0 : index
    %c52_161 = arith.constant 52 : index
    %162 = vector.load %arg18[%c0_160, %c52_161] : memref<56x504xf32, #tpu.memory_space<vmem>>, vector<56x384xf32>
    tpu.vector_store %arg18[%c0_160, %c52_161], %161 {strides = array<i32>} : memref<56x504xf32, #tpu.memory_space<vmem>>, vector<56x384xf32>,
    %c0_162 = arith.constant 0 : index
    %c0_163 = arith.constant 0 : index
    %c0_164 = arith.constant 0 : index
    %163 = vector.load %arg15[%c0_162, %c0_163, %c0_164] : memref<25x4x56xf32, #tpu.memory_space<vmem>>, vector<1x4x56xf32>
    %164 = vector.shape_cast %163 : vector<1x4x56xf32> to vector<4x56xf32>
    %c0_165 = arith.constant 0 : index
    %c2_166 = arith.constant 2 : index
    %165 = vector.load %arg18[%c0_165, %c2_166] : memref<56x504xf32, #tpu.memory_space<vmem>>, vector<56x384xf32>
    %cst_167 = arith.constant dense<0.000000e+00> : vector<4x384xf32>
    %166 = tpu.matmul %164, %165, %cst_167 {dimension_numbers = #tpu.dot_dimension_numbers<[1], [0], [0], [1], [0, 0, 1, 1], [], []>} : vector<4x56xf32>, vector<56x384xf32>, vector<4x384xf32> -> vector<4x384xf32>
    %c1_168 = arith.constant 1 : index
    %c0_169 = arith.constant 0 : index
    %c0_170 = arith.constant 0 : index
    %167 = vector.load %arg15[%c1_168, %c0_169, %c0_170] : memref<25x4x56xf32, #tpu.memory_space<vmem>>, vector<1x4x56xf32>
    %168 = vector.shape_cast %167 : vector<1x4x56xf32> to vector<4x56xf32>
    %c0_171 = arith.constant 0 : index
    %c3_172 = arith.constant 3 : index
    %169 = vector.load %arg18[%c0_171, %c3_172] : memref<56x504xf32, #tpu.memory_space<vmem>>, vector<56x384xf32>
    %cst_173 = arith.constant dense<0.000000e+00> : vector<4x384xf32>
    %170 = tpu.matmul %168, %169, %cst_173 {dimension_numbers = #tpu.dot_dimension_numbers<[1], [0], [0], [1], [0, 0, 1, 1], [], []>} : vector<4x56xf32>, vector<56x384xf32>, vector<4x384xf32> -> vector<4x384xf32>
    %171 = arith.addf %166, %170 : vector<4x384xf32>
    %c2_174 = arith.constant 2 : index
    %c0_175 = arith.constant 0 : index
    %c0_176 = arith.constant 0 : index
    %172 = vector.load %arg15[%c2_174, %c0_175, %c0_176] : memref<25x4x56xf32, #tpu.memory_space<vmem>>, vector<1x4x56xf32>
    %173 = vector.shape_cast %172 : vector<1x4x56xf32> to vector<4x56xf32>
    %c0_177 = arith.constant 0 : index
    %c4 = arith.constant 4 : index
    %174 = vector.load %arg18[%c0_177, %c4] : memref<56x504xf32, #tpu.memory_space<vmem>>, vector<56x384xf32>
    %cst_178 = arith.constant dense<0.000000e+00> : vector<4x384xf32>
    %175 = tpu.matmul %173, %174, %cst_178 {dimension_numbers = #tpu.dot_dimension_numbers<[1], [0], [0], [1], [0, 0, 1, 1], [], []>} : vector<4x56xf32>, vector<56x384xf32>, vector<4x384xf32> -> vector<4x384xf32>
    %176 = arith.addf %171, %175 : vector<4x384xf32>
    %c3_179 = arith.constant 3 : index
    %c0_180 = arith.constant 0 : index
    %c0_181 = arith.constant 0 : index
    %177 = vector.load %arg15[%c3_179, %c0_180, %c0_181] : memref<25x4x56xf32, #tpu.memory_space<vmem>>, vector<1x4x56xf32>
    %178 = vector.shape_cast %177 : vector<1x4x56xf32> to vector<4x56xf32>
    %c0_182 = arith.constant 0 : index
    %c5 = arith.constant 5 : index
    %179 = vector.load %arg18[%c0_182, %c5] : memref<56x504xf32, #tpu.memory_space<vmem>>, vector<56x384xf32>
    %cst_183 = arith.constant dense<0.000000e+00> : vector<4x384xf32>
    %180 = tpu.matmul %178, %179, %cst_183 {dimension_numbers = #tpu.dot_dimension_numbers<[1], [0], [0], [1], [0, 0, 1, 1], [], []>} : vector<4x56xf32>, vector<56x384xf32>, vector<4x384xf32> -> vector<4x384xf32>
    %181 = arith.addf %176, %180 : vector<4x384xf32>
    %c4_184 = arith.constant 4 : index
    %c0_185 = arith.constant 0 : index
    %c0_186 = arith.constant 0 : index
    %182 = vector.load %arg15[%c4_184, %c0_185, %c0_186] : memref<25x4x56xf32, #tpu.memory_space<vmem>>, vector<1x4x56xf32>
    %183 = vector.shape_cast %182 : vector<1x4x56xf32> to vector<4x56xf32>
    %c0_187 = arith.constant 0 : index
    %c6 = arith.constant 6 : index
    %184 = vector.load %arg18[%c0_187, %c6] : memref<56x504xf32, #tpu.memory_space<vmem>>, vector<56x384xf32>
    %cst_188 = arith.constant dense<0.000000e+00> : vector<4x384xf32>
    %185 = tpu.matmul %183, %184, %cst_188 {dimension_numbers = #tpu.dot_dimension_numbers<[1], [0], [0], [1], [0, 0, 1, 1], [], []>} : vector<4x56xf32>, vector<56x384xf32>, vector<4x384xf32> -> vector<4x384xf32>
    %186 = arith.addf %181, %185 : vector<4x384xf32>
    %c5_189 = arith.constant 5 : index
    %c0_190 = arith.constant 0 : index
    %c0_191 = arith.constant 0 : index
    %187 = vector.load %arg15[%c5_189, %c0_190, %c0_191] : memref<25x4x56xf32, #tpu.memory_space<vmem>>, vector<1x4x56xf32>
    %188 = vector.shape_cast %187 : vector<1x4x56xf32> to vector<4x56xf32>
    %c0_192 = arith.constant 0 : index
    %c26 = arith.constant 26 : index
    %189 = vector.load %arg18[%c0_192, %c26] : memref<56x504xf32, #tpu.memory_space<vmem>>, vector<56x384xf32>
    %cst_193 = arith.constant dense<0.000000e+00> : vector<4x384xf32>
    %190 = tpu.matmul %188, %189, %cst_193 {dimension_numbers = #tpu.dot_dimension_numbers<[1], [0], [0], [1], [0, 0, 1, 1], [], []>} : vector<4x56xf32>, vector<56x384xf32>, vector<4x384xf32> -> vector<4x384xf32>
    %191 = arith.addf %186, %190 : vector<4x384xf32>
    %c6_194 = arith.constant 6 : index
    %c0_195 = arith.constant 0 : index
    %c0_196 = arith.constant 0 : index
    %192 = vector.load %arg15[%c6_194, %c0_195, %c0_196] : memref<25x4x56xf32, #tpu.memory_space<vmem>>, vector<1x4x56xf32>
    %193 = vector.shape_cast %192 : vector<1x4x56xf32> to vector<4x56xf32>
    %c0_197 = arith.constant 0 : index
    %c27_198 = arith.constant 27 : index
    %194 = vector.load %arg18[%c0_197, %c27_198] : memref<56x504xf32, #tpu.memory_space<vmem>>, vector<56x384xf32>
    %cst_199 = arith.constant dense<0.000000e+00> : vector<4x384xf32>
    %195 = tpu.matmul %193, %194, %cst_199 {dimension_numbers = #tpu.dot_dimension_numbers<[1], [0], [0], [1], [0, 0, 1, 1], [], []>} : vector<4x56xf32>, vector<56x384xf32>, vector<4x384xf32> -> vector<4x384xf32>
    %196 = arith.addf %191, %195 : vector<4x384xf32>
    %c7 = arith.constant 7 : index
    %c0_200 = arith.constant 0 : index
    %c0_201 = arith.constant 0 : index
    %197 = vector.load %arg15[%c7, %c0_200, %c0_201] : memref<25x4x56xf32, #tpu.memory_space<vmem>>, vector<1x4x56xf32>
    %198 = vector.shape_cast %197 : vector<1x4x56xf32> to vector<4x56xf32>
    %c0_202 = arith.constant 0 : index
    %c28_203 = arith.constant 28 : index
    %199 = vector.load %arg18[%c0_202, %c28_203] : memref<56x504xf32, #tpu.memory_space<vmem>>, vector<56x384xf32>
    %cst_204 = arith.constant dense<0.000000e+00> : vector<4x384xf32>
    %200 = tpu.matmul %198, %199, %cst_204 {dimension_numbers = #tpu.dot_dimension_numbers<[1], [0], [0], [1], [0, 0, 1, 1], [], []>} : vector<4x56xf32>, vector<56x384xf32>, vector<4x384xf32> -> vector<4x384xf32>
    %201 = arith.addf %196, %200 : vector<4x384xf32>
    %c8 = arith.constant 8 : index
    %c0_205 = arith.constant 0 : index
    %c0_206 = arith.constant 0 : index
    %202 = vector.load %arg15[%c8, %c0_205, %c0_206] : memref<25x4x56xf32, #tpu.memory_space<vmem>>, vector<1x4x56xf32>
    %203 = vector.shape_cast %202 : vector<1x4x56xf32> to vector<4x56xf32>
    %c0_207 = arith.constant 0 : index
    %c29_208 = arith.constant 29 : index
    %204 = vector.load %arg18[%c0_207, %c29_208] : memref<56x504xf32, #tpu.memory_space<vmem>>, vector<56x384xf32>
    %cst_209 = arith.constant dense<0.000000e+00> : vector<4x384xf32>
    %205 = tpu.matmul %203, %204, %cst_209 {dimension_numbers = #tpu.dot_dimension_numbers<[1], [0], [0], [1], [0, 0, 1, 1], [], []>} : vector<4x56xf32>, vector<56x384xf32>, vector<4x384xf32> -> vector<4x384xf32>
    %206 = arith.addf %201, %205 : vector<4x384xf32>
    %c9 = arith.constant 9 : index
    %c0_210 = arith.constant 0 : index
    %c0_211 = arith.constant 0 : index
    %207 = vector.load %arg15[%c9, %c0_210, %c0_211] : memref<25x4x56xf32, #tpu.memory_space<vmem>>, vector<1x4x56xf32>
    %208 = vector.shape_cast %207 : vector<1x4x56xf32> to vector<4x56xf32>
    %c0_212 = arith.constant 0 : index
    %c30 = arith.constant 30 : index
    %209 = vector.load %arg18[%c0_212, %c30] : memref<56x504xf32, #tpu.memory_space<vmem>>, vector<56x384xf32>
    %cst_213 = arith.constant dense<0.000000e+00> : vector<4x384xf32>
    %210 = tpu.matmul %208, %209, %cst_213 {dimension_numbers = #tpu.dot_dimension_numbers<[1], [0], [0], [1], [0, 0, 1, 1], [], []>} : vector<4x56xf32>, vector<56x384xf32>, vector<4x384xf32> -> vector<4x384xf32>
    %211 = arith.addf %206, %210 : vector<4x384xf32>
    %c10 = arith.constant 10 : index
    %c0_214 = arith.constant 0 : index
    %c0_215 = arith.constant 0 : index
    %212 = vector.load %arg15[%c10, %c0_214, %c0_215] : memref<25x4x56xf32, #tpu.memory_space<vmem>>, vector<1x4x56xf32>
    %213 = vector.shape_cast %212 : vector<1x4x56xf32> to vector<4x56xf32>
    %c0_216 = arith.constant 0 : index
    %c50 = arith.constant 50 : index
    %214 = vector.load %arg18[%c0_216, %c50] : memref<56x504xf32, #tpu.memory_space<vmem>>, vector<56x384xf32>
    %cst_217 = arith.constant dense<0.000000e+00> : vector<4x384xf32>
    %215 = tpu.matmul %213, %214, %cst_217 {dimension_numbers = #tpu.dot_dimension_numbers<[1], [0], [0], [1], [0, 0, 1, 1], [], []>} : vector<4x56xf32>, vector<56x384xf32>, vector<4x384xf32> -> vector<4x384xf32>
    %216 = arith.addf %211, %215 : vector<4x384xf32>
    %c11 = arith.constant 11 : index
    %c0_218 = arith.constant 0 : index
    %c0_219 = arith.constant 0 : index
    %217 = vector.load %arg15[%c11, %c0_218, %c0_219] : memref<25x4x56xf32, #tpu.memory_space<vmem>>, vector<1x4x56xf32>
    %218 = vector.shape_cast %217 : vector<1x4x56xf32> to vector<4x56xf32>
    %c0_220 = arith.constant 0 : index
    %c51_221 = arith.constant 51 : index
    %219 = vector.load %arg18[%c0_220, %c51_221] : memref<56x504xf32, #tpu.memory_space<vmem>>, vector<56x384xf32>
    %cst_222 = arith.constant dense<0.000000e+00> : vector<4x384xf32>
    %220 = tpu.matmul %218, %219, %cst_222 {dimension_numbers = #tpu.dot_dimension_numbers<[1], [0], [0], [1], [0, 0, 1, 1], [], []>} : vector<4x56xf32>, vector<56x384xf32>, vector<4x384xf32> -> vector<4x384xf32>
    %221 = arith.addf %216, %220 : vector<4x384xf32>
    %c12 = arith.constant 12 : index
    %c0_223 = arith.constant 0 : index
    %c0_224 = arith.constant 0 : index
    %222 = vector.load %arg15[%c12, %c0_223, %c0_224] : memref<25x4x56xf32, #tpu.memory_space<vmem>>, vector<1x4x56xf32>
    %223 = vector.shape_cast %222 : vector<1x4x56xf32> to vector<4x56xf32>
    %c0_225 = arith.constant 0 : index
    %c52_226 = arith.constant 52 : index
    %224 = vector.load %arg18[%c0_225, %c52_226] : memref<56x504xf32, #tpu.memory_space<vmem>>, vector<56x384xf32>
    %cst_227 = arith.constant dense<0.000000e+00> : vector<4x384xf32>
    %225 = tpu.matmul %223, %224, %cst_227 {dimension_numbers = #tpu.dot_dimension_numbers<[1], [0], [0], [1], [0, 0, 1, 1], [], []>} : vector<4x56xf32>, vector<56x384xf32>, vector<4x384xf32> -> vector<4x384xf32>
    %226 = arith.addf %221, %225 : vector<4x384xf32>
    %c13 = arith.constant 13 : index
    %c0_228 = arith.constant 0 : index
    %c0_229 = arith.constant 0 : index
    %227 = vector.load %arg15[%c13, %c0_228, %c0_229] : memref<25x4x56xf32, #tpu.memory_space<vmem>>, vector<1x4x56xf32>
    %228 = vector.shape_cast %227 : vector<1x4x56xf32> to vector<4x56xf32>
    %c0_230 = arith.constant 0 : index
    %c53_231 = arith.constant 53 : index
    %229 = vector.load %arg18[%c0_230, %c53_231] : memref<56x504xf32, #tpu.memory_space<vmem>>, vector<56x384xf32>
    %cst_232 = arith.constant dense<0.000000e+00> : vector<4x384xf32>
    %230 = tpu.matmul %228, %229, %cst_232 {dimension_numbers = #tpu.dot_dimension_numbers<[1], [0], [0], [1], [0, 0, 1, 1], [], []>} : vector<4x56xf32>, vector<56x384xf32>, vector<4x384xf32> -> vector<4x384xf32>
    %231 = arith.addf %226, %230 : vector<4x384xf32>
    %c14 = arith.constant 14 : index
    %c0_233 = arith.constant 0 : index
    %c0_234 = arith.constant 0 : index
    %232 = vector.load %arg15[%c14, %c0_233, %c0_234] : memref<25x4x56xf32, #tpu.memory_space<vmem>>, vector<1x4x56xf32>
    %233 = vector.shape_cast %232 : vector<1x4x56xf32> to vector<4x56xf32>
    %c0_235 = arith.constant 0 : index
    %c54 = arith.constant 54 : index
    %234 = vector.load %arg18[%c0_235, %c54] : memref<56x504xf32, #tpu.memory_space<vmem>>, vector<56x384xf32>
    %cst_236 = arith.constant dense<0.000000e+00> : vector<4x384xf32>
    %235 = tpu.matmul %233, %234, %cst_236 {dimension_numbers = #tpu.dot_dimension_numbers<[1], [0], [0], [1], [0, 0, 1, 1], [], []>} : vector<4x56xf32>, vector<56x384xf32>, vector<4x384xf32> -> vector<4x384xf32>
    %236 = arith.addf %231, %235 : vector<4x384xf32>
    %c15 = arith.constant 15 : index
    %c0_237 = arith.constant 0 : index
    %c0_238 = arith.constant 0 : index
    %237 = vector.load %arg15[%c15, %c0_237, %c0_238] : memref<25x4x56xf32, #tpu.memory_space<vmem>>, vector<1x4x56xf32>
    %238 = vector.shape_cast %237 : vector<1x4x56xf32> to vector<4x56xf32>
    %c0_239 = arith.constant 0 : index
    %c74 = arith.constant 74 : index
    %239 = vector.load %arg18[%c0_239, %c74] : memref<56x504xf32, #tpu.memory_space<vmem>>, vector<56x384xf32>
    %cst_240 = arith.constant dense<0.000000e+00> : vector<4x384xf32>
    %240 = tpu.matmul %238, %239, %cst_240 {dimension_numbers = #tpu.dot_dimension_numbers<[1], [0], [0], [1], [0, 0, 1, 1], [], []>} : vector<4x56xf32>, vector<56x384xf32>, vector<4x384xf32> -> vector<4x384xf32>
    %241 = arith.addf %236, %240 : vector<4x384xf32>
    %c16 = arith.constant 16 : index
    %c0_241 = arith.constant 0 : index
    %c0_242 = arith.constant 0 : index
    %242 = vector.load %arg15[%c16, %c0_241, %c0_242] : memref<25x4x56xf32, #tpu.memory_space<vmem>>, vector<1x4x56xf32>
    %243 = vector.shape_cast %242 : vector<1x4x56xf32> to vector<4x56xf32>
    %c0_243 = arith.constant 0 : index
    %c75_244 = arith.constant 75 : index
    %244 = vector.load %arg18[%c0_243, %c75_244] : memref<56x504xf32, #tpu.memory_space<vmem>>, vector<56x384xf32>
    %cst_245 = arith.constant dense<0.000000e+00> : vector<4x384xf32>
    %245 = tpu.matmul %243, %244, %cst_245 {dimension_numbers = #tpu.dot_dimension_numbers<[1], [0], [0], [1], [0, 0, 1, 1], [], []>} : vector<4x56xf32>, vector<56x384xf32>, vector<4x384xf32> -> vector<4x384xf32>
    %246 = arith.addf %241, %245 : vector<4x384xf32>
    %c17 = arith.constant 17 : index
    %c0_246 = arith.constant 0 : index
    %c0_247 = arith.constant 0 : index
    %247 = vector.load %arg15[%c17, %c0_246, %c0_247] : memref<25x4x56xf32, #tpu.memory_space<vmem>>, vector<1x4x56xf32>
    %248 = vector.shape_cast %247 : vector<1x4x56xf32> to vector<4x56xf32>
    %c0_248 = arith.constant 0 : index
    %c76_249 = arith.constant 76 : index
    %249 = vector.load %arg18[%c0_248, %c76_249] : memref<56x504xf32, #tpu.memory_space<vmem>>, vector<56x384xf32>
    %cst_250 = arith.constant dense<0.000000e+00> : vector<4x384xf32>
    %250 = tpu.matmul %248, %249, %cst_250 {dimension_numbers = #tpu.dot_dimension_numbers<[1], [0], [0], [1], [0, 0, 1, 1], [], []>} : vector<4x56xf32>, vector<56x384xf32>, vector<4x384xf32> -> vector<4x384xf32>
    %251 = arith.addf %246, %250 : vector<4x384xf32>
    %c18 = arith.constant 18 : index
    %c0_251 = arith.constant 0 : index
    %c0_252 = arith.constant 0 : index
    %252 = vector.load %arg15[%c18, %c0_251, %c0_252] : memref<25x4x56xf32, #tpu.memory_space<vmem>>, vector<1x4x56xf32>
    %253 = vector.shape_cast %252 : vector<1x4x56xf32> to vector<4x56xf32>
    %c0_253 = arith.constant 0 : index
    %c77_254 = arith.constant 77 : index
    %254 = vector.load %arg18[%c0_253, %c77_254] : memref<56x504xf32, #tpu.memory_space<vmem>>, vector<56x384xf32>
    %cst_255 = arith.constant dense<0.000000e+00> : vector<4x384xf32>
    %255 = tpu.matmul %253, %254, %cst_255 {dimension_numbers = #tpu.dot_dimension_numbers<[1], [0], [0], [1], [0, 0, 1, 1], [], []>} : vector<4x56xf32>, vector<56x384xf32>, vector<4x384xf32> -> vector<4x384xf32>
    %256 = arith.addf %251, %255 : vector<4x384xf32>
    %c19 = arith.constant 19 : index
    %c0_256 = arith.constant 0 : index
    %c0_257 = arith.constant 0 : index
    %257 = vector.load %arg15[%c19, %c0_256, %c0_257] : memref<25x4x56xf32, #tpu.memory_space<vmem>>, vector<1x4x56xf32>
    %258 = vector.shape_cast %257 : vector<1x4x56xf32> to vector<4x56xf32>
    %c0_258 = arith.constant 0 : index
    %c78 = arith.constant 78 : index
    %259 = vector.load %arg18[%c0_258, %c78] : memref<56x504xf32, #tpu.memory_space<vmem>>, vector<56x384xf32>
    %cst_259 = arith.constant dense<0.000000e+00> : vector<4x384xf32>
    %260 = tpu.matmul %258, %259, %cst_259 {dimension_numbers = #tpu.dot_dimension_numbers<[1], [0], [0], [1], [0, 0, 1, 1], [], []>} : vector<4x56xf32>, vector<56x384xf32>, vector<4x384xf32> -> vector<4x384xf32>
    %261 = arith.addf %256, %260 : vector<4x384xf32>
    %c20 = arith.constant 20 : index
    %c0_260 = arith.constant 0 : index
    %c0_261 = arith.constant 0 : index
    %262 = vector.load %arg15[%c20, %c0_260, %c0_261] : memref<25x4x56xf32, #tpu.memory_space<vmem>>, vector<1x4x56xf32>
    %263 = vector.shape_cast %262 : vector<1x4x56xf32> to vector<4x56xf32>
    %c0_262 = arith.constant 0 : index
    %c98 = arith.constant 98 : index
    %264 = vector.load %arg18[%c0_262, %c98] : memref<56x504xf32, #tpu.memory_space<vmem>>, vector<56x384xf32>
    %cst_263 = arith.constant dense<0.000000e+00> : vector<4x384xf32>
    %265 = tpu.matmul %263, %264, %cst_263 {dimension_numbers = #tpu.dot_dimension_numbers<[1], [0], [0], [1], [0, 0, 1, 1], [], []>} : vector<4x56xf32>, vector<56x384xf32>, vector<4x384xf32> -> vector<4x384xf32>
    %266 = arith.addf %261, %265 : vector<4x384xf32>
    %c21 = arith.constant 21 : index
    %c0_264 = arith.constant 0 : index
    %c0_265 = arith.constant 0 : index
    %267 = vector.load %arg15[%c21, %c0_264, %c0_265] : memref<25x4x56xf32, #tpu.memory_space<vmem>>, vector<1x4x56xf32>
    %268 = vector.shape_cast %267 : vector<1x4x56xf32> to vector<4x56xf32>
    %c0_266 = arith.constant 0 : index
    %c99 = arith.constant 99 : index
    %269 = vector.load %arg18[%c0_266, %c99] : memref<56x504xf32, #tpu.memory_space<vmem>>, vector<56x384xf32>
    %cst_267 = arith.constant dense<0.000000e+00> : vector<4x384xf32>
    %270 = tpu.matmul %268, %269, %cst_267 {dimension_numbers = #tpu.dot_dimension_numbers<[1], [0], [0], [1], [0, 0, 1, 1], [], []>} : vector<4x56xf32>, vector<56x384xf32>, vector<4x384xf32> -> vector<4x384xf32>
    %271 = arith.addf %266, %270 : vector<4x384xf32>
    %c22 = arith.constant 22 : index
    %c0_268 = arith.constant 0 : index
    %c0_269 = arith.constant 0 : index
    %272 = vector.load %arg15[%c22, %c0_268, %c0_269] : memref<25x4x56xf32, #tpu.memory_space<vmem>>, vector<1x4x56xf32>
    %273 = vector.shape_cast %272 : vector<1x4x56xf32> to vector<4x56xf32>
    %c0_270 = arith.constant 0 : index
    %c100 = arith.constant 100 : index
    %274 = vector.load %arg18[%c0_270, %c100] : memref<56x504xf32, #tpu.memory_space<vmem>>, vector<56x384xf32>
    %cst_271 = arith.constant dense<0.000000e+00> : vector<4x384xf32>
    %275 = tpu.matmul %273, %274, %cst_271 {dimension_numbers = #tpu.dot_dimension_numbers<[1], [0], [0], [1], [0, 0, 1, 1], [], []>} : vector<4x56xf32>, vector<56x384xf32>, vector<4x384xf32> -> vector<4x384xf32>
    %276 = arith.addf %271, %275 : vector<4x384xf32>
    %c23 = arith.constant 23 : index
    %c0_272 = arith.constant 0 : index
    %c0_273 = arith.constant 0 : index
    %277 = vector.load %arg15[%c23, %c0_272, %c0_273] : memref<25x4x56xf32, #tpu.memory_space<vmem>>, vector<1x4x56xf32>
    %278 = vector.shape_cast %277 : vector<1x4x56xf32> to vector<4x56xf32>
    %c0_274 = arith.constant 0 : index
    %c101 = arith.constant 101 : index
    %279 = vector.load %arg18[%c0_274, %c101] : memref<56x504xf32, #tpu.memory_space<vmem>>, vector<56x384xf32>
    %cst_275 = arith.constant dense<0.000000e+00> : vector<4x384xf32>
    %280 = tpu.matmul %278, %279, %cst_275 {dimension_numbers = #tpu.dot_dimension_numbers<[1], [0], [0], [1], [0, 0, 1, 1], [], []>} : vector<4x56xf32>, vector<56x384xf32>, vector<4x384xf32> -> vector<4x384xf32>
    %281 = arith.addf %276, %280 : vector<4x384xf32>
    %c24 = arith.constant 24 : index
    %c0_276 = arith.constant 0 : index
    %c0_277 = arith.constant 0 : index
    %282 = vector.load %arg15[%c24, %c0_276, %c0_277] : memref<25x4x56xf32, #tpu.memory_space<vmem>>, vector<1x4x56xf32>
    %283 = vector.shape_cast %282 : vector<1x4x56xf32> to vector<4x56xf32>
    %c0_278 = arith.constant 0 : index
    %c102 = arith.constant 102 : index
    %284 = vector.load %arg18[%c0_278, %c102] : memref<56x504xf32, #tpu.memory_space<vmem>>, vector<56x384xf32>
    %cst_279 = arith.constant dense<0.000000e+00> : vector<4x384xf32>
    %285 = tpu.matmul %283, %284, %cst_279 {dimension_numbers = #tpu.dot_dimension_numbers<[1], [0], [0], [1], [0, 0, 1, 1], [], []>} : vector<4x56xf32>, vector<56x384xf32>, vector<4x384xf32> -> vector<4x384xf32>
    %286 = arith.addf %281, %285 : vector<4x384xf32>
    %c0_280 = arith.constant 0 : index
    %c0_281 = arith.constant 0 : index
    %287 = vector.load %arg16[%c0_280, %c0_281] : memref<4x1xf32, #tpu.memory_space<vmem>>, vector<4x1xf32>
    %288 = vector.broadcast %287 : vector<4x1xf32> to vector<4x384xf32>
    %289 = arith.addf %286, %288 : vector<4x384xf32>
    %c0_282 = arith.constant 0 : index
    %c0_283 = arith.constant 0 : index
    %c0_284 = arith.constant 0 : index
    %290 = vector.load %arg17[%c0_282, %c0_283, %c0_284] : memref<1x4x384xf32, #tpu.memory_space<vmem>>, vector<1x4x384xf32>
    %291 = vector.shape_cast %290 : vector<1x4x384xf32> to vector<4x384xf32>
    %292 = vector.shape_cast %289 : vector<4x384xf32> to vector<1x4x384xf32>
    tpu.vector_store %arg17[%c0_282, %c0_283, %c0_284], %292 {strides = array<i32>} : memref<1x4x384xf32, #tpu.memory_space<vmem>>, vector<1x4x384xf32>,
    return
  }
  func.func @transform_0(%arg0: i32) -> (i32, i32, i32) {
    %c0_i32 = arith.constant 0 : i32
    %c0_i32_0 = arith.constant 0 : i32
    %c0_i32_1 = arith.constant 0 : i32
    return %arg0, %c0_i32, %c0_i32_0 : i32, i32, i32
  }
  func.func @transform_1(%arg0: i32) -> (i32, i32) {
    %c0_i32 = arith.constant 0 : i32
    %c0_i32_0 = arith.constant 0 : i32
    %c0_i32_1 = arith.constant 0 : i32
    return %c0_i32, %c0_i32_0 : i32, i32
  }
  func.func @transform_2(%arg0: i32) -> (i32, i32) {
    %c0_i32 = arith.constant 0 : i32
    %c0_i32_0 = arith.constant 0 : i32
    %c0_i32_1 = arith.constant 0 : i32
    return %c0_i32, %c0_i32_0 : i32, i32
  }
  func.func @transform_3(%arg0: i32) -> (i32, i32) {
    %c0_i32 = arith.constant 0 : i32
    %c0_i32_0 = arith.constant 0 : i32
    %c0_i32_1 = arith.constant 0 : i32
    return %c0_i32, %c0_i32_0 : i32, i32
  }
  func.func @transform_4(%arg0: i32) -> (i32, i32) {
    %c0_i32 = arith.constant 0 : i32
    %c0_i32_0 = arith.constant 0 : i32
    %c0_i32_1 = arith.constant 0 : i32
    return %c0_i32, %c0_i32_0 : i32, i32
  }
  func.func @transform_5(%arg0: i32) -> (i32, i32) {
    %c0_i32 = arith.constant 0 : i32
    %c0_i32_0 = arith.constant 0 : i32
    %c0_i32_1 = arith.constant 0 : i32
    return %c0_i32, %c0_i32_0 : i32, i32
  }
  func.func @transform_6(%arg0: i32) -> (i32, i32) {
    %c0_i32 = arith.constant 0 : i32
    %c0_i32_0 = arith.constant 0 : i32
    %c0_i32_1 = arith.constant 0 : i32
    return %c0_i32, %c0_i32_0 : i32, i32
  }
  func.func @transform_7(%arg0: i32) -> (i32, i32) {
    %c0_i32 = arith.constant 0 : i32
    %c0_i32_0 = arith.constant 0 : i32
    %c0_i32_1 = arith.constant 0 : i32
    return %c0_i32, %c0_i32_0 : i32, i32
  }
  func.func @transform_8(%arg0: i32) -> (i32, i32, i32) {
    %c0_i32 = arith.constant 0 : i32
    %c0_i32_0 = arith.constant 0 : i32
    %c0_i32_1 = arith.constant 0 : i32
    %c0_i32_2 = arith.constant 0 : i32
    return %c0_i32, %c0_i32_0, %c0_i32_1 : i32, i32, i32
  }
  func.func @transform_9(%arg0: i32) -> (i32, i32, i32) {
    %c0_i32 = arith.constant 0 : i32
    %c0_i32_0 = arith.constant 0 : i32
    %c0_i32_1 = arith.constant 0 : i32
    %c0_i32_2 = arith.constant 0 : i32
    return %c0_i32, %c0_i32_0, %c0_i32_1 : i32, i32, i32
  }
  func.func @transform_10(%arg0: i32) -> (i32, i32, i32) {
    %c0_i32 = arith.constant 0 : i32
    %c0_i32_0 = arith.constant 0 : i32
    %c0_i32_1 = arith.constant 0 : i32
    %c0_i32_2 = arith.constant 0 : i32
    return %c0_i32, %c0_i32_0, %c0_i32_1 : i32, i32, i32
  }
  func.func @transform_11(%arg0: i32) -> (i32, i32) {
    %c0_i32 = arith.constant 0 : i32
    %c0_i32_0 = arith.constant 0 : i32
    %c0_i32_1 = arith.constant 0 : i32
    return %c0_i32, %c0_i32_0 : i32, i32
  }
  func.func @transform_12(%arg0: i32) -> (i32, i32) {
    %c0_i32 = arith.constant 0 : i32
    %c0_i32_0 = arith.constant 0 : i32
    %c0_i32_1 = arith.constant 0 : i32
    return %c0_i32, %c0_i32_0 : i32, i32
  }
  func.func @transform_13(%arg0: i32) -> (i32, i32) {
    %c0_i32 = arith.constant 0 : i32
    %c0_i32_0 = arith.constant 0 : i32
    %c0_i32_1 = arith.constant 0 : i32
    return %c0_i32, %c0_i32_0 : i32, i32
  }
  func.func @transform_14(%arg0: i32) -> (i32, i32, i32) {
    %c0_i32 = arith.constant 0 : i32
    %c0_i32_0 = arith.constant 0 : i32
    %c0_i32_1 = arith.constant 0 : i32
    %c0_i32_2 = arith.constant 0 : i32
    return %c0_i32, %c0_i32_0, %c0_i32_1 : i32, i32, i32
  }
  func.func @transform_15(%arg0: i32) -> (i32, i32) {
    %c0_i32 = arith.constant 0 : i32
    %c0_i32_0 = arith.constant 0 : i32
    %c0_i32_1 = arith.constant 0 : i32
    return %c0_i32, %c0_i32_0 : i32, i32
  }
  func.func @transform_16(%arg0: i32) -> (i32, i32, i32) {
    %c0_i32 = arith.constant 0 : i32
    %c0_i32_0 = arith.constant 0 : i32
    %c0_i32_1 = arith.constant 0 : i32
    return %arg0, %c0_i32, %c0_i32_0 : i32, i32, i32
  }
}

</mosaic_0001>

<llo_original>
// kernel: fsrcnn_forward.1
$region0: #{fsrcnn_forward.1}
  #allocation0 [shape = 'u32[]', space=smem, size = 0x4, offset = 0x4, fixed_abs, tag = 'smem constant byte address 0x4 - core index']
  #allocation1 [shape = 'u32[144,128]{1,0:T(1,128)}', space=vmem, size = 0x12000, scoped, tag = 'internal scratch']
  #allocation2 [shape = 'f32[56,504]{1,0:T(8,128)}', space=vmem, size = 0x1c000, scoped, tag = 'scratch operand']
  #allocation3 [shape = 'f32[12,504]{1,0:T(8,128)}', space=vmem, size = 0x8000, scoped, tag = 'scratch operand']
  #allocation4 [shape = 'f32[12,504]{1,0:T(8,128)}', space=vmem, size = 0x8000, scoped, tag = 'scratch operand']
  %s0 = inlined_call_operand.vmem [shape: f32[2,25,384], index: 0, kind: input, shape index: {}]
  %s1 = inlined_call_operand.vmem [shape: f32[1,384], index: 1, kind: input, shape index: {}]
  %s2 = inlined_call_operand.vmem [shape: f32[56,25], index: 2, kind: input, shape index: {}]
  %s3 = inlined_call_operand.vmem [shape: f32[56,1], index: 3, kind: input, shape index: {}]
  %s4 = inlined_call_operand.vmem [shape: f32[56,1], index: 4, kind: input, shape index: {}]
  %s5 = inlined_call_operand.vmem [shape: f32[12,56], index: 5, kind: input, shape index: {}]
  %s6 = inlined_call_operand.vmem [shape: f32[12,1], index: 6, kind: input, shape index: {}]
  %s7 = inlined_call_operand.vmem [shape: f32[12,1], index: 7, kind: input, shape index: {}]
  %s8 = inlined_call_operand.vmem [shape: f32[4,12,108], index: 8, kind: input, shape index: {}]
  %s9 = inlined_call_operand.vmem [shape: f32[4,12,1], index: 9, kind: input, shape index: {}]
  %s10 = inlined_call_operand.vmem [shape: f32[4,12,1], index: 10, kind: input, shape index: {}]
  %s11 = inlined_call_operand.vmem [shape: f32[56,12], index: 11, kind: input, shape index: {}]
  %s12 = inlined_call_operand.vmem [shape: f32[56,1], index: 12, kind: input, shape index: {}]
  %s13 = inlined_call_operand.vmem [shape: f32[56,1], index: 13, kind: input, shape index: {}]
  %s14 = inlined_call_operand.vmem [shape: f32[25,4,56], index: 14, kind: input, shape index: {}]
  %s15 = inlined_call_operand.vmem [shape: f32[4,1], index: 15, kind: input, shape index: {}]
  %s16 = inlined_call_operand.vmem [shape: f32[2,4,384], index: 16, kind: output, shape index: {}]
  %s17 = sld [smem:[#allocation0]]
  $region97: #{fsrcnn_forward.1} parent=0
    _
  %s19 = ssub.s32 1, %s17
  %s20 = scalar_select 0, %s19, %s17
  loop: start=0, step=1, limit=4
  $region2: #{fsrcnn_forward.1} parent=0 // loop_pre_header
    _
  $region3: #{fsrcnn_forward.1} parent=0 // loop_header
    %s22 = sphi 0, %s26
    %p23 = scmp.ge.s32.totalorder %s22, 4
    %s32 = sphi 0, %s34
    %s35 = sphi 0, %s32
    %s36 = sphi 0, %s35
    %s52 = sphi 0, %s36
    %s56 = sphi 0, %s56
    %s58 = sphi 0, %s56
    %s59 = sphi 0, %s58
    %s73 = sphi 0, %s59
    %s77 = sphi 0, %s77
    %s79 = sphi 0, %s77
    %s80 = sphi 0, %s79
    %s94 = sphi 0, %s80
    %s98 = sphi 0, %s98
    %s100 = sphi 0, %s98
    %s101 = sphi 0, %s100
    %s115 = sphi 0, %s101
    %s119 = sphi 0, %s119
    %s121 = sphi 0, %s119
    %s122 = sphi 0, %s121
    %s136 = sphi 0, %s122
    %s140 = sphi 0, %s140
    %s142 = sphi 0, %s140
    %s143 = sphi 0, %s142
    %s157 = sphi 0, %s143
    %s161 = sphi 0, %s161
    %s163 = sphi 0, %s161
    %s164 = sphi 0, %s163
    %s178 = sphi 0, %s164
    %s182 = sphi 0, %s182
    %s184 = sphi 0, %s182
    %s185 = sphi 0, %s184
    %s199 = sphi 0, %s185
    %s203 = sphi 0, %s203
    %s205 = sphi 0, %s203
    %s206 = sphi 0, %s205
    %s220 = sphi 0, %s206
    %s224 = sphi 0, %s224
    %s226 = sphi 0, %s224
    %s227 = sphi 0, %s226
    %s241 = sphi 0, %s227
    %s245 = sphi 0, %s245
    %s247 = sphi 0, %s245
    %s248 = sphi 0, %s247
    %s262 = sphi 0, %s248
    %s266 = sphi 0, %s266
    %s268 = sphi 0, %s266
    %s269 = sphi 0, %s268
    %s283 = sphi 0, %s269
    %s287 = sphi 0, %s287
    %s289 = sphi 0, %s287
    %s290 = sphi 0, %s289
    %s304 = sphi 0, %s290
    %s308 = sphi 0, %s308
    %s310 = sphi 0, %s308
    %s311 = sphi 0, %s310
    %s325 = sphi 0, %s311
    %s329 = sphi 0, %s329
    %s331 = sphi 0, %s329
    %s332 = sphi 0, %s331
    %s346 = sphi 0, %s332
    %s350 = sphi 0, %s350
    %s352 = sphi 0, %s350
    %s353 = sphi 0, %s352
    %s367 = sphi 0, %s353
    %s373 = sphi 0, %s375
    %s376 = sphi 0, %s373
    %s377 = sphi 0, %s376
    %s393 = sphi 0, %s377
  $region4: #{fsrcnn_forward.1} parent=0 // loop_header_branch
    %25 = sbr.rel (%p23) target = $region8
  $region5: #{fsrcnn_forward.1} parent=0 // loop_body
    %s27 = ssub.s32 %s22, 1
    %s28 = ssub.s32 %s22, 2
    %s29 = sadd.s32 %s22, 1
    %s30 = ssub.s32 %s22, %s29
    %p31 = scmp.eq.s32.totalorder %s30, 0
    %s33 = sadd.s32 %s32, 1
    %s34 = scalar_select %p31, %s32, %s33
    %p37 = pneg %p31
    %p38 = scmp.eq.s32.totalorder %s22, 1
    %p39 = por %p37, %p38
    %p40 = scmp.ne.s32.totalorder %s32, %s35
    %p41 = scmp.eq.s32.totalorder %s22, 0
    %p42 = por %p40, %p41
    %p43 = scmp.ne.s32.totalorder %s32, %s35
    %p44 = scmp.eq.s32.totalorder %s27, 1
    %p45 = por %p43, %p44
    %p46 = scmp.ne.s32.totalorder %s35, %s36
    %p47 = scmp.eq.s32.totalorder %s27, 0
    %p48 = por %p46, %p47
    %p49 = scmp.ne.s32.totalorder %s35, %s36
    %p50 = scmp.eq.s32.totalorder %s28, 1
    %p51 = por %p49, %p50
    %p53 = scmp.ne.s32.totalorder %s36, %s52
    %p54 = scmp.eq.s32.totalorder %s28, 0
    %p55 = por %p53, %p54
    %s57 = sadd.s32 %s56, 1
    %p60 = scmp.eq.s32.totalorder %s22, 1
    %p61 = scmp.ne.s32.totalorder %s56, %s58
    %p62 = scmp.eq.s32.totalorder %s22, 0
    %p63 = por %p61, %p62
    %p64 = scmp.ne.s32.totalorder %s56, %s58
    %p65 = scmp.eq.s32.totalorder %s27, 1
    %p66 = por %p64, %p65
    %p67 = scmp.ne.s32.totalorder %s58, %s59
    %p68 = scmp.eq.s32.totalorder %s27, 0
    %p69 = por %p67, %p68
    %p70 = scmp.ne.s32.totalorder %s58, %s59
    %p71 = scmp.eq.s32.totalorder %s28, 1
    %p72 = por %p70, %p71
    %p74 = scmp.ne.s32.totalorder %s59, %s73
    %p75 = scmp.eq.s32.totalorder %s28, 0
    %p76 = por %p74, %p75
    %s78 = sadd.s32 %s77, 1
    %p81 = scmp.eq.s32.totalorder %s22, 1
    %p82 = scmp.ne.s32.totalorder %s77, %s79
    %p83 = scmp.eq.s32.totalorder %s22, 0
    %p84 = por %p82, %p83
    %p85 = scmp.ne.s32.totalorder %s77, %s79
    %p86 = scmp.eq.s32.totalorder %s27, 1
    %p87 = por %p85, %p86
    %p88 = scmp.ne.s32.totalorder %s79, %s80
    %p89 = scmp.eq.s32.totalorder %s27, 0
    %p90 = por %p88, %p89
    %p91 = scmp.ne.s32.totalorder %s79, %s80
    %p92 = scmp.eq.s32.totalorder %s28, 1
    %p93 = por %p91, %p92
    %p95 = scmp.ne.s32.totalorder %s80, %s94
    %p96 = scmp.eq.s32.totalorder %s28, 0
    %p97 = por %p95, %p96
    %s99 = sadd.s32 %s98, 1
    %p102 = scmp.eq.s32.totalorder %s22, 1
    %p103 = scmp.ne.s32.totalorder %s98, %s100
    %p104 = scmp.eq.s32.totalorder %s22, 0
    %p105 = por %p103, %p104
    %p106 = scmp.ne.s32.totalorder %s98, %s100
    %p107 = scmp.eq.s32.totalorder %s27, 1
    %p108 = por %p106, %p107
    %p109 = scmp.ne.s32.totalorder %s100, %s101
    %p110 = scmp.eq.s32.totalorder %s27, 0
    %p111 = por %p109, %p110
    %p112 = scmp.ne.s32.totalorder %s100, %s101
    %p113 = scmp.eq.s32.totalorder %s28, 1
    %p114 = por %p112, %p113
    %p116 = scmp.ne.s32.totalorder %s101, %s115
    %p117 = scmp.eq.s32.totalorder %s28, 0
    %p118 = por %p116, %p117
    %s120 = sadd.s32 %s119, 1
    %p123 = scmp.eq.s32.totalorder %s22, 1
    %p124 = scmp.ne.s32.totalorder %s119, %s121
    %p125 = scmp.eq.s32.totalorder %s22, 0
    %p126 = por %p124, %p125
    %p127 = scmp.ne.s32.totalorder %s119, %s121
    %p128 = scmp.eq.s32.totalorder %s27, 1
    %p129 = por %p127, %p128
    %p130 = scmp.ne.s32.totalorder %s121, %s122
    %p131 = scmp.eq.s32.totalorder %s27, 0
    %p132 = por %p130, %p131
    %p133 = scmp.ne.s32.totalorder %s121, %s122
    %p134 = scmp.eq.s32.totalorder %s28, 1
    %p135 = por %p133, %p134
    %p137 = scmp.ne.s32.totalorder %s122, %s136
    %p138 = scmp.eq.s32.totalorder %s28, 0
    %p139 = por %p137, %p138
    %s141 = sadd.s32 %s140, 1
    %p144 = scmp.eq.s32.totalorder %s22, 1
    %p145 = scmp.ne.s32.totalorder %s140, %s142
    %p146 = scmp.eq.s32.totalorder %s22, 0
    %p147 = por %p145, %p146
    %p148 = scmp.ne.s32.totalorder %s140, %s142
    %p149 = scmp.eq.s32.totalorder %s27, 1
    %p150 = por %p148, %p149
    %p151 = scmp.ne.s32.totalorder %s142, %s143
    %p152 = scmp.eq.s32.totalorder %s27, 0
    %p153 = por %p151, %p152
    %p154 = scmp.ne.s32.totalorder %s142, %s143
    %p155 = scmp.eq.s32.totalorder %s28, 1
    %p156 = por %p154, %p155
    %p158 = scmp.ne.s32.totalorder %s143, %s157
    %p159 = scmp.eq.s32.totalorder %s28, 0
    %p160 = por %p158, %p159
    %s162 = sadd.s32 %s161, 1
    %p165 = scmp.eq.s32.totalorder %s22, 1
    %p166 = scmp.ne.s32.totalorder %s161, %s163
    %p167 = scmp.eq.s32.totalorder %s22, 0
    %p168 = por %p166, %p167
    %p169 = scmp.ne.s32.totalorder %s161, %s163
    %p170 = scmp.eq.s32.totalorder %s27, 1
    %p171 = por %p169, %p170
    %p172 = scmp.ne.s32.totalorder %s163, %s164
    %p173 = scmp.eq.s32.totalorder %s27, 0
    %p174 = por %p172, %p173
    %p175 = scmp.ne.s32.totalorder %s163, %s164
    %p176 = scmp.eq.s32.totalorder %s28, 1
    %p177 = por %p175, %p176
    %p179 = scmp.ne.s32.totalorder %s164, %s178
    %p180 = scmp.eq.s32.totalorder %s28, 0
    %p181 = por %p179, %p180
    %s183 = sadd.s32 %s182, 1
    %p186 = scmp.eq.s32.totalorder %s22, 1
    %p187 = scmp.ne.s32.totalorder %s182, %s184
    %p188 = scmp.eq.s32.totalorder %s22, 0
    %p189 = por %p187, %p188
    %p190 = scmp.ne.s32.totalorder %s182, %s184
    %p191 = scmp.eq.s32.totalorder %s27, 1
    %p192 = por %p190, %p191
    %p193 = scmp.ne.s32.totalorder %s184, %s185
    %p194 = scmp.eq.s32.totalorder %s27, 0
    %p195 = por %p193, %p194
    %p196 = scmp.ne.s32.totalorder %s184, %s185
    %p197 = scmp.eq.s32.totalorder %s28, 1
    %p198 = por %p196, %p197
    %p200 = scmp.ne.s32.totalorder %s185, %s199
    %p201 = scmp.eq.s32.totalorder %s28, 0
    %p202 = por %p200, %p201
    %s204 = sadd.s32 %s203, 1
    %p207 = scmp.eq.s32.totalorder %s22, 1
    %p208 = scmp.ne.s32.totalorder %s203, %s205
    %p209 = scmp.eq.s32.totalorder %s22, 0
    %p210 = por %p208, %p209
    %p211 = scmp.ne.s32.totalorder %s203, %s205
    %p212 = scmp.eq.s32.totalorder %s27, 1
    %p213 = por %p211, %p212
    %p214 = scmp.ne.s32.totalorder %s205, %s206
    %p215 = scmp.eq.s32.totalorder %s27, 0
    %p216 = por %p214, %p215
    %p217 = scmp.ne.s32.totalorder %s205, %s206
    %p218 = scmp.eq.s32.totalorder %s28, 1
    %p219 = por %p217, %p218
    %p221 = scmp.ne.s32.totalorder %s206, %s220
    %p222 = scmp.eq.s32.totalorder %s28, 0
    %p223 = por %p221, %p222
    %s225 = sadd.s32 %s224, 1
    %p228 = scmp.eq.s32.totalorder %s22, 1
    %p229 = scmp.ne.s32.totalorder %s224, %s226
    %p230 = scmp.eq.s32.totalorder %s22, 0
    %p231 = por %p229, %p230
    %p232 = scmp.ne.s32.totalorder %s224, %s226
    %p233 = scmp.eq.s32.totalorder %s27, 1
    %p234 = por %p232, %p233
    %p235 = scmp.ne.s32.totalorder %s226, %s227
    %p236 = scmp.eq.s32.totalorder %s27, 0
    %p237 = por %p235, %p236
    %p238 = scmp.ne.s32.totalorder %s226, %s227
    %p239 = scmp.eq.s32.totalorder %s28, 1
    %p240 = por %p238, %p239
    %p242 = scmp.ne.s32.totalorder %s227, %s241
    %p243 = scmp.eq.s32.totalorder %s28, 0
    %p244 = por %p242, %p243
    %s246 = sadd.s32 %s245, 1
    %p249 = scmp.eq.s32.totalorder %s22, 1
    %p250 = scmp.ne.s32.totalorder %s245, %s247
    %p251 = scmp.eq.s32.totalorder %s22, 0
    %p252 = por %p250, %p251
    %p253 = scmp.ne.s32.totalorder %s245, %s247
    %p254 = scmp.eq.s32.totalorder %s27, 1
    %p255 = por %p253, %p254
    %p256 = scmp.ne.s32.totalorder %s247, %s248
    %p257 = scmp.eq.s32.totalorder %s27, 0
    %p258 = por %p256, %p257
    %p259 = scmp.ne.s32.totalorder %s247, %s248
    %p260 = scmp.eq.s32.totalorder %s28, 1
    %p261 = por %p259, %p260
    %p263 = scmp.ne.s32.totalorder %s248, %s262
    %p264 = scmp.eq.s32.totalorder %s28, 0
    %p265 = por %p263, %p264
    %s267 = sadd.s32 %s266, 1
    %p270 = scmp.eq.s32.totalorder %s22, 1
    %p271 = scmp.ne.s32.totalorder %s266, %s268
    %p272 = scmp.eq.s32.totalorder %s22, 0
    %p273 = por %p271, %p272
    %p274 = scmp.ne.s32.totalorder %s266, %s268
    %p275 = scmp.eq.s32.totalorder %s27, 1
    %p276 = por %p274, %p275
    %p277 = scmp.ne.s32.totalorder %s268, %s269
    %p278 = scmp.eq.s32.totalorder %s27, 0
    %p279 = por %p277, %p278
    %p280 = scmp.ne.s32.totalorder %s268, %s269
    %p281 = scmp.eq.s32.totalorder %s28, 1
    %p282 = por %p280, %p281
    %p284 = scmp.ne.s32.totalorder %s269, %s283
    %p285 = scmp.eq.s32.totalorder %s28, 0
    %p286 = por %p284, %p285
    %s288 = sadd.s32 %s287, 1
    %p291 = scmp.eq.s32.totalorder %s22, 1
    %p292 = scmp.ne.s32.totalorder %s287, %s289
    %p293 = scmp.eq.s32.totalorder %s22, 0
    %p294 = por %p292, %p293
    %p295 = scmp.ne.s32.totalorder %s287, %s289
    %p296 = scmp.eq.s32.totalorder %s27, 1
    %p297 = por %p295, %p296
    %p298 = scmp.ne.s32.totalorder %s289, %s290
    %p299 = scmp.eq.s32.totalorder %s27, 0
    %p300 = por %p298, %p299
    %p301 = scmp.ne.s32.totalorder %s289, %s290
    %p302 = scmp.eq.s32.totalorder %s28, 1
    %p303 = por %p301, %p302
    %p305 = scmp.ne.s32.totalorder %s290, %s304
    %p306 = scmp.eq.s32.totalorder %s28, 0
    %p307 = por %p305, %p306
    %s309 = sadd.s32 %s308, 1
    %p312 = scmp.eq.s32.totalorder %s22, 1
    %p313 = scmp.ne.s32.totalorder %s308, %s310
    %p314 = scmp.eq.s32.totalorder %s22, 0
    %p315 = por %p313, %p314
    %p316 = scmp.ne.s32.totalorder %s308, %s310
    %p317 = scmp.eq.s32.totalorder %s27, 1
    %p318 = por %p316, %p317
    %p319 = scmp.ne.s32.totalorder %s310, %s311
    %p320 = scmp.eq.s32.totalorder %s27, 0
    %p321 = por %p319, %p320
    %p322 = scmp.ne.s32.totalorder %s310, %s311
    %p323 = scmp.eq.s32.totalorder %s28, 1
    %p324 = por %p322, %p323
    %p326 = scmp.ne.s32.totalorder %s311, %s325
    %p327 = scmp.eq.s32.totalorder %s28, 0
    %p328 = por %p326, %p327
    %s330 = sadd.s32 %s329, 1
    %p333 = scmp.eq.s32.totalorder %s22, 1
    %p334 = scmp.ne.s32.totalorder %s329, %s331
    %p335 = scmp.eq.s32.totalorder %s22, 0
    %p336 = por %p334, %p335
    %p337 = scmp.ne.s32.totalorder %s329, %s331
    %p338 = scmp.eq.s32.totalorder %s27, 1
    %p339 = por %p337, %p338
    %p340 = scmp.ne.s32.totalorder %s331, %s332
    %p341 = scmp.eq.s32.totalorder %s27, 0
    %p342 = por %p340, %p341
    %p343 = scmp.ne.s32.totalorder %s331, %s332
    %p344 = scmp.eq.s32.totalorder %s28, 1
    %p345 = por %p343, %p344
    %p347 = scmp.ne.s32.totalorder %s332, %s346
    %p348 = scmp.eq.s32.totalorder %s28, 0
    %p349 = por %p347, %p348
    %s351 = sadd.s32 %s350, 1
    %p354 = scmp.eq.s32.totalorder %s22, 1
    %p355 = scmp.ne.s32.totalorder %s350, %s352
    %p356 = scmp.eq.s32.totalorder %s22, 0
    %p357 = por %p355, %p356
    %p358 = scmp.ne.s32.totalorder %s350, %s352
    %p359 = scmp.eq.s32.totalorder %s27, 1
    %p360 = por %p358, %p359
    %p361 = scmp.ne.s32.totalorder %s352, %s353
    %p362 = scmp.eq.s32.totalorder %s27, 0
    %p363 = por %p361, %p362
    %p364 = scmp.ne.s32.totalorder %s352, %s353
    %p365 = scmp.eq.s32.totalorder %s28, 1
    %p366 = por %p364, %p365
    %p368 = scmp.ne.s32.totalorder %s353, %s367
    %p369 = scmp.eq.s32.totalorder %s28, 0
    %p370 = por %p368, %p369
    %s371 = ssub.s32 %s22, %s29
    %p372 = scmp.eq.s32.totalorder %s371, 0
    %s374 = sadd.s32 %s373, 1
    %s375 = scalar_select %p372, %s373, %s374
    %p378 = pneg %p372
    %p379 = scmp.eq.s32.totalorder %s22, 1
    %p380 = por %p378, %p379
    %p381 = scmp.ne.s32.totalorder %s373, %s376
    %p382 = scmp.eq.s32.totalorder %s22, 0
    %p383 = por %p381, %p382
    %p384 = scmp.ne.s32.totalorder %s373, %s376
    %p385 = scmp.eq.s32.totalorder %s27, 1
    %p386 = por %p384, %p385
    %p387 = scmp.ne.s32.totalorder %s376, %s377
    %p388 = scmp.eq.s32.totalorder %s27, 0
    %p389 = por %p387, %p388
    %p390 = scmp.ne.s32.totalorder %s376, %s377
    %p391 = scmp.eq.s32.totalorder %s28, 1
    %p392 = por %p390, %p391
    %p394 = scmp.ne.s32.totalorder %s377, %s393
    %p395 = scmp.eq.s32.totalorder %s28, 0
    %p396 = por %p394, %p395
    %p397 = scmp.le.s32.totalorder 1, %s22
    %p398 = scmp.lt.s32.totalorder %s22, 3
    %p399 = pnand %p397, %p398
    %p400 = pneg %p399
    // Predicated region
    $region9: #{fsrcnn_forward.1} parent=5 // pred_check
      _
    $region10: #{fsrcnn_forward.1} parent=5 // pred_check_branch
      %402 = sbr.rel (%p399) target = $region12
    $region11: #{fsrcnn_forward.1} parent=5 // pred_region
      %s403 = ssub.s32 %s22, 1
      // Predicated region
      $region13: #{fsrcnn_forward.1} parent=11 // pred_check
        %p404 = pneg %p69
      $region14: #{fsrcnn_forward.1} parent=11 // pred_check_branch
        %406 = sbr.rel (%p404) target = $region16
      $region15: #{fsrcnn_forward.1} parent=11 // pred_region
        _
      $region16: #{fsrcnn_forward.1} parent=11 // pred_fallthru
        _
      // Predicated region
      $region17: #{fsrcnn_forward.1} parent=11 // pred_check
        %p407 = pneg %p90
      $region18: #{fsrcnn_forward.1} parent=11 // pred_check_branch
        %409 = sbr.rel (%p407) target = $region20
      $region19: #{fsrcnn_forward.1} parent=11 // pred_region
        _
      $region20: #{fsrcnn_forward.1} parent=11 // pred_fallthru
        _
      // Predicated region
      $region21: #{fsrcnn_forward.1} parent=11 // pred_check
        %p410 = pneg %p111
      $region22: #{fsrcnn_forward.1} parent=11 // pred_check_branch
        %412 = sbr.rel (%p410) target = $region24
      $region23: #{fsrcnn_forward.1} parent=11 // pred_region
        _
      $region24: #{fsrcnn_forward.1} parent=11 // pred_fallthru
        _
      // Predicated region
      $region25: #{fsrcnn_forward.1} parent=11 // pred_check
        %p413 = pneg %p132
      $region26: #{fsrcnn_forward.1} parent=11 // pred_check_branch
        %415 = sbr.rel (%p413) target = $region28
      $region27: #{fsrcnn_forward.1} parent=11 // pred_region
        _
      $region28: #{fsrcnn_forward.1} parent=11 // pred_fallthru
        _
      // Predicated region
      $region29: #{fsrcnn_forward.1} parent=11 // pred_check
        %p416 = pneg %p153
      $region30: #{fsrcnn_forward.1} parent=11 // pred_check_branch
        %418 = sbr.rel (%p416) target = $region32
      $region31: #{fsrcnn_forward.1} parent=11 // pred_region
        _
      $region32: #{fsrcnn_forward.1} parent=11 // pred_fallthru
        _
      // Predicated region
      $region33: #{fsrcnn_forward.1} parent=11 // pred_check
        %p419 = pneg %p174
      $region34: #{fsrcnn_forward.1} parent=11 // pred_check_branch
        %421 = sbr.rel (%p419) target = $region36
      $region35: #{fsrcnn_forward.1} parent=11 // pred_region
        _
      $region36: #{fsrcnn_forward.1} parent=11 // pred_fallthru
        _
      // Predicated region
      $region37: #{fsrcnn_forward.1} parent=11 // pred_check
        %p422 = pneg %p195
      $region38: #{fsrcnn_forward.1} parent=11 // pred_check_branch
        %424 = sbr.rel (%p422) target = $region40
      $region39: #{fsrcnn_forward.1} parent=11 // pred_region
        _
      $region40: #{fsrcnn_forward.1} parent=11 // pred_fallthru
        _
      // Predicated region
      $region41: #{fsrcnn_forward.1} parent=11 // pred_check
        %p425 = pneg %p216
      $region42: #{fsrcnn_forward.1} parent=11 // pred_check_branch
        %427 = sbr.rel (%p425) target = $region44
      $region43: #{fsrcnn_forward.1} parent=11 // pred_region
        _
      $region44: #{fsrcnn_forward.1} parent=11 // pred_fallthru
        _
      // Predicated region
      $region45: #{fsrcnn_forward.1} parent=11 // pred_check
        %p428 = pneg %p237
      $region46: #{fsrcnn_forward.1} parent=11 // pred_check_branch
        %430 = sbr.rel (%p428) target = $region48
      $region47: #{fsrcnn_forward.1} parent=11 // pred_region
        _
      $region48: #{fsrcnn_forward.1} parent=11 // pred_fallthru
        _
      // Predicated region
      $region49: #{fsrcnn_forward.1} parent=11 // pred_check
        %p431 = pneg %p258
      $region50: #{fsrcnn_forward.1} parent=11 // pred_check_branch
        %433 = sbr.rel (%p431) target = $region52
      $region51: #{fsrcnn_forward.1} parent=11 // pred_region
        _
      $region52: #{fsrcnn_forward.1} parent=11 // pred_fallthru
        _
      // Predicated region
      $region53: #{fsrcnn_forward.1} parent=11 // pred_check
        %p434 = pneg %p279
      $region54: #{fsrcnn_forward.1} parent=11 // pred_check_branch
        %436 = sbr.rel (%p434) target = $region56
      $region55: #{fsrcnn_forward.1} parent=11 // pred_region
        _
      $region56: #{fsrcnn_forward.1} parent=11 // pred_fallthru
        _
      // Predicated region
      $region57: #{fsrcnn_forward.1} parent=11 // pred_check
        %p437 = pneg %p300
      $region58: #{fsrcnn_forward.1} parent=11 // pred_check_branch
        %439 = sbr.rel (%p437) target = $region60
      $region59: #{fsrcnn_forward.1} parent=11 // pred_region
        _
      $region60: #{fsrcnn_forward.1} parent=11 // pred_fallthru
        _
      // Predicated region
      $region61: #{fsrcnn_forward.1} parent=11 // pred_check
        %p440 = pneg %p321
      $region62: #{fsrcnn_forward.1} parent=11 // pred_check_branch
        %442 = sbr.rel (%p440) target = $region64
      $region63: #{fsrcnn_forward.1} parent=11 // pred_region
        _
      $region64: #{fsrcnn_forward.1} parent=11 // pred_fallthru
        _
      // Predicated region
      $region65: #{fsrcnn_forward.1} parent=11 // pred_check
        %p443 = pneg %p342
      $region66: #{fsrcnn_forward.1} parent=11 // pred_check_branch
        %445 = sbr.rel (%p443) target = $region68
      $region67: #{fsrcnn_forward.1} parent=11 // pred_region
        _
      $region68: #{fsrcnn_forward.1} parent=11 // pred_fallthru
        _
      // Predicated region
      $region69: #{fsrcnn_forward.1} parent=11 // pred_check
        %p446 = pneg %p363
      $region70: #{fsrcnn_forward.1} parent=11 // pred_check_branch
        %448 = sbr.rel (%p446) target = $region72
      $region71: #{fsrcnn_forward.1} parent=11 // pred_region
        _
      $region72: #{fsrcnn_forward.1} parent=11 // pred_fallthru
        _
    $region12: #{fsrcnn_forward.1} parent=5 // pred_fallthru
      _
    %p449 = scmp.lt.s32.totalorder %s22, 2
    // Predicated region
    $region73: #{fsrcnn_forward.1} parent=5 // pred_check
      %p450 = pneg %p449
    $region74: #{fsrcnn_forward.1} parent=5 // pred_check_branch
      %452 = sbr.rel (%p450) target = $region76
    $region75: #{fsrcnn_forward.1} parent=5 // pred_region
      // Predicated region
      $region77: #{fsrcnn_forward.1} parent=75 // pred_check
        %p453 = pneg %p42
      $region78: #{fsrcnn_forward.1} parent=75 // pred_check_branch
        %455 = sbr.rel (%p453) target = $region80
      $region79: #{fsrcnn_forward.1} parent=75 // pred_region
        %p456 = scmp.lt.s32.totalorder %s22, 1
        %s457 = scalar_select %p456, %s22, 1
        %s458 = smul.addr %s457, 12
        %s459 = smul.addr %s458, 8
        %s460 = scalar_lea.vmem %s0, %s459
      $region80: #{fsrcnn_forward.1} parent=75 // pred_fallthru
        _
    $region76: #{fsrcnn_forward.1} parent=5 // pred_fallthru
      _
    %p461 = scmp.le.s32.totalorder 1, %s22
    %p462 = scmp.lt.s32.totalorder %s22, 3
    %p463 = pnand %p461, %p462
    %p464 = pneg %p463
    // Predicated region
    $region81: #{fsrcnn_forward.1} parent=5 // pred_check
      _
    $region82: #{fsrcnn_forward.1} parent=5 // pred_check_branch
      %466 = sbr.rel (%p463) target = $region84
    $region83: #{fsrcnn_forward.1} parent=5 // pred_region
      %s467 = ssub.s32 %s22, 1
      %p468 = scmp.lt.s32.totalorder %s27, 1
      %s469 = scalar_select %p468, %s27, 1
      %s470 = smul.addr %s469, 12
      %s471 = smul.addr %s470, 8
      %s472 = scalar_lea.vmem %s0, %s471
      %p473 = pneg %p48
      %p474 = pneg %p45
      %p475 = pneg %p69
      %p476 = pneg %p66
      %p477 = pneg %p90
      %p478 = pneg %p87
      %p479 = pneg %p111
      %p480 = pneg %p108
      %p481 = pneg %p132
      %p482 = pneg %p129
      %p483 = pneg %p153
      %p484 = pneg %p150
      %p485 = pneg %p174
      %p486 = pneg %p171
      %p487 = pneg %p195
      %p488 = pneg %p192
      %p489 = pneg %p216
      %p490 = pneg %p213
      %p491 = pneg %p237
      %p492 = pneg %p234
      %p493 = pneg %p258
      %p494 = pneg %p255
      %p495 = pneg %p279
      %p496 = pneg %p276
      %p497 = pneg %p300
      %p498 = pneg %p297
      %p499 = pneg %p321
      %p500 = pneg %p318
      %p501 = pneg %p342
      %p502 = pneg %p339
      %p503 = pneg %p363
      %p504 = pneg %p360
      %p505 = pneg %p389
      %p506 = pneg %p386
      %p507 = scmp.lt.s32.totalorder %s27, 1
      %s508 = scalar_select %p507, %s27, 1
      %s509 = smul.addr %s508, 3
      %s510 = smul.addr %s509, 4
      %s511 = scalar_lea.vmem %s16, %s510
      %p512 = scmp.lt.s32.totalorder %s27, 1
      %s513 = scalar_select %p512, %s27, 1
      %s514 = smul.addr %s513, 12
      %s515 = smul.addr %s514, 8
      %s516 = scalar_lea.vmem %s0, %s515
      %p517 = scmp.lt.s32.totalorder %s27, 1
      %s518 = scalar_select %p517, %s27, 1
      %s519 = smul.addr %s518, 3
      %s520 = smul.addr %s519, 4
      %s521 = scalar_lea.vmem %s16, %s520
      %vm522 = vcmask 424960
      %523 = vst.msk [vmem:[#allocation2] sm:$0xff] %vm522, 0.0
      %524 = vst.msk [vmem:[#allocation2 + $0x20] sm:$0xff] %vm522, 0.0
      %525 = vst.msk [vmem:[#allocation2 + $0x40] sm:$0xff] %vm522, 0.0
      %526 = vst.msk [vmem:[#allocation2 + $0x60] sm:$0xff] %vm522, 0.0
      %527 = vst.msk [vmem:[#allocation2 + $0x80] sm:$0xff] %vm522, 0.0
      %528 = vst.msk [vmem:[#allocation2 + $0xa0] sm:$0xff] %vm522, 0.0
      %529 = vst.msk [vmem:[#allocation2 + $0xc0] sm:$0xff] %vm522, 0.0
      %vm530 = vcmask 982432
      %531 = vst.msk [vmem:[#allocation2 + $0x18] sm:$0xff] %vm530, 0.0
      %532 = vst.msk [vmem:[#allocation2 + $0x38] sm:$0xff] %vm530, 0.0
      %533 = vst.msk [vmem:[#allocation2 + $0x58] sm:$0xff] %vm530, 0.0
      %534 = vst.msk [vmem:[#allocation2 + $0x78] sm:$0xff] %vm530, 0.0
      %535 = vst.msk [vmem:[#allocation2 + $0x98] sm:$0xff] %vm530, 0.0
      %536 = vst.msk [vmem:[#allocation2 + $0xb8] sm:$0xff] %vm530, 0.0
      %537 = vst.msk [vmem:[#allocation2 + $0xd8] sm:$0xff] %vm530, 0.0
      %538 = vst.msk [vmem:[#allocation3] sm:$0xff] %vm522, 0.0
      %vm539 = vcmask 420864
      %540 = vst.msk [vmem:[#allocation3 + $0x20] sm:$0xf] %vm539, 0.0
      %541 = vst.msk [vmem:[#allocation3 + $0x18] sm:$0xff] %vm530, 0.0
      %vm542 = vcmask 978336
      %543 = vst.msk [vmem:[#allocation3 + $0x38] sm:$0xf] %vm542, 0.0
      %544 = vst.msk [vmem:[#allocation4] sm:$0xff] %vm522, 0.0
      %545 = vst.msk [vmem:[#allocation4 + $0x20] sm:$0xf] %vm539, 0.0
      %546 = vst.msk [vmem:[#allocation4 + $0x18] sm:$0xff] %vm530, 0.0
      %547 = vst.msk [vmem:[#allocation4 + $0x38] sm:$0xf] %vm542, 0.0
      %v548 = vld [vmem:[%s1] sm:$0x7]
      %v549 = vld [vmem:[%s2] sm:$0xff]
      %v550 = vld [vmem:[%s2 + $0x8] sm:$0xff]
      %v551 = vld [vmem:[%s2 + $0x10] sm:$0xff]
      %v552 = vld [vmem:[%s2 + $0x18] sm:$0xff]
      %v553 = vld [vmem:[%s2 + $0x20] sm:$0xff]
      %v554 = vld [vmem:[%s2 + $0x28] sm:$0xff]
      %v555 = vld [vmem:[%s2 + $0x30] sm:$0xff]
      %v556 = vld [vmem:[%s516] sm:$0xff]
      %v557 = vld [vmem:[%s516 + $0x8] sm:$0xff]
      %v558 = vld [vmem:[%s516 + $0x10] sm:$0xff]
      %v559 = vld [vmem:[%s516 + $0x18] sm:$0xff]
      %v560 = vld [vmem:[%s516 + $0x20] sm:$0xff]
      %v561 = vld [vmem:[%s516 + $0x28] sm:$0xff]
      %v562 = vld [vmem:[%s516 + $0x30] sm:$0xff]
      %v563 = vld [vmem:[%s516 + $0x38] sm:$0xff]
      %v564 = vld [vmem:[%s516 + $0x40] sm:$0xff]
      %v565 = vld [vmem:[%s516 + $0x48] sm:$0x1]
      %v566 = vld [vmem:[%s516 + $0x50] sm:$0x1]
      %v567 = vld [vmem:[%s516 + $0x58] sm:$0x1]
      %v568 = vld [vmem:[%s3] sm:$0xff]
      %v569 = vld [vmem:[%s3 + $0x8] sm:$0xff]
      %v570 = vld [vmem:[%s3 + $0x10] sm:$0xff]
      %v571 = vld [vmem:[%s3 + $0x18] sm:$0xff]
      %v572 = vld [vmem:[%s3 + $0x20] sm:$0xff]
      %v573 = vld [vmem:[%s3 + $0x28] sm:$0xff]
      %v574 = vld [vmem:[%s3 + $0x30] sm:$0xff]
      %576 = vset.pattern.permute.xlu0 0
      %577 = vperm.xlu0 %576, %v568
      %v578 = vpop.permute.xlu0 %577
      %581 = vset.pattern.permute.xlu0 0
      %582 = vperm.xlu0 %581, %v569
      %v583 = vpop.permute.xlu0 %582
      %586 = vset.pattern.permute.xlu0 0
      %587 = vperm.xlu0 %586, %v570
      %v588 = vpop.permute.xlu0 %587
      %591 = vset.pattern.permute.xlu0 0
      %592 = vperm.xlu0 %591, %v571
      %v593 = vpop.permute.xlu0 %592
      %596 = vset.pattern.permute.xlu0 0
      %597 = vperm.xlu0 %596, %v572
      %v598 = vpop.permute.xlu0 %597
      %601 = vset.pattern.permute.xlu0 0
      %602 = vperm.xlu0 %601, %v573
      %v603 = vpop.permute.xlu0 %602
      %606 = vset.pattern.permute.xlu0 0
      %607 = vperm.xlu0 %606, %v574
      %v608 = vpop.permute.xlu0 %607
      %vm610 = vcmask 203776
      %v612 = vsel %vm610, %v549, 0
      %v615 = vsel %vm610, %v550, 0
      %v618 = vsel %vm610, %v551, 0
      %v621 = vsel %vm610, %v552, 0
      %v624 = vsel %vm610, %v553, 0
      %v627 = vsel %vm610, %v554, 0
      %v630 = vsel %vm610, %v555, 0
      %vm632 = vcmask 1040384
      %v634 = vsel %vm632, %v565, 0
      %v637 = vsel %vm632, %v566, 0
      %v640 = vsel %vm632, %v567, 0
      %642 = vmatprep.subr.mxu0 0.0
      %643 = vmatpush1.msra.mxu0 0.0
      %644 = vmatprep.subr.mxu0 0.0
      %645 = vmatpush1.msra.mxu0 0.0
      %646 = vmatprep.subr.mxu0 0.0
      %647 = vmatpush1.msra.mxu0 0.0
      %648 = vmatprep.subr.mxu0 0.0
      %649 = vmatpush1.msra.mxu0 0.0
      %650 = vmatprep.subr.mxu0 0.0
      %651 = vmatpush1.msra.mxu0 0.0
      %652 = vmatprep.subr.mxu0 0.0
      %653 = vmatpush1.msra.mxu0 0.0
      %654 = vmatprep.subr.mxu0 0.0
      %655 = vmatpush1.msra.mxu0 0.0
      %656 = vmatprep.subr.mxu0 0.0
      %657 = vmatpush1.msra.mxu0 0.0
      %658 = vmatprep.subr.mxu0 0.0
      %659 = vmatpush1.msra.mxu0 0.0
      %660 = vmatprep.subr.mxu0 0.0
      %661 = vmatpush1.msra.mxu0 0.0
      %662 = vmatprep.subr.mxu0 0.0
      %663 = vmatpush1.msra.mxu0 0.0
      %664 = vmatprep.subr.mxu0 0.0
      %665 = vmatpush1.msra.mxu0 0.0
      %666 = vmatprep.subr.mxu0 %v637
      %667 = vmatpush1.msra.mxu0 %v634
      %668 = vmatprep.subr.mxu0 %v563
      %669 = vmatpush1.msra.mxu0 %v562
      %670 = vmatprep.subr.mxu0 %v560
      %671 = vmatpush1.msra.mxu0 %v559
      %672 = vmatprep.subr.mxu0 %v557
      %673 = vmatpush1.msra.mxu0 %v556
      %674 = vmatprep.subr.mxu0 0.0
      %675 = vmatpush2.msra.mxu0 0.0
      %676 = vmatprep.subr.mxu0 0.0
      %677 = vmatpush2.msra.mxu0 0.0
      %678 = vmatprep.subr.mxu0 0.0
      %679 = vmatpush2.msra.mxu0 0.0
      %680 = vmatprep.subr.mxu0 0.0
      %681 = vmatpush2.msra.mxu0 0.0
      %682 = vmatprep.subr.mxu0 0.0
      %683 = vmatpush2.msra.mxu0 0.0
      %684 = vmatprep.subr.mxu0 0.0
      %685 = vmatpush2.msra.mxu0 0.0
      %686 = vmatprep.subr.mxu0 0.0
      %687 = vmatpush2.msra.mxu0 0.0
      %688 = vmatprep.subr.mxu0 0.0
      %689 = vmatpush2.msra.mxu0 0.0
      %690 = vmatprep.subr.mxu0 0.0
      %691 = vmatpush2.msra.mxu0 0.0
      %692 = vmatprep.subr.mxu0 0.0
      %693 = vmatpush2.msra.mxu0 0.0
      %694 = vmatprep.subr.mxu0 0.0
      %695 = vmatpush2.msra.mxu0 0.0
      %696 = vmatprep.subr.mxu0 0.0
      %697 = vmatpush2.msra.mxu0 0.0
      %698 = vmatprep.subr.mxu0 0.0
      %699 = vmatpush2.msra.mxu0 0.0
      %700 = vmatprep.subr.mxu0 0.0
      %701 = vmatpush2.msra.mxu0 0.0
      %702 = vmatprep.subr.mxu0 0.0
      %703 = vmatpush2.msra.mxu0 0.0
      %704 = vmatprep.subr.mxu0 0.0
      %705 = vmatpush2.msra.mxu0 0.0
      %706 = vmatprep.mubr.f32.mxu0 0.0
      %707 = vmatmul.mubr.f32.gmra.mxu0 %v612
      %v708 = vpop.f32.mrf.mxu0
      %v709 = vadd.f32 %v578, %v708
      %v710 = vpop.f32.mrf.mxu0
      %v711 = vadd.f32 %v578, %v710
      %712 = vmatprep.mubr.f32.mxu0 0.0
      %713 = vmatmul.mubr.f32.gmra.mxu0 %v615
      %v714 = vpop.f32.mrf.mxu0
      %v715 = vadd.f32 %v583, %v714
      %v716 = vpop.f32.mrf.mxu0
      %v717 = vadd.f32 %v583, %v716
      %718 = vmatprep.mubr.f32.mxu0 0.0
      %719 = vmatmul.mubr.f32.gmra.mxu0 %v618
      %v720 = vpop.f32.mrf.mxu0
      %v721 = vadd.f32 %v588, %v720
      %v722 = vpop.f32.mrf.mxu0
      %v723 = vadd.f32 %v588, %v722
      %724 = vmatprep.mubr.f32.mxu0 0.0
      %725 = vmatmul.mubr.f32.gmra.mxu0 %v621
      %v726 = vpop.f32.mrf.mxu0
      %v727 = vadd.f32 %v593, %v726
      %v728 = vpop.f32.mrf.mxu0
      %v729 = vadd.f32 %v593, %v728
      %730 = vmatprep.mubr.f32.mxu0 0.0
      %731 = vmatmul.mubr.f32.gmra.mxu0 %v624
      %v732 = vpop.f32.mrf.mxu0
      %v733 = vadd.f32 %v598, %v732
      %v734 = vpop.f32.mrf.mxu0
      %v735 = vadd.f32 %v598, %v734
      %736 = vmatprep.mubr.f32.mxu0 0.0
      %737 = vmatmul.mubr.f32.gmra.mxu0 %v627
      %v738 = vpop.f32.mrf.mxu0
      %v739 = vadd.f32 %v603, %v738
      %v740 = vpop.f32.mrf.mxu0
      %v741 = vadd.f32 %v603, %v740
      %742 = vmatprep.mubr.f32.mxu0 0.0
      %743 = vmatmul.mubr.f32.gmra.mxu0 %v630
      %v744 = vpop.f32.mrf.mxu0
      %v745 = vadd.f32 %v608, %v744
      %v746 = vpop.f32.mrf.mxu0
      %v747 = vadd.f32 %v608, %v746
      %748 = vdwg.mxu0
      %749 = vmatprep.subr.mxu0 0.0
      %750 = vmatpush1.msra.mxu0 0.0
      %751 = vmatprep.subr.mxu0 0.0
      %752 = vmatpush1.msra.mxu0 0.0
      %753 = vmatprep.subr.mxu0 0.0
      %754 = vmatpush1.msra.mxu0 0.0
      %755 = vmatprep.subr.mxu0 0.0
      %756 = vmatpush1.msra.mxu0 0.0
      %757 = vmatprep.subr.mxu0 0.0
      %758 = vmatpush1.msra.mxu0 0.0
      %759 = vmatprep.subr.mxu0 0.0
      %760 = vmatpush1.msra.mxu0 0.0
      %761 = vmatprep.subr.mxu0 0.0
      %762 = vmatpush1.msra.mxu0 0.0
      %763 = vmatprep.subr.mxu0 0.0
      %764 = vmatpush1.msra.mxu0 0.0
      %765 = vmatprep.subr.mxu0 0.0
      %766 = vmatpush1.msra.mxu0 0.0
      %767 = vmatprep.subr.mxu0 0.0
      %768 = vmatpush1.msra.mxu0 0.0
      %769 = vmatprep.subr.mxu0 0.0
      %770 = vmatpush1.msra.mxu0 0.0
      %771 = vmatprep.subr.mxu0 0.0
      %772 = vmatpush1.msra.mxu0 0.0
      %773 = vmatprep.subr.mxu0 0.0
      %774 = vmatpush1.msra.mxu0 %v640
      %775 = vmatprep.subr.mxu0 0.0
      %776 = vmatpush1.msra.mxu0 %v564
      %777 = vmatprep.subr.mxu0 0.0
      %778 = vmatpush1.msra.mxu0 %v561
      %779 = vmatprep.subr.mxu0 0.0
      %780 = vmatpush1.msra.mxu0 %v558
      %781 = vmatprep.subr.mxu0 0.0
      %782 = vmatpush2.msra.mxu0 0.0
      %783 = vmatprep.subr.mxu0 0.0
      %784 = vmatpush2.msra.mxu0 0.0
      %785 = vmatprep.subr.mxu0 0.0
      %786 = vmatpush2.msra.mxu0 0.0
      %787 = vmatprep.subr.mxu0 0.0
      %788 = vmatpush2.msra.mxu0 0.0
      %789 = vmatprep.subr.mxu0 0.0
      %790 = vmatpush2.msra.mxu0 0.0
      %791 = vmatprep.subr.mxu0 0.0
      %792 = vmatpush2.msra.mxu0 0.0
      %793 = vmatprep.subr.mxu0 0.0
      %794 = vmatpush2.msra.mxu0 0.0
      %795 = vmatprep.subr.mxu0 0.0
      %796 = vmatpush2.msra.mxu0 0.0
      %797 = vmatprep.subr.mxu0 0.0
      %798 = vmatpush2.msra.mxu0 0.0
      %799 = vmatprep.subr.mxu0 0.0
      %800 = vmatpush2.msra.mxu0 0.0
      %801 = vmatprep.subr.mxu0 0.0
      %802 = vmatpush2.msra.mxu0 0.0
      %803 = vmatprep.subr.mxu0 0.0
      %804 = vmatpush2.msra.mxu0 0.0
      %805 = vmatprep.subr.mxu0 0.0
      %806 = vmatpush2.msra.mxu0 0.0
      %807 = vmatprep.subr.mxu0 0.0
      %808 = vmatpush2.msra.mxu0 0.0
      %809 = vmatprep.subr.mxu0 0.0
      %810 = vmatpush2.msra.mxu0 0.0
      %811 = vmatprep.subr.mxu0 0.0
      %812 = vmatpush2.msra.mxu0 0.0
      %813 = vmatprep.mubr.f32.mxu0 0.0
      %814 = vmatmul.mubr.f32.gmra.mxu0 %v612
      %v815 = vpop.f32.mrf.mxu0
      %v816 = vadd.f32 %v578, %v815
      %v817 = vpop.f32.mrf.mxu0
      %818 = vmatprep.mubr.f32.mxu0 0.0
      %819 = vmatmul.mubr.f32.gmra.mxu0 %v615
      %v820 = vpop.f32.mrf.mxu0
      %v821 = vadd.f32 %v583, %v820
      %v822 = vpop.f32.mrf.mxu0
      %823 = vmatprep.mubr.f32.mxu0 0.0
      %824 = vmatmul.mubr.f32.gmra.mxu0 %v618
      %v825 = vpop.f32.mrf.mxu0
      %v826 = vadd.f32 %v588, %v825
      %v827 = vpop.f32.mrf.mxu0
      %828 = vmatprep.mubr.f32.mxu0 0.0
      %829 = vmatmul.mubr.f32.gmra.mxu0 %v621
      %v830 = vpop.f32.mrf.mxu0
      %v831 = vadd.f32 %v593, %v830
      %v832 = vpop.f32.mrf.mxu0
      %833 = vmatprep.mubr.f32.mxu0 0.0
      %834 = vmatmul.mubr.f32.gmra.mxu0 %v624
      %v835 = vpop.f32.mrf.mxu0
      %v836 = vadd.f32 %v598, %v835
      %v837 = vpop.f32.mrf.mxu0
      %838 = vmatprep.mubr.f32.mxu0 0.0
      %839 = vmatmul.mubr.f32.gmra.mxu0 %v627
      %v840 = vpop.f32.mrf.mxu0
      %v841 = vadd.f32 %v603, %v840
      %v842 = vpop.f32.mrf.mxu0
      %843 = vmatprep.mubr.f32.mxu0 0.0
      %844 = vmatmul.mubr.f32.gmra.mxu0 %v630
      %v845 = vpop.f32.mrf.mxu0
      %v846 = vadd.f32 %v608, %v845
      %v847 = vpop.f32.mrf.mxu0
      %848 = vdwg.mxu0
      %v849 = vld [vmem:[%s4] sm:$0xff]
      %v850 = vld [vmem:[%s4 + $0x8] sm:$0xff]
      %v851 = vld [vmem:[%s4 + $0x10] sm:$0xff]
      %v852 = vld [vmem:[%s4 + $0x18] sm:$0xff]
      %v853 = vld [vmem:[%s4 + $0x20] sm:$0xff]
      %v854 = vld [vmem:[%s4 + $0x28] sm:$0xff]
      %v855 = vld [vmem:[%s4 + $0x30] sm:$0xff]
      %vm856 = vcmp.gt.f32.partialorder %v709, 0.0
      %vm857 = vcmp.gt.f32.partialorder %v711, 0.0
      %vm858 = vcmp.gt.f32.partialorder %v816, 0.0
      %vm859 = vcmp.gt.f32.partialorder %v715, 0.0
      %vm860 = vcmp.gt.f32.partialorder %v717, 0.0
      %vm861 = vcmp.gt.f32.partialorder %v821, 0.0
      %vm862 = vcmp.gt.f32.partialorder %v721, 0.0
      %vm863 = vcmp.gt.f32.partialorder %v723, 0.0
      %vm864 = vcmp.gt.f32.partialorder %v826, 0.0
      %vm865 = vcmp.gt.f32.partialorder %v727, 0.0
      %vm866 = vcmp.gt.f32.partialorder %v729, 0.0
      %vm867 = vcmp.gt.f32.partialorder %v831, 0.0
      %vm868 = vcmp.gt.f32.partialorder %v733, 0.0
      %vm869 = vcmp.gt.f32.partialorder %v735, 0.0
      %vm870 = vcmp.gt.f32.partialorder %v836, 0.0
      %vm871 = vcmp.gt.f32.partialorder %v739, 0.0
      %vm872 = vcmp.gt.f32.partialorder %v741, 0.0
      %vm873 = vcmp.gt.f32.partialorder %v841, 0.0
      %vm874 = vcmp.gt.f32.partialorder %v745, 0.0
      %vm875 = vcmp.gt.f32.partialorder %v747, 0.0
      %vm876 = vcmp.gt.f32.partialorder %v846, 0.0
      %878 = vset.pattern.permute.xlu0 0
      %879 = vperm.xlu0 %878, %v849
      %v880 = vpop.permute.xlu0 %879
      %883 = vset.pattern.permute.xlu0 0
      %884 = vperm.xlu0 %883, %v850
      %v885 = vpop.permute.xlu0 %884
      %888 = vset.pattern.permute.xlu0 0
      %889 = vperm.xlu0 %888, %v851
      %v890 = vpop.permute.xlu0 %889
      %893 = vset.pattern.permute.xlu0 0
      %894 = vperm.xlu0 %893, %v852
      %v895 = vpop.permute.xlu0 %894
      %898 = vset.pattern.permute.xlu0 0
      %899 = vperm.xlu0 %898, %v853
      %v900 = vpop.permute.xlu0 %899
      %903 = vset.pattern.permute.xlu0 0
      %904 = vperm.xlu0 %903, %v854
      %v905 = vpop.permute.xlu0 %904
      %908 = vset.pattern.permute.xlu0 0
      %909 = vperm.xlu0 %908, %v855
      %v910 = vpop.permute.xlu0 %909
      %v912 = vmul.f32 %v880, %v709
      %v913 = vmul.f32 %v880, %v711
      %v914 = vmul.f32 %v880, %v816
      %v915 = vmul.f32 %v885, %v715
      %v916 = vmul.f32 %v885, %v717
      %v917 = vmul.f32 %v885, %v821
      %v918 = vmul.f32 %v890, %v721
      %v919 = vmul.f32 %v890, %v723
      %v920 = vmul.f32 %v890, %v826
      %v921 = vmul.f32 %v895, %v727
      %v922 = vmul.f32 %v895, %v729
      %v923 = vmul.f32 %v895, %v831
      %v924 = vmul.f32 %v900, %v733
      %v925 = vmul.f32 %v900, %v735
      %v926 = vmul.f32 %v900, %v836
      %v927 = vmul.f32 %v905, %v739
      %v928 = vmul.f32 %v905, %v741
      %v929 = vmul.f32 %v905, %v841
      %v930 = vmul.f32 %v910, %v745
      %v931 = vmul.f32 %v910, %v747
      %v932 = vmul.f32 %v910, %v846
      %v933 = vsel %vm856, %v709, %v912
      %v934 = vsel %vm857, %v711, %v913
      %v935 = vsel %vm858, %v816, %v914
      %v936 = vsel %vm859, %v715, %v915
      %v937 = vsel %vm860, %v717, %v916
      %v938 = vsel %vm861, %v821, %v917
      %v939 = vsel %vm862, %v721, %v918
      %v940 = vsel %vm863, %v723, %v919
      %v941 = vsel %vm864, %v826, %v920
      %v942 = vsel %vm865, %v727, %v921
      %v943 = vsel %vm866, %v729, %v922
      %v944 = vsel %vm867, %v831, %v923
      %v945 = vsel %vm868, %v733, %v924
      %v946 = vsel %vm869, %v735, %v925
      %v947 = vsel %vm870, %v836, %v926
      %v948 = vsel %vm871, %v739, %v927
      %v949 = vsel %vm872, %v741, %v928
      %v950 = vsel %vm873, %v841, %v929
      %v951 = vsel %vm874, %v745, %v930
      %v952 = vsel %vm875, %v747, %v931
      %v953 = vsel %vm876, %v846, %v932
      %v954 = vld [vmem:[%s5] sm:$0xff]
      %v955 = vld [vmem:[%s5 + $0x8] sm:$0xf]
      %v956 = vld [vmem:[%s6] sm:$0xff]
      %v957 = vld [vmem:[%s6 + $0x8] sm:$0xf]
      %959 = vset.pattern.permute.xlu0 0
      %960 = vperm.xlu0 %959, %v956
      %v961 = vpop.permute.xlu0 %960
      %964 = vset.pattern.permute.xlu0 0
      %965 = vperm.xlu0 %964, %v957
      %v966 = vpop.permute.xlu0 %965
      %vm968 = vcmask 457728
      %v970 = vsel %vm968, %v954, 0
      %v973 = vsel %vm968, %v955, 0
      %975 = vmatprep.subr.mxu0 0.0
      %976 = vmatpush1.msra.mxu0 0.0
      %977 = vmatprep.subr.mxu0 0.0
      %978 = vmatpush1.msra.mxu0 0.0
      %979 = vmatprep.subr.mxu0 0.0
      %980 = vmatpush1.msra.mxu0 0.0
      %981 = vmatprep.subr.mxu0 0.0
      %982 = vmatpush1.msra.mxu0 0.0
      %983 = vmatprep.subr.mxu0 0.0
      %984 = vmatpush1.msra.mxu0 0.0
      %985 = vmatprep.subr.mxu0 0.0
      %986 = vmatpush1.msra.mxu0 0.0
      %987 = vmatprep.subr.mxu0 0.0
      %988 = vmatpush1.msra.mxu0 0.0
      %989 = vmatprep.subr.mxu0 0.0
      %990 = vmatpush1.msra.mxu0 0.0
      %991 = vmatprep.subr.mxu0 0.0
      %992 = vmatpush1.msra.mxu0 0.0
      %993 = vmatprep.subr.mxu0 %v952
      %994 = vmatpush1.msra.mxu0 %v951
      %995 = vmatprep.subr.mxu0 %v949
      %996 = vmatpush1.msra.mxu0 %v948
      %997 = vmatprep.subr.mxu0 %v946
      %998 = vmatpush1.msra.mxu0 %v945
      %999 = vmatprep.subr.mxu0 %v943
      %1000 = vmatpush1.msra.mxu0 %v942
      %1001 = vmatprep.subr.mxu0 %v940
      %1002 = vmatpush1.msra.mxu0 %v939
      %1003 = vmatprep.subr.mxu0 %v937
      %1004 = vmatpush1.msra.mxu0 %v936
      %1005 = vmatprep.subr.mxu0 %v934
      %1006 = vmatpush1.msra.mxu0 %v933
      %1007 = vmatprep.subr.mxu0 0.0
      %1008 = vmatpush2.msra.mxu0 0.0
      %1009 = vmatprep.subr.mxu0 0.0
      %1010 = vmatpush2.msra.mxu0 0.0
      %1011 = vmatprep.subr.mxu0 0.0
      %1012 = vmatpush2.msra.mxu0 0.0
      %1013 = vmatprep.subr.mxu0 0.0
      %1014 = vmatpush2.msra.mxu0 0.0
      %1015 = vmatprep.subr.mxu0 0.0
      %1016 = vmatpush2.msra.mxu0 0.0
      %1017 = vmatprep.subr.mxu0 0.0
      %1018 = vmatpush2.msra.mxu0 0.0
      %1019 = vmatprep.subr.mxu0 0.0
      %1020 = vmatpush2.msra.mxu0 0.0
      %1021 = vmatprep.subr.mxu0 0.0
      %1022 = vmatpush2.msra.mxu0 0.0
      %1023 = vmatprep.subr.mxu0 0.0
      %1024 = vmatpush2.msra.mxu0 0.0
      %1025 = vmatprep.subr.mxu0 0.0
      %1026 = vmatpush2.msra.mxu0 0.0
      %1027 = vmatprep.subr.mxu0 0.0
      %1028 = vmatpush2.msra.mxu0 0.0
      %1029 = vmatprep.subr.mxu0 0.0
      %1030 = vmatpush2.msra.mxu0 0.0
      %1031 = vmatprep.subr.mxu0 0.0
      %1032 = vmatpush2.msra.mxu0 0.0
      %1033 = vmatprep.subr.mxu0 0.0
      %1034 = vmatpush2.msra.mxu0 0.0
      %1035 = vmatprep.subr.mxu0 0.0
      %1036 = vmatpush2.msra.mxu0 0.0
      %1037 = vmatprep.subr.mxu0 0.0
      %1038 = vmatpush2.msra.mxu0 0.0
      %1039 = vmatprep.mubr.f32.mxu0 0.0
      %1040 = vmatmul.mubr.f32.gmra.mxu0 %v970
      %v1041 = vpop.f32.mrf.mxu0
      %v1042 = vadd.f32 %v961, %v1041
      %v1043 = vpop.f32.mrf.mxu0
      %v1044 = vadd.f32 %v961, %v1043
      %1045 = vmatprep.mubr.f32.mxu0 0.0
      %1046 = vmatmul.mubr.f32.gmra.mxu0 %v973
      %v1047 = vpop.f32.mrf.mxu0
      %v1048 = vadd.f32 %v966, %v1047
      %v1049 = vpop.f32.mrf.mxu0
      %v1050 = vadd.f32 %v966, %v1049
      %1051 = vdwg.mxu0
      %1052 = vmatprep.subr.mxu0 0.0
      %1053 = vmatpush1.msra.mxu0 0.0
      %1054 = vmatprep.subr.mxu0 0.0
      %1055 = vmatpush1.msra.mxu0 0.0
      %1056 = vmatprep.subr.mxu0 0.0
      %1057 = vmatpush1.msra.mxu0 0.0
      %1058 = vmatprep.subr.mxu0 0.0
      %1059 = vmatpush1.msra.mxu0 0.0
      %1060 = vmatprep.subr.mxu0 0.0
      %1061 = vmatpush1.msra.mxu0 0.0
      %1062 = vmatprep.subr.mxu0 0.0
      %1063 = vmatpush1.msra.mxu0 0.0
      %1064 = vmatprep.subr.mxu0 0.0
      %1065 = vmatpush1.msra.mxu0 0.0
      %1066 = vmatprep.subr.mxu0 0.0
      %1067 = vmatpush1.msra.mxu0 0.0
      %1068 = vmatprep.subr.mxu0 0.0
      %1069 = vmatpush1.msra.mxu0 0.0
      %1070 = vmatprep.subr.mxu0 0.0
      %1071 = vmatpush1.msra.mxu0 %v953
      %1072 = vmatprep.subr.mxu0 0.0
      %1073 = vmatpush1.msra.mxu0 %v950
      %1074 = vmatprep.subr.mxu0 0.0
      %1075 = vmatpush1.msra.mxu0 %v947
      %1076 = vmatprep.subr.mxu0 0.0
      %1077 = vmatpush1.msra.mxu0 %v944
      %1078 = vmatprep.subr.mxu0 0.0
      %1079 = vmatpush1.msra.mxu0 %v941
      %1080 = vmatprep.subr.mxu0 0.0
      %1081 = vmatpush1.msra.mxu0 %v938
      %1082 = vmatprep.subr.mxu0 0.0
      %1083 = vmatpush1.msra.mxu0 %v935
      %1084 = vmatprep.subr.mxu0 0.0
      %1085 = vmatpush2.msra.mxu0 0.0
      %1086 = vmatprep.subr.mxu0 0.0
      %1087 = vmatpush2.msra.mxu0 0.0
      %1088 = vmatprep.subr.mxu0 0.0
      %1089 = vmatpush2.msra.mxu0 0.0
      %1090 = vmatprep.subr.mxu0 0.0
      %1091 = vmatpush2.msra.mxu0 0.0
      %1092 = vmatprep.subr.mxu0 0.0
      %1093 = vmatpush2.msra.mxu0 0.0
      %1094 = vmatprep.subr.mxu0 0.0
      %1095 = vmatpush2.msra.mxu0 0.0
      %1096 = vmatprep.subr.mxu0 0.0
      %1097 = vmatpush2.msra.mxu0 0.0
      %1098 = vmatprep.subr.mxu0 0.0
      %1099 = vmatpush2.msra.mxu0 0.0
      %1100 = vmatprep.subr.mxu0 0.0
      %1101 = vmatpush2.msra.mxu0 0.0
      %1102 = vmatprep.subr.mxu0 0.0
      %1103 = vmatpush2.msra.mxu0 0.0
      %1104 = vmatprep.subr.mxu0 0.0
      %1105 = vmatpush2.msra.mxu0 0.0
      %1106 = vmatprep.subr.mxu0 0.0
      %1107 = vmatpush2.msra.mxu0 0.0
      %1108 = vmatprep.subr.mxu0 0.0
      %1109 = vmatpush2.msra.mxu0 0.0
      %1110 = vmatprep.subr.mxu0 0.0
      %1111 = vmatpush2.msra.mxu0 0.0
      %1112 = vmatprep.subr.mxu0 0.0
      %1113 = vmatpush2.msra.mxu0 0.0
      %1114 = vmatprep.subr.mxu0 0.0
      %1115 = vmatpush2.msra.mxu0 0.0
      %1116 = vmatprep.mubr.f32.mxu0 0.0
      %1117 = vmatmul.mubr.f32.gmra.mxu0 %v970
      %v1118 = vpop.f32.mrf.mxu0
      %v1119 = vadd.f32 %v961, %v1118
      %v1120 = vpop.f32.mrf.mxu0
      %1121 = vmatprep.mubr.f32.mxu0 0.0
      %1122 = vmatmul.mubr.f32.gmra.mxu0 %v973
      %v1123 = vpop.f32.mrf.mxu0
      %v1124 = vadd.f32 %v966, %v1123
      %v1125 = vpop.f32.mrf.mxu0
      %1126 = vdwg.mxu0
      %v1127 = vld [vmem:[%s7] sm:$0xff]
      %v1128 = vld [vmem:[%s7 + $0x8] sm:$0xf]
      %vm1129 = vcmp.gt.f32.partialorder %v1042, 0.0
      %vm1130 = vcmp.gt.f32.partialorder %v1044, 0.0
      %vm1131 = vcmp.gt.f32.partialorder %v1119, 0.0
      %vm1132 = vcmp.gt.f32.partialorder %v1048, 0.0
      %vm1133 = vcmp.gt.f32.partialorder %v1050, 0.0
      %vm1134 = vcmp.gt.f32.partialorder %v1124, 0.0
      %1136 = vset.pattern.permute.xlu0 0
      %1137 = vperm.xlu0 %1136, %v1127
      %v1138 = vpop.permute.xlu0 %1137
      %1141 = vset.pattern.permute.xlu0 0
      %1142 = vperm.xlu0 %1141, %v1128
      %v1143 = vpop.permute.xlu0 %1142
      %v1145 = vmul.f32 %v1138, %v1042
      %v1146 = vmul.f32 %v1138, %v1044
      %v1147 = vmul.f32 %v1138, %v1119
      %v1148 = vmul.f32 %v1143, %v1048
      %v1149 = vmul.f32 %v1143, %v1050
      %v1150 = vmul.f32 %v1143, %v1124
      %v1151 = vsel %vm1129, %v1042, %v1145
      %v1152 = vsel %vm1130, %v1044, %v1146
      %v1153 = vsel %vm1131, %v1119, %v1147
      %v1154 = vsel %vm1132, %v1048, %v1148
      %v1155 = vsel %vm1133, %v1050, %v1149
      %v1156 = vsel %vm1134, %v1124, %v1150
      %v1158 = vlaneseq
      %v1159 = vshrl.u32 %v1158, 7
      %v1160 = vsub.s32 0, %v1159
      %v1161 = vrot.slane %v548, %v1160
      %v1162 = vlaneseq
      %v1163 = vshrl.u32 %v1162, 7
      %v1164 = vsub.s32 1, %v1163
      %v1165 = vrot.slane %v548, %v1164
      %v1166 = vlaneseq
      %v1167 = vshrl.u32 %v1166, 7
      %v1168 = vsub.s32 2, %v1167
      %v1169 = vrot.slane %v548, %v1168
      %v1173 = vmul.f32 %v1151, %v1161
      %v1174 = vmul.f32 %v1152, %v1165
      %v1175 = vmul.f32 %v1153, %v1169
      %v1176 = vmul.f32 %v1154, %v1161
      %v1177 = vmul.f32 %v1155, %v1165
      %v1178 = vmul.f32 %v1156, %v1169
      %1185 = vrot.lane.b32.xlu0 %v1173, 52
      %v1186 = vpop.permute.xlu0 %1185
      %1187 = vrot.lane.b32.xlu0 %v1174, 52
      %v1188 = vpop.permute.xlu0 %1187
      %1189 = vrot.lane.b32.xlu0 %v1175, 52
      %v1190 = vpop.permute.xlu0 %1189
      %1191 = vrot.lane.b32.xlu0 %v1176, 52
      %v1192 = vpop.permute.xlu0 %1191
      %1193 = vrot.lane.b32.xlu0 %v1177, 52
      %v1194 = vpop.permute.xlu0 %1193
      %1195 = vrot.lane.b32.xlu0 %v1178, 52
      %v1196 = vpop.permute.xlu0 %1195
      %v1197 = vsel %vm522, %v1186, %v1188
      %v1198 = vsel %vm522, %v1188, %v1190
      %v1199 = vsel %vm522, %v1192, %v1194
      %v1200 = vsel %vm522, %v1194, %v1196
      %vm1209 = vcmask 1047968
      %1210 = vst.msk [vmem:[#allocation3] sm:$0xff] %vm1209, %v1186
      %1211 = vst [vmem:[#allocation3 + $0x8] sm:$0xff] %v1197
      %1212 = vst [vmem:[#allocation3 + $0x10] sm:$0xff] %v1198
      %1213 = vst.msk [vmem:[#allocation3 + $0x18] sm:$0xff] %vm522, %v1190
      %vm1214 = vcmask 1043872
      %1215 = vst.msk [vmem:[#allocation3 + $0x20] sm:$0xf] %vm1214, %v1192
      %1216 = vst [vmem:[#allocation3 + $0x28] sm:$0xf] %v1199
      %1217 = vst [vmem:[#allocation3 + $0x30] sm:$0xf] %v1200
      %1218 = vst.msk [vmem:[#allocation3 + $0x38] sm:$0xf] %vm539, %v1196
      %v1219 = vld [vmem:[#allocation3] sm:$0xff]
      %v1220 = vld [vmem:[#allocation3 + $0x8] sm:$0xff]
      %v1221 = vld [vmem:[#allocation3 + $0x10] sm:$0xff]
      %v1222 = vld [vmem:[#allocation3 + $0x18] sm:$0xff]
      %v1223 = vld [vmem:[#allocation3 + $0x20] sm:$0xf]
      %v1224 = vld [vmem:[#allocation3 + $0x28] sm:$0xf]
      %v1225 = vld [vmem:[#allocation3 + $0x30] sm:$0xf]
      %v1226 = vld [vmem:[#allocation3 + $0x38] sm:$0xf]
      %vm1235 = vcmask 1043456
      %v1236 = vrot.slane %v1219, 4
      %v1237 = vrot.slane %v1220, 4
      %v1238 = vrot.slane %v1221, 4
      %v1239 = vrot.slane %v1222, 4
      %v1240 = vrot.slane %v1223, 4
      %v1241 = vsel %vm1235, %v1236, %v1240
      %v1242 = vrot.slane %v1224, 4
      %v1243 = vsel %vm1235, %v1237, %v1242
      %v1244 = vrot.slane %v1225, 4
      %v1245 = vsel %vm1235, %v1238, %v1244
      %v1246 = vrot.slane %v1226, 4
      %v1247 = vsel %vm1235, %v1239, %v1246
      %1248 = vrot.lane.b32.xlu0 %v1236, 127
      %v1249 = vpop.permute.xlu0 %1248
      %1250 = vrot.lane.b32.xlu0 %v1237, 127
      %v1251 = vpop.permute.xlu0 %1250
      %1252 = vrot.lane.b32.xlu0 %v1238, 127
      %v1253 = vpop.permute.xlu0 %1252
      %1254 = vrot.lane.b32.xlu0 %v1239, 127
      %v1255 = vpop.permute.xlu0 %1254
      %1256 = vrot.lane.b32.xlu0 %v1241, 127
      %v1257 = vpop.permute.xlu0 %1256
      %1258 = vrot.lane.b32.xlu0 %v1243, 127
      %v1259 = vpop.permute.xlu0 %1258
      %1260 = vrot.lane.b32.xlu0 %v1245, 127
      %v1261 = vpop.permute.xlu0 %1260
      %1262 = vrot.lane.b32.xlu0 %v1247, 127
      %v1263 = vpop.permute.xlu0 %1262
      %vm1264 = vcmask 1039360
      %v1265 = vsel %vm1264, %v1249, %v1251
      %v1266 = vsel %vm1264, %v1251, %v1253
      %v1267 = vsel %vm1264, %v1253, %v1255
      %v1268 = vsel %vm1264, %v1257, %v1259
      %v1269 = vsel %vm1264, %v1259, %v1261
      %v1270 = vsel %vm1264, %v1261, %v1263
      %1275 = vrot.lane.b32.xlu0 %v1219, 126
      %v1276 = vpop.permute.xlu0 %1275
      %1277 = vrot.lane.b32.xlu0 %v1220, 126
      %v1278 = vpop.permute.xlu0 %1277
      %1279 = vrot.lane.b32.xlu0 %v1221, 126
      %v1280 = vpop.permute.xlu0 %1279
      %1281 = vrot.lane.b32.xlu0 %v1222, 126
      %v1282 = vpop.permute.xlu0 %1281
      %1283 = vrot.lane.b32.xlu0 %v1223, 126
      %v1284 = vpop.permute.xlu0 %1283
      %1285 = vrot.lane.b32.xlu0 %v1224, 126
      %v1286 = vpop.permute.xlu0 %1285
      %1287 = vrot.lane.b32.xlu0 %v1225, 126
      %v1288 = vpop.permute.xlu0 %1287
      %1289 = vrot.lane.b32.xlu0 %v1226, 126
      %v1290 = vpop.permute.xlu0 %1289
      %vm1291 = vcmask 1031168
      %v1292 = vsel %vm1291, %v1276, %v1278
      %v1293 = vsel %vm1291, %v1278, %v1280
      %v1294 = vsel %vm1291, %v1280, %v1282
      %v1295 = vsel %vm1291, %v1284, %v1286
      %v1296 = vsel %vm1291, %v1286, %v1288
      %v1297 = vsel %vm1291, %v1288, %v1290
      %1302 = vrot.lane.b32.xlu0 %v1236, 104
      %v1303 = vpop.permute.xlu0 %1302
      %1304 = vrot.lane.b32.xlu0 %v1237, 104
      %v1305 = vpop.permute.xlu0 %1304
      %1306 = vrot.lane.b32.xlu0 %v1238, 104
      %v1307 = vpop.permute.xlu0 %1306
      %1308 = vrot.lane.b32.xlu0 %v1239, 104
      %v1309 = vpop.permute.xlu0 %1308
      %1310 = vrot.lane.b32.xlu0 %v1241, 104
      %v1311 = vpop.permute.xlu0 %1310
      %1312 = vrot.lane.b32.xlu0 %v1243, 104
      %v1313 = vpop.permute.xlu0 %1312
      %1314 = vrot.lane.b32.xlu0 %v1245, 104
      %v1315 = vpop.permute.xlu0 %1314
      %1316 = vrot.lane.b32.xlu0 %v1247, 104
      %v1317 = vpop.permute.xlu0 %1316
      %vm1318 = vcmask 850944
      %v1319 = vsel %vm1318, %v1303, %v1305
      %v1320 = vsel %vm1318, %v1305, %v1307
      %v1321 = vsel %vm1318, %v1307, %v1309
      %v1322 = vsel %vm1318, %v1311, %v1313
      %v1323 = vsel %vm1318, %v1313, %v1315
      %v1324 = vsel %vm1318, %v1315, %v1317
      %1329 = vrot.lane.b32.xlu0 %v1219, 103
      %v1330 = vpop.permute.xlu0 %1329
      %1331 = vrot.lane.b32.xlu0 %v1220, 103
      %v1332 = vpop.permute.xlu0 %1331
      %1333 = vrot.lane.b32.xlu0 %v1221, 103
      %v1334 = vpop.permute.xlu0 %1333
      %1335 = vrot.lane.b32.xlu0 %v1222, 103
      %v1336 = vpop.permute.xlu0 %1335
      %1337 = vrot.lane.b32.xlu0 %v1223, 103
      %v1338 = vpop.permute.xlu0 %1337
      %1339 = vrot.lane.b32.xlu0 %v1224, 103
      %v1340 = vpop.permute.xlu0 %1339
      %1341 = vrot.lane.b32.xlu0 %v1225, 103
      %v1342 = vpop.permute.xlu0 %1341
      %1343 = vrot.lane.b32.xlu0 %v1226, 103
      %v1344 = vpop.permute.xlu0 %1343
      %vm1345 = vcmask 842752
      %v1346 = vsel %vm1345, %v1330, %v1332
      %v1347 = vsel %vm1345, %v1332, %v1334
      %v1348 = vsel %vm1345, %v1334, %v1336
      %v1349 = vsel %vm1345, %v1338, %v1340
      %v1350 = vsel %vm1345, %v1340, %v1342
      %v1351 = vsel %vm1345, %v1342, %v1344
      %1356 = vrot.lane.b32.xlu0 %v1236, 102
      %v1357 = vpop.permute.xlu0 %1356
      %1358 = vrot.lane.b32.xlu0 %v1237, 102
      %v1359 = vpop.permute.xlu0 %1358
      %1360 = vrot.lane.b32.xlu0 %v1238, 102
      %v1361 = vpop.permute.xlu0 %1360
      %1362 = vrot.lane.b32.xlu0 %v1239, 102
      %v1363 = vpop.permute.xlu0 %1362
      %1364 = vrot.lane.b32.xlu0 %v1241, 102
      %v1365 = vpop.permute.xlu0 %1364
      %1366 = vrot.lane.b32.xlu0 %v1243, 102
      %v1367 = vpop.permute.xlu0 %1366
      %1368 = vrot.lane.b32.xlu0 %v1245, 102
      %v1369 = vpop.permute.xlu0 %1368
      %1370 = vrot.lane.b32.xlu0 %v1247, 102
      %v1371 = vpop.permute.xlu0 %1370
      %vm1372 = vcmask 834560
      %v1373 = vsel %vm1372, %v1357, %v1359
      %v1374 = vsel %vm1372, %v1359, %v1361
      %v1375 = vsel %vm1372, %v1361, %v1363
      %v1376 = vsel %vm1372, %v1365, %v1367
      %v1377 = vsel %vm1372, %v1367, %v1369
      %v1378 = vsel %vm1372, %v1369, %v1371
      %1383 = vrot.lane.b32.xlu0 %v1219, 80
      %v1384 = vpop.permute.xlu0 %1383
      %1385 = vrot.lane.b32.xlu0 %v1220, 80
      %v1386 = vpop.permute.xlu0 %1385
      %1387 = vrot.lane.b32.xlu0 %v1221, 80
      %v1388 = vpop.permute.xlu0 %1387
      %1389 = vrot.lane.b32.xlu0 %v1222, 80
      %v1390 = vpop.permute.xlu0 %1389
      %1391 = vrot.lane.b32.xlu0 %v1223, 80
      %v1392 = vpop.permute.xlu0 %1391
      %1393 = vrot.lane.b32.xlu0 %v1224, 80
      %v1394 = vpop.permute.xlu0 %1393
      %1395 = vrot.lane.b32.xlu0 %v1225, 80
      %v1396 = vpop.permute.xlu0 %1395
      %1397 = vrot.lane.b32.xlu0 %v1226, 80
      %v1398 = vpop.permute.xlu0 %1397
      %vm1399 = vcmask 654336
      %v1400 = vsel %vm1399, %v1384, %v1386
      %v1401 = vsel %vm1399, %v1386, %v1388
      %v1402 = vsel %vm1399, %v1388, %v1390
      %v1403 = vsel %vm1399, %v1392, %v1394
      %v1404 = vsel %vm1399, %v1394, %v1396
      %v1405 = vsel %vm1399, %v1396, %v1398
      %1410 = vrot.lane.b32.xlu0 %v1236, 79
      %v1411 = vpop.permute.xlu0 %1410
      %1412 = vrot.lane.b32.xlu0 %v1237, 79
      %v1413 = vpop.permute.xlu0 %1412
      %1414 = vrot.lane.b32.xlu0 %v1238, 79
      %v1415 = vpop.permute.xlu0 %1414
      %1416 = vrot.lane.b32.xlu0 %v1239, 79
      %v1417 = vpop.permute.xlu0 %1416
      %1418 = vrot.lane.b32.xlu0 %v1241, 79
      %v1419 = vpop.permute.xlu0 %1418
      %1420 = vrot.lane.b32.xlu0 %v1243, 79
      %v1421 = vpop.permute.xlu0 %1420
      %1422 = vrot.lane.b32.xlu0 %v1245, 79
      %v1423 = vpop.permute.xlu0 %1422
      %1424 = vrot.lane.b32.xlu0 %v1247, 79
      %v1425 = vpop.permute.xlu0 %1424
      %vm1426 = vcmask 646144
      %v1427 = vsel %vm1426, %v1411, %v1413
      %v1428 = vsel %vm1426, %v1413, %v1415
      %v1429 = vsel %vm1426, %v1415, %v1417
      %v1430 = vsel %vm1426, %v1419, %v1421
      %v1431 = vsel %vm1426, %v1421, %v1423
      %v1432 = vsel %vm1426, %v1423, %v1425
      %1437 = vrot.lane.b32.xlu0 %v1219, 78
      %v1438 = vpop.permute.xlu0 %1437
      %1439 = vrot.lane.b32.xlu0 %v1220, 78
      %v1440 = vpop.permute.xlu0 %1439
      %1441 = vrot.lane.b32.xlu0 %v1221, 78
      %v1442 = vpop.permute.xlu0 %1441
      %1443 = vrot.lane.b32.xlu0 %v1222, 78
      %v1444 = vpop.permute.xlu0 %1443
      %1445 = vrot.lane.b32.xlu0 %v1223, 78
      %v1446 = vpop.permute.xlu0 %1445
      %1447 = vrot.lane.b32.xlu0 %v1224, 78
      %v1448 = vpop.permute.xlu0 %1447
      %1449 = vrot.lane.b32.xlu0 %v1225, 78
      %v1450 = vpop.permute.xlu0 %1449
      %1451 = vrot.lane.b32.xlu0 %v1226, 78
      %v1452 = vpop.permute.xlu0 %1451
      %vm1453 = vcmask 637952
      %v1454 = vsel %vm1453, %v1438, %v1440
      %v1455 = vsel %vm1453, %v1440, %v1442
      %v1456 = vsel %vm1453, %v1442, %v1444
      %v1457 = vsel %vm1453, %v1446, %v1448
      %v1458 = vsel %vm1453, %v1448, %v1450
      %v1459 = vsel %vm1453, %v1450, %v1452
      %v1460 = vsel %vm1235, %v1223, %v1265
      %v1461 = vsel %vm1235, %v1224, %v1266
      %v1462 = vsel %vm1235, %v1225, %v1267
      %v1463 = vsel %vm1235, %v1226, %v1255
      %v1464 = vsel %vm1235, %v1295, %v1319
      %v1465 = vsel %vm1235, %v1296, %v1320
      %v1466 = vsel %vm1235, %v1297, %v1321
      %v1467 = vsel %vm1235, %v1290, %v1309
      %v1468 = vsel %vm1235, %v1349, %v1373
      %v1469 = vsel %vm1235, %v1350, %v1374
      %v1470 = vsel %vm1235, %v1351, %v1375
      %v1471 = vsel %vm1235, %v1344, %v1363
      %v1472 = vsel %vm1235, %v1403, %v1427
      %v1473 = vsel %vm1235, %v1404, %v1428
      %v1474 = vsel %vm1235, %v1405, %v1429
      %v1475 = vsel %vm1235, %v1398, %v1417
      %v1476 = vld [vmem:[%s8] sm:$0xff]
      %v1477 = vld [vmem:[%s8 + $0x8] sm:$0xf]
      %v1478 = vld [vmem:[%s9] sm:$0xff]
      %v1479 = vld [vmem:[%s9 + $0x8] sm:$0xf]
      %1481 = vset.pattern.permute.xlu0 0
      %1482 = vperm.xlu0 %1481, %v1478
      %v1483 = vpop.permute.xlu0 %1482
      %1486 = vset.pattern.permute.xlu0 0
      %1487 = vperm.xlu0 %1486, %v1479
      %v1488 = vpop.permute.xlu0 %1487
      %1506 = vrot.lane.b32.xlu0 %v1219, 101
      %v1507 = vpop.permute.xlu0 %1506
      %1508 = vrot.lane.b32.xlu0 %v1220, 101
      %v1509 = vpop.permute.xlu0 %1508
      %1510 = vrot.lane.b32.xlu0 %v1221, 101
      %v1511 = vpop.permute.xlu0 %1510
      %1512 = vrot.lane.b32.xlu0 %v1222, 101
      %v1513 = vpop.permute.xlu0 %1512
      %1514 = vrot.lane.b32.xlu0 %v1460, 101
      %v1515 = vpop.permute.xlu0 %1514
      %1516 = vrot.lane.b32.xlu0 %v1461, 101
      %v1517 = vpop.permute.xlu0 %1516
      %1518 = vrot.lane.b32.xlu0 %v1462, 101
      %v1519 = vpop.permute.xlu0 %1518
      %1520 = vrot.lane.b32.xlu0 %v1463, 101
      %v1521 = vpop.permute.xlu0 %1520
      %1522 = vrot.lane.b32.xlu0 %v1268, 101
      %v1523 = vpop.permute.xlu0 %1522
      %1524 = vrot.lane.b32.xlu0 %v1269, 101
      %v1525 = vpop.permute.xlu0 %1524
      %1526 = vrot.lane.b32.xlu0 %v1270, 101
      %v1527 = vpop.permute.xlu0 %1526
      %1528 = vrot.lane.b32.xlu0 %v1263, 101
      %v1529 = vpop.permute.xlu0 %1528
      %1530 = vrot.lane.b32.xlu0 %v1292, 101
      %v1531 = vpop.permute.xlu0 %1530
      %1532 = vrot.lane.b32.xlu0 %v1293, 101
      %v1533 = vpop.permute.xlu0 %1532
      %1534 = vrot.lane.b32.xlu0 %v1294, 101
      %v1535 = vpop.permute.xlu0 %1534
      %1536 = vrot.lane.b32.xlu0 %v1282, 101
      %v1537 = vpop.permute.xlu0 %1536
      %1538 = vrot.lane.b32.xlu0 %v1464, 101
      %v1539 = vpop.permute.xlu0 %1538
      %1540 = vrot.lane.b32.xlu0 %v1465, 101
      %v1541 = vpop.permute.xlu0 %1540
      %1542 = vrot.lane.b32.xlu0 %v1466, 101
      %v1543 = vpop.permute.xlu0 %1542
      %1544 = vrot.lane.b32.xlu0 %v1467, 101
      %v1545 = vpop.permute.xlu0 %1544
      %1546 = vrot.lane.b32.xlu0 %v1322, 101
      %v1547 = vpop.permute.xlu0 %1546
      %1548 = vrot.lane.b32.xlu0 %v1323, 101
      %v1549 = vpop.permute.xlu0 %1548
      %1550 = vrot.lane.b32.xlu0 %v1324, 101
      %v1551 = vpop.permute.xlu0 %1550
      %1552 = vrot.lane.b32.xlu0 %v1317, 101
      %v1553 = vpop.permute.xlu0 %1552
      %1554 = vrot.lane.b32.xlu0 %v1346, 101
      %v1555 = vpop.permute.xlu0 %1554
      %1556 = vrot.lane.b32.xlu0 %v1347, 101
      %v1557 = vpop.permute.xlu0 %1556
      %1558 = vrot.lane.b32.xlu0 %v1348, 101
      %v1559 = vpop.permute.xlu0 %1558
      %1560 = vrot.lane.b32.xlu0 %v1336, 101
      %v1561 = vpop.permute.xlu0 %1560
      %1562 = vrot.lane.b32.xlu0 %v1468, 101
      %v1563 = vpop.permute.xlu0 %1562
      %1564 = vrot.lane.b32.xlu0 %v1469, 101
      %v1565 = vpop.permute.xlu0 %1564
      %1566 = vrot.lane.b32.xlu0 %v1470, 101
      %v1567 = vpop.permute.xlu0 %1566
      %1568 = vrot.lane.b32.xlu0 %v1471, 101
      %v1569 = vpop.permute.xlu0 %1568
      %1570 = vrot.lane.b32.xlu0 %v1376, 101
      %v1571 = vpop.permute.xlu0 %1570
      %1572 = vrot.lane.b32.xlu0 %v1377, 101
      %v1573 = vpop.permute.xlu0 %1572
      %1574 = vrot.lane.b32.xlu0 %v1378, 101
      %v1575 = vpop.permute.xlu0 %1574
      %1576 = vrot.lane.b32.xlu0 %v1371, 101
      %v1577 = vpop.permute.xlu0 %1576
      %1578 = vrot.lane.b32.xlu0 %v1400, 101
      %v1579 = vpop.permute.xlu0 %1578
      %1580 = vrot.lane.b32.xlu0 %v1401, 101
      %v1581 = vpop.permute.xlu0 %1580
      %1582 = vrot.lane.b32.xlu0 %v1402, 101
      %v1583 = vpop.permute.xlu0 %1582
      %1584 = vrot.lane.b32.xlu0 %v1390, 101
      %v1585 = vpop.permute.xlu0 %1584
      %1586 = vrot.lane.b32.xlu0 %v1472, 101
      %v1587 = vpop.permute.xlu0 %1586
      %1588 = vrot.lane.b32.xlu0 %v1473, 101
      %v1589 = vpop.permute.xlu0 %1588
      %1590 = vrot.lane.b32.xlu0 %v1474, 101
      %v1591 = vpop.permute.xlu0 %1590
      %1592 = vrot.lane.b32.xlu0 %v1475, 101
      %v1593 = vpop.permute.xlu0 %1592
      %1594 = vrot.lane.b32.xlu0 %v1430, 101
      %v1595 = vpop.permute.xlu0 %1594
      %1596 = vrot.lane.b32.xlu0 %v1431, 101
      %v1597 = vpop.permute.xlu0 %1596
      %1598 = vrot.lane.b32.xlu0 %v1432, 101
      %v1599 = vpop.permute.xlu0 %1598
      %1600 = vrot.lane.b32.xlu0 %v1425, 101
      %v1601 = vpop.permute.xlu0 %1600
      %1602 = vrot.lane.b32.xlu0 %v1454, 101
      %v1603 = vpop.permute.xlu0 %1602
      %1604 = vrot.lane.b32.xlu0 %v1455, 101
      %v1605 = vpop.permute.xlu0 %1604
      %1606 = vrot.lane.b32.xlu0 %v1456, 101
      %v1607 = vpop.permute.xlu0 %1606
      %1608 = vrot.lane.b32.xlu0 %v1444, 101
      %v1609 = vpop.permute.xlu0 %1608
      %1610 = vrot.lane.b32.xlu0 %v1457, 101
      %v1611 = vpop.permute.xlu0 %1610
      %1612 = vrot.lane.b32.xlu0 %v1458, 101
      %v1613 = vpop.permute.xlu0 %1612
      %1614 = vrot.lane.b32.xlu0 %v1459, 101
      %v1615 = vpop.permute.xlu0 %1614
      %1616 = vrot.lane.b32.xlu0 %v1452, 101
      %v1617 = vpop.permute.xlu0 %1616
      %vm1618 = vcmask 826368
      %v1619 = vsel %vm1618, %v1507, %v1509
      %v1620 = vsel %vm1618, %v1509, %v1511
      %v1621 = vsel %vm1618, %v1511, %v1513
      %v1622 = vsel %vm1618, %v1515, %v1517
      %v1623 = vsel %vm1618, %v1517, %v1519
      %v1624 = vsel %vm1618, %v1519, %v1521
      %v1625 = vsel %vm1618, %v1523, %v1525
      %v1626 = vsel %vm1618, %v1525, %v1527
      %v1627 = vsel %vm1618, %v1527, %v1529
      %v1628 = vsel %vm1618, %v1531, %v1533
      %v1629 = vsel %vm1618, %v1533, %v1535
      %v1630 = vsel %vm1618, %v1535, %v1537
      %v1631 = vsel %vm1618, %v1539, %v1541
      %v1632 = vsel %vm1618, %v1541, %v1543
      %v1633 = vsel %vm1618, %v1543, %v1545
      %v1634 = vsel %vm1618, %v1547, %v1549
      %v1635 = vsel %vm1618, %v1549, %v1551
      %v1636 = vsel %vm1618, %v1551, %v1553
      %v1637 = vsel %vm1618, %v1555, %v1557
      %v1638 = vsel %vm1618, %v1557, %v1559
      %v1639 = vsel %vm1618, %v1559, %v1561
      %v1640 = vsel %vm1618, %v1563, %v1565
      %v1641 = vsel %vm1618, %v1565, %v1567
      %v1642 = vsel %vm1618, %v1567, %v1569
      %v1643 = vsel %vm1618, %v1571, %v1573
      %v1644 = vsel %vm1618, %v1573, %v1575
      %v1645 = vsel %vm1618, %v1575, %v1577
      %v1646 = vsel %vm1618, %v1579, %v1581
      %v1647 = vsel %vm1618, %v1581, %v1583
      %v1648 = vsel %vm1618, %v1583, %v1585
      %v1649 = vsel %vm1618, %v1587, %v1589
      %v1650 = vsel %vm1618, %v1589, %v1591
      %v1651 = vsel %vm1618, %v1591, %v1593
      %v1652 = vsel %vm1618, %v1595, %v1597
      %v1653 = vsel %vm1618, %v1597, %v1599
      %v1654 = vsel %vm1618, %v1599, %v1601
      %v1655 = vsel %vm1618, %v1603, %v1605
      %v1656 = vsel %vm1618, %v1605, %v1607
      %v1657 = vsel %vm1618, %v1607, %v1609
      %v1658 = vsel %vm1618, %v1611, %v1613
      %v1659 = vsel %vm1618, %v1613, %v1615
      %v1660 = vsel %vm1618, %v1615, %v1617
      %vm1700 = vcmask 883712
      %v1702 = vsel %vm1700, %v1476, 0
      %v1705 = vsel %vm1700, %v1477, 0
      %v1707 = vsel %vm1235, %v1658, 0
      %v1709 = vsel %vm1235, %v1659, 0
      %v1711 = vsel %vm1235, %v1660, 0
      %1713 = vmatprep.subr.mxu0 0.0
      %1714 = vmatpush1.msra.mxu0 0.0
      %1715 = vmatprep.subr.mxu0 0.0
      %1716 = vmatpush1.msra.mxu0 0.0
      %1717 = vmatprep.subr.mxu0 %v1709
      %1718 = vmatpush1.msra.mxu0 %v1707
      %1719 = vmatprep.subr.mxu0 %v1656
      %1720 = vmatpush1.msra.mxu0 %v1655
      %1721 = vmatprep.subr.mxu0 %v1653
      %1722 = vmatpush1.msra.mxu0 %v1652
      %1723 = vmatprep.subr.mxu0 %v1650
      %1724 = vmatpush1.msra.mxu0 %v1649
      %1725 = vmatprep.subr.mxu0 %v1647
      %1726 = vmatpush1.msra.mxu0 %v1646
      %1727 = vmatprep.subr.mxu0 %v1644
      %1728 = vmatpush1.msra.mxu0 %v1643
      %1729 = vmatprep.subr.mxu0 %v1641
      %1730 = vmatpush1.msra.mxu0 %v1640
      %1731 = vmatprep.subr.mxu0 %v1638
      %1732 = vmatpush1.msra.mxu0 %v1637
      %1733 = vmatprep.subr.mxu0 %v1635
      %1734 = vmatpush1.msra.mxu0 %v1634
      %1735 = vmatprep.subr.mxu0 %v1632
      %1736 = vmatpush1.msra.mxu0 %v1631
      %1737 = vmatprep.subr.mxu0 %v1629
      %1738 = vmatpush1.msra.mxu0 %v1628
      %1739 = vmatprep.subr.mxu0 %v1626
      %1740 = vmatpush1.msra.mxu0 %v1625
      %1741 = vmatprep.subr.mxu0 %v1623
      %1742 = vmatpush1.msra.mxu0 %v1622
      %1743 = vmatprep.subr.mxu0 %v1620
      %1744 = vmatpush1.msra.mxu0 %v1619
      %1745 = vmatprep.subr.mxu0 0.0
      %1746 = vmatpush2.msra.mxu0 0.0
      %1747 = vmatprep.subr.mxu0 0.0
      %1748 = vmatpush2.msra.mxu0 0.0
      %1749 = vmatprep.subr.mxu0 0.0
      %1750 = vmatpush2.msra.mxu0 0.0
      %1751 = vmatprep.subr.mxu0 0.0
      %1752 = vmatpush2.msra.mxu0 0.0
      %1753 = vmatprep.subr.mxu0 0.0
      %1754 = vmatpush2.msra.mxu0 0.0
      %1755 = vmatprep.subr.mxu0 0.0
      %1756 = vmatpush2.msra.mxu0 0.0
      %1757 = vmatprep.subr.mxu0 0.0
      %1758 = vmatpush2.msra.mxu0 0.0
      %1759 = vmatprep.subr.mxu0 0.0
      %1760 = vmatpush2.msra.mxu0 0.0
      %1761 = vmatprep.subr.mxu0 0.0
      %1762 = vmatpush2.msra.mxu0 0.0
      %1763 = vmatprep.subr.mxu0 0.0
      %1764 = vmatpush2.msra.mxu0 0.0
      %1765 = vmatprep.subr.mxu0 0.0
      %1766 = vmatpush2.msra.mxu0 0.0
      %1767 = vmatprep.subr.mxu0 0.0
      %1768 = vmatpush2.msra.mxu0 0.0
      %1769 = vmatprep.subr.mxu0 0.0
      %1770 = vmatpush2.msra.mxu0 0.0
      %1771 = vmatprep.subr.mxu0 0.0
      %1772 = vmatpush2.msra.mxu0 0.0
      %1773 = vmatprep.subr.mxu0 0.0
      %1774 = vmatpush2.msra.mxu0 0.0
      %1775 = vmatprep.subr.mxu0 0.0
      %1776 = vmatpush2.msra.mxu0 0.0
      %1777 = vmatprep.mubr.f32.mxu0 0.0
      %1778 = vmatmul.mubr.f32.gmra.mxu0 %v1702
      %v1779 = vpop.f32.mrf.mxu0
      %v1780 = vadd.f32 %v1483, %v1779
      %v1781 = vpop.f32.mrf.mxu0
      %v1782 = vadd.f32 %v1483, %v1781
      %1783 = vmatprep.mubr.f32.mxu0 0.0
      %1784 = vmatmul.mubr.f32.gmra.mxu0 %v1705
      %v1785 = vpop.f32.mrf.mxu0
      %v1786 = vadd.f32 %v1488, %v1785
      %v1787 = vpop.f32.mrf.mxu0
      %v1788 = vadd.f32 %v1488, %v1787
      %1789 = vdwg.mxu0
      %1790 = vmatprep.subr.mxu0 0.0
      %1791 = vmatpush1.msra.mxu0 0.0
      %1792 = vmatprep.subr.mxu0 0.0
      %1793 = vmatpush1.msra.mxu0 0.0
      %1794 = vmatprep.subr.mxu0 0.0
      %1795 = vmatpush1.msra.mxu0 %v1711
      %1796 = vmatprep.subr.mxu0 0.0
      %1797 = vmatpush1.msra.mxu0 %v1657
      %1798 = vmatprep.subr.mxu0 0.0
      %1799 = vmatpush1.msra.mxu0 %v1654
      %1800 = vmatprep.subr.mxu0 0.0
      %1801 = vmatpush1.msra.mxu0 %v1651
      %1802 = vmatprep.subr.mxu0 0.0
      %1803 = vmatpush1.msra.mxu0 %v1648
      %1804 = vmatprep.subr.mxu0 0.0
      %1805 = vmatpush1.msra.mxu0 %v1645
      %1806 = vmatprep.subr.mxu0 0.0
      %1807 = vmatpush1.msra.mxu0 %v1642
      %1808 = vmatprep.subr.mxu0 0.0
      %1809 = vmatpush1.msra.mxu0 %v1639
      %1810 = vmatprep.subr.mxu0 0.0
      %1811 = vmatpush1.msra.mxu0 %v1636
      %1812 = vmatprep.subr.mxu0 0.0
      %1813 = vmatpush1.msra.mxu0 %v1633
      %1814 = vmatprep.subr.mxu0 0.0
      %1815 = vmatpush1.msra.mxu0 %v1630
      %1816 = vmatprep.subr.mxu0 0.0
      %1817 = vmatpush1.msra.mxu0 %v1627
      %1818 = vmatprep.subr.mxu0 0.0
      %1819 = vmatpush1.msra.mxu0 %v1624
      %1820 = vmatprep.subr.mxu0 0.0
      %1821 = vmatpush1.msra.mxu0 %v1621
      %1822 = vmatprep.subr.mxu0 0.0
      %1823 = vmatpush2.msra.mxu0 0.0
      %1824 = vmatprep.subr.mxu0 0.0
      %1825 = vmatpush2.msra.mxu0 0.0
      %1826 = vmatprep.subr.mxu0 0.0
      %1827 = vmatpush2.msra.mxu0 0.0
      %1828 = vmatprep.subr.mxu0 0.0
      %1829 = vmatpush2.msra.mxu0 0.0
      %1830 = vmatprep.subr.mxu0 0.0
      %1831 = vmatpush2.msra.mxu0 0.0
      %1832 = vmatprep.subr.mxu0 0.0
      %1833 = vmatpush2.msra.mxu0 0.0
      %1834 = vmatprep.subr.mxu0 0.0
      %1835 = vmatpush2.msra.mxu0 0.0
      %1836 = vmatprep.subr.mxu0 0.0
      %1837 = vmatpush2.msra.mxu0 0.0
      %1838 = vmatprep.subr.mxu0 0.0
      %1839 = vmatpush2.msra.mxu0 0.0
      %1840 = vmatprep.subr.mxu0 0.0
      %1841 = vmatpush2.msra.mxu0 0.0
      %1842 = vmatprep.subr.mxu0 0.0
      %1843 = vmatpush2.msra.mxu0 0.0
      %1844 = vmatprep.subr.mxu0 0.0
      %1845 = vmatpush2.msra.mxu0 0.0
      %1846 = vmatprep.subr.mxu0 0.0
      %1847 = vmatpush2.msra.mxu0 0.0
      %1848 = vmatprep.subr.mxu0 0.0
      %1849 = vmatpush2.msra.mxu0 0.0
      %1850 = vmatprep.subr.mxu0 0.0
      %1851 = vmatpush2.msra.mxu0 0.0
      %1852 = vmatprep.subr.mxu0 0.0
      %1853 = vmatpush2.msra.mxu0 0.0
      %1854 = vmatprep.mubr.f32.mxu0 0.0
      %1855 = vmatmul.mubr.f32.gmra.mxu0 %v1702
      %v1856 = vpop.f32.mrf.mxu0
      %v1857 = vadd.f32 %v1483, %v1856
      %v1858 = vpop.f32.mrf.mxu0
      %1859 = vmatprep.mubr.f32.mxu0 0.0
      %1860 = vmatmul.mubr.f32.gmra.mxu0 %v1705
      %v1861 = vpop.f32.mrf.mxu0
      %v1862 = vadd.f32 %v1488, %v1861
      %v1863 = vpop.f32.mrf.mxu0
      %1864 = vdwg.mxu0
      %v1865 = vld [vmem:[%s10] sm:$0xff]
      %v1866 = vld [vmem:[%s10 + $0x8] sm:$0xf]
      %vm1867 = vcmp.gt.f32.partialorder %v1780, 0.0
      %vm1868 = vcmp.gt.f32.partialorder %v1782, 0.0
      %vm1869 = vcmp.gt.f32.partialorder %v1857, 0.0
      %vm1870 = vcmp.gt.f32.partialorder %v1786, 0.0
      %vm1871 = vcmp.gt.f32.partialorder %v1788, 0.0
      %vm1872 = vcmp.gt.f32.partialorder %v1862, 0.0
      %1874 = vset.pattern.permute.xlu0 0
      %1875 = vperm.xlu0 %1874, %v1865
      %v1876 = vpop.permute.xlu0 %1875
      %1879 = vset.pattern.permute.xlu0 0
      %1880 = vperm.xlu0 %1879, %v1866
      %v1881 = vpop.permute.xlu0 %1880
      %v1883 = vmul.f32 %v1876, %v1780
      %v1884 = vmul.f32 %v1876, %v1782
      %v1885 = vmul.f32 %v1876, %v1857
      %v1886 = vmul.f32 %v1881, %v1786
      %v1887 = vmul.f32 %v1881, %v1788
      %v1888 = vmul.f32 %v1881, %v1862
      %v1889 = vsel %vm1867, %v1780, %v1883
      %v1890 = vsel %vm1868, %v1782, %v1884
      %v1891 = vsel %vm1869, %v1857, %v1885
      %v1892 = vsel %vm1870, %v1786, %v1886
      %v1893 = vsel %vm1871, %v1788, %v1887
      %v1894 = vsel %vm1872, %v1862, %v1888
      %v1895 = vmul.f32 %v1889, %v1161
      %v1896 = vmul.f32 %v1890, %v1165
      %v1897 = vmul.f32 %v1891, %v1169
      %v1898 = vmul.f32 %v1892, %v1161
      %v1899 = vmul.f32 %v1893, %v1165
      %v1900 = vmul.f32 %v1894, %v1169
      %1907 = vrot.lane.b32.xlu0 %v1895, 52
      %v1908 = vpop.permute.xlu0 %1907
      %1909 = vrot.lane.b32.xlu0 %v1896, 52
      %v1910 = vpop.permute.xlu0 %1909
      %1911 = vrot.lane.b32.xlu0 %v1897, 52
      %v1912 = vpop.permute.xlu0 %1911
      %1913 = vrot.lane.b32.xlu0 %v1898, 52
      %v1914 = vpop.permute.xlu0 %1913
      %1915 = vrot.lane.b32.xlu0 %v1899, 52
      %v1916 = vpop.permute.xlu0 %1915
      %1917 = vrot.lane.b32.xlu0 %v1900, 52
      %v1918 = vpop.permute.xlu0 %1917
      %v1919 = vsel %vm522, %v1908, %v1910
      %v1920 = vsel %vm522, %v1910, %v1912
      %v1921 = vsel %vm522, %v1914, %v1916
      %v1922 = vsel %vm522, %v1916, %v1918
      %1931 = vst.msk [vmem:[#allocation4] sm:$0xff] %vm1209, %v1908
      %1932 = vst [vmem:[#allocation4 + $0x8] sm:$0xff] %v1919
      %1933 = vst [vmem:[#allocation4 + $0x10] sm:$0xff] %v1920
      %1934 = vst.msk [vmem:[#allocation4 + $0x18] sm:$0xff] %vm522, %v1912
      %1935 = vst.msk [vmem:[#allocation4 + $0x20] sm:$0xf] %vm1214, %v1914
      %1936 = vst [vmem:[#allocation4 + $0x28] sm:$0xf] %v1921
      %1937 = vst [vmem:[#allocation4 + $0x30] sm:$0xf] %v1922
      %1938 = vst.msk [vmem:[#allocation4 + $0x38] sm:$0xf] %vm539, %v1918
      %v1939 = vld [vmem:[#allocation4] sm:$0xff]
      %v1940 = vld [vmem:[#allocation4 + $0x8] sm:$0xff]
      %v1941 = vld [vmem:[#allocation4 + $0x10] sm:$0xff]
      %v1942 = vld [vmem:[#allocation4 + $0x18] sm:$0xff]
      %v1943 = vld [vmem:[#allocation4 + $0x20] sm:$0xf]
      %v1944 = vld [vmem:[#allocation4 + $0x28] sm:$0xf]
      %v1945 = vld [vmem:[#allocation4 + $0x30] sm:$0xf]
      %v1946 = vld [vmem:[#allocation4 + $0x38] sm:$0xf]
      %v1955 = vrot.slane %v1939, 4
      %v1956 = vrot.slane %v1940, 4
      %v1957 = vrot.slane %v1941, 4
      %v1958 = vrot.slane %v1942, 4
      %v1959 = vrot.slane %v1943, 4
      %v1960 = vsel %vm1235, %v1955, %v1959
      %v1961 = vrot.slane %v1944, 4
      %v1962 = vsel %vm1235, %v1956, %v1961
      %v1963 = vrot.slane %v1945, 4
      %v1964 = vsel %vm1235, %v1957, %v1963
      %v1965 = vrot.slane %v1946, 4
      %v1966 = vsel %vm1235, %v1958, %v1965
      %1967 = vrot.lane.b32.xlu0 %v1955, 127
      %v1968 = vpop.permute.xlu0 %1967
      %1969 = vrot.lane.b32.xlu0 %v1956, 127
      %v1970 = vpop.permute.xlu0 %1969
      %1971 = vrot.lane.b32.xlu0 %v1957, 127
      %v1972 = vpop.permute.xlu0 %1971
      %1973 = vrot.lane.b32.xlu0 %v1958, 127
      %v1974 = vpop.permute.xlu0 %1973
      %1975 = vrot.lane.b32.xlu0 %v1960, 127
      %v1976 = vpop.permute.xlu0 %1975
      %1977 = vrot.lane.b32.xlu0 %v1962, 127
      %v1978 = vpop.permute.xlu0 %1977
      %1979 = vrot.lane.b32.xlu0 %v1964, 127
      %v1980 = vpop.permute.xlu0 %1979
      %1981 = vrot.lane.b32.xlu0 %v1966, 127
      %v1982 = vpop.permute.xlu0 %1981
      %v1983 = vsel %vm1264, %v1968, %v1970
      %v1984 = vsel %vm1264, %v1970, %v1972
      %v1985 = vsel %vm1264, %v1972, %v1974
      %v1986 = vsel %vm1264, %v1976, %v1978
      %v1987 = vsel %vm1264, %v1978, %v1980
      %v1988 = vsel %vm1264, %v1980, %v1982
      %1993 = vrot.lane.b32.xlu0 %v1939, 126
      %v1994 = vpop.permute.xlu0 %1993
      %1995 = vrot.lane.b32.xlu0 %v1940, 126
      %v1996 = vpop.permute.xlu0 %1995
      %1997 = vrot.lane.b32.xlu0 %v1941, 126
      %v1998 = vpop.permute.xlu0 %1997
      %1999 = vrot.lane.b32.xlu0 %v1942, 126
      %v2000 = vpop.permute.xlu0 %1999
      %2001 = vrot.lane.b32.xlu0 %v1943, 126
      %v2002 = vpop.permute.xlu0 %2001
      %2003 = vrot.lane.b32.xlu0 %v1944, 126
      %v2004 = vpop.permute.xlu0 %2003
      %2005 = vrot.lane.b32.xlu0 %v1945, 126
      %v2006 = vpop.permute.xlu0 %2005
      %2007 = vrot.lane.b32.xlu0 %v1946, 126
      %v2008 = vpop.permute.xlu0 %2007
      %v2009 = vsel %vm1291, %v1994, %v1996
      %v2010 = vsel %vm1291, %v1996, %v1998
      %v2011 = vsel %vm1291, %v1998, %v2000
      %v2012 = vsel %vm1291, %v2002, %v2004
      %v2013 = vsel %vm1291, %v2004, %v2006
      %v2014 = vsel %vm1291, %v2006, %v2008
      %2019 = vrot.lane.b32.xlu0 %v1955, 104
      %v2020 = vpop.permute.xlu0 %2019
      %2021 = vrot.lane.b32.xlu0 %v1956, 104
      %v2022 = vpop.permute.xlu0 %2021
      %2023 = vrot.lane.b32.xlu0 %v1957, 104
      %v2024 = vpop.permute.xlu0 %2023
      %2025 = vrot.lane.b32.xlu0 %v1958, 104
      %v2026 = vpop.permute.xlu0 %2025
      %2027 = vrot.lane.b32.xlu0 %v1960, 104
      %v2028 = vpop.permute.xlu0 %2027
      %2029 = vrot.lane.b32.xlu0 %v1962, 104
      %v2030 = vpop.permute.xlu0 %2029
      %2031 = vrot.lane.b32.xlu0 %v1964, 104
      %v2032 = vpop.permute.xlu0 %2031
      %2033 = vrot.lane.b32.xlu0 %v1966, 104
      %v2034 = vpop.permute.xlu0 %2033
      %v2035 = vsel %vm1318, %v2020, %v2022
      %v2036 = vsel %vm1318, %v2022, %v2024
      %v2037 = vsel %vm1318, %v2024, %v2026
      %v2038 = vsel %vm1318, %v2028, %v2030
      %v2039 = vsel %vm1318, %v2030, %v2032
      %v2040 = vsel %vm1318, %v2032, %v2034
      %2045 = vrot.lane.b32.xlu0 %v1939, 103
      %v2046 = vpop.permute.xlu0 %2045
      %2047 = vrot.lane.b32.xlu0 %v1940, 103
      %v2048 = vpop.permute.xlu0 %2047
      %2049 = vrot.lane.b32.xlu0 %v1941, 103
      %v2050 = vpop.permute.xlu0 %2049
      %2051 = vrot.lane.b32.xlu0 %v1942, 103
      %v2052 = vpop.permute.xlu0 %2051
      %2053 = vrot.lane.b32.xlu0 %v1943, 103
      %v2054 = vpop.permute.xlu0 %2053
      %2055 = vrot.lane.b32.xlu0 %v1944, 103
      %v2056 = vpop.permute.xlu0 %2055
      %2057 = vrot.lane.b32.xlu0 %v1945, 103
      %v2058 = vpop.permute.xlu0 %2057
      %2059 = vrot.lane.b32.xlu0 %v1946, 103
      %v2060 = vpop.permute.xlu0 %2059
      %v2061 = vsel %vm1345, %v2046, %v2048
      %v2062 = vsel %vm1345, %v2048, %v2050
      %v2063 = vsel %vm1345, %v2050, %v2052
      %v2064 = vsel %vm1345, %v2054, %v2056
      %v2065 = vsel %vm1345, %v2056, %v2058
      %v2066 = vsel %vm1345, %v2058, %v2060
      %2071 = vrot.lane.b32.xlu0 %v1955, 102
      %v2072 = vpop.permute.xlu0 %2071
      %2073 = vrot.lane.b32.xlu0 %v1956, 102
      %v2074 = vpop.permute.xlu0 %2073
      %2075 = vrot.lane.b32.xlu0 %v1957, 102
      %v2076 = vpop.permute.xlu0 %2075
      %2077 = vrot.lane.b32.xlu0 %v1958, 102
      %v2078 = vpop.permute.xlu0 %2077
      %2079 = vrot.lane.b32.xlu0 %v1960, 102
      %v2080 = vpop.permute.xlu0 %2079
      %2081 = vrot.lane.b32.xlu0 %v1962, 102
      %v2082 = vpop.permute.xlu0 %2081
      %2083 = vrot.lane.b32.xlu0 %v1964, 102
      %v2084 = vpop.permute.xlu0 %2083
      %2085 = vrot.lane.b32.xlu0 %v1966, 102
      %v2086 = vpop.permute.xlu0 %2085
      %v2087 = vsel %vm1372, %v2072, %v2074
      %v2088 = vsel %vm1372, %v2074, %v2076
      %v2089 = vsel %vm1372, %v2076, %v2078
      %v2090 = vsel %vm1372, %v2080, %v2082
      %v2091 = vsel %vm1372, %v2082, %v2084
      %v2092 = vsel %vm1372, %v2084, %v2086
      %2097 = vrot.lane.b32.xlu0 %v1939, 80
      %v2098 = vpop.permute.xlu0 %2097
      %2099 = vrot.lane.b32.xlu0 %v1940, 80
      %v2100 = vpop.permute.xlu0 %2099
      %2101 = vrot.lane.b32.xlu0 %v1941, 80
      %v2102 = vpop.permute.xlu0 %2101
      %2103 = vrot.lane.b32.xlu0 %v1942, 80
      %v2104 = vpop.permute.xlu0 %2103
      %2105 = vrot.lane.b32.xlu0 %v1943, 80
      %v2106 = vpop.permute.xlu0 %2105
      %2107 = vrot.lane.b32.xlu0 %v1944, 80
      %v2108 = vpop.permute.xlu0 %2107
      %2109 = vrot.lane.b32.xlu0 %v1945, 80
      %v2110 = vpop.permute.xlu0 %2109
      %2111 = vrot.lane.b32.xlu0 %v1946, 80
      %v2112 = vpop.permute.xlu0 %2111
      %v2113 = vsel %vm1399, %v2098, %v2100
      %v2114 = vsel %vm1399, %v2100, %v2102
      %v2115 = vsel %vm1399, %v2102, %v2104
      %v2116 = vsel %vm1399, %v2106, %v2108
      %v2117 = vsel %vm1399, %v2108, %v2110
      %v2118 = vsel %vm1399, %v2110, %v2112
      %2123 = vrot.lane.b32.xlu0 %v1955, 79
      %v2124 = vpop.permute.xlu0 %2123
      %2125 = vrot.lane.b32.xlu0 %v1956, 79
      %v2126 = vpop.permute.xlu0 %2125
      %2127 = vrot.lane.b32.xlu0 %v1957, 79
      %v2128 = vpop.permute.xlu0 %2127
      %2129 = vrot.lane.b32.xlu0 %v1958, 79
      %v2130 = vpop.permute.xlu0 %2129
      %2131 = vrot.lane.b32.xlu0 %v1960, 79
      %v2132 = vpop.permute.xlu0 %2131
      %2133 = vrot.lane.b32.xlu0 %v1962, 79
      %v2134 = vpop.permute.xlu0 %2133
      %2135 = vrot.lane.b32.xlu0 %v1964, 79
      %v2136 = vpop.permute.xlu0 %2135
      %2137 = vrot.lane.b32.xlu0 %v1966, 79
      %v2138 = vpop.permute.xlu0 %2137
      %v2139 = vsel %vm1426, %v2124, %v2126
      %v2140 = vsel %vm1426, %v2126, %v2128
      %v2141 = vsel %vm1426, %v2128, %v2130
      %v2142 = vsel %vm1426, %v2132, %v2134
      %v2143 = vsel %vm1426, %v2134, %v2136
      %v2144 = vsel %vm1426, %v2136, %v2138
      %2149 = vrot.lane.b32.xlu0 %v1939, 78
      %v2150 = vpop.permute.xlu0 %2149
      %2151 = vrot.lane.b32.xlu0 %v1940, 78
      %v2152 = vpop.permute.xlu0 %2151
      %2153 = vrot.lane.b32.xlu0 %v1941, 78
      %v2154 = vpop.permute.xlu0 %2153
      %2155 = vrot.lane.b32.xlu0 %v1942, 78
      %v2156 = vpop.permute.xlu0 %2155
      %2157 = vrot.lane.b32.xlu0 %v1943, 78
      %v2158 = vpop.permute.xlu0 %2157
      %2159 = vrot.lane.b32.xlu0 %v1944, 78
      %v2160 = vpop.permute.xlu0 %2159
      %2161 = vrot.lane.b32.xlu0 %v1945, 78
      %v2162 = vpop.permute.xlu0 %2161
      %2163 = vrot.lane.b32.xlu0 %v1946, 78
      %v2164 = vpop.permute.xlu0 %2163
      %v2165 = vsel %vm1453, %v2150, %v2152
      %v2166 = vsel %vm1453, %v2152, %v2154
      %v2167 = vsel %vm1453, %v2154, %v2156
      %v2168 = vsel %vm1453, %v2158, %v2160
      %v2169 = vsel %vm1453, %v2160, %v2162
      %v2170 = vsel %vm1453, %v2162, %v2164
      %v2171 = vsel %vm1235, %v1943, %v1983
      %v2172 = vsel %vm1235, %v1944, %v1984
      %v2173 = vsel %vm1235, %v1945, %v1985
      %v2174 = vsel %vm1235, %v1946, %v1974
      %v2175 = vsel %vm1235, %v2012, %v2035
      %v2176 = vsel %vm1235, %v2013, %v2036
      %v2177 = vsel %vm1235, %v2014, %v2037
      %v2178 = vsel %vm1235, %v2008, %v2026
      %v2179 = vsel %vm1235, %v2064, %v2087
      %v2180 = vsel %vm1235, %v2065, %v2088
      %v2181 = vsel %vm1235, %v2066, %v2089
      %v2182 = vsel %vm1235, %v2060, %v2078
      %v2183 = vsel %vm1235, %v2116, %v2139
      %v2184 = vsel %vm1235, %v2117, %v2140
      %v2185 = vsel %vm1235, %v2118, %v2141
      %v2186 = vsel %vm1235, %v2112, %v2130
      %s2187 = scalar_lea.vmem %s8, 16
      %v2188 = vld [vmem:[%s2187] sm:$0xff]
      %v2189 = vld [vmem:[%s2187 + $0x8] sm:$0xf]
      %s2190 = scalar_lea.vmem %s9, 16
      %v2191 = vld [vmem:[%s2190] sm:$0xff]
      %v2192 = vld [vmem:[%s2190 + $0x8] sm:$0xf]
      %2194 = vset.pattern.permute.xlu0 0
      %2195 = vperm.xlu0 %2194, %v2191
      %v2196 = vpop.permute.xlu0 %2195
      %2199 = vset.pattern.permute.xlu0 0
      %2200 = vperm.xlu0 %2199, %v2192
      %v2201 = vpop.permute.xlu0 %2200
      %2219 = vrot.lane.b32.xlu0 %v1939, 101
      %v2220 = vpop.permute.xlu0 %2219
      %2221 = vrot.lane.b32.xlu0 %v1940, 101
      %v2222 = vpop.permute.xlu0 %2221
      %2223 = vrot.lane.b32.xlu0 %v1941, 101
      %v2224 = vpop.permute.xlu0 %2223
      %2225 = vrot.lane.b32.xlu0 %v1942, 101
      %v2226 = vpop.permute.xlu0 %2225
      %2227 = vrot.lane.b32.xlu0 %v2171, 101
      %v2228 = vpop.permute.xlu0 %2227
      %2229 = vrot.lane.b32.xlu0 %v2172, 101
      %v2230 = vpop.permute.xlu0 %2229
      %2231 = vrot.lane.b32.xlu0 %v2173, 101
      %v2232 = vpop.permute.xlu0 %2231
      %2233 = vrot.lane.b32.xlu0 %v2174, 101
      %v2234 = vpop.permute.xlu0 %2233
      %2235 = vrot.lane.b32.xlu0 %v1986, 101
      %v2236 = vpop.permute.xlu0 %2235
      %2237 = vrot.lane.b32.xlu0 %v1987, 101
      %v2238 = vpop.permute.xlu0 %2237
      %2239 = vrot.lane.b32.xlu0 %v1988, 101
      %v2240 = vpop.permute.xlu0 %2239
      %2241 = vrot.lane.b32.xlu0 %v1982, 101
      %v2242 = vpop.permute.xlu0 %2241
      %2243 = vrot.lane.b32.xlu0 %v2009, 101
      %v2244 = vpop.permute.xlu0 %2243
      %2245 = vrot.lane.b32.xlu0 %v2010, 101
      %v2246 = vpop.permute.xlu0 %2245
      %2247 = vrot.lane.b32.xlu0 %v2011, 101
      %v2248 = vpop.permute.xlu0 %2247
      %2249 = vrot.lane.b32.xlu0 %v2000, 101
      %v2250 = vpop.permute.xlu0 %2249
      %2251 = vrot.lane.b32.xlu0 %v2175, 101
      %v2252 = vpop.permute.xlu0 %2251
      %2253 = vrot.lane.b32.xlu0 %v2176, 101
      %v2254 = vpop.permute.xlu0 %2253
      %2255 = vrot.lane.b32.xlu0 %v2177, 101
      %v2256 = vpop.permute.xlu0 %2255
      %2257 = vrot.lane.b32.xlu0 %v2178, 101
      %v2258 = vpop.permute.xlu0 %2257
      %2259 = vrot.lane.b32.xlu0 %v2038, 101
      %v2260 = vpop.permute.xlu0 %2259
      %2261 = vrot.lane.b32.xlu0 %v2039, 101
      %v2262 = vpop.permute.xlu0 %2261
      %2263 = vrot.lane.b32.xlu0 %v2040, 101
      %v2264 = vpop.permute.xlu0 %2263
      %2265 = vrot.lane.b32.xlu0 %v2034, 101
      %v2266 = vpop.permute.xlu0 %2265
      %2267 = vrot.lane.b32.xlu0 %v2061, 101
      %v2268 = vpop.permute.xlu0 %2267
      %2269 = vrot.lane.b32.xlu0 %v2062, 101
      %v2270 = vpop.permute.xlu0 %2269
      %2271 = vrot.lane.b32.xlu0 %v2063, 101
      %v2272 = vpop.permute.xlu0 %2271
      %2273 = vrot.lane.b32.xlu0 %v2052, 101
      %v2274 = vpop.permute.xlu0 %2273
      %2275 = vrot.lane.b32.xlu0 %v2179, 101
      %v2276 = vpop.permute.xlu0 %2275
      %2277 = vrot.lane.b32.xlu0 %v2180, 101
      %v2278 = vpop.permute.xlu0 %2277
      %2279 = vrot.lane.b32.xlu0 %v2181, 101
      %v2280 = vpop.permute.xlu0 %2279
      %2281 = vrot.lane.b32.xlu0 %v2182, 101
      %v2282 = vpop.permute.xlu0 %2281
      %2283 = vrot.lane.b32.xlu0 %v2090, 101
      %v2284 = vpop.permute.xlu0 %2283
      %2285 = vrot.lane.b32.xlu0 %v2091, 101
      %v2286 = vpop.permute.xlu0 %2285
      %2287 = vrot.lane.b32.xlu0 %v2092, 101
      %v2288 = vpop.permute.xlu0 %2287
      %2289 = vrot.lane.b32.xlu0 %v2086, 101
      %v2290 = vpop.permute.xlu0 %2289
      %2291 = vrot.lane.b32.xlu0 %v2113, 101
      %v2292 = vpop.permute.xlu0 %2291
      %2293 = vrot.lane.b32.xlu0 %v2114, 101
      %v2294 = vpop.permute.xlu0 %2293
      %2295 = vrot.lane.b32.xlu0 %v2115, 101
      %v2296 = vpop.permute.xlu0 %2295
      %2297 = vrot.lane.b32.xlu0 %v2104, 101
      %v2298 = vpop.permute.xlu0 %2297
      %2299 = vrot.lane.b32.xlu0 %v2183, 101
      %v2300 = vpop.permute.xlu0 %2299
      %2301 = vrot.lane.b32.xlu0 %v2184, 101
      %v2302 = vpop.permute.xlu0 %2301
      %2303 = vrot.lane.b32.xlu0 %v2185, 101
      %v2304 = vpop.permute.xlu0 %2303
      %2305 = vrot.lane.b32.xlu0 %v2186, 101
      %v2306 = vpop.permute.xlu0 %2305
      %2307 = vrot.lane.b32.xlu0 %v2142, 101
      %v2308 = vpop.permute.xlu0 %2307
      %2309 = vrot.lane.b32.xlu0 %v2143, 101
      %v2310 = vpop.permute.xlu0 %2309
      %2311 = vrot.lane.b32.xlu0 %v2144, 101
      %v2312 = vpop.permute.xlu0 %2311
      %2313 = vrot.lane.b32.xlu0 %v2138, 101
      %v2314 = vpop.permute.xlu0 %2313
      %2315 = vrot.lane.b32.xlu0 %v2165, 101
      %v2316 = vpop.permute.xlu0 %2315
      %2317 = vrot.lane.b32.xlu0 %v2166, 101
      %v2318 = vpop.permute.xlu0 %2317
      %2319 = vrot.lane.b32.xlu0 %v2167, 101
      %v2320 = vpop.permute.xlu0 %2319
      %2321 = vrot.lane.b32.xlu0 %v2156, 101
      %v2322 = vpop.permute.xlu0 %2321
      %2323 = vrot.lane.b32.xlu0 %v2168, 101
      %v2324 = vpop.permute.xlu0 %2323
      %2325 = vrot.lane.b32.xlu0 %v2169, 101
      %v2326 = vpop.permute.xlu0 %2325
      %2327 = vrot.lane.b32.xlu0 %v2170, 101
      %v2328 = vpop.permute.xlu0 %2327
      %2329 = vrot.lane.b32.xlu0 %v2164, 101
      %v2330 = vpop.permute.xlu0 %2329
      %v2331 = vsel %vm1618, %v2220, %v2222
      %v2332 = vsel %vm1618, %v2222, %v2224
      %v2333 = vsel %vm1618, %v2224, %v2226
      %v2334 = vsel %vm1618, %v2228, %v2230
      %v2335 = vsel %vm1618, %v2230, %v2232
      %v2336 = vsel %vm1618, %v2232, %v2234
      %v2337 = vsel %vm1618, %v2236, %v2238
      %v2338 = vsel %vm1618, %v2238, %v2240
      %v2339 = vsel %vm1618, %v2240, %v2242
      %v2340 = vsel %vm1618, %v2244, %v2246
      %v2341 = vsel %vm1618, %v2246, %v2248
      %v2342 = vsel %vm1618, %v2248, %v2250
      %v2343 = vsel %vm1618, %v2252, %v2254
      %v2344 = vsel %vm1618, %v2254, %v2256
      %v2345 = vsel %vm1618, %v2256, %v2258
      %v2346 = vsel %vm1618, %v2260, %v2262
      %v2347 = vsel %vm1618, %v2262, %v2264
      %v2348 = vsel %vm1618, %v2264, %v2266
      %v2349 = vsel %vm1618, %v2268, %v2270
      %v2350 = vsel %vm1618, %v2270, %v2272
      %v2351 = vsel %vm1618, %v2272, %v2274
      %v2352 = vsel %vm1618, %v2276, %v2278
      %v2353 = vsel %vm1618, %v2278, %v2280
      %v2354 = vsel %vm1618, %v2280, %v2282
      %v2355 = vsel %vm1618, %v2284, %v2286
      %v2356 = vsel %vm1618, %v2286, %v2288
      %v2357 = vsel %vm1618, %v2288, %v2290
      %v2358 = vsel %vm1618, %v2292, %v2294
      %v2359 = vsel %vm1618, %v2294, %v2296
      %v2360 = vsel %vm1618, %v2296, %v2298
      %v2361 = vsel %vm1618, %v2300, %v2302
      %v2362 = vsel %vm1618, %v2302, %v2304
      %v2363 = vsel %vm1618, %v2304, %v2306
      %v2364 = vsel %vm1618, %v2308, %v2310
      %v2365 = vsel %vm1618, %v2310, %v2312
      %v2366 = vsel %vm1618, %v2312, %v2314
      %v2367 = vsel %vm1618, %v2316, %v2318
      %v2368 = vsel %vm1618, %v2318, %v2320
      %v2369 = vsel %vm1618, %v2320, %v2322
      %v2370 = vsel %vm1618, %v2324, %v2326
      %v2371 = vsel %vm1618, %v2326, %v2328
      %v2372 = vsel %vm1618, %v2328, %v2330
      %v2413 = vsel %vm1700, %v2188, 0
      %v2416 = vsel %vm1700, %v2189, 0
      %v2418 = vsel %vm1235, %v2370, 0
      %v2420 = vsel %vm1235, %v2371, 0
      %v2422 = vsel %vm1235, %v2372, 0
      %2424 = vmatprep.subr.mxu0 0.0
      %2425 = vmatpush1.msra.mxu0 0.0
      %2426 = vmatprep.subr.mxu0 0.0
      %2427 = vmatpush1.msra.mxu0 0.0
      %2428 = vmatprep.subr.mxu0 %v2420
      %2429 = vmatpush1.msra.mxu0 %v2418
      %2430 = vmatprep.subr.mxu0 %v2368
      %2431 = vmatpush1.msra.mxu0 %v2367
      %2432 = vmatprep.subr.mxu0 %v2365
      %2433 = vmatpush1.msra.mxu0 %v2364
      %2434 = vmatprep.subr.mxu0 %v2362
      %2435 = vmatpush1.msra.mxu0 %v2361
      %2436 = vmatprep.subr.mxu0 %v2359
      %2437 = vmatpush1.msra.mxu0 %v2358
      %2438 = vmatprep.subr.mxu0 %v2356
      %2439 = vmatpush1.msra.mxu0 %v2355
      %2440 = vmatprep.subr.mxu0 %v2353
      %2441 = vmatpush1.msra.mxu0 %v2352
      %2442 = vmatprep.subr.mxu0 %v2350
      %2443 = vmatpush1.msra.mxu0 %v2349
      %2444 = vmatprep.subr.mxu0 %v2347
      %2445 = vmatpush1.msra.mxu0 %v2346
      %2446 = vmatprep.subr.mxu0 %v2344
      %2447 = vmatpush1.msra.mxu0 %v2343
      %2448 = vmatprep.subr.mxu0 %v2341
      %2449 = vmatpush1.msra.mxu0 %v2340
      %2450 = vmatprep.subr.mxu0 %v2338
      %2451 = vmatpush1.msra.mxu0 %v2337
      %2452 = vmatprep.subr.mxu0 %v2335
      %2453 = vmatpush1.msra.mxu0 %v2334
      %2454 = vmatprep.subr.mxu0 %v2332
      %2455 = vmatpush1.msra.mxu0 %v2331
      %2456 = vmatprep.subr.mxu0 0.0
      %2457 = vmatpush2.msra.mxu0 0.0
      %2458 = vmatprep.subr.mxu0 0.0
      %2459 = vmatpush2.msra.mxu0 0.0
      %2460 = vmatprep.subr.mxu0 0.0
      %2461 = vmatpush2.msra.mxu0 0.0
      %2462 = vmatprep.subr.mxu0 0.0
      %2463 = vmatpush2.msra.mxu0 0.0
      %2464 = vmatprep.subr.mxu0 0.0
      %2465 = vmatpush2.msra.mxu0 0.0
      %2466 = vmatprep.subr.mxu0 0.0
      %2467 = vmatpush2.msra.mxu0 0.0
      %2468 = vmatprep.subr.mxu0 0.0
      %2469 = vmatpush2.msra.mxu0 0.0
      %2470 = vmatprep.subr.mxu0 0.0
      %2471 = vmatpush2.msra.mxu0 0.0
      %2472 = vmatprep.subr.mxu0 0.0
      %2473 = vmatpush2.msra.mxu0 0.0
      %2474 = vmatprep.subr.mxu0 0.0
      %2475 = vmatpush2.msra.mxu0 0.0
      %2476 = vmatprep.subr.mxu0 0.0
      %2477 = vmatpush2.msra.mxu0 0.0
      %2478 = vmatprep.subr.mxu0 0.0
      %2479 = vmatpush2.msra.mxu0 0.0
      %2480 = vmatprep.subr.mxu0 0.0
      %2481 = vmatpush2.msra.mxu0 0.0
      %2482 = vmatprep.subr.mxu0 0.0
      %2483 = vmatpush2.msra.mxu0 0.0
      %2484 = vmatprep.subr.mxu0 0.0
      %2485 = vmatpush2.msra.mxu0 0.0
      %2486 = vmatprep.subr.mxu0 0.0
      %2487 = vmatpush2.msra.mxu0 0.0
      %2488 = vmatprep.mubr.f32.mxu0 0.0
      %2489 = vmatmul.mubr.f32.gmra.mxu0 %v2413
      %v2490 = vpop.f32.mrf.mxu0
      %v2491 = vadd.f32 %v2196, %v2490
      %v2492 = vpop.f32.mrf.mxu0
      %v2493 = vadd.f32 %v2196, %v2492
      %2494 = vmatprep.mubr.f32.mxu0 0.0
      %2495 = vmatmul.mubr.f32.gmra.mxu0 %v2416
      %v2496 = vpop.f32.mrf.mxu0
      %v2497 = vadd.f32 %v2201, %v2496
      %v2498 = vpop.f32.mrf.mxu0
      %v2499 = vadd.f32 %v2201, %v2498
      %2500 = vdwg.mxu0
      %2501 = vmatprep.subr.mxu0 0.0
      %2502 = vmatpush1.msra.mxu0 0.0
      %2503 = vmatprep.subr.mxu0 0.0
      %2504 = vmatpush1.msra.mxu0 0.0
      %2505 = vmatprep.subr.mxu0 0.0
      %2506 = vmatpush1.msra.mxu0 %v2422
      %2507 = vmatprep.subr.mxu0 0.0
      %2508 = vmatpush1.msra.mxu0 %v2369
      %2509 = vmatprep.subr.mxu0 0.0
      %2510 = vmatpush1.msra.mxu0 %v2366
      %2511 = vmatprep.subr.mxu0 0.0
      %2512 = vmatpush1.msra.mxu0 %v2363
      %2513 = vmatprep.subr.mxu0 0.0
      %2514 = vmatpush1.msra.mxu0 %v2360
      %2515 = vmatprep.subr.mxu0 0.0
      %2516 = vmatpush1.msra.mxu0 %v2357
      %2517 = vmatprep.subr.mxu0 0.0
      %2518 = vmatpush1.msra.mxu0 %v2354
      %2519 = vmatprep.subr.mxu0 0.0
      %2520 = vmatpush1.msra.mxu0 %v2351
      %2521 = vmatprep.subr.mxu0 0.0
      %2522 = vmatpush1.msra.mxu0 %v2348
      %2523 = vmatprep.subr.mxu0 0.0
      %2524 = vmatpush1.msra.mxu0 %v2345
      %2525 = vmatprep.subr.mxu0 0.0
      %2526 = vmatpush1.msra.mxu0 %v2342
      %2527 = vmatprep.subr.mxu0 0.0
      %2528 = vmatpush1.msra.mxu0 %v2339
      %2529 = vmatprep.subr.mxu0 0.0
      %2530 = vmatpush1.msra.mxu0 %v2336
      %2531 = vmatprep.subr.mxu0 0.0
      %2532 = vmatpush1.msra.mxu0 %v2333
      %2533 = vmatprep.subr.mxu0 0.0
      %2534 = vmatpush2.msra.mxu0 0.0
      %2535 = vmatprep.subr.mxu0 0.0
      %2536 = vmatpush2.msra.mxu0 0.0
      %2537 = vmatprep.subr.mxu0 0.0
      %2538 = vmatpush2.msra.mxu0 0.0
      %2539 = vmatprep.subr.mxu0 0.0
      %2540 = vmatpush2.msra.mxu0 0.0
      %2541 = vmatprep.subr.mxu0 0.0
      %2542 = vmatpush2.msra.mxu0 0.0
      %2543 = vmatprep.subr.mxu0 0.0
      %2544 = vmatpush2.msra.mxu0 0.0
      %2545 = vmatprep.subr.mxu0 0.0
      %2546 = vmatpush2.msra.mxu0 0.0
      %2547 = vmatprep.subr.mxu0 0.0
      %2548 = vmatpush2.msra.mxu0 0.0
      %2549 = vmatprep.subr.mxu0 0.0
      %2550 = vmatpush2.msra.mxu0 0.0
      %2551 = vmatprep.subr.mxu0 0.0
      %2552 = vmatpush2.msra.mxu0 0.0
      %2553 = vmatprep.subr.mxu0 0.0
      %2554 = vmatpush2.msra.mxu0 0.0
      %2555 = vmatprep.subr.mxu0 0.0
      %2556 = vmatpush2.msra.mxu0 0.0
      %2557 = vmatprep.subr.mxu0 0.0
      %2558 = vmatpush2.msra.mxu0 0.0
      %2559 = vmatprep.subr.mxu0 0.0
      %2560 = vmatpush2.msra.mxu0 0.0
      %2561 = vmatprep.subr.mxu0 0.0
      %2562 = vmatpush2.msra.mxu0 0.0
      %2563 = vmatprep.subr.mxu0 0.0
      %2564 = vmatpush2.msra.mxu0 0.0
      %2565 = vmatprep.mubr.f32.mxu0 0.0
      %2566 = vmatmul.mubr.f32.gmra.mxu0 %v2413
      %v2567 = vpop.f32.mrf.mxu0
      %v2568 = vadd.f32 %v2196, %v2567
      %v2569 = vpop.f32.mrf.mxu0
      %2570 = vmatprep.mubr.f32.mxu0 0.0
      %2571 = vmatmul.mubr.f32.gmra.mxu0 %v2416
      %v2572 = vpop.f32.mrf.mxu0
      %v2573 = vadd.f32 %v2201, %v2572
      %v2574 = vpop.f32.mrf.mxu0
      %2575 = vdwg.mxu0
      %s2576 = scalar_lea.vmem %s10, 16
      %v2577 = vld [vmem:[%s2576] sm:$0xff]
      %v2578 = vld [vmem:[%s2576 + $0x8] sm:$0xf]
      %vm2579 = vcmp.gt.f32.partialorder %v2491, 0.0
      %vm2580 = vcmp.gt.f32.partialorder %v2493, 0.0
      %vm2581 = vcmp.gt.f32.partialorder %v2568, 0.0
      %vm2582 = vcmp.gt.f32.partialorder %v2497, 0.0
      %vm2583 = vcmp.gt.f32.partialorder %v2499, 0.0
      %vm2584 = vcmp.gt.f32.partialorder %v2573, 0.0
      %2586 = vset.pattern.permute.xlu0 0
      %2587 = vperm.xlu0 %2586, %v2577
      %v2588 = vpop.permute.xlu0 %2587
      %2591 = vset.pattern.permute.xlu0 0
      %2592 = vperm.xlu0 %2591, %v2578
      %v2593 = vpop.permute.xlu0 %2592
      %v2595 = vmul.f32 %v2588, %v2491
      %v2596 = vmul.f32 %v2588, %v2493
      %v2597 = vmul.f32 %v2588, %v2568
      %v2598 = vmul.f32 %v2593, %v2497
      %v2599 = vmul.f32 %v2593, %v2499
      %v2600 = vmul.f32 %v2593, %v2573
      %v2601 = vsel %vm2579, %v2491, %v2595
      %v2602 = vsel %vm2580, %v2493, %v2596
      %v2603 = vsel %vm2581, %v2568, %v2597
      %v2604 = vsel %vm2582, %v2497, %v2598
      %v2605 = vsel %vm2583, %v2499, %v2599
      %v2606 = vsel %vm2584, %v2573, %v2600
      %v2607 = vmul.f32 %v2601, %v1161
      %v2608 = vmul.f32 %v2602, %v1165
      %v2609 = vmul.f32 %v2603, %v1169
      %v2610 = vmul.f32 %v2604, %v1161
      %v2611 = vmul.f32 %v2605, %v1165
      %v2612 = vmul.f32 %v2606, %v1169
      %2619 = vrot.lane.b32.xlu0 %v2607, 52
      %v2620 = vpop.permute.xlu0 %2619
      %2621 = vrot.lane.b32.xlu0 %v2608, 52
      %v2622 = vpop.permute.xlu0 %2621
      %2623 = vrot.lane.b32.xlu0 %v2609, 52
      %v2624 = vpop.permute.xlu0 %2623
      %2625 = vrot.lane.b32.xlu0 %v2610, 52
      %v2626 = vpop.permute.xlu0 %2625
      %2627 = vrot.lane.b32.xlu0 %v2611, 52
      %v2628 = vpop.permute.xlu0 %2627
      %2629 = vrot.lane.b32.xlu0 %v2612, 52
      %v2630 = vpop.permute.xlu0 %2629
      %v2631 = vsel %vm522, %v2620, %v2622
      %v2632 = vsel %vm522, %v2622, %v2624
      %v2633 = vsel %vm522, %v2626, %v2628
      %v2634 = vsel %vm522, %v2628, %v2630
      %2643 = vst.msk [vmem:[#allocation3] sm:$0xff] %vm1209, %v2620
      %2644 = vst [vmem:[#allocation3 + $0x8] sm:$0xff] %v2631
      %2645 = vst [vmem:[#allocation3 + $0x10] sm:$0xff] %v2632
      %2646 = vst.msk [vmem:[#allocation3 + $0x18] sm:$0xff] %vm522, %v2624
      %2647 = vst.msk [vmem:[#allocation3 + $0x20] sm:$0xf] %vm1214, %v2626
      %2648 = vst [vmem:[#allocation3 + $0x28] sm:$0xf] %v2633
      %2649 = vst [vmem:[#allocation3 + $0x30] sm:$0xf] %v2634
      %2650 = vst.msk [vmem:[#allocation3 + $0x38] sm:$0xf] %vm539, %v2630
      %v2651 = vld [vmem:[#allocation3] sm:$0xff]
      %v2652 = vld [vmem:[#allocation3 + $0x8] sm:$0xff]
      %v2653 = vld [vmem:[#allocation3 + $0x10] sm:$0xff]
      %v2654 = vld [vmem:[#allocation3 + $0x18] sm:$0xff]
      %v2655 = vld [vmem:[#allocation3 + $0x20] sm:$0xf]
      %v2656 = vld [vmem:[#allocation3 + $0x28] sm:$0xf]
      %v2657 = vld [vmem:[#allocation3 + $0x30] sm:$0xf]
      %v2658 = vld [vmem:[#allocation3 + $0x38] sm:$0xf]
      %v2667 = vrot.slane %v2651, 4
      %v2668 = vrot.slane %v2652, 4
      %v2669 = vrot.slane %v2653, 4
      %v2670 = vrot.slane %v2654, 4
      %v2671 = vrot.slane %v2655, 4
      %v2672 = vsel %vm1235, %v2667, %v2671
      %v2673 = vrot.slane %v2656, 4
      %v2674 = vsel %vm1235, %v2668, %v2673
      %v2675 = vrot.slane %v2657, 4
      %v2676 = vsel %vm1235, %v2669, %v2675
      %v2677 = vrot.slane %v2658, 4
      %v2678 = vsel %vm1235, %v2670, %v2677
      %2679 = vrot.lane.b32.xlu0 %v2667, 127
      %v2680 = vpop.permute.xlu0 %2679
      %2681 = vrot.lane.b32.xlu0 %v2668, 127
      %v2682 = vpop.permute.xlu0 %2681
      %2683 = vrot.lane.b32.xlu0 %v2669, 127
      %v2684 = vpop.permute.xlu0 %2683
      %2685 = vrot.lane.b32.xlu0 %v2670, 127
      %v2686 = vpop.permute.xlu0 %2685
      %2687 = vrot.lane.b32.xlu0 %v2672, 127
      %v2688 = vpop.permute.xlu0 %2687
      %2689 = vrot.lane.b32.xlu0 %v2674, 127
      %v2690 = vpop.permute.xlu0 %2689
      %2691 = vrot.lane.b32.xlu0 %v2676, 127
      %v2692 = vpop.permute.xlu0 %2691
      %2693 = vrot.lane.b32.xlu0 %v2678, 127
      %v2694 = vpop.permute.xlu0 %2693
      %v2695 = vsel %vm1264, %v2680, %v2682
      %v2696 = vsel %vm1264, %v2682, %v2684
      %v2697 = vsel %vm1264, %v2684, %v2686
      %v2698 = vsel %vm1264, %v2688, %v2690
      %v2699 = vsel %vm1264, %v2690, %v2692
      %v2700 = vsel %vm1264, %v2692, %v2694
      %2705 = vrot.lane.b32.xlu0 %v2651, 126
      %v2706 = vpop.permute.xlu0 %2705
      %2707 = vrot.lane.b32.xlu0 %v2652, 126
      %v2708 = vpop.permute.xlu0 %2707
      %2709 = vrot.lane.b32.xlu0 %v2653, 126
      %v2710 = vpop.permute.xlu0 %2709
      %2711 = vrot.lane.b32.xlu0 %v2654, 126
      %v2712 = vpop.permute.xlu0 %2711
      %2713 = vrot.lane.b32.xlu0 %v2655, 126
      %v2714 = vpop.permute.xlu0 %2713
      %2715 = vrot.lane.b32.xlu0 %v2656, 126
      %v2716 = vpop.permute.xlu0 %2715
      %2717 = vrot.lane.b32.xlu0 %v2657, 126
      %v2718 = vpop.permute.xlu0 %2717
      %2719 = vrot.lane.b32.xlu0 %v2658, 126
      %v2720 = vpop.permute.xlu0 %2719
      %v2721 = vsel %vm1291, %v2706, %v2708
      %v2722 = vsel %vm1291, %v2708, %v2710
      %v2723 = vsel %vm1291, %v2710, %v2712
      %v2724 = vsel %vm1291, %v2714, %v2716
      %v2725 = vsel %vm1291, %v2716, %v2718
      %v2726 = vsel %vm1291, %v2718, %v2720
      %2731 = vrot.lane.b32.xlu0 %v2667, 104
      %v2732 = vpop.permute.xlu0 %2731
      %2733 = vrot.lane.b32.xlu0 %v2668, 104
      %v2734 = vpop.permute.xlu0 %2733
      %2735 = vrot.lane.b32.xlu0 %v2669, 104
      %v2736 = vpop.permute.xlu0 %2735
      %2737 = vrot.lane.b32.xlu0 %v2670, 104
      %v2738 = vpop.permute.xlu0 %2737
      %2739 = vrot.lane.b32.xlu0 %v2672, 104
      %v2740 = vpop.permute.xlu0 %2739
      %2741 = vrot.lane.b32.xlu0 %v2674, 104
      %v2742 = vpop.permute.xlu0 %2741
      %2743 = vrot.lane.b32.xlu0 %v2676, 104
      %v2744 = vpop.permute.xlu0 %2743
      %2745 = vrot.lane.b32.xlu0 %v2678, 104
      %v2746 = vpop.permute.xlu0 %2745
      %v2747 = vsel %vm1318, %v2732, %v2734
      %v2748 = vsel %vm1318, %v2734, %v2736
      %v2749 = vsel %vm1318, %v2736, %v2738
      %v2750 = vsel %vm1318, %v2740, %v2742
      %v2751 = vsel %vm1318, %v2742, %v2744
      %v2752 = vsel %vm1318, %v2744, %v2746
      %2757 = vrot.lane.b32.xlu0 %v2651, 103
      %v2758 = vpop.permute.xlu0 %2757
      %2759 = vrot.lane.b32.xlu0 %v2652, 103
      %v2760 = vpop.permute.xlu0 %2759
      %2761 = vrot.lane.b32.xlu0 %v2653, 103
      %v2762 = vpop.permute.xlu0 %2761
      %2763 = vrot.lane.b32.xlu0 %v2654, 103
      %v2764 = vpop.permute.xlu0 %2763
      %2765 = vrot.lane.b32.xlu0 %v2655, 103
      %v2766 = vpop.permute.xlu0 %2765
      %2767 = vrot.lane.b32.xlu0 %v2656, 103
      %v2768 = vpop.permute.xlu0 %2767
      %2769 = vrot.lane.b32.xlu0 %v2657, 103
      %v2770 = vpop.permute.xlu0 %2769
      %2771 = vrot.lane.b32.xlu0 %v2658, 103
      %v2772 = vpop.permute.xlu0 %2771
      %v2773 = vsel %vm1345, %v2758, %v2760
      %v2774 = vsel %vm1345, %v2760, %v2762
      %v2775 = vsel %vm1345, %v2762, %v2764
      %v2776 = vsel %vm1345, %v2766, %v2768
      %v2777 = vsel %vm1345, %v2768, %v2770
      %v2778 = vsel %vm1345, %v2770, %v2772
      %2783 = vrot.lane.b32.xlu0 %v2667, 102
      %v2784 = vpop.permute.xlu0 %2783
      %2785 = vrot.lane.b32.xlu0 %v2668, 102
      %v2786 = vpop.permute.xlu0 %2785
      %2787 = vrot.lane.b32.xlu0 %v2669, 102
      %v2788 = vpop.permute.xlu0 %2787
      %2789 = vrot.lane.b32.xlu0 %v2670, 102
      %v2790 = vpop.permute.xlu0 %2789
      %2791 = vrot.lane.b32.xlu0 %v2672, 102
      %v2792 = vpop.permute.xlu0 %2791
      %2793 = vrot.lane.b32.xlu0 %v2674, 102
      %v2794 = vpop.permute.xlu0 %2793
      %2795 = vrot.lane.b32.xlu0 %v2676, 102
      %v2796 = vpop.permute.xlu0 %2795
      %2797 = vrot.lane.b32.xlu0 %v2678, 102
      %v2798 = vpop.permute.xlu0 %2797
      %v2799 = vsel %vm1372, %v2784, %v2786
      %v2800 = vsel %vm1372, %v2786, %v2788
      %v2801 = vsel %vm1372, %v2788, %v2790
      %v2802 = vsel %vm1372, %v2792, %v2794
      %v2803 = vsel %vm1372, %v2794, %v2796
      %v2804 = vsel %vm1372, %v2796, %v2798
      %2809 = vrot.lane.b32.xlu0 %v2651, 80
      %v2810 = vpop.permute.xlu0 %2809
      %2811 = vrot.lane.b32.xlu0 %v2652, 80
      %v2812 = vpop.permute.xlu0 %2811
      %2813 = vrot.lane.b32.xlu0 %v2653, 80
      %v2814 = vpop.permute.xlu0 %2813
      %2815 = vrot.lane.b32.xlu0 %v2654, 80
      %v2816 = vpop.permute.xlu0 %2815
      %2817 = vrot.lane.b32.xlu0 %v2655, 80
      %v2818 = vpop.permute.xlu0 %2817
      %2819 = vrot.lane.b32.xlu0 %v2656, 80
      %v2820 = vpop.permute.xlu0 %2819
      %2821 = vrot.lane.b32.xlu0 %v2657, 80
      %v2822 = vpop.permute.xlu0 %2821
      %2823 = vrot.lane.b32.xlu0 %v2658, 80
      %v2824 = vpop.permute.xlu0 %2823
      %v2825 = vsel %vm1399, %v2810, %v2812
      %v2826 = vsel %vm1399, %v2812, %v2814
      %v2827 = vsel %vm1399, %v2814, %v2816
      %v2828 = vsel %vm1399, %v2818, %v2820
      %v2829 = vsel %vm1399, %v2820, %v2822
      %v2830 = vsel %vm1399, %v2822, %v2824
      %2835 = vrot.lane.b32.xlu0 %v2667, 79
      %v2836 = vpop.permute.xlu0 %2835
      %2837 = vrot.lane.b32.xlu0 %v2668, 79
      %v2838 = vpop.permute.xlu0 %2837
      %2839 = vrot.lane.b32.xlu0 %v2669, 79
      %v2840 = vpop.permute.xlu0 %2839
      %2841 = vrot.lane.b32.xlu0 %v2670, 79
      %v2842 = vpop.permute.xlu0 %2841
      %2843 = vrot.lane.b32.xlu0 %v2672, 79
      %v2844 = vpop.permute.xlu0 %2843
      %2845 = vrot.lane.b32.xlu0 %v2674, 79
      %v2846 = vpop.permute.xlu0 %2845
      %2847 = vrot.lane.b32.xlu0 %v2676, 79
      %v2848 = vpop.permute.xlu0 %2847
      %2849 = vrot.lane.b32.xlu0 %v2678, 79
      %v2850 = vpop.permute.xlu0 %2849
      %v2851 = vsel %vm1426, %v2836, %v2838
      %v2852 = vsel %vm1426, %v2838, %v2840
      %v2853 = vsel %vm1426, %v2840, %v2842
      %v2854 = vsel %vm1426, %v2844, %v2846
      %v2855 = vsel %vm1426, %v2846, %v2848
      %v2856 = vsel %vm1426, %v2848, %v2850
      %2861 = vrot.lane.b32.xlu0 %v2651, 78
      %v2862 = vpop.permute.xlu0 %2861
      %2863 = vrot.lane.b32.xlu0 %v2652, 78
      %v2864 = vpop.permute.xlu0 %2863
      %2865 = vrot.lane.b32.xlu0 %v2653, 78
      %v2866 = vpop.permute.xlu0 %2865
      %2867 = vrot.lane.b32.xlu0 %v2654, 78
      %v2868 = vpop.permute.xlu0 %2867
      %2869 = vrot.lane.b32.xlu0 %v2655, 78
      %v2870 = vpop.permute.xlu0 %2869
      %2871 = vrot.lane.b32.xlu0 %v2656, 78
      %v2872 = vpop.permute.xlu0 %2871
      %2873 = vrot.lane.b32.xlu0 %v2657, 78
      %v2874 = vpop.permute.xlu0 %2873
      %2875 = vrot.lane.b32.xlu0 %v2658, 78
      %v2876 = vpop.permute.xlu0 %2875
      %v2877 = vsel %vm1453, %v2862, %v2864
      %v2878 = vsel %vm1453, %v2864, %v2866
      %v2879 = vsel %vm1453, %v2866, %v2868
      %v2880 = vsel %vm1453, %v2870, %v2872
      %v2881 = vsel %vm1453, %v2872, %v2874
      %v2882 = vsel %vm1453, %v2874, %v2876
      %v2883 = vsel %vm1235, %v2655, %v2695
      %v2884 = vsel %vm1235, %v2656, %v2696
      %v2885 = vsel %vm1235, %v2657, %v2697
      %v2886 = vsel %vm1235, %v2658, %v2686
      %v2887 = vsel %vm1235, %v2724, %v2747
      %v2888 = vsel %vm1235, %v2725, %v2748
      %v2889 = vsel %vm1235, %v2726, %v2749
      %v2890 = vsel %vm1235, %v2720, %v2738
      %v2891 = vsel %vm1235, %v2776, %v2799
      %v2892 = vsel %vm1235, %v2777, %v2800
      %v2893 = vsel %vm1235, %v2778, %v2801
      %v2894 = vsel %vm1235, %v2772, %v2790
      %v2895 = vsel %vm1235, %v2828, %v2851
      %v2896 = vsel %vm1235, %v2829, %v2852
      %v2897 = vsel %vm1235, %v2830, %v2853
      %v2898 = vsel %vm1235, %v2824, %v2842
      %s2899 = scalar_lea.vmem %s8, 32
      %v2900 = vld [vmem:[%s2899] sm:$0xff]
      %v2901 = vld [vmem:[%s2899 + $0x8] sm:$0xf]
      %s2902 = scalar_lea.vmem %s9, 32
      %v2903 = vld [vmem:[%s2902] sm:$0xff]
      %v2904 = vld [vmem:[%s2902 + $0x8] sm:$0xf]
      %2906 = vset.pattern.permute.xlu0 0
      %2907 = vperm.xlu0 %2906, %v2903
      %v2908 = vpop.permute.xlu0 %2907
      %2911 = vset.pattern.permute.xlu0 0
      %2912 = vperm.xlu0 %2911, %v2904
      %v2913 = vpop.permute.xlu0 %2912
      %2931 = vrot.lane.b32.xlu0 %v2651, 101
      %v2932 = vpop.permute.xlu0 %2931
      %2933 = vrot.lane.b32.xlu0 %v2652, 101
      %v2934 = vpop.permute.xlu0 %2933
      %2935 = vrot.lane.b32.xlu0 %v2653, 101
      %v2936 = vpop.permute.xlu0 %2935
      %2937 = vrot.lane.b32.xlu0 %v2654, 101
      %v2938 = vpop.permute.xlu0 %2937
      %2939 = vrot.lane.b32.xlu0 %v2883, 101
      %v2940 = vpop.permute.xlu0 %2939
      %2941 = vrot.lane.b32.xlu0 %v2884, 101
      %v2942 = vpop.permute.xlu0 %2941
      %2943 = vrot.lane.b32.xlu0 %v2885, 101
      %v2944 = vpop.permute.xlu0 %2943
      %2945 = vrot.lane.b32.xlu0 %v2886, 101
      %v2946 = vpop.permute.xlu0 %2945
      %2947 = vrot.lane.b32.xlu0 %v2698, 101
      %v2948 = vpop.permute.xlu0 %2947
      %2949 = vrot.lane.b32.xlu0 %v2699, 101
      %v2950 = vpop.permute.xlu0 %2949
      %2951 = vrot.lane.b32.xlu0 %v2700, 101
      %v2952 = vpop.permute.xlu0 %2951
      %2953 = vrot.lane.b32.xlu0 %v2694, 101
      %v2954 = vpop.permute.xlu0 %2953
      %2955 = vrot.lane.b32.xlu0 %v2721, 101
      %v2956 = vpop.permute.xlu0 %2955
      %2957 = vrot.lane.b32.xlu0 %v2722, 101
      %v2958 = vpop.permute.xlu0 %2957
      %2959 = vrot.lane.b32.xlu0 %v2723, 101
      %v2960 = vpop.permute.xlu0 %2959
      %2961 = vrot.lane.b32.xlu0 %v2712, 101
      %v2962 = vpop.permute.xlu0 %2961
      %2963 = vrot.lane.b32.xlu0 %v2887, 101
      %v2964 = vpop.permute.xlu0 %2963
      %2965 = vrot.lane.b32.xlu0 %v2888, 101
      %v2966 = vpop.permute.xlu0 %2965
      %2967 = vrot.lane.b32.xlu0 %v2889, 101
      %v2968 = vpop.permute.xlu0 %2967
      %2969 = vrot.lane.b32.xlu0 %v2890, 101
      %v2970 = vpop.permute.xlu0 %2969
      %2971 = vrot.lane.b32.xlu0 %v2750, 101
      %v2972 = vpop.permute.xlu0 %2971
      %2973 = vrot.lane.b32.xlu0 %v2751, 101
      %v2974 = vpop.permute.xlu0 %2973
      %2975 = vrot.lane.b32.xlu0 %v2752, 101
      %v2976 = vpop.permute.xlu0 %2975
      %2977 = vrot.lane.b32.xlu0 %v2746, 101
      %v2978 = vpop.permute.xlu0 %2977
      %2979 = vrot.lane.b32.xlu0 %v2773, 101
      %v2980 = vpop.permute.xlu0 %2979
      %2981 = vrot.lane.b32.xlu0 %v2774, 101
      %v2982 = vpop.permute.xlu0 %2981
      %2983 = vrot.lane.b32.xlu0 %v2775, 101
      %v2984 = vpop.permute.xlu0 %2983
      %2985 = vrot.lane.b32.xlu0 %v2764, 101
      %v2986 = vpop.permute.xlu0 %2985
      %2987 = vrot.lane.b32.xlu0 %v2891, 101
      %v2988 = vpop.permute.xlu0 %2987
      %2989 = vrot.lane.b32.xlu0 %v2892, 101
      %v2990 = vpop.permute.xlu0 %2989
      %2991 = vrot.lane.b32.xlu0 %v2893, 101
      %v2992 = vpop.permute.xlu0 %2991
      %2993 = vrot.lane.b32.xlu0 %v2894, 101
      %v2994 = vpop.permute.xlu0 %2993
      %2995 = vrot.lane.b32.xlu0 %v2802, 101
      %v2996 = vpop.permute.xlu0 %2995
      %2997 = vrot.lane.b32.xlu0 %v2803, 101
      %v2998 = vpop.permute.xlu0 %2997
      %2999 = vrot.lane.b32.xlu0 %v2804, 101
      %v3000 = vpop.permute.xlu0 %2999
      %3001 = vrot.lane.b32.xlu0 %v2798, 101
      %v3002 = vpop.permute.xlu0 %3001
      %3003 = vrot.lane.b32.xlu0 %v2825, 101
      %v3004 = vpop.permute.xlu0 %3003
      %3005 = vrot.lane.b32.xlu0 %v2826, 101
      %v3006 = vpop.permute.xlu0 %3005
      %3007 = vrot.lane.b32.xlu0 %v2827, 101
      %v3008 = vpop.permute.xlu0 %3007
      %3009 = vrot.lane.b32.xlu0 %v2816, 101
      %v3010 = vpop.permute.xlu0 %3009
      %3011 = vrot.lane.b32.xlu0 %v2895, 101
      %v3012 = vpop.permute.xlu0 %3011
      %3013 = vrot.lane.b32.xlu0 %v2896, 101
      %v3014 = vpop.permute.xlu0 %3013
      %3015 = vrot.lane.b32.xlu0 %v2897, 101
      %v3016 = vpop.permute.xlu0 %3015
      %3017 = vrot.lane.b32.xlu0 %v2898, 101
      %v3018 = vpop.permute.xlu0 %3017
      %3019 = vrot.lane.b32.xlu0 %v2854, 101
      %v3020 = vpop.permute.xlu0 %3019
      %3021 = vrot.lane.b32.xlu0 %v2855, 101
      %v3022 = vpop.permute.xlu0 %3021
      %3023 = vrot.lane.b32.xlu0 %v2856, 101
      %v3024 = vpop.permute.xlu0 %3023
      %3025 = vrot.lane.b32.xlu0 %v2850, 101
      %v3026 = vpop.permute.xlu0 %3025
      %3027 = vrot.lane.b32.xlu0 %v2877, 101
      %v3028 = vpop.permute.xlu0 %3027
      %3029 = vrot.lane.b32.xlu0 %v2878, 101
      %v3030 = vpop.permute.xlu0 %3029
      %3031 = vrot.lane.b32.xlu0 %v2879, 101
      %v3032 = vpop.permute.xlu0 %3031
      %3033 = vrot.lane.b32.xlu0 %v2868, 101
      %v3034 = vpop.permute.xlu0 %3033
      %3035 = vrot.lane.b32.xlu0 %v2880, 101
      %v3036 = vpop.permute.xlu0 %3035
      %3037 = vrot.lane.b32.xlu0 %v2881, 101
      %v3038 = vpop.permute.xlu0 %3037
      %3039 = vrot.lane.b32.xlu0 %v2882, 101
      %v3040 = vpop.permute.xlu0 %3039
      %3041 = vrot.lane.b32.xlu0 %v2876, 101
      %v3042 = vpop.permute.xlu0 %3041
      %v3043 = vsel %vm1618, %v2932, %v2934
      %v3044 = vsel %vm1618, %v2934, %v2936
      %v3045 = vsel %vm1618, %v2936, %v2938
      %v3046 = vsel %vm1618, %v2940, %v2942
      %v3047 = vsel %vm1618, %v2942, %v2944
      %v3048 = vsel %vm1618, %v2944, %v2946
      %v3049 = vsel %vm1618, %v2948, %v2950
      %v3050 = vsel %vm1618, %v2950, %v2952
      %v3051 = vsel %vm1618, %v2952, %v2954
      %v3052 = vsel %vm1618, %v2956, %v2958
      %v3053 = vsel %vm1618, %v2958, %v2960
      %v3054 = vsel %vm1618, %v2960, %v2962
      %v3055 = vsel %vm1618, %v2964, %v2966
      %v3056 = vsel %vm1618, %v2966, %v2968
      %v3057 = vsel %vm1618, %v2968, %v2970
      %v3058 = vsel %vm1618, %v2972, %v2974
      %v3059 = vsel %vm1618, %v2974, %v2976
      %v3060 = vsel %vm1618, %v2976, %v2978
      %v3061 = vsel %vm1618, %v2980, %v2982
      %v3062 = vsel %vm1618, %v2982, %v2984
      %v3063 = vsel %vm1618, %v2984, %v2986
      %v3064 = vsel %vm1618, %v2988, %v2990
      %v3065 = vsel %vm1618, %v2990, %v2992
      %v3066 = vsel %vm1618, %v2992, %v2994
      %v3067 = vsel %vm1618, %v2996, %v2998
      %v3068 = vsel %vm1618, %v2998, %v3000
      %v3069 = vsel %vm1618, %v3000, %v3002
      %v3070 = vsel %vm1618, %v3004, %v3006
      %v3071 = vsel %vm1618, %v3006, %v3008
      %v3072 = vsel %vm1618, %v3008, %v3010
      %v3073 = vsel %vm1618, %v3012, %v3014
      %v3074 = vsel %vm1618, %v3014, %v3016
      %v3075 = vsel %vm1618, %v3016, %v3018
      %v3076 = vsel %vm1618, %v3020, %v3022
      %v3077 = vsel %vm1618, %v3022, %v3024
      %v3078 = vsel %vm1618, %v3024, %v3026
      %v3079 = vsel %vm1618, %v3028, %v3030
      %v3080 = vsel %vm1618, %v3030, %v3032
      %v3081 = vsel %vm1618, %v3032, %v3034
      %v3082 = vsel %vm1618, %v3036, %v3038
      %v3083 = vsel %vm1618, %v3038, %v3040
      %v3084 = vsel %vm1618, %v3040, %v3042
      %v3125 = vsel %vm1700, %v2900, 0
      %v3128 = vsel %vm1700, %v2901, 0
      %v3130 = vsel %vm1235, %v3082, 0
      %v3132 = vsel %vm1235, %v3083, 0
      %v3134 = vsel %vm1235, %v3084, 0
      %3136 = vmatprep.subr.mxu0 0.0
      %3137 = vmatpush1.msra.mxu0 0.0
      %3138 = vmatprep.subr.mxu0 0.0
      %3139 = vmatpush1.msra.mxu0 0.0
      %3140 = vmatprep.subr.mxu0 %v3132
      %3141 = vmatpush1.msra.mxu0 %v3130
      %3142 = vmatprep.subr.mxu0 %v3080
      %3143 = vmatpush1.msra.mxu0 %v3079
      %3144 = vmatprep.subr.mxu0 %v3077
      %3145 = vmatpush1.msra.mxu0 %v3076
      %3146 = vmatprep.subr.mxu0 %v3074
      %3147 = vmatpush1.msra.mxu0 %v3073
      %3148 = vmatprep.subr.mxu0 %v3071
      %3149 = vmatpush1.msra.mxu0 %v3070
      %3150 = vmatprep.subr.mxu0 %v3068
      %3151 = vmatpush1.msra.mxu0 %v3067
      %3152 = vmatprep.subr.mxu0 %v3065
      %3153 = vmatpush1.msra.mxu0 %v3064
      %3154 = vmatprep.subr.mxu0 %v3062
      %3155 = vmatpush1.msra.mxu0 %v3061
      %3156 = vmatprep.subr.mxu0 %v3059
      %3157 = vmatpush1.msra.mxu0 %v3058
      %3158 = vmatprep.subr.mxu0 %v3056
      %3159 = vmatpush1.msra.mxu0 %v3055
      %3160 = vmatprep.subr.mxu0 %v3053
      %3161 = vmatpush1.msra.mxu0 %v3052
      %3162 = vmatprep.subr.mxu0 %v3050
      %3163 = vmatpush1.msra.mxu0 %v3049
      %3164 = vmatprep.subr.mxu0 %v3047
      %3165 = vmatpush1.msra.mxu0 %v3046
      %3166 = vmatprep.subr.mxu0 %v3044
      %3167 = vmatpush1.msra.mxu0 %v3043
      %3168 = vmatprep.subr.mxu0 0.0
      %3169 = vmatpush2.msra.mxu0 0.0
      %3170 = vmatprep.subr.mxu0 0.0
      %3171 = vmatpush2.msra.mxu0 0.0
      %3172 = vmatprep.subr.mxu0 0.0
      %3173 = vmatpush2.msra.mxu0 0.0
      %3174 = vmatprep.subr.mxu0 0.0
      %3175 = vmatpush2.msra.mxu0 0.0
      %3176 = vmatprep.subr.mxu0 0.0
      %3177 = vmatpush2.msra.mxu0 0.0
      %3178 = vmatprep.subr.mxu0 0.0
      %3179 = vmatpush2.msra.mxu0 0.0
      %3180 = vmatprep.subr.mxu0 0.0
      %3181 = vmatpush2.msra.mxu0 0.0
      %3182 = vmatprep.subr.mxu0 0.0
      %3183 = vmatpush2.msra.mxu0 0.0
      %3184 = vmatprep.subr.mxu0 0.0
      %3185 = vmatpush2.msra.mxu0 0.0
      %3186 = vmatprep.subr.mxu0 0.0
      %3187 = vmatpush2.msra.mxu0 0.0
      %3188 = vmatprep.subr.mxu0 0.0
      %3189 = vmatpush2.msra.mxu0 0.0
      %3190 = vmatprep.subr.mxu0 0.0
      %3191 = vmatpush2.msra.mxu0 0.0
      %3192 = vmatprep.subr.mxu0 0.0
      %3193 = vmatpush2.msra.mxu0 0.0
      %3194 = vmatprep.subr.mxu0 0.0
      %3195 = vmatpush2.msra.mxu0 0.0
      %3196 = vmatprep.subr.mxu0 0.0
      %3197 = vmatpush2.msra.mxu0 0.0
      %3198 = vmatprep.subr.mxu0 0.0
      %3199 = vmatpush2.msra.mxu0 0.0
      %3200 = vmatprep.mubr.f32.mxu0 0.0
      %3201 = vmatmul.mubr.f32.gmra.mxu0 %v3125
      %v3202 = vpop.f32.mrf.mxu0
      %v3203 = vadd.f32 %v2908, %v3202
      %v3204 = vpop.f32.mrf.mxu0
      %v3205 = vadd.f32 %v2908, %v3204
      %3206 = vmatprep.mubr.f32.mxu0 0.0
      %3207 = vmatmul.mubr.f32.gmra.mxu0 %v3128
      %v3208 = vpop.f32.mrf.mxu0
      %v3209 = vadd.f32 %v2913, %v3208
      %v3210 = vpop.f32.mrf.mxu0
      %v3211 = vadd.f32 %v2913, %v3210
      %3212 = vdwg.mxu0
      %3213 = vmatprep.subr.mxu0 0.0
      %3214 = vmatpush1.msra.mxu0 0.0
      %3215 = vmatprep.subr.mxu0 0.0
      %3216 = vmatpush1.msra.mxu0 0.0
      %3217 = vmatprep.subr.mxu0 0.0
      %3218 = vmatpush1.msra.mxu0 %v3134
      %3219 = vmatprep.subr.mxu0 0.0
      %3220 = vmatpush1.msra.mxu0 %v3081
      %3221 = vmatprep.subr.mxu0 0.0
      %3222 = vmatpush1.msra.mxu0 %v3078
      %3223 = vmatprep.subr.mxu0 0.0
      %3224 = vmatpush1.msra.mxu0 %v3075
      %3225 = vmatprep.subr.mxu0 0.0
      %3226 = vmatpush1.msra.mxu0 %v3072
      %3227 = vmatprep.subr.mxu0 0.0
      %3228 = vmatpush1.msra.mxu0 %v3069
      %3229 = vmatprep.subr.mxu0 0.0
      %3230 = vmatpush1.msra.mxu0 %v3066
      %3231 = vmatprep.subr.mxu0 0.0
      %3232 = vmatpush1.msra.mxu0 %v3063
      %3233 = vmatprep.subr.mxu0 0.0
      %3234 = vmatpush1.msra.mxu0 %v3060
      %3235 = vmatprep.subr.mxu0 0.0
      %3236 = vmatpush1.msra.mxu0 %v3057
      %3237 = vmatprep.subr.mxu0 0.0
      %3238 = vmatpush1.msra.mxu0 %v3054
      %3239 = vmatprep.subr.mxu0 0.0
      %3240 = vmatpush1.msra.mxu0 %v3051
      %3241 = vmatprep.subr.mxu0 0.0
      %3242 = vmatpush1.msra.mxu0 %v3048
      %3243 = vmatprep.subr.mxu0 0.0
      %3244 = vmatpush1.msra.mxu0 %v3045
      %3245 = vmatprep.subr.mxu0 0.0
      %3246 = vmatpush2.msra.mxu0 0.0
      %3247 = vmatprep.subr.mxu0 0.0
      %3248 = vmatpush2.msra.mxu0 0.0
      %3249 = vmatprep.subr.mxu0 0.0
      %3250 = vmatpush2.msra.mxu0 0.0
      %3251 = vmatprep.subr.mxu0 0.0
      %3252 = vmatpush2.msra.mxu0 0.0
      %3253 = vmatprep.subr.mxu0 0.0
      %3254 = vmatpush2.msra.mxu0 0.0
      %3255 = vmatprep.subr.mxu0 0.0
      %3256 = vmatpush2.msra.mxu0 0.0
      %3257 = vmatprep.subr.mxu0 0.0
      %3258 = vmatpush2.msra.mxu0 0.0
      %3259 = vmatprep.subr.mxu0 0.0
      %3260 = vmatpush2.msra.mxu0 0.0
      %3261 = vmatprep.subr.mxu0 0.0
      %3262 = vmatpush2.msra.mxu0 0.0
      %3263 = vmatprep.subr.mxu0 0.0
      %3264 = vmatpush2.msra.mxu0 0.0
      %3265 = vmatprep.subr.mxu0 0.0
      %3266 = vmatpush2.msra.mxu0 0.0
      %3267 = vmatprep.subr.mxu0 0.0
      %3268 = vmatpush2.msra.mxu0 0.0
      %3269 = vmatprep.subr.mxu0 0.0
      %3270 = vmatpush2.msra.mxu0 0.0
      %3271 = vmatprep.subr.mxu0 0.0
      %3272 = vmatpush2.msra.mxu0 0.0
      %3273 = vmatprep.subr.mxu0 0.0
      %3274 = vmatpush2.msra.mxu0 0.0
      %3275 = vmatprep.subr.mxu0 0.0
      %3276 = vmatpush2.msra.mxu0 0.0
      %3277 = vmatprep.mubr.f32.mxu0 0.0
      %3278 = vmatmul.mubr.f32.gmra.mxu0 %v3125
      %v3279 = vpop.f32.mrf.mxu0
      %v3280 = vadd.f32 %v2908, %v3279
      %v3281 = vpop.f32.mrf.mxu0
      %3282 = vmatprep.mubr.f32.mxu0 0.0
      %3283 = vmatmul.mubr.f32.gmra.mxu0 %v3128
      %v3284 = vpop.f32.mrf.mxu0
      %v3285 = vadd.f32 %v2913, %v3284
      %v3286 = vpop.f32.mrf.mxu0
      %3287 = vdwg.mxu0
      %s3288 = scalar_lea.vmem %s10, 32
      %v3289 = vld [vmem:[%s3288] sm:$0xff]
      %v3290 = vld [vmem:[%s3288 + $0x8] sm:$0xf]
      %vm3291 = vcmp.gt.f32.partialorder %v3203, 0.0
      %vm3292 = vcmp.gt.f32.partialorder %v3205, 0.0
      %vm3293 = vcmp.gt.f32.partialorder %v3280, 0.0
      %vm3294 = vcmp.gt.f32.partialorder %v3209, 0.0
      %vm3295 = vcmp.gt.f32.partialorder %v3211, 0.0
      %vm3296 = vcmp.gt.f32.partialorder %v3285, 0.0
      %3298 = vset.pattern.permute.xlu0 0
      %3299 = vperm.xlu0 %3298, %v3289
      %v3300 = vpop.permute.xlu0 %3299
      %3303 = vset.pattern.permute.xlu0 0
      %3304 = vperm.xlu0 %3303, %v3290
      %v3305 = vpop.permute.xlu0 %3304
      %v3307 = vmul.f32 %v3300, %v3203
      %v3308 = vmul.f32 %v3300, %v3205
      %v3309 = vmul.f32 %v3300, %v3280
      %v3310 = vmul.f32 %v3305, %v3209
      %v3311 = vmul.f32 %v3305, %v3211
      %v3312 = vmul.f32 %v3305, %v3285
      %v3313 = vsel %vm3291, %v3203, %v3307
      %v3314 = vsel %vm3292, %v3205, %v3308
      %v3315 = vsel %vm3293, %v3280, %v3309
      %v3316 = vsel %vm3294, %v3209, %v3310
      %v3317 = vsel %vm3295, %v3211, %v3311
      %v3318 = vsel %vm3296, %v3285, %v3312
      %v3319 = vmul.f32 %v3313, %v1161
      %v3320 = vmul.f32 %v3314, %v1165
      %v3321 = vmul.f32 %v3315, %v1169
      %v3322 = vmul.f32 %v3316, %v1161
      %v3323 = vmul.f32 %v3317, %v1165
      %v3324 = vmul.f32 %v3318, %v1169
      %3331 = vrot.lane.b32.xlu0 %v3319, 52
      %v3332 = vpop.permute.xlu0 %3331
      %3333 = vrot.lane.b32.xlu0 %v3320, 52
      %v3334 = vpop.permute.xlu0 %3333
      %3335 = vrot.lane.b32.xlu0 %v3321, 52
      %v3336 = vpop.permute.xlu0 %3335
      %3337 = vrot.lane.b32.xlu0 %v3322, 52
      %v3338 = vpop.permute.xlu0 %3337
      %3339 = vrot.lane.b32.xlu0 %v3323, 52
      %v3340 = vpop.permute.xlu0 %3339
      %3341 = vrot.lane.b32.xlu0 %v3324, 52
      %v3342 = vpop.permute.xlu0 %3341
      %v3343 = vsel %vm522, %v3332, %v3334
      %v3344 = vsel %vm522, %v3334, %v3336
      %v3345 = vsel %vm522, %v3338, %v3340
      %v3346 = vsel %vm522, %v3340, %v3342
      %3355 = vst.msk [vmem:[#allocation4] sm:$0xff] %vm1209, %v3332
      %3356 = vst [vmem:[#allocation4 + $0x8] sm:$0xff] %v3343
      %3357 = vst [vmem:[#allocation4 + $0x10] sm:$0xff] %v3344
      %3358 = vst.msk [vmem:[#allocation4 + $0x18] sm:$0xff] %vm522, %v3336
      %3359 = vst.msk [vmem:[#allocation4 + $0x20] sm:$0xf] %vm1214, %v3338
      %3360 = vst [vmem:[#allocation4 + $0x28] sm:$0xf] %v3345
      %3361 = vst [vmem:[#allocation4 + $0x30] sm:$0xf] %v3346
      %3362 = vst.msk [vmem:[#allocation4 + $0x38] sm:$0xf] %vm539, %v3342
      %v3363 = vld [vmem:[#allocation4] sm:$0xff]
      %v3364 = vld [vmem:[#allocation4 + $0x8] sm:$0xff]
      %v3365 = vld [vmem:[#allocation4 + $0x10] sm:$0xff]
      %v3366 = vld [vmem:[#allocation4 + $0x18] sm:$0xff]
      %v3367 = vld [vmem:[#allocation4 + $0x20] sm:$0xf]
      %v3368 = vld [vmem:[#allocation4 + $0x28] sm:$0xf]
      %v3369 = vld [vmem:[#allocation4 + $0x30] sm:$0xf]
      %v3370 = vld [vmem:[#allocation4 + $0x38] sm:$0xf]
      %v3379 = vrot.slane %v3363, 4
      %v3380 = vrot.slane %v3364, 4
      %v3381 = vrot.slane %v3365, 4
      %v3382 = vrot.slane %v3366, 4
      %v3383 = vrot.slane %v3367, 4
      %v3384 = vsel %vm1235, %v3379, %v3383
      %v3385 = vrot.slane %v3368, 4
      %v3386 = vsel %vm1235, %v3380, %v3385
      %v3387 = vrot.slane %v3369, 4
      %v3388 = vsel %vm1235, %v3381, %v3387
      %v3389 = vrot.slane %v3370, 4
      %v3390 = vsel %vm1235, %v3382, %v3389
      %3391 = vrot.lane.b32.xlu0 %v3379, 127
      %v3392 = vpop.permute.xlu0 %3391
      %3393 = vrot.lane.b32.xlu0 %v3380, 127
      %v3394 = vpop.permute.xlu0 %3393
      %3395 = vrot.lane.b32.xlu0 %v3381, 127
      %v3396 = vpop.permute.xlu0 %3395
      %3397 = vrot.lane.b32.xlu0 %v3382, 127
      %v3398 = vpop.permute.xlu0 %3397
      %3399 = vrot.lane.b32.xlu0 %v3384, 127
      %v3400 = vpop.permute.xlu0 %3399
      %3401 = vrot.lane.b32.xlu0 %v3386, 127
      %v3402 = vpop.permute.xlu0 %3401
      %3403 = vrot.lane.b32.xlu0 %v3388, 127
      %v3404 = vpop.permute.xlu0 %3403
      %3405 = vrot.lane.b32.xlu0 %v3390, 127
      %v3406 = vpop.permute.xlu0 %3405
      %v3407 = vsel %vm1264, %v3392, %v3394
      %v3408 = vsel %vm1264, %v3394, %v3396
      %v3409 = vsel %vm1264, %v3396, %v3398
      %v3410 = vsel %vm1264, %v3400, %v3402
      %v3411 = vsel %vm1264, %v3402, %v3404
      %v3412 = vsel %vm1264, %v3404, %v3406
      %3417 = vrot.lane.b32.xlu0 %v3363, 126
      %v3418 = vpop.permute.xlu0 %3417
      %3419 = vrot.lane.b32.xlu0 %v3364, 126
      %v3420 = vpop.permute.xlu0 %3419
      %3421 = vrot.lane.b32.xlu0 %v3365, 126
      %v3422 = vpop.permute.xlu0 %3421
      %3423 = vrot.lane.b32.xlu0 %v3366, 126
      %v3424 = vpop.permute.xlu0 %3423
      %3425 = vrot.lane.b32.xlu0 %v3367, 126
      %v3426 = vpop.permute.xlu0 %3425
      %3427 = vrot.lane.b32.xlu0 %v3368, 126
      %v3428 = vpop.permute.xlu0 %3427
      %3429 = vrot.lane.b32.xlu0 %v3369, 126
      %v3430 = vpop.permute.xlu0 %3429
      %3431 = vrot.lane.b32.xlu0 %v3370, 126
      %v3432 = vpop.permute.xlu0 %3431
      %v3433 = vsel %vm1291, %v3418, %v3420
      %v3434 = vsel %vm1291, %v3420, %v3422
      %v3435 = vsel %vm1291, %v3422, %v3424
      %v3436 = vsel %vm1291, %v3426, %v3428
      %v3437 = vsel %vm1291, %v3428, %v3430
      %v3438 = vsel %vm1291, %v3430, %v3432
      %3443 = vrot.lane.b32.xlu0 %v3379, 104
      %v3444 = vpop.permute.xlu0 %3443
      %3445 = vrot.lane.b32.xlu0 %v3380, 104
      %v3446 = vpop.permute.xlu0 %3445
      %3447 = vrot.lane.b32.xlu0 %v3381, 104
      %v3448 = vpop.permute.xlu0 %3447
      %3449 = vrot.lane.b32.xlu0 %v3382, 104
      %v3450 = vpop.permute.xlu0 %3449
      %3451 = vrot.lane.b32.xlu0 %v3384, 104
      %v3452 = vpop.permute.xlu0 %3451
      %3453 = vrot.lane.b32.xlu0 %v3386, 104
      %v3454 = vpop.permute.xlu0 %3453
      %3455 = vrot.lane.b32.xlu0 %v3388, 104
      %v3456 = vpop.permute.xlu0 %3455
      %3457 = vrot.lane.b32.xlu0 %v3390, 104
      %v3458 = vpop.permute.xlu0 %3457
      %v3459 = vsel %vm1318, %v3444, %v3446
      %v3460 = vsel %vm1318, %v3446, %v3448
      %v3461 = vsel %vm1318, %v3448, %v3450
      %v3462 = vsel %vm1318, %v3452, %v3454
      %v3463 = vsel %vm1318, %v3454, %v3456
      %v3464 = vsel %vm1318, %v3456, %v3458
      %3469 = vrot.lane.b32.xlu0 %v3363, 103
      %v3470 = vpop.permute.xlu0 %3469
      %3471 = vrot.lane.b32.xlu0 %v3364, 103
      %v3472 = vpop.permute.xlu0 %3471
      %3473 = vrot.lane.b32.xlu0 %v3365, 103
      %v3474 = vpop.permute.xlu0 %3473
      %3475 = vrot.lane.b32.xlu0 %v3366, 103
      %v3476 = vpop.permute.xlu0 %3475
      %3477 = vrot.lane.b32.xlu0 %v3367, 103
      %v3478 = vpop.permute.xlu0 %3477
      %3479 = vrot.lane.b32.xlu0 %v3368, 103
      %v3480 = vpop.permute.xlu0 %3479
      %3481 = vrot.lane.b32.xlu0 %v3369, 103
      %v3482 = vpop.permute.xlu0 %3481
      %3483 = vrot.lane.b32.xlu0 %v3370, 103
      %v3484 = vpop.permute.xlu0 %3483
      %v3485 = vsel %vm1345, %v3470, %v3472
      %v3486 = vsel %vm1345, %v3472, %v3474
      %v3487 = vsel %vm1345, %v3474, %v3476
      %v3488 = vsel %vm1345, %v3478, %v3480
      %v3489 = vsel %vm1345, %v3480, %v3482
      %v3490 = vsel %vm1345, %v3482, %v3484
      %3495 = vrot.lane.b32.xlu0 %v3379, 102
      %v3496 = vpop.permute.xlu0 %3495
      %3497 = vrot.lane.b32.xlu0 %v3380, 102
      %v3498 = vpop.permute.xlu0 %3497
      %3499 = vrot.lane.b32.xlu0 %v3381, 102
      %v3500 = vpop.permute.xlu0 %3499
      %3501 = vrot.lane.b32.xlu0 %v3382, 102
      %v3502 = vpop.permute.xlu0 %3501
      %3503 = vrot.lane.b32.xlu0 %v3384, 102
      %v3504 = vpop.permute.xlu0 %3503
      %3505 = vrot.lane.b32.xlu0 %v3386, 102
      %v3506 = vpop.permute.xlu0 %3505
      %3507 = vrot.lane.b32.xlu0 %v3388, 102
      %v3508 = vpop.permute.xlu0 %3507
      %3509 = vrot.lane.b32.xlu0 %v3390, 102
      %v3510 = vpop.permute.xlu0 %3509
      %v3511 = vsel %vm1372, %v3496, %v3498
      %v3512 = vsel %vm1372, %v3498, %v3500
      %v3513 = vsel %vm1372, %v3500, %v3502
      %v3514 = vsel %vm1372, %v3504, %v3506
      %v3515 = vsel %vm1372, %v3506, %v3508
      %v3516 = vsel %vm1372, %v3508, %v3510
      %3521 = vrot.lane.b32.xlu0 %v3363, 80
      %v3522 = vpop.permute.xlu0 %3521
      %3523 = vrot.lane.b32.xlu0 %v3364, 80
      %v3524 = vpop.permute.xlu0 %3523
      %3525 = vrot.lane.b32.xlu0 %v3365, 80
      %v3526 = vpop.permute.xlu0 %3525
      %3527 = vrot.lane.b32.xlu0 %v3366, 80
      %v3528 = vpop.permute.xlu0 %3527
      %3529 = vrot.lane.b32.xlu0 %v3367, 80
      %v3530 = vpop.permute.xlu0 %3529
      %3531 = vrot.lane.b32.xlu0 %v3368, 80
      %v3532 = vpop.permute.xlu0 %3531
      %3533 = vrot.lane.b32.xlu0 %v3369, 80
      %v3534 = vpop.permute.xlu0 %3533
      %3535 = vrot.lane.b32.xlu0 %v3370, 80
      %v3536 = vpop.permute.xlu0 %3535
      %v3537 = vsel %vm1399, %v3522, %v3524
      %v3538 = vsel %vm1399, %v3524, %v3526
      %v3539 = vsel %vm1399, %v3526, %v3528
      %v3540 = vsel %vm1399, %v3530, %v3532
      %v3541 = vsel %vm1399, %v3532, %v3534
      %v3542 = vsel %vm1399, %v3534, %v3536
      %3547 = vrot.lane.b32.xlu0 %v3379, 79
      %v3548 = vpop.permute.xlu0 %3547
      %3549 = vrot.lane.b32.xlu0 %v3380, 79
      %v3550 = vpop.permute.xlu0 %3549
      %3551 = vrot.lane.b32.xlu0 %v3381, 79
      %v3552 = vpop.permute.xlu0 %3551
      %3553 = vrot.lane.b32.xlu0 %v3382, 79
      %v3554 = vpop.permute.xlu0 %3553
      %3555 = vrot.lane.b32.xlu0 %v3384, 79
      %v3556 = vpop.permute.xlu0 %3555
      %3557 = vrot.lane.b32.xlu0 %v3386, 79
      %v3558 = vpop.permute.xlu0 %3557
      %3559 = vrot.lane.b32.xlu0 %v3388, 79
      %v3560 = vpop.permute.xlu0 %3559
      %3561 = vrot.lane.b32.xlu0 %v3390, 79
      %v3562 = vpop.permute.xlu0 %3561
      %v3563 = vsel %vm1426, %v3548, %v3550
      %v3564 = vsel %vm1426, %v3550, %v3552
      %v3565 = vsel %vm1426, %v3552, %v3554
      %v3566 = vsel %vm1426, %v3556, %v3558
      %v3567 = vsel %vm1426, %v3558, %v3560
      %v3568 = vsel %vm1426, %v3560, %v3562
      %3573 = vrot.lane.b32.xlu0 %v3363, 78
      %v3574 = vpop.permute.xlu0 %3573
      %3575 = vrot.lane.b32.xlu0 %v3364, 78
      %v3576 = vpop.permute.xlu0 %3575
      %3577 = vrot.lane.b32.xlu0 %v3365, 78
      %v3578 = vpop.permute.xlu0 %3577
      %3579 = vrot.lane.b32.xlu0 %v3366, 78
      %v3580 = vpop.permute.xlu0 %3579
      %3581 = vrot.lane.b32.xlu0 %v3367, 78
      %v3582 = vpop.permute.xlu0 %3581
      %3583 = vrot.lane.b32.xlu0 %v3368, 78
      %v3584 = vpop.permute.xlu0 %3583
      %3585 = vrot.lane.b32.xlu0 %v3369, 78
      %v3586 = vpop.permute.xlu0 %3585
      %3587 = vrot.lane.b32.xlu0 %v3370, 78
      %v3588 = vpop.permute.xlu0 %3587
      %v3589 = vsel %vm1453, %v3574, %v3576
      %v3590 = vsel %vm1453, %v3576, %v3578
      %v3591 = vsel %vm1453, %v3578, %v3580
      %v3592 = vsel %vm1453, %v3582, %v3584
      %v3593 = vsel %vm1453, %v3584, %v3586
      %v3594 = vsel %vm1453, %v3586, %v3588
      %v3595 = vsel %vm1235, %v3367, %v3407
      %v3596 = vsel %vm1235, %v3368, %v3408
      %v3597 = vsel %vm1235, %v3369, %v3409
      %v3598 = vsel %vm1235, %v3370, %v3398
      %v3599 = vsel %vm1235, %v3436, %v3459
      %v3600 = vsel %vm1235, %v3437, %v3460
      %v3601 = vsel %vm1235, %v3438, %v3461
      %v3602 = vsel %vm1235, %v3432, %v3450
      %v3603 = vsel %vm1235, %v3488, %v3511
      %v3604 = vsel %vm1235, %v3489, %v3512
      %v3605 = vsel %vm1235, %v3490, %v3513
      %v3606 = vsel %vm1235, %v3484, %v3502
      %v3607 = vsel %vm1235, %v3540, %v3563
      %v3608 = vsel %vm1235, %v3541, %v3564
      %v3609 = vsel %vm1235, %v3542, %v3565
      %v3610 = vsel %vm1235, %v3536, %v3554
      %s3611 = scalar_lea.vmem %s8, 48
      %v3612 = vld [vmem:[%s3611] sm:$0xff]
      %v3613 = vld [vmem:[%s3611 + $0x8] sm:$0xf]
      %s3614 = scalar_lea.vmem %s9, 48
      %v3615 = vld [vmem:[%s3614] sm:$0xff]
      %v3616 = vld [vmem:[%s3614 + $0x8] sm:$0xf]
      %3618 = vset.pattern.permute.xlu0 0
      %3619 = vperm.xlu0 %3618, %v3615
      %v3620 = vpop.permute.xlu0 %3619
      %3623 = vset.pattern.permute.xlu0 0
      %3624 = vperm.xlu0 %3623, %v3616
      %v3625 = vpop.permute.xlu0 %3624
      %3643 = vrot.lane.b32.xlu0 %v3363, 101
      %v3644 = vpop.permute.xlu0 %3643
      %3645 = vrot.lane.b32.xlu0 %v3364, 101
      %v3646 = vpop.permute.xlu0 %3645
      %3647 = vrot.lane.b32.xlu0 %v3365, 101
      %v3648 = vpop.permute.xlu0 %3647
      %3649 = vrot.lane.b32.xlu0 %v3366, 101
      %v3650 = vpop.permute.xlu0 %3649
      %3651 = vrot.lane.b32.xlu0 %v3595, 101
      %v3652 = vpop.permute.xlu0 %3651
      %3653 = vrot.lane.b32.xlu0 %v3596, 101
      %v3654 = vpop.permute.xlu0 %3653
      %3655 = vrot.lane.b32.xlu0 %v3597, 101
      %v3656 = vpop.permute.xlu0 %3655
      %3657 = vrot.lane.b32.xlu0 %v3598, 101
      %v3658 = vpop.permute.xlu0 %3657
      %3659 = vrot.lane.b32.xlu0 %v3410, 101
      %v3660 = vpop.permute.xlu0 %3659
      %3661 = vrot.lane.b32.xlu0 %v3411, 101
      %v3662 = vpop.permute.xlu0 %3661
      %3663 = vrot.lane.b32.xlu0 %v3412, 101
      %v3664 = vpop.permute.xlu0 %3663
      %3665 = vrot.lane.b32.xlu0 %v3406, 101
      %v3666 = vpop.permute.xlu0 %3665
      %3667 = vrot.lane.b32.xlu0 %v3433, 101
      %v3668 = vpop.permute.xlu0 %3667
      %3669 = vrot.lane.b32.xlu0 %v3434, 101
      %v3670 = vpop.permute.xlu0 %3669
      %3671 = vrot.lane.b32.xlu0 %v3435, 101
      %v3672 = vpop.permute.xlu0 %3671
      %3673 = vrot.lane.b32.xlu0 %v3424, 101
      %v3674 = vpop.permute.xlu0 %3673
      %3675 = vrot.lane.b32.xlu0 %v3599, 101
      %v3676 = vpop.permute.xlu0 %3675
      %3677 = vrot.lane.b32.xlu0 %v3600, 101
      %v3678 = vpop.permute.xlu0 %3677
      %3679 = vrot.lane.b32.xlu0 %v3601, 101
      %v3680 = vpop.permute.xlu0 %3679
      %3681 = vrot.lane.b32.xlu0 %v3602, 101
      %v3682 = vpop.permute.xlu0 %3681
      %3683 = vrot.lane.b32.xlu0 %v3462, 101
      %v3684 = vpop.permute.xlu0 %3683
      %3685 = vrot.lane.b32.xlu0 %v3463, 101
      %v3686 = vpop.permute.xlu0 %3685
      %3687 = vrot.lane.b32.xlu0 %v3464, 101
      %v3688 = vpop.permute.xlu0 %3687
      %3689 = vrot.lane.b32.xlu0 %v3458, 101
      %v3690 = vpop.permute.xlu0 %3689
      %3691 = vrot.lane.b32.xlu0 %v3485, 101
      %v3692 = vpop.permute.xlu0 %3691
      %3693 = vrot.lane.b32.xlu0 %v3486, 101
      %v3694 = vpop.permute.xlu0 %3693
      %3695 = vrot.lane.b32.xlu0 %v3487, 101
      %v3696 = vpop.permute.xlu0 %3695
      %3697 = vrot.lane.b32.xlu0 %v3476, 101
      %v3698 = vpop.permute.xlu0 %3697
      %3699 = vrot.lane.b32.xlu0 %v3603, 101
      %v3700 = vpop.permute.xlu0 %3699
      %3701 = vrot.lane.b32.xlu0 %v3604, 101
      %v3702 = vpop.permute.xlu0 %3701
      %3703 = vrot.lane.b32.xlu0 %v3605, 101
      %v3704 = vpop.permute.xlu0 %3703
      %3705 = vrot.lane.b32.xlu0 %v3606, 101
      %v3706 = vpop.permute.xlu0 %3705
      %3707 = vrot.lane.b32.xlu0 %v3514, 101
      %v3708 = vpop.permute.xlu0 %3707
      %3709 = vrot.lane.b32.xlu0 %v3515, 101
      %v3710 = vpop.permute.xlu0 %3709
      %3711 = vrot.lane.b32.xlu0 %v3516, 101
      %v3712 = vpop.permute.xlu0 %3711
      %3713 = vrot.lane.b32.xlu0 %v3510, 101
      %v3714 = vpop.permute.xlu0 %3713
      %3715 = vrot.lane.b32.xlu0 %v3537, 101
      %v3716 = vpop.permute.xlu0 %3715
      %3717 = vrot.lane.b32.xlu0 %v3538, 101
      %v3718 = vpop.permute.xlu0 %3717
      %3719 = vrot.lane.b32.xlu0 %v3539, 101
      %v3720 = vpop.permute.xlu0 %3719
      %3721 = vrot.lane.b32.xlu0 %v3528, 101
      %v3722 = vpop.permute.xlu0 %3721
      %3723 = vrot.lane.b32.xlu0 %v3607, 101
      %v3724 = vpop.permute.xlu0 %3723
      %3725 = vrot.lane.b32.xlu0 %v3608, 101
      %v3726 = vpop.permute.xlu0 %3725
      %3727 = vrot.lane.b32.xlu0 %v3609, 101
      %v3728 = vpop.permute.xlu0 %3727
      %3729 = vrot.lane.b32.xlu0 %v3610, 101
      %v3730 = vpop.permute.xlu0 %3729
      %3731 = vrot.lane.b32.xlu0 %v3566, 101
      %v3732 = vpop.permute.xlu0 %3731
      %3733 = vrot.lane.b32.xlu0 %v3567, 101
      %v3734 = vpop.permute.xlu0 %3733
      %3735 = vrot.lane.b32.xlu0 %v3568, 101
      %v3736 = vpop.permute.xlu0 %3735
      %3737 = vrot.lane.b32.xlu0 %v3562, 101
      %v3738 = vpop.permute.xlu0 %3737
      %3739 = vrot.lane.b32.xlu0 %v3589, 101
      %v3740 = vpop.permute.xlu0 %3739
      %3741 = vrot.lane.b32.xlu0 %v3590, 101
      %v3742 = vpop.permute.xlu0 %3741
      %3743 = vrot.lane.b32.xlu0 %v3591, 101
      %v3744 = vpop.permute.xlu0 %3743
      %3745 = vrot.lane.b32.xlu0 %v3580, 101
      %v3746 = vpop.permute.xlu0 %3745
      %3747 = vrot.lane.b32.xlu0 %v3592, 101
      %v3748 = vpop.permute.xlu0 %3747
      %3749 = vrot.lane.b32.xlu0 %v3593, 101
      %v3750 = vpop.permute.xlu0 %3749
      %3751 = vrot.lane.b32.xlu0 %v3594, 101
      %v3752 = vpop.permute.xlu0 %3751
      %3753 = vrot.lane.b32.xlu0 %v3588, 101
      %v3754 = vpop.permute.xlu0 %3753
      %v3755 = vsel %vm1618, %v3644, %v3646
      %v3756 = vsel %vm1618, %v3646, %v3648
      %v3757 = vsel %vm1618, %v3648, %v3650
      %v3758 = vsel %vm1618, %v3652, %v3654
      %v3759 = vsel %vm1618, %v3654, %v3656
      %v3760 = vsel %vm1618, %v3656, %v3658
      %v3761 = vsel %vm1618, %v3660, %v3662
      %v3762 = vsel %vm1618, %v3662, %v3664
      %v3763 = vsel %vm1618, %v3664, %v3666
      %v3764 = vsel %vm1618, %v3668, %v3670
      %v3765 = vsel %vm1618, %v3670, %v3672
      %v3766 = vsel %vm1618, %v3672, %v3674
      %v3767 = vsel %vm1618, %v3676, %v3678
      %v3768 = vsel %vm1618, %v3678, %v3680
      %v3769 = vsel %vm1618, %v3680, %v3682
      %v3770 = vsel %vm1618, %v3684, %v3686
      %v3771 = vsel %vm1618, %v3686, %v3688
      %v3772 = vsel %vm1618, %v3688, %v3690
      %v3773 = vsel %vm1618, %v3692, %v3694
      %v3774 = vsel %vm1618, %v3694, %v3696
      %v3775 = vsel %vm1618, %v3696, %v3698
      %v3776 = vsel %vm1618, %v3700, %v3702
      %v3777 = vsel %vm1618, %v3702, %v3704
      %v3778 = vsel %vm1618, %v3704, %v3706
      %v3779 = vsel %vm1618, %v3708, %v3710
      %v3780 = vsel %vm1618, %v3710, %v3712
      %v3781 = vsel %vm1618, %v3712, %v3714
      %v3782 = vsel %vm1618, %v3716, %v3718
      %v3783 = vsel %vm1618, %v3718, %v3720
      %v3784 = vsel %vm1618, %v3720, %v3722
      %v3785 = vsel %vm1618, %v3724, %v3726
      %v3786 = vsel %vm1618, %v3726, %v3728
      %v3787 = vsel %vm1618, %v3728, %v3730
      %v3788 = vsel %vm1618, %v3732, %v3734
      %v3789 = vsel %vm1618, %v3734, %v3736
      %v3790 = vsel %vm1618, %v3736, %v3738
      %v3791 = vsel %vm1618, %v3740, %v3742
      %v3792 = vsel %vm1618, %v3742, %v3744
      %v3793 = vsel %vm1618, %v3744, %v3746
      %v3794 = vsel %vm1618, %v3748, %v3750
      %v3795 = vsel %vm1618, %v3750, %v3752
      %v3796 = vsel %vm1618, %v3752, %v3754
      %v3837 = vsel %vm1700, %v3612, 0
      %v3840 = vsel %vm1700, %v3613, 0
      %v3842 = vsel %vm1235, %v3794, 0
      %v3844 = vsel %vm1235, %v3795, 0
      %v3846 = vsel %vm1235, %v3796, 0
      %3848 = vmatprep.subr.mxu0 0.0
      %3849 = vmatpush1.msra.mxu0 0.0
      %3850 = vmatprep.subr.mxu0 0.0
      %3851 = vmatpush1.msra.mxu0 0.0
      %3852 = vmatprep.subr.mxu0 %v3844
      %3853 = vmatpush1.msra.mxu0 %v3842
      %3854 = vmatprep.subr.mxu0 %v3792
      %3855 = vmatpush1.msra.mxu0 %v3791
      %3856 = vmatprep.subr.mxu0 %v3789
      %3857 = vmatpush1.msra.mxu0 %v3788
      %3858 = vmatprep.subr.mxu0 %v3786
      %3859 = vmatpush1.msra.mxu0 %v3785
      %3860 = vmatprep.subr.mxu0 %v3783
      %3861 = vmatpush1.msra.mxu0 %v3782
      %3862 = vmatprep.subr.mxu0 %v3780
      %3863 = vmatpush1.msra.mxu0 %v3779
      %3864 = vmatprep.subr.mxu0 %v3777
      %3865 = vmatpush1.msra.mxu0 %v3776
      %3866 = vmatprep.subr.mxu0 %v3774
      %3867 = vmatpush1.msra.mxu0 %v3773
      %3868 = vmatprep.subr.mxu0 %v3771
      %3869 = vmatpush1.msra.mxu0 %v3770
      %3870 = vmatprep.subr.mxu0 %v3768
      %3871 = vmatpush1.msra.mxu0 %v3767
      %3872 = vmatprep.subr.mxu0 %v3765
      %3873 = vmatpush1.msra.mxu0 %v3764
      %3874 = vmatprep.subr.mxu0 %v3762
      %3875 = vmatpush1.msra.mxu0 %v3761
      %3876 = vmatprep.subr.mxu0 %v3759
      %3877 = vmatpush1.msra.mxu0 %v3758
      %3878 = vmatprep.subr.mxu0 %v3756
      %3879 = vmatpush1.msra.mxu0 %v3755
      %3880 = vmatprep.subr.mxu0 0.0
      %3881 = vmatpush2.msra.mxu0 0.0
      %3882 = vmatprep.subr.mxu0 0.0
      %3883 = vmatpush2.msra.mxu0 0.0
      %3884 = vmatprep.subr.mxu0 0.0
      %3885 = vmatpush2.msra.mxu0 0.0
      %3886 = vmatprep.subr.mxu0 0.0
      %3887 = vmatpush2.msra.mxu0 0.0
      %3888 = vmatprep.subr.mxu0 0.0
      %3889 = vmatpush2.msra.mxu0 0.0
      %3890 = vmatprep.subr.mxu0 0.0
      %3891 = vmatpush2.msra.mxu0 0.0
      %3892 = vmatprep.subr.mxu0 0.0
      %3893 = vmatpush2.msra.mxu0 0.0
      %3894 = vmatprep.subr.mxu0 0.0
      %3895 = vmatpush2.msra.mxu0 0.0
      %3896 = vmatprep.subr.mxu0 0.0
      %3897 = vmatpush2.msra.mxu0 0.0
      %3898 = vmatprep.subr.mxu0 0.0
      %3899 = vmatpush2.msra.mxu0 0.0
      %3900 = vmatprep.subr.mxu0 0.0
      %3901 = vmatpush2.msra.mxu0 0.0
      %3902 = vmatprep.subr.mxu0 0.0
      %3903 = vmatpush2.msra.mxu0 0.0
      %3904 = vmatprep.subr.mxu0 0.0
      %3905 = vmatpush2.msra.mxu0 0.0
      %3906 = vmatprep.subr.mxu0 0.0
      %3907 = vmatpush2.msra.mxu0 0.0
      %3908 = vmatprep.subr.mxu0 0.0
      %3909 = vmatpush2.msra.mxu0 0.0
      %3910 = vmatprep.subr.mxu0 0.0
      %3911 = vmatpush2.msra.mxu0 0.0
      %3912 = vmatprep.mubr.f32.mxu0 0.0
      %3913 = vmatmul.mubr.f32.gmra.mxu0 %v3837
      %v3914 = vpop.f32.mrf.mxu0
      %v3915 = vadd.f32 %v3620, %v3914
      %v3916 = vpop.f32.mrf.mxu0
      %v3917 = vadd.f32 %v3620, %v3916
      %3918 = vmatprep.mubr.f32.mxu0 0.0
      %3919 = vmatmul.mubr.f32.gmra.mxu0 %v3840
      %v3920 = vpop.f32.mrf.mxu0
      %v3921 = vadd.f32 %v3625, %v3920
      %v3922 = vpop.f32.mrf.mxu0
      %v3923 = vadd.f32 %v3625, %v3922
      %3924 = vdwg.mxu0
      %3925 = vmatprep.subr.mxu0 0.0
      %3926 = vmatpush1.msra.mxu0 0.0
      %3927 = vmatprep.subr.mxu0 0.0
      %3928 = vmatpush1.msra.mxu0 0.0
      %3929 = vmatprep.subr.mxu0 0.0
      %3930 = vmatpush1.msra.mxu0 %v3846
      %3931 = vmatprep.subr.mxu0 0.0
      %3932 = vmatpush1.msra.mxu0 %v3793
      %3933 = vmatprep.subr.mxu0 0.0
      %3934 = vmatpush1.msra.mxu0 %v3790
      %3935 = vmatprep.subr.mxu0 0.0
      %3936 = vmatpush1.msra.mxu0 %v3787
      %3937 = vmatprep.subr.mxu0 0.0
      %3938 = vmatpush1.msra.mxu0 %v3784
      %3939 = vmatprep.subr.mxu0 0.0
      %3940 = vmatpush1.msra.mxu0 %v3781
      %3941 = vmatprep.subr.mxu0 0.0
      %3942 = vmatpush1.msra.mxu0 %v3778
      %3943 = vmatprep.subr.mxu0 0.0
      %3944 = vmatpush1.msra.mxu0 %v3775
      %3945 = vmatprep.subr.mxu0 0.0
      %3946 = vmatpush1.msra.mxu0 %v3772
      %3947 = vmatprep.subr.mxu0 0.0
      %3948 = vmatpush1.msra.mxu0 %v3769
      %3949 = vmatprep.subr.mxu0 0.0
      %3950 = vmatpush1.msra.mxu0 %v3766
      %3951 = vmatprep.subr.mxu0 0.0
      %3952 = vmatpush1.msra.mxu0 %v3763
      %3953 = vmatprep.subr.mxu0 0.0
      %3954 = vmatpush1.msra.mxu0 %v3760
      %3955 = vmatprep.subr.mxu0 0.0
      %3956 = vmatpush1.msra.mxu0 %v3757
      %3957 = vmatprep.subr.mxu0 0.0
      %3958 = vmatpush2.msra.mxu0 0.0
      %3959 = vmatprep.subr.mxu0 0.0
      %3960 = vmatpush2.msra.mxu0 0.0
      %3961 = vmatprep.subr.mxu0 0.0
      %3962 = vmatpush2.msra.mxu0 0.0
      %3963 = vmatprep.subr.mxu0 0.0
      %3964 = vmatpush2.msra.mxu0 0.0
      %3965 = vmatprep.subr.mxu0 0.0
      %3966 = vmatpush2.msra.mxu0 0.0
      %3967 = vmatprep.subr.mxu0 0.0
      %3968 = vmatpush2.msra.mxu0 0.0
      %3969 = vmatprep.subr.mxu0 0.0
      %3970 = vmatpush2.msra.mxu0 0.0
      %3971 = vmatprep.subr.mxu0 0.0
      %3972 = vmatpush2.msra.mxu0 0.0
      %3973 = vmatprep.subr.mxu0 0.0
      %3974 = vmatpush2.msra.mxu0 0.0
      %3975 = vmatprep.subr.mxu0 0.0
      %3976 = vmatpush2.msra.mxu0 0.0
      %3977 = vmatprep.subr.mxu0 0.0
      %3978 = vmatpush2.msra.mxu0 0.0
      %3979 = vmatprep.subr.mxu0 0.0
      %3980 = vmatpush2.msra.mxu0 0.0
      %3981 = vmatprep.subr.mxu0 0.0
      %3982 = vmatpush2.msra.mxu0 0.0
      %3983 = vmatprep.subr.mxu0 0.0
      %3984 = vmatpush2.msra.mxu0 0.0
      %3985 = vmatprep.subr.mxu0 0.0
      %3986 = vmatpush2.msra.mxu0 0.0
      %3987 = vmatprep.subr.mxu0 0.0
      %3988 = vmatpush2.msra.mxu0 0.0
      %3989 = vmatprep.mubr.f32.mxu0 0.0
      %3990 = vmatmul.mubr.f32.gmra.mxu0 %v3837
      %v3991 = vpop.f32.mrf.mxu0
      %v3992 = vadd.f32 %v3620, %v3991
      %v3993 = vpop.f32.mrf.mxu0
      %3994 = vmatprep.mubr.f32.mxu0 0.0
      %3995 = vmatmul.mubr.f32.gmra.mxu0 %v3840
      %v3996 = vpop.f32.mrf.mxu0
      %v3997 = vadd.f32 %v3625, %v3996
      %v3998 = vpop.f32.mrf.mxu0
      %3999 = vdwg.mxu0
      %s4000 = scalar_lea.vmem %s10, 48
      %v4001 = vld [vmem:[%s4000] sm:$0xff]
      %v4002 = vld [vmem:[%s4000 + $0x8] sm:$0xf]
      %vm4003 = vcmp.gt.f32.partialorder %v3915, 0.0
      %vm4004 = vcmp.gt.f32.partialorder %v3917, 0.0
      %vm4005 = vcmp.gt.f32.partialorder %v3992, 0.0
      %vm4006 = vcmp.gt.f32.partialorder %v3921, 0.0
      %vm4007 = vcmp.gt.f32.partialorder %v3923, 0.0
      %vm4008 = vcmp.gt.f32.partialorder %v3997, 0.0
      %4010 = vset.pattern.permute.xlu0 0
      %4011 = vperm.xlu0 %4010, %v4001
      %v4012 = vpop.permute.xlu0 %4011
      %4015 = vset.pattern.permute.xlu0 0
      %4016 = vperm.xlu0 %4015, %v4002
      %v4017 = vpop.permute.xlu0 %4016
      %v4019 = vmul.f32 %v4012, %v3915
      %v4020 = vmul.f32 %v4012, %v3917
      %v4021 = vmul.f32 %v4012, %v3992
      %v4022 = vmul.f32 %v4017, %v3921
      %v4023 = vmul.f32 %v4017, %v3923
      %v4024 = vmul.f32 %v4017, %v3997
      %v4025 = vsel %vm4003, %v3915, %v4019
      %v4026 = vsel %vm4004, %v3917, %v4020
      %v4027 = vsel %vm4005, %v3992, %v4021
      %v4028 = vsel %vm4006, %v3921, %v4022
      %v4029 = vsel %vm4007, %v3923, %v4023
      %v4030 = vsel %vm4008, %v3997, %v4024
      %v4031 = vmul.f32 %v4025, %v1161
      %v4032 = vmul.f32 %v4026, %v1165
      %v4033 = vmul.f32 %v4027, %v1169
      %v4034 = vmul.f32 %v4028, %v1161
      %v4035 = vmul.f32 %v4029, %v1165
      %v4036 = vmul.f32 %v4030, %v1169
      %4043 = vrot.lane.b32.xlu0 %v4031, 52
      %v4044 = vpop.permute.xlu0 %4043
      %4045 = vrot.lane.b32.xlu0 %v4032, 52
      %v4046 = vpop.permute.xlu0 %4045
      %4047 = vrot.lane.b32.xlu0 %v4033, 52
      %v4048 = vpop.permute.xlu0 %4047
      %4049 = vrot.lane.b32.xlu0 %v4034, 52
      %v4050 = vpop.permute.xlu0 %4049
      %4051 = vrot.lane.b32.xlu0 %v4035, 52
      %v4052 = vpop.permute.xlu0 %4051
      %4053 = vrot.lane.b32.xlu0 %v4036, 52
      %v4054 = vpop.permute.xlu0 %4053
      %v4055 = vsel %vm522, %v4044, %v4046
      %v4056 = vsel %vm522, %v4046, %v4048
      %v4057 = vsel %vm522, %v4050, %v4052
      %v4058 = vsel %vm522, %v4052, %v4054
      %4067 = vst.msk [vmem:[#allocation3] sm:$0xff] %vm1209, %v4044
      %4068 = vst [vmem:[#allocation3 + $0x8] sm:$0xff] %v4055
      %4069 = vst [vmem:[#allocation3 + $0x10] sm:$0xff] %v4056
      %4070 = vst.msk [vmem:[#allocation3 + $0x18] sm:$0xff] %vm522, %v4048
      %4071 = vst.msk [vmem:[#allocation3 + $0x20] sm:$0xf] %vm1214, %v4050
      %4072 = vst [vmem:[#allocation3 + $0x28] sm:$0xf] %v4057
      %4073 = vst [vmem:[#allocation3 + $0x30] sm:$0xf] %v4058
      %4074 = vst.msk [vmem:[#allocation3 + $0x38] sm:$0xf] %vm539, %v4054
      %v4075 = vld [vmem:[%s11] sm:$0xff]
      %v4076 = vld [vmem:[%s11 + $0x8] sm:$0xff]
      %v4077 = vld [vmem:[%s11 + $0x10] sm:$0xff]
      %v4078 = vld [vmem:[%s11 + $0x18] sm:$0xff]
      %v4079 = vld [vmem:[%s11 + $0x20] sm:$0xff]
      %v4080 = vld [vmem:[%s11 + $0x28] sm:$0xff]
      %v4081 = vld [vmem:[%s11 + $0x30] sm:$0xff]
      %v4082 = vld [vmem:[#allocation3] sm:$0xff]
      %v4083 = vld [vmem:[#allocation3 + $0x8] sm:$0xff]
      %v4084 = vld [vmem:[#allocation3 + $0x10] sm:$0xff]
      %v4085 = vld [vmem:[#allocation3 + $0x18] sm:$0xff]
      %v4086 = vld [vmem:[#allocation3 + $0x20] sm:$0xf]
      %v4087 = vld [vmem:[#allocation3 + $0x28] sm:$0xf]
      %v4088 = vld [vmem:[#allocation3 + $0x30] sm:$0xf]
      %v4089 = vld [vmem:[#allocation3 + $0x38] sm:$0xf]
      %v4090 = vld [vmem:[%s12] sm:$0xff]
      %v4091 = vld [vmem:[%s12 + $0x8] sm:$0xff]
      %v4092 = vld [vmem:[%s12 + $0x10] sm:$0xff]
      %v4093 = vld [vmem:[%s12 + $0x18] sm:$0xff]
      %v4094 = vld [vmem:[%s12 + $0x20] sm:$0xff]
      %v4095 = vld [vmem:[%s12 + $0x28] sm:$0xff]
      %v4096 = vld [vmem:[%s12 + $0x30] sm:$0xff]
      %4098 = vset.pattern.permute.xlu0 0
      %4099 = vperm.xlu0 %4098, %v4090
      %v4100 = vpop.permute.xlu0 %4099
      %4103 = vset.pattern.permute.xlu0 0
      %4104 = vperm.xlu0 %4103, %v4091
      %v4105 = vpop.permute.xlu0 %4104
      %4108 = vset.pattern.permute.xlu0 0
      %4109 = vperm.xlu0 %4108, %v4092
      %v4110 = vpop.permute.xlu0 %4109
      %4113 = vset.pattern.permute.xlu0 0
      %4114 = vperm.xlu0 %4113, %v4093
      %v4115 = vpop.permute.xlu0 %4114
      %4118 = vset.pattern.permute.xlu0 0
      %4119 = vperm.xlu0 %4118, %v4094
      %v4120 = vpop.permute.xlu0 %4119
      %4123 = vset.pattern.permute.xlu0 0
      %4124 = vperm.xlu0 %4123, %v4095
      %v4125 = vpop.permute.xlu0 %4124
      %4128 = vset.pattern.permute.xlu0 0
      %4129 = vperm.xlu0 %4128, %v4096
      %v4130 = vpop.permute.xlu0 %4129
      %4140 = vrot.lane.b32.xlu0 %v4082, 76
      %v4141 = vpop.permute.xlu0 %4140
      %4142 = vrot.lane.b32.xlu0 %v4083, 76
      %v4143 = vpop.permute.xlu0 %4142
      %4144 = vrot.lane.b32.xlu0 %v4084, 76
      %v4145 = vpop.permute.xlu0 %4144
      %4146 = vrot.lane.b32.xlu0 %v4085, 76
      %v4147 = vpop.permute.xlu0 %4146
      %4148 = vrot.lane.b32.xlu0 %v4086, 76
      %v4149 = vpop.permute.xlu0 %4148
      %4150 = vrot.lane.b32.xlu0 %v4087, 76
      %v4151 = vpop.permute.xlu0 %4150
      %4152 = vrot.lane.b32.xlu0 %v4088, 76
      %v4153 = vpop.permute.xlu0 %4152
      %4154 = vrot.lane.b32.xlu0 %v4089, 76
      %v4155 = vpop.permute.xlu0 %4154
      %vm4156 = vcmask 621568
      %v4157 = vsel %vm4156, %v4141, %v4143
      %v4158 = vsel %vm4156, %v4143, %v4145
      %v4159 = vsel %vm4156, %v4145, %v4147
      %v4160 = vsel %vm4156, %v4149, %v4151
      %v4161 = vsel %vm4156, %v4151, %v4153
      %v4162 = vsel %vm4156, %v4153, %v4155
      %vm4166 = vcmask 97280
      %v4168 = vsel %vm4166, %v4075, 0
      %v4171 = vsel %vm4166, %v4076, 0
      %v4174 = vsel %vm4166, %v4077, 0
      %v4177 = vsel %vm4166, %v4078, 0
      %v4180 = vsel %vm4166, %v4079, 0
      %v4183 = vsel %vm4166, %v4080, 0
      %v4186 = vsel %vm4166, %v4081, 0
      %v4188 = vsel %vm1235, %v4160, 0
      %v4190 = vsel %vm1235, %v4161, 0
      %v4192 = vsel %vm1235, %v4162, 0
      %4194 = vmatprep.subr.mxu0 0.0
      %4195 = vmatpush1.msra.mxu0 0.0
      %4196 = vmatprep.subr.mxu0 0.0
      %4197 = vmatpush1.msra.mxu0 0.0
      %4198 = vmatprep.subr.mxu0 0.0
      %4199 = vmatpush1.msra.mxu0 0.0
      %4200 = vmatprep.subr.mxu0 0.0
      %4201 = vmatpush1.msra.mxu0 0.0
      %4202 = vmatprep.subr.mxu0 0.0
      %4203 = vmatpush1.msra.mxu0 0.0
      %4204 = vmatprep.subr.mxu0 0.0
      %4205 = vmatpush1.msra.mxu0 0.0
      %4206 = vmatprep.subr.mxu0 0.0
      %4207 = vmatpush1.msra.mxu0 0.0
      %4208 = vmatprep.subr.mxu0 0.0
      %4209 = vmatpush1.msra.mxu0 0.0
      %4210 = vmatprep.subr.mxu0 0.0
      %4211 = vmatpush1.msra.mxu0 0.0
      %4212 = vmatprep.subr.mxu0 0.0
      %4213 = vmatpush1.msra.mxu0 0.0
      %4214 = vmatprep.subr.mxu0 0.0
      %4215 = vmatpush1.msra.mxu0 0.0
      %4216 = vmatprep.subr.mxu0 0.0
      %4217 = vmatpush1.msra.mxu0 0.0
      %4218 = vmatprep.subr.mxu0 0.0
      %4219 = vmatpush1.msra.mxu0 0.0
      %4220 = vmatprep.subr.mxu0 0.0
      %4221 = vmatpush1.msra.mxu0 0.0
      %4222 = vmatprep.subr.mxu0 %v4190
      %4223 = vmatpush1.msra.mxu0 %v4188
      %4224 = vmatprep.subr.mxu0 %v4158
      %4225 = vmatpush1.msra.mxu0 %v4157
      %4226 = vmatprep.subr.mxu0 0.0
      %4227 = vmatpush2.msra.mxu0 0.0
      %4228 = vmatprep.subr.mxu0 0.0
      %4229 = vmatpush2.msra.mxu0 0.0
      %4230 = vmatprep.subr.mxu0 0.0
      %4231 = vmatpush2.msra.mxu0 0.0
      %4232 = vmatprep.subr.mxu0 0.0
      %4233 = vmatpush2.msra.mxu0 0.0
      %4234 = vmatprep.subr.mxu0 0.0
      %4235 = vmatpush2.msra.mxu0 0.0
      %4236 = vmatprep.subr.mxu0 0.0
      %4237 = vmatpush2.msra.mxu0 0.0
      %4238 = vmatprep.subr.mxu0 0.0
      %4239 = vmatpush2.msra.mxu0 0.0
      %4240 = vmatprep.subr.mxu0 0.0
      %4241 = vmatpush2.msra.mxu0 0.0
      %4242 = vmatprep.subr.mxu0 0.0
      %4243 = vmatpush2.msra.mxu0 0.0
      %4244 = vmatprep.subr.mxu0 0.0
      %4245 = vmatpush2.msra.mxu0 0.0
      %4246 = vmatprep.subr.mxu0 0.0
      %4247 = vmatpush2.msra.mxu0 0.0
      %4248 = vmatprep.subr.mxu0 0.0
      %4249 = vmatpush2.msra.mxu0 0.0
      %4250 = vmatprep.subr.mxu0 0.0
      %4251 = vmatpush2.msra.mxu0 0.0
      %4252 = vmatprep.subr.mxu0 0.0
      %4253 = vmatpush2.msra.mxu0 0.0
      %4254 = vmatprep.subr.mxu0 0.0
      %4255 = vmatpush2.msra.mxu0 0.0
      %4256 = vmatprep.subr.mxu0 0.0
      %4257 = vmatpush2.msra.mxu0 0.0
      %4258 = vmatprep.mubr.f32.mxu0 0.0
      %4259 = vmatmul.mubr.f32.gmra.mxu0 %v4168
      %v4260 = vpop.f32.mrf.mxu0
      %v4261 = vadd.f32 %v4100, %v4260
      %v4262 = vpop.f32.mrf.mxu0
      %v4263 = vadd.f32 %v4100, %v4262
      %4264 = vmatprep.mubr.f32.mxu0 0.0
      %4265 = vmatmul.mubr.f32.gmra.mxu0 %v4171
      %v4266 = vpop.f32.mrf.mxu0
      %v4267 = vadd.f32 %v4105, %v4266
      %v4268 = vpop.f32.mrf.mxu0
      %v4269 = vadd.f32 %v4105, %v4268
      %4270 = vmatprep.mubr.f32.mxu0 0.0
      %4271 = vmatmul.mubr.f32.gmra.mxu0 %v4174
      %v4272 = vpop.f32.mrf.mxu0
      %v4273 = vadd.f32 %v4110, %v4272
      %v4274 = vpop.f32.mrf.mxu0
      %v4275 = vadd.f32 %v4110, %v4274
      %4276 = vmatprep.mubr.f32.mxu0 0.0
      %4277 = vmatmul.mubr.f32.gmra.mxu0 %v4177
      %v4278 = vpop.f32.mrf.mxu0
      %v4279 = vadd.f32 %v4115, %v4278
      %v4280 = vpop.f32.mrf.mxu0
      %v4281 = vadd.f32 %v4115, %v4280
      %4282 = vmatprep.mubr.f32.mxu0 0.0
      %4283 = vmatmul.mubr.f32.gmra.mxu0 %v4180
      %v4284 = vpop.f32.mrf.mxu0
      %v4285 = vadd.f32 %v4120, %v4284
      %v4286 = vpop.f32.mrf.mxu0
      %v4287 = vadd.f32 %v4120, %v4286
      %4288 = vmatprep.mubr.f32.mxu0 0.0
      %4289 = vmatmul.mubr.f32.gmra.mxu0 %v4183
      %v4290 = vpop.f32.mrf.mxu0
      %v4291 = vadd.f32 %v4125, %v4290
      %v4292 = vpop.f32.mrf.mxu0
      %v4293 = vadd.f32 %v4125, %v4292
      %4294 = vmatprep.mubr.f32.mxu0 0.0
      %4295 = vmatmul.mubr.f32.gmra.mxu0 %v4186
      %v4296 = vpop.f32.mrf.mxu0
      %v4297 = vadd.f32 %v4130, %v4296
      %v4298 = vpop.f32.mrf.mxu0
      %v4299 = vadd.f32 %v4130, %v4298
      %4300 = vdwg.mxu0
      %4301 = vmatprep.subr.mxu0 0.0
      %4302 = vmatpush1.msra.mxu0 0.0
      %4303 = vmatprep.subr.mxu0 0.0
      %4304 = vmatpush1.msra.mxu0 0.0
      %4305 = vmatprep.subr.mxu0 0.0
      %4306 = vmatpush1.msra.mxu0 0.0
      %4307 = vmatprep.subr.mxu0 0.0
      %4308 = vmatpush1.msra.mxu0 0.0
      %4309 = vmatprep.subr.mxu0 0.0
      %4310 = vmatpush1.msra.mxu0 0.0
      %4311 = vmatprep.subr.mxu0 0.0
      %4312 = vmatpush1.msra.mxu0 0.0
      %4313 = vmatprep.subr.mxu0 0.0
      %4314 = vmatpush1.msra.mxu0 0.0
      %4315 = vmatprep.subr.mxu0 0.0
      %4316 = vmatpush1.msra.mxu0 0.0
      %4317 = vmatprep.subr.mxu0 0.0
      %4318 = vmatpush1.msra.mxu0 0.0
      %4319 = vmatprep.subr.mxu0 0.0
      %4320 = vmatpush1.msra.mxu0 0.0
      %4321 = vmatprep.subr.mxu0 0.0
      %4322 = vmatpush1.msra.mxu0 0.0
      %4323 = vmatprep.subr.mxu0 0.0
      %4324 = vmatpush1.msra.mxu0 0.0
      %4325 = vmatprep.subr.mxu0 0.0
      %4326 = vmatpush1.msra.mxu0 0.0
      %4327 = vmatprep.subr.mxu0 0.0
      %4328 = vmatpush1.msra.mxu0 0.0
      %4329 = vmatprep.subr.mxu0 0.0
      %4330 = vmatpush1.msra.mxu0 %v4192
      %4331 = vmatprep.subr.mxu0 0.0
      %4332 = vmatpush1.msra.mxu0 %v4159
      %4333 = vmatprep.subr.mxu0 0.0
      %4334 = vmatpush2.msra.mxu0 0.0
      %4335 = vmatprep.subr.mxu0 0.0
      %4336 = vmatpush2.msra.mxu0 0.0
      %4337 = vmatprep.subr.mxu0 0.0
      %4338 = vmatpush2.msra.mxu0 0.0
      %4339 = vmatprep.subr.mxu0 0.0
      %4340 = vmatpush2.msra.mxu0 0.0
      %4341 = vmatprep.subr.mxu0 0.0
      %4342 = vmatpush2.msra.mxu0 0.0
      %4343 = vmatprep.subr.mxu0 0.0
      %4344 = vmatpush2.msra.mxu0 0.0
      %4345 = vmatprep.subr.mxu0 0.0
      %4346 = vmatpush2.msra.mxu0 0.0
      %4347 = vmatprep.subr.mxu0 0.0
      %4348 = vmatpush2.msra.mxu0 0.0
      %4349 = vmatprep.subr.mxu0 0.0
      %4350 = vmatpush2.msra.mxu0 0.0
      %4351 = vmatprep.subr.mxu0 0.0
      %4352 = vmatpush2.msra.mxu0 0.0
      %4353 = vmatprep.subr.mxu0 0.0
      %4354 = vmatpush2.msra.mxu0 0.0
      %4355 = vmatprep.subr.mxu0 0.0
      %4356 = vmatpush2.msra.mxu0 0.0
      %4357 = vmatprep.subr.mxu0 0.0
      %4358 = vmatpush2.msra.mxu0 0.0
      %4359 = vmatprep.subr.mxu0 0.0
      %4360 = vmatpush2.msra.mxu0 0.0
      %4361 = vmatprep.subr.mxu0 0.0
      %4362 = vmatpush2.msra.mxu0 0.0
      %4363 = vmatprep.subr.mxu0 0.0
      %4364 = vmatpush2.msra.mxu0 0.0
      %4365 = vmatprep.mubr.f32.mxu0 0.0
      %4366 = vmatmul.mubr.f32.gmra.mxu0 %v4168
      %v4367 = vpop.f32.mrf.mxu0
      %v4368 = vadd.f32 %v4100, %v4367
      %v4369 = vpop.f32.mrf.mxu0
      %4370 = vmatprep.mubr.f32.mxu0 0.0
      %4371 = vmatmul.mubr.f32.gmra.mxu0 %v4171
      %v4372 = vpop.f32.mrf.mxu0
      %v4373 = vadd.f32 %v4105, %v4372
      %v4374 = vpop.f32.mrf.mxu0
      %4375 = vmatprep.mubr.f32.mxu0 0.0
      %4376 = vmatmul.mubr.f32.gmra.mxu0 %v4174
      %v4377 = vpop.f32.mrf.mxu0
      %v4378 = vadd.f32 %v4110, %v4377
      %v4379 = vpop.f32.mrf.mxu0
      %4380 = vmatprep.mubr.f32.mxu0 0.0
      %4381 = vmatmul.mubr.f32.gmra.mxu0 %v4177
      %v4382 = vpop.f32.mrf.mxu0
      %v4383 = vadd.f32 %v4115, %v4382
      %v4384 = vpop.f32.mrf.mxu0
      %4385 = vmatprep.mubr.f32.mxu0 0.0
      %4386 = vmatmul.mubr.f32.gmra.mxu0 %v4180
      %v4387 = vpop.f32.mrf.mxu0
      %v4388 = vadd.f32 %v4120, %v4387
      %v4389 = vpop.f32.mrf.mxu0
      %4390 = vmatprep.mubr.f32.mxu0 0.0
      %4391 = vmatmul.mubr.f32.gmra.mxu0 %v4183
      %v4392 = vpop.f32.mrf.mxu0
      %v4393 = vadd.f32 %v4125, %v4392
      %v4394 = vpop.f32.mrf.mxu0
      %4395 = vmatprep.mubr.f32.mxu0 0.0
      %4396 = vmatmul.mubr.f32.gmra.mxu0 %v4186
      %v4397 = vpop.f32.mrf.mxu0
      %v4398 = vadd.f32 %v4130, %v4397
      %v4399 = vpop.f32.mrf.mxu0
      %4400 = vdwg.mxu0
      %v4401 = vld [vmem:[%s13] sm:$0xff]
      %v4402 = vld [vmem:[%s13 + $0x8] sm:$0xff]
      %v4403 = vld [vmem:[%s13 + $0x10] sm:$0xff]
      %v4404 = vld [vmem:[%s13 + $0x18] sm:$0xff]
      %v4405 = vld [vmem:[%s13 + $0x20] sm:$0xff]
      %v4406 = vld [vmem:[%s13 + $0x28] sm:$0xff]
      %v4407 = vld [vmem:[%s13 + $0x30] sm:$0xff]
      %vm4408 = vcmp.gt.f32.partialorder %v4261, 0.0
      %vm4409 = vcmp.gt.f32.partialorder %v4263, 0.0
      %vm4410 = vcmp.gt.f32.partialorder %v4368, 0.0
      %vm4411 = vcmp.gt.f32.partialorder %v4267, 0.0
      %vm4412 = vcmp.gt.f32.partialorder %v4269, 0.0
      %vm4413 = vcmp.gt.f32.partialorder %v4373, 0.0
      %vm4414 = vcmp.gt.f32.partialorder %v4273, 0.0
      %vm4415 = vcmp.gt.f32.partialorder %v4275, 0.0
      %vm4416 = vcmp.gt.f32.partialorder %v4378, 0.0
      %vm4417 = vcmp.gt.f32.partialorder %v4279, 0.0
      %vm4418 = vcmp.gt.f32.partialorder %v4281, 0.0
      %vm4419 = vcmp.gt.f32.partialorder %v4383, 0.0
      %vm4420 = vcmp.gt.f32.partialorder %v4285, 0.0
      %vm4421 = vcmp.gt.f32.partialorder %v4287, 0.0
      %vm4422 = vcmp.gt.f32.partialorder %v4388, 0.0
      %vm4423 = vcmp.gt.f32.partialorder %v4291, 0.0
      %vm4424 = vcmp.gt.f32.partialorder %v4293, 0.0
      %vm4425 = vcmp.gt.f32.partialorder %v4393, 0.0
      %vm4426 = vcmp.gt.f32.partialorder %v4297, 0.0
      %vm4427 = vcmp.gt.f32.partialorder %v4299, 0.0
      %vm4428 = vcmp.gt.f32.partialorder %v4398, 0.0
      %4430 = vset.pattern.permute.xlu0 0
      %4431 = vperm.xlu0 %4430, %v4401
      %v4432 = vpop.permute.xlu0 %4431
      %4435 = vset.pattern.permute.xlu0 0
      %4436 = vperm.xlu0 %4435, %v4402
      %v4437 = vpop.permute.xlu0 %4436
      %4440 = vset.pattern.permute.xlu0 0
      %4441 = vperm.xlu0 %4440, %v4403
      %v4442 = vpop.permute.xlu0 %4441
      %4445 = vset.pattern.permute.xlu0 0
      %4446 = vperm.xlu0 %4445, %v4404
      %v4447 = vpop.permute.xlu0 %4446
      %4450 = vset.pattern.permute.xlu0 0
      %4451 = vperm.xlu0 %4450, %v4405
      %v4452 = vpop.permute.xlu0 %4451
      %4455 = vset.pattern.permute.xlu0 0
      %4456 = vperm.xlu0 %4455, %v4406
      %v4457 = vpop.permute.xlu0 %4456
      %4460 = vset.pattern.permute.xlu0 0
      %4461 = vperm.xlu0 %4460, %v4407
      %v4462 = vpop.permute.xlu0 %4461
      %v4464 = vmul.f32 %v4432, %v4261
      %v4465 = vmul.f32 %v4432, %v4263
      %v4466 = vmul.f32 %v4432, %v4368
      %v4467 = vmul.f32 %v4437, %v4267
      %v4468 = vmul.f32 %v4437, %v4269
      %v4469 = vmul.f32 %v4437, %v4373
      %v4470 = vmul.f32 %v4442, %v4273
      %v4471 = vmul.f32 %v4442, %v4275
      %v4472 = vmul.f32 %v4442, %v4378
      %v4473 = vmul.f32 %v4447, %v4279
      %v4474 = vmul.f32 %v4447, %v4281
      %v4475 = vmul.f32 %v4447, %v4383
      %v4476 = vmul.f32 %v4452, %v4285
      %v4477 = vmul.f32 %v4452, %v4287
      %v4478 = vmul.f32 %v4452, %v4388
      %v4479 = vmul.f32 %v4457, %v4291
      %v4480 = vmul.f32 %v4457, %v4293
      %v4481 = vmul.f32 %v4457, %v4393
      %v4482 = vmul.f32 %v4462, %v4297
      %v4483 = vmul.f32 %v4462, %v4299
      %v4484 = vmul.f32 %v4462, %v4398
      %v4485 = vsel %vm4408, %v4261, %v4464
      %v4486 = vsel %vm4409, %v4263, %v4465
      %v4487 = vsel %vm4410, %v4368, %v4466
      %v4488 = vsel %vm4411, %v4267, %v4467
      %v4489 = vsel %vm4412, %v4269, %v4468
      %v4490 = vsel %vm4413, %v4373, %v4469
      %v4491 = vsel %vm4414, %v4273, %v4470
      %v4492 = vsel %vm4415, %v4275, %v4471
      %v4493 = vsel %vm4416, %v4378, %v4472
      %v4494 = vsel %vm4417, %v4279, %v4473
      %v4495 = vsel %vm4418, %v4281, %v4474
      %v4496 = vsel %vm4419, %v4383, %v4475
      %v4497 = vsel %vm4420, %v4285, %v4476
      %v4498 = vsel %vm4421, %v4287, %v4477
      %v4499 = vsel %vm4422, %v4388, %v4478
      %v4500 = vsel %vm4423, %v4291, %v4479
      %v4501 = vsel %vm4424, %v4293, %v4480
      %v4502 = vsel %vm4425, %v4393, %v4481
      %v4503 = vsel %vm4426, %v4297, %v4482
      %v4504 = vsel %vm4427, %v4299, %v4483
      %v4505 = vsel %vm4428, %v4398, %v4484
      %v4506 = vmul.f32 %v4485, %v1161
      %v4507 = vmul.f32 %v4486, %v1165
      %v4508 = vmul.f32 %v4487, %v1169
      %v4509 = vmul.f32 %v4488, %v1161
      %v4510 = vmul.f32 %v4489, %v1165
      %v4511 = vmul.f32 %v4490, %v1169
      %v4512 = vmul.f32 %v4491, %v1161
      %v4513 = vmul.f32 %v4492, %v1165
      %v4514 = vmul.f32 %v4493, %v1169
      %v4515 = vmul.f32 %v4494, %v1161
      %v4516 = vmul.f32 %v4495, %v1165
      %v4517 = vmul.f32 %v4496, %v1169
      %v4518 = vmul.f32 %v4497, %v1161
      %v4519 = vmul.f32 %v4498, %v1165
      %v4520 = vmul.f32 %v4499, %v1169
      %v4521 = vmul.f32 %v4500, %v1161
      %v4522 = vmul.f32 %v4501, %v1165
      %v4523 = vmul.f32 %v4502, %v1169
      %v4524 = vmul.f32 %v4503, %v1161
      %v4525 = vmul.f32 %v4504, %v1165
      %v4526 = vmul.f32 %v4505, %v1169
      %4548 = vrot.lane.b32.xlu0 %v4506, 52
      %v4549 = vpop.permute.xlu0 %4548
      %4550 = vrot.lane.b32.xlu0 %v4507, 52
      %v4551 = vpop.permute.xlu0 %4550
      %4552 = vrot.lane.b32.xlu0 %v4508, 52
      %v4553 = vpop.permute.xlu0 %4552
      %4554 = vrot.lane.b32.xlu0 %v4509, 52
      %v4555 = vpop.permute.xlu0 %4554
      %4556 = vrot.lane.b32.xlu0 %v4510, 52
      %v4557 = vpop.permute.xlu0 %4556
      %4558 = vrot.lane.b32.xlu0 %v4511, 52
      %v4559 = vpop.permute.xlu0 %4558
      %4560 = vrot.lane.b32.xlu0 %v4512, 52
      %v4561 = vpop.permute.xlu0 %4560
      %4562 = vrot.lane.b32.xlu0 %v4513, 52
      %v4563 = vpop.permute.xlu0 %4562
      %4564 = vrot.lane.b32.xlu0 %v4514, 52
      %v4565 = vpop.permute.xlu0 %4564
      %4566 = vrot.lane.b32.xlu0 %v4515, 52
      %v4567 = vpop.permute.xlu0 %4566
      %4568 = vrot.lane.b32.xlu0 %v4516, 52
      %v4569 = vpop.permute.xlu0 %4568
      %4570 = vrot.lane.b32.xlu0 %v4517, 52
      %v4571 = vpop.permute.xlu0 %4570
      %4572 = vrot.lane.b32.xlu0 %v4518, 52
      %v4573 = vpop.permute.xlu0 %4572
      %4574 = vrot.lane.b32.xlu0 %v4519, 52
      %v4575 = vpop.permute.xlu0 %4574
      %4576 = vrot.lane.b32.xlu0 %v4520, 52
      %v4577 = vpop.permute.xlu0 %4576
      %4578 = vrot.lane.b32.xlu0 %v4521, 52
      %v4579 = vpop.permute.xlu0 %4578
      %4580 = vrot.lane.b32.xlu0 %v4522, 52
      %v4581 = vpop.permute.xlu0 %4580
      %4582 = vrot.lane.b32.xlu0 %v4523, 52
      %v4583 = vpop.permute.xlu0 %4582
      %4584 = vrot.lane.b32.xlu0 %v4524, 52
      %v4585 = vpop.permute.xlu0 %4584
      %4586 = vrot.lane.b32.xlu0 %v4525, 52
      %v4587 = vpop.permute.xlu0 %4586
      %4588 = vrot.lane.b32.xlu0 %v4526, 52
      %v4589 = vpop.permute.xlu0 %4588
      %v4590 = vsel %vm522, %v4549, %v4551
      %v4591 = vsel %vm522, %v4551, %v4553
      %v4592 = vsel %vm522, %v4555, %v4557
      %v4593 = vsel %vm522, %v4557, %v4559
      %v4594 = vsel %vm522, %v4561, %v4563
      %v4595 = vsel %vm522, %v4563, %v4565
      %v4596 = vsel %vm522, %v4567, %v4569
      %v4597 = vsel %vm522, %v4569, %v4571
      %v4598 = vsel %vm522, %v4573, %v4575
      %v4599 = vsel %vm522, %v4575, %v4577
      %v4600 = vsel %vm522, %v4579, %v4581
      %v4601 = vsel %vm522, %v4581, %v4583
      %v4602 = vsel %vm522, %v4585, %v4587
      %v4603 = vsel %vm522, %v4587, %v4589
      %4632 = vst.msk [vmem:[#allocation2] sm:$0xff] %vm1209, %v4549
      %4633 = vst [vmem:[#allocation2 + $0x8] sm:$0xff] %v4590
      %4634 = vst [vmem:[#allocation2 + $0x10] sm:$0xff] %v4591
      %4635 = vst.msk [vmem:[#allocation2 + $0x18] sm:$0xff] %vm522, %v4553
      %4636 = vst.msk [vmem:[#allocation2 + $0x20] sm:$0xff] %vm1209, %v4555
      %4637 = vst [vmem:[#allocation2 + $0x28] sm:$0xff] %v4592
      %4638 = vst [vmem:[#allocation2 + $0x30] sm:$0xff] %v4593
      %4639 = vst.msk [vmem:[#allocation2 + $0x38] sm:$0xff] %vm522, %v4559
      %4640 = vst.msk [vmem:[#allocation2 + $0x40] sm:$0xff] %vm1209, %v4561
      %4641 = vst [vmem:[#allocation2 + $0x48] sm:$0xff] %v4594
      %4642 = vst [vmem:[#allocation2 + $0x50] sm:$0xff] %v4595
      %4643 = vst.msk [vmem:[#allocation2 + $0x58] sm:$0xff] %vm522, %v4565
      %4644 = vst.msk [vmem:[#allocation2 + $0x60] sm:$0xff] %vm1209, %v4567
      %4645 = vst [vmem:[#allocation2 + $0x68] sm:$0xff] %v4596
      %4646 = vst [vmem:[#allocation2 + $0x70] sm:$0xff] %v4597
      %4647 = vst.msk [vmem:[#allocation2 + $0x78] sm:$0xff] %vm522, %v4571
      %4648 = vst.msk [vmem:[#allocation2 + $0x80] sm:$0xff] %vm1209, %v4573
      %4649 = vst [vmem:[#allocation2 + $0x88] sm:$0xff] %v4598
      %4650 = vst [vmem:[#allocation2 + $0x90] sm:$0xff] %v4599
      %4651 = vst.msk [vmem:[#allocation2 + $0x98] sm:$0xff] %vm522, %v4577
      %4652 = vst.msk [vmem:[#allocation2 + $0xa0] sm:$0xff] %vm1209, %v4579
      %4653 = vst [vmem:[#allocation2 + $0xa8] sm:$0xff] %v4600
      %4654 = vst [vmem:[#allocation2 + $0xb0] sm:$0xff] %v4601
      %4655 = vst.msk [vmem:[#allocation2 + $0xb8] sm:$0xff] %vm522, %v4583
      %4656 = vst.msk [vmem:[#allocation2 + $0xc0] sm:$0xff] %vm1209, %v4585
      %4657 = vst [vmem:[#allocation2 + $0xc8] sm:$0xff] %v4602
      %4658 = vst [vmem:[#allocation2 + $0xd0] sm:$0xff] %v4603
      %4659 = vst.msk [vmem:[#allocation2 + $0xd8] sm:$0xff] %vm522, %v4589
      %v4660 = vld [vmem:[%s14] sm:$0xf]
      %v4661 = vld [vmem:[#allocation2] sm:$0xff]
      %v4662 = vld [vmem:[#allocation2 + $0x8] sm:$0xff]
      %v4663 = vld [vmem:[#allocation2 + $0x10] sm:$0xff]
      %v4664 = vld [vmem:[#allocation2 + $0x18] sm:$0xff]
      %v4665 = vld [vmem:[#allocation2 + $0x20] sm:$0xff]
      %v4666 = vld [vmem:[#allocation2 + $0x28] sm:$0xff]
      %v4667 = vld [vmem:[#allocation2 + $0x30] sm:$0xff]
      %v4668 = vld [vmem:[#allocation2 + $0x38] sm:$0xff]
      %v4669 = vld [vmem:[#allocation2 + $0x40] sm:$0xff]
      %v4670 = vld [vmem:[#allocation2 + $0x48] sm:$0xff]
      %v4671 = vld [vmem:[#allocation2 + $0x50] sm:$0xff]
      %v4672 = vld [vmem:[#allocation2 + $0x58] sm:$0xff]
      %v4673 = vld [vmem:[#allocation2 + $0x60] sm:$0xff]
      %v4674 = vld [vmem:[#allocation2 + $0x68] sm:$0xff]
      %v4675 = vld [vmem:[#allocation2 + $0x70] sm:$0xff]
      %v4676 = vld [vmem:[#allocation2 + $0x78] sm:$0xff]
      %v4677 = vld [vmem:[#allocation2 + $0x80] sm:$0xff]
      %v4678 = vld [vmem:[#allocation2 + $0x88] sm:$0xff]
      %v4679 = vld [vmem:[#allocation2 + $0x90] sm:$0xff]
      %v4680 = vld [vmem:[#allocation2 + $0x98] sm:$0xff]
      %v4681 = vld [vmem:[#allocation2 + $0xa0] sm:$0xff]
      %v4682 = vld [vmem:[#allocation2 + $0xa8] sm:$0xff]
      %v4683 = vld [vmem:[#allocation2 + $0xb0] sm:$0xff]
      %v4684 = vld [vmem:[#allocation2 + $0xb8] sm:$0xff]
      %v4685 = vld [vmem:[#allocation2 + $0xc0] sm:$0xff]
      %v4686 = vld [vmem:[#allocation2 + $0xc8] sm:$0xff]
      %v4687 = vld [vmem:[#allocation2 + $0xd0] sm:$0xff]
      %v4688 = vld [vmem:[#allocation2 + $0xd8] sm:$0xff]
      %s4689 = scalar_lea.vmem %s14, 4
      %v4690 = vld [vmem:[%s4689] sm:$0xf]
      %4719 = vrot.lane.b32.xlu0 %v4661, 125
      %v4720 = vpop.permute.xlu0 %4719
      %4721 = vrot.lane.b32.xlu0 %v4662, 125
      %v4722 = vpop.permute.xlu0 %4721
      %4723 = vrot.lane.b32.xlu0 %v4663, 125
      %v4724 = vpop.permute.xlu0 %4723
      %4725 = vrot.lane.b32.xlu0 %v4664, 125
      %v4726 = vpop.permute.xlu0 %4725
      %4727 = vrot.lane.b32.xlu0 %v4665, 125
      %v4728 = vpop.permute.xlu0 %4727
      %4729 = vrot.lane.b32.xlu0 %v4666, 125
      %v4730 = vpop.permute.xlu0 %4729
      %4731 = vrot.lane.b32.xlu0 %v4667, 125
      %v4732 = vpop.permute.xlu0 %4731
      %4733 = vrot.lane.b32.xlu0 %v4668, 125
      %v4734 = vpop.permute.xlu0 %4733
      %4735 = vrot.lane.b32.xlu0 %v4669, 125
      %v4736 = vpop.permute.xlu0 %4735
      %4737 = vrot.lane.b32.xlu0 %v4670, 125
      %v4738 = vpop.permute.xlu0 %4737
      %4739 = vrot.lane.b32.xlu0 %v4671, 125
      %v4740 = vpop.permute.xlu0 %4739
      %4741 = vrot.lane.b32.xlu0 %v4672, 125
      %v4742 = vpop.permute.xlu0 %4741
      %4743 = vrot.lane.b32.xlu0 %v4673, 125
      %v4744 = vpop.permute.xlu0 %4743
      %4745 = vrot.lane.b32.xlu0 %v4674, 125
      %v4746 = vpop.permute.xlu0 %4745
      %4747 = vrot.lane.b32.xlu0 %v4675, 125
      %v4748 = vpop.permute.xlu0 %4747
      %4749 = vrot.lane.b32.xlu0 %v4676, 125
      %v4750 = vpop.permute.xlu0 %4749
      %4751 = vrot.lane.b32.xlu0 %v4677, 125
      %v4752 = vpop.permute.xlu0 %4751
      %4753 = vrot.lane.b32.xlu0 %v4678, 125
      %v4754 = vpop.permute.xlu0 %4753
      %4755 = vrot.lane.b32.xlu0 %v4679, 125
      %v4756 = vpop.permute.xlu0 %4755
      %4757 = vrot.lane.b32.xlu0 %v4680, 125
      %v4758 = vpop.permute.xlu0 %4757
      %4759 = vrot.lane.b32.xlu0 %v4681, 125
      %v4760 = vpop.permute.xlu0 %4759
      %4761 = vrot.lane.b32.xlu0 %v4682, 125
      %v4762 = vpop.permute.xlu0 %4761
      %4763 = vrot.lane.b32.xlu0 %v4683, 125
      %v4764 = vpop.permute.xlu0 %4763
      %4765 = vrot.lane.b32.xlu0 %v4684, 125
      %v4766 = vpop.permute.xlu0 %4765
      %4767 = vrot.lane.b32.xlu0 %v4685, 125
      %v4768 = vpop.permute.xlu0 %4767
      %4769 = vrot.lane.b32.xlu0 %v4686, 125
      %v4770 = vpop.permute.xlu0 %4769
      %4771 = vrot.lane.b32.xlu0 %v4687, 125
      %v4772 = vpop.permute.xlu0 %4771
      %4773 = vrot.lane.b32.xlu0 %v4688, 125
      %v4774 = vpop.permute.xlu0 %4773
      %vm4775 = vcmask 1022976
      %v4776 = vsel %vm4775, %v4720, %v4722
      %v4777 = vsel %vm4775, %v4722, %v4724
      %v4778 = vsel %vm4775, %v4724, %v4726
      %v4779 = vsel %vm4775, %v4728, %v4730
      %v4780 = vsel %vm4775, %v4730, %v4732
      %v4781 = vsel %vm4775, %v4732, %v4734
      %v4782 = vsel %vm4775, %v4736, %v4738
      %v4783 = vsel %vm4775, %v4738, %v4740
      %v4784 = vsel %vm4775, %v4740, %v4742
      %v4785 = vsel %vm4775, %v4744, %v4746
      %v4786 = vsel %vm4775, %v4746, %v4748
      %v4787 = vsel %vm4775, %v4748, %v4750
      %v4788 = vsel %vm4775, %v4752, %v4754
      %v4789 = vsel %vm4775, %v4754, %v4756
      %v4790 = vsel %vm4775, %v4756, %v4758
      %v4791 = vsel %vm4775, %v4760, %v4762
      %v4792 = vsel %vm4775, %v4762, %v4764
      %v4793 = vsel %vm4775, %v4764, %v4766
      %v4794 = vsel %vm4775, %v4768, %v4770
      %v4795 = vsel %vm4775, %v4770, %v4772
      %v4796 = vsel %vm4775, %v4772, %v4774
      %v4819 = vsel %vm968, %v4690, 0
      %4821 = vmatprep.subr.mxu0 0.0
      %4822 = vmatpush1.msra.mxu0 0.0
      %4823 = vmatprep.subr.mxu0 0.0
      %4824 = vmatpush1.msra.mxu0 0.0
      %4825 = vmatprep.subr.mxu0 0.0
      %4826 = vmatpush1.msra.mxu0 0.0
      %4827 = vmatprep.subr.mxu0 0.0
      %4828 = vmatpush1.msra.mxu0 0.0
      %4829 = vmatprep.subr.mxu0 0.0
      %4830 = vmatpush1.msra.mxu0 0.0
      %4831 = vmatprep.subr.mxu0 0.0
      %4832 = vmatpush1.msra.mxu0 0.0
      %4833 = vmatprep.subr.mxu0 0.0
      %4834 = vmatpush1.msra.mxu0 0.0
      %4835 = vmatprep.subr.mxu0 0.0
      %4836 = vmatpush1.msra.mxu0 0.0
      %4837 = vmatprep.subr.mxu0 0.0
      %4838 = vmatpush1.msra.mxu0 0.0
      %4839 = vmatprep.subr.mxu0 %v4795
      %4840 = vmatpush1.msra.mxu0 %v4794
      %4841 = vmatprep.subr.mxu0 %v4792
      %4842 = vmatpush1.msra.mxu0 %v4791
      %4843 = vmatprep.subr.mxu0 %v4789
      %4844 = vmatpush1.msra.mxu0 %v4788
      %4845 = vmatprep.subr.mxu0 %v4786
      %4846 = vmatpush1.msra.mxu0 %v4785
      %4847 = vmatprep.subr.mxu0 %v4783
      %4848 = vmatpush1.msra.mxu0 %v4782
      %4849 = vmatprep.subr.mxu0 %v4780
      %4850 = vmatpush1.msra.mxu0 %v4779
      %4851 = vmatprep.subr.mxu0 %v4777
      %4852 = vmatpush1.msra.mxu0 %v4776
      %4853 = vmatprep.subr.mxu0 0.0
      %4854 = vmatpush2.msra.mxu0 0.0
      %4855 = vmatprep.subr.mxu0 0.0
      %4856 = vmatpush2.msra.mxu0 0.0
      %4857 = vmatprep.subr.mxu0 0.0
      %4858 = vmatpush2.msra.mxu0 0.0
      %4859 = vmatprep.subr.mxu0 0.0
      %4860 = vmatpush2.msra.mxu0 0.0
      %4861 = vmatprep.subr.mxu0 0.0
      %4862 = vmatpush2.msra.mxu0 0.0
      %4863 = vmatprep.subr.mxu0 0.0
      %4864 = vmatpush2.msra.mxu0 0.0
      %4865 = vmatprep.subr.mxu0 0.0
      %4866 = vmatpush2.msra.mxu0 0.0
      %4867 = vmatprep.subr.mxu0 0.0
      %4868 = vmatpush2.msra.mxu0 0.0
      %4869 = vmatprep.subr.mxu0 0.0
      %4870 = vmatpush2.msra.mxu0 0.0
      %4871 = vmatprep.subr.mxu0 0.0
      %4872 = vmatpush2.msra.mxu0 0.0
      %4873 = vmatprep.subr.mxu0 0.0
      %4874 = vmatpush2.msra.mxu0 0.0
      %4875 = vmatprep.subr.mxu0 0.0
      %4876 = vmatpush2.msra.mxu0 0.0
      %4877 = vmatprep.subr.mxu0 0.0
      %4878 = vmatpush2.msra.mxu0 0.0
      %4879 = vmatprep.subr.mxu0 0.0
      %4880 = vmatpush2.msra.mxu0 0.0
      %4881 = vmatprep.subr.mxu0 0.0
      %4882 = vmatpush2.msra.mxu0 0.0
      %4883 = vmatprep.subr.mxu0 0.0
      %4884 = vmatpush2.msra.mxu0 0.0
      %4885 = vmatprep.mubr.f32.mxu0 0.0
      %4886 = vmatmul.mubr.f32.gmra.mxu0 %v4819
      %v4887 = vpop.f32.mrf.mxu0
      %v4888 = vadd.f32 0.0, %v4887
      %v4889 = vpop.f32.mrf.mxu0
      %v4890 = vadd.f32 0.0, %v4889
      %4891 = vdwg.mxu0
      %4892 = vmatprep.subr.mxu0 0.0
      %4893 = vmatpush1.msra.mxu0 0.0
      %4894 = vmatprep.subr.mxu0 0.0
      %4895 = vmatpush1.msra.mxu0 0.0
      %4896 = vmatprep.subr.mxu0 0.0
      %4897 = vmatpush1.msra.mxu0 0.0
      %4898 = vmatprep.subr.mxu0 0.0
      %4899 = vmatpush1.msra.mxu0 0.0
      %4900 = vmatprep.subr.mxu0 0.0
      %4901 = vmatpush1.msra.mxu0 0.0
      %4902 = vmatprep.subr.mxu0 0.0
      %4903 = vmatpush1.msra.mxu0 0.0
      %4904 = vmatprep.subr.mxu0 0.0
      %4905 = vmatpush1.msra.mxu0 0.0
      %4906 = vmatprep.subr.mxu0 0.0
      %4907 = vmatpush1.msra.mxu0 0.0
      %4908 = vmatprep.subr.mxu0 0.0
      %4909 = vmatpush1.msra.mxu0 0.0
      %4910 = vmatprep.subr.mxu0 0.0
      %4911 = vmatpush1.msra.mxu0 %v4796
      %4912 = vmatprep.subr.mxu0 0.0
      %4913 = vmatpush1.msra.mxu0 %v4793
      %4914 = vmatprep.subr.mxu0 0.0
      %4915 = vmatpush1.msra.mxu0 %v4790
      %4916 = vmatprep.subr.mxu0 0.0
      %4917 = vmatpush1.msra.mxu0 %v4787
      %4918 = vmatprep.subr.mxu0 0.0
      %4919 = vmatpush1.msra.mxu0 %v4784
      %4920 = vmatprep.subr.mxu0 0.0
      %4921 = vmatpush1.msra.mxu0 %v4781
      %4922 = vmatprep.subr.mxu0 0.0
      %4923 = vmatpush1.msra.mxu0 %v4778
      %4924 = vmatprep.subr.mxu0 0.0
      %4925 = vmatpush2.msra.mxu0 0.0
      %4926 = vmatprep.subr.mxu0 0.0
      %4927 = vmatpush2.msra.mxu0 0.0
      %4928 = vmatprep.subr.mxu0 0.0
      %4929 = vmatpush2.msra.mxu0 0.0
      %4930 = vmatprep.subr.mxu0 0.0
      %4931 = vmatpush2.msra.mxu0 0.0
      %4932 = vmatprep.subr.mxu0 0.0
      %4933 = vmatpush2.msra.mxu0 0.0
      %4934 = vmatprep.subr.mxu0 0.0
      %4935 = vmatpush2.msra.mxu0 0.0
      %4936 = vmatprep.subr.mxu0 0.0
      %4937 = vmatpush2.msra.mxu0 0.0
      %4938 = vmatprep.subr.mxu0 0.0
      %4939 = vmatpush2.msra.mxu0 0.0
      %4940 = vmatprep.subr.mxu0 0.0
      %4941 = vmatpush2.msra.mxu0 0.0
      %4942 = vmatprep.subr.mxu0 0.0
      %4943 = vmatpush2.msra.mxu0 0.0
      %4944 = vmatprep.subr.mxu0 0.0
      %4945 = vmatpush2.msra.mxu0 0.0
      %4946 = vmatprep.subr.mxu0 0.0
      %4947 = vmatpush2.msra.mxu0 0.0
      %4948 = vmatprep.subr.mxu0 0.0
      %4949 = vmatpush2.msra.mxu0 0.0
      %4950 = vmatprep.subr.mxu0 0.0
      %4951 = vmatpush2.msra.mxu0 0.0
      %4952 = vmatprep.subr.mxu0 0.0
      %4953 = vmatpush2.msra.mxu0 0.0
      %4954 = vmatprep.subr.mxu0 0.0
      %4955 = vmatpush2.msra.mxu0 0.0
      %4956 = vmatprep.mubr.f32.mxu0 0.0
      %4957 = vmatmul.mubr.f32.gmra.mxu0 %v4819
      %v4958 = vpop.f32.mrf.mxu0
      %v4959 = vadd.f32 0.0, %v4958
      %v4960 = vpop.f32.mrf.mxu0
      %4961 = vdwg.mxu0
      %4962 = vrot.lane.b32.xlu0 %v4661, 126
      %v4963 = vpop.permute.xlu0 %4962
      %4964 = vrot.lane.b32.xlu0 %v4662, 126
      %v4965 = vpop.permute.xlu0 %4964
      %4966 = vrot.lane.b32.xlu0 %v4663, 126
      %v4967 = vpop.permute.xlu0 %4966
      %4968 = vrot.lane.b32.xlu0 %v4664, 126
      %v4969 = vpop.permute.xlu0 %4968
      %4970 = vrot.lane.b32.xlu0 %v4665, 126
      %v4971 = vpop.permute.xlu0 %4970
      %4972 = vrot.lane.b32.xlu0 %v4666, 126
      %v4973 = vpop.permute.xlu0 %4972
      %4974 = vrot.lane.b32.xlu0 %v4667, 126
      %v4975 = vpop.permute.xlu0 %4974
      %4976 = vrot.lane.b32.xlu0 %v4668, 126
      %v4977 = vpop.permute.xlu0 %4976
      %4978 = vrot.lane.b32.xlu0 %v4669, 126
      %v4979 = vpop.permute.xlu0 %4978
      %4980 = vrot.lane.b32.xlu0 %v4670, 126
      %v4981 = vpop.permute.xlu0 %4980
      %4982 = vrot.lane.b32.xlu0 %v4671, 126
      %v4983 = vpop.permute.xlu0 %4982
      %4984 = vrot.lane.b32.xlu0 %v4672, 126
      %v4985 = vpop.permute.xlu0 %4984
      %4986 = vrot.lane.b32.xlu0 %v4673, 126
      %v4987 = vpop.permute.xlu0 %4986
      %4988 = vrot.lane.b32.xlu0 %v4674, 126
      %v4989 = vpop.permute.xlu0 %4988
      %4990 = vrot.lane.b32.xlu0 %v4675, 126
      %v4991 = vpop.permute.xlu0 %4990
      %4992 = vrot.lane.b32.xlu0 %v4676, 126
      %v4993 = vpop.permute.xlu0 %4992
      %4994 = vrot.lane.b32.xlu0 %v4677, 126
      %v4995 = vpop.permute.xlu0 %4994
      %4996 = vrot.lane.b32.xlu0 %v4678, 126
      %v4997 = vpop.permute.xlu0 %4996
      %4998 = vrot.lane.b32.xlu0 %v4679, 126
      %v4999 = vpop.permute.xlu0 %4998
      %5000 = vrot.lane.b32.xlu0 %v4680, 126
      %v5001 = vpop.permute.xlu0 %5000
      %5002 = vrot.lane.b32.xlu0 %v4681, 126
      %v5003 = vpop.permute.xlu0 %5002
      %5004 = vrot.lane.b32.xlu0 %v4682, 126
      %v5005 = vpop.permute.xlu0 %5004
      %5006 = vrot.lane.b32.xlu0 %v4683, 126
      %v5007 = vpop.permute.xlu0 %5006
      %5008 = vrot.lane.b32.xlu0 %v4684, 126
      %v5009 = vpop.permute.xlu0 %5008
      %5010 = vrot.lane.b32.xlu0 %v4685, 126
      %v5011 = vpop.permute.xlu0 %5010
      %5012 = vrot.lane.b32.xlu0 %v4686, 126
      %v5013 = vpop.permute.xlu0 %5012
      %5014 = vrot.lane.b32.xlu0 %v4687, 126
      %v5015 = vpop.permute.xlu0 %5014
      %5016 = vrot.lane.b32.xlu0 %v4688, 126
      %v5017 = vpop.permute.xlu0 %5016
      %v5018 = vsel %vm1291, %v4963, %v4965
      %v5019 = vsel %vm1291, %v4965, %v4967
      %v5020 = vsel %vm1291, %v4967, %v4969
      %v5021 = vsel %vm1291, %v4971, %v4973
      %v5022 = vsel %vm1291, %v4973, %v4975
      %v5023 = vsel %vm1291, %v4975, %v4977
      %v5024 = vsel %vm1291, %v4979, %v4981
      %v5025 = vsel %vm1291, %v4981, %v4983
      %v5026 = vsel %vm1291, %v4983, %v4985
      %v5027 = vsel %vm1291, %v4987, %v4989
      %v5028 = vsel %vm1291, %v4989, %v4991
      %v5029 = vsel %vm1291, %v4991, %v4993
      %v5030 = vsel %vm1291, %v4995, %v4997
      %v5031 = vsel %vm1291, %v4997, %v4999
      %v5032 = vsel %vm1291, %v4999, %v5001
      %v5033 = vsel %vm1291, %v5003, %v5005
      %v5034 = vsel %vm1291, %v5005, %v5007
      %v5035 = vsel %vm1291, %v5007, %v5009
      %v5036 = vsel %vm1291, %v5011, %v5013
      %v5037 = vsel %vm1291, %v5013, %v5015
      %v5038 = vsel %vm1291, %v5015, %v5017
      %v5061 = vsel %vm968, %v4660, 0
      %5063 = vmatprep.subr.mxu0 0.0
      %5064 = vmatpush1.msra.mxu0 0.0
      %5065 = vmatprep.subr.mxu0 0.0
      %5066 = vmatpush1.msra.mxu0 0.0
      %5067 = vmatprep.subr.mxu0 0.0
      %5068 = vmatpush1.msra.mxu0 0.0
      %5069 = vmatprep.subr.mxu0 0.0
      %5070 = vmatpush1.msra.mxu0 0.0
      %5071 = vmatprep.subr.mxu0 0.0
      %5072 = vmatpush1.msra.mxu0 0.0
      %5073 = vmatprep.subr.mxu0 0.0
      %5074 = vmatpush1.msra.mxu0 0.0
      %5075 = vmatprep.subr.mxu0 0.0
      %5076 = vmatpush1.msra.mxu0 0.0
      %5077 = vmatprep.subr.mxu0 0.0
      %5078 = vmatpush1.msra.mxu0 0.0
      %5079 = vmatprep.subr.mxu0 0.0
      %5080 = vmatpush1.msra.mxu0 0.0
      %5081 = vmatprep.subr.mxu0 %v5037
      %5082 = vmatpush1.msra.mxu0 %v5036
      %5083 = vmatprep.subr.mxu0 %v5034
      %5084 = vmatpush1.msra.mxu0 %v5033
      %5085 = vmatprep.subr.mxu0 %v5031
      %5086 = vmatpush1.msra.mxu0 %v5030
      %5087 = vmatprep.subr.mxu0 %v5028
      %5088 = vmatpush1.msra.mxu0 %v5027
      %5089 = vmatprep.subr.mxu0 %v5025
      %5090 = vmatpush1.msra.mxu0 %v5024
      %5091 = vmatprep.subr.mxu0 %v5022
      %5092 = vmatpush1.msra.mxu0 %v5021
      %5093 = vmatprep.subr.mxu0 %v5019
      %5094 = vmatpush1.msra.mxu0 %v5018
      %5095 = vmatprep.subr.mxu0 0.0
      %5096 = vmatpush2.msra.mxu0 0.0
      %5097 = vmatprep.subr.mxu0 0.0
      %5098 = vmatpush2.msra.mxu0 0.0
      %5099 = vmatprep.subr.mxu0 0.0
      %5100 = vmatpush2.msra.mxu0 0.0
      %5101 = vmatprep.subr.mxu0 0.0
      %5102 = vmatpush2.msra.mxu0 0.0
      %5103 = vmatprep.subr.mxu0 0.0
      %5104 = vmatpush2.msra.mxu0 0.0
      %5105 = vmatprep.subr.mxu0 0.0
      %5106 = vmatpush2.msra.mxu0 0.0
      %5107 = vmatprep.subr.mxu0 0.0
      %5108 = vmatpush2.msra.mxu0 0.0
      %5109 = vmatprep.subr.mxu0 0.0
      %5110 = vmatpush2.msra.mxu0 0.0
      %5111 = vmatprep.subr.mxu0 0.0
      %5112 = vmatpush2.msra.mxu0 0.0
      %5113 = vmatprep.subr.mxu0 0.0
      %5114 = vmatpush2.msra.mxu0 0.0
      %5115 = vmatprep.subr.mxu0 0.0
      %5116 = vmatpush2.msra.mxu0 0.0
      %5117 = vmatprep.subr.mxu0 0.0
      %5118 = vmatpush2.msra.mxu0 0.0
      %5119 = vmatprep.subr.mxu0 0.0
      %5120 = vmatpush2.msra.mxu0 0.0
      %5121 = vmatprep.subr.mxu0 0.0
      %5122 = vmatpush2.msra.mxu0 0.0
      %5123 = vmatprep.subr.mxu0 0.0
      %5124 = vmatpush2.msra.mxu0 0.0
      %5125 = vmatprep.subr.mxu0 0.0
      %5126 = vmatpush2.msra.mxu0 0.0
      %5127 = vmatprep.mubr.f32.mxu0 0.0
      %5128 = vmatmul.mubr.f32.gmra.mxu0 %v5061
      %v5129 = vpop.f32.mrf.mxu0
      %v5130 = vadd.f32 %v4888, %v5129
      %v5131 = vpop.f32.mrf.mxu0
      %v5132 = vadd.f32 %v4890, %v5131
      %5133 = vdwg.mxu0
      %5134 = vmatprep.subr.mxu0 0.0
      %5135 = vmatpush1.msra.mxu0 0.0
      %5136 = vmatprep.subr.mxu0 0.0
      %5137 = vmatpush1.msra.mxu0 0.0
      %5138 = vmatprep.subr.mxu0 0.0
      %5139 = vmatpush1.msra.mxu0 0.0
      %5140 = vmatprep.subr.mxu0 0.0
      %5141 = vmatpush1.msra.mxu0 0.0
      %5142 = vmatprep.subr.mxu0 0.0
      %5143 = vmatpush1.msra.mxu0 0.0
      %5144 = vmatprep.subr.mxu0 0.0
      %5145 = vmatpush1.msra.mxu0 0.0
      %5146 = vmatprep.subr.mxu0 0.0
      %5147 = vmatpush1.msra.mxu0 0.0
      %5148 = vmatprep.subr.mxu0 0.0
      %5149 = vmatpush1.msra.mxu0 0.0
      %5150 = vmatprep.subr.mxu0 0.0
      %5151 = vmatpush1.msra.mxu0 0.0
      %5152 = vmatprep.subr.mxu0 0.0
      %5153 = vmatpush1.msra.mxu0 %v5038
      %5154 = vmatprep.subr.mxu0 0.0
      %5155 = vmatpush1.msra.mxu0 %v5035
      %5156 = vmatprep.subr.mxu0 0.0
      %5157 = vmatpush1.msra.mxu0 %v5032
      %5158 = vmatprep.subr.mxu0 0.0
      %5159 = vmatpush1.msra.mxu0 %v5029
      %5160 = vmatprep.subr.mxu0 0.0
      %5161 = vmatpush1.msra.mxu0 %v5026
      %5162 = vmatprep.subr.mxu0 0.0
      %5163 = vmatpush1.msra.mxu0 %v5023
      %5164 = vmatprep.subr.mxu0 0.0
      %5165 = vmatpush1.msra.mxu0 %v5020
      %5166 = vmatprep.subr.mxu0 0.0
      %5167 = vmatpush2.msra.mxu0 0.0
      %5168 = vmatprep.subr.mxu0 0.0
      %5169 = vmatpush2.msra.mxu0 0.0
      %5170 = vmatprep.subr.mxu0 0.0
      %5171 = vmatpush2.msra.mxu0 0.0
      %5172 = vmatprep.subr.mxu0 0.0
      %5173 = vmatpush2.msra.mxu0 0.0
      %5174 = vmatprep.subr.mxu0 0.0
      %5175 = vmatpush2.msra.mxu0 0.0
      %5176 = vmatprep.subr.mxu0 0.0
      %5177 = vmatpush2.msra.mxu0 0.0
      %5178 = vmatprep.subr.mxu0 0.0
      %5179 = vmatpush2.msra.mxu0 0.0
      %5180 = vmatprep.subr.mxu0 0.0
      %5181 = vmatpush2.msra.mxu0 0.0
      %5182 = vmatprep.subr.mxu0 0.0
      %5183 = vmatpush2.msra.mxu0 0.0
      %5184 = vmatprep.subr.mxu0 0.0
      %5185 = vmatpush2.msra.mxu0 0.0
      %5186 = vmatprep.subr.mxu0 0.0
      %5187 = vmatpush2.msra.mxu0 0.0
      %5188 = vmatprep.subr.mxu0 0.0
      %5189 = vmatpush2.msra.mxu0 0.0
      %5190 = vmatprep.subr.mxu0 0.0
      %5191 = vmatpush2.msra.mxu0 0.0
      %5192 = vmatprep.subr.mxu0 0.0
      %5193 = vmatpush2.msra.mxu0 0.0
      %5194 = vmatprep.subr.mxu0 0.0
      %5195 = vmatpush2.msra.mxu0 0.0
      %5196 = vmatprep.subr.mxu0 0.0
      %5197 = vmatpush2.msra.mxu0 0.0
      %5198 = vmatprep.mubr.f32.mxu0 0.0
      %5199 = vmatmul.mubr.f32.gmra.mxu0 %v5061
      %v5200 = vpop.f32.mrf.mxu0
      %v5201 = vadd.f32 %v4959, %v5200
      %v5202 = vpop.f32.mrf.mxu0
      %5203 = vdwg.mxu0
      %s5204 = scalar_lea.vmem %s14, 8
      %v5205 = vld [vmem:[%s5204] sm:$0xf]
      %5206 = vrot.lane.b32.xlu0 %v4661, 124
      %v5207 = vpop.permute.xlu0 %5206
      %5208 = vrot.lane.b32.xlu0 %v4662, 124
      %v5209 = vpop.permute.xlu0 %5208
      %5210 = vrot.lane.b32.xlu0 %v4663, 124
      %v5211 = vpop.permute.xlu0 %5210
      %5212 = vrot.lane.b32.xlu0 %v4664, 124
      %v5213 = vpop.permute.xlu0 %5212
      %5214 = vrot.lane.b32.xlu0 %v4665, 124
      %v5215 = vpop.permute.xlu0 %5214
      %5216 = vrot.lane.b32.xlu0 %v4666, 124
      %v5217 = vpop.permute.xlu0 %5216
      %5218 = vrot.lane.b32.xlu0 %v4667, 124
      %v5219 = vpop.permute.xlu0 %5218
      %5220 = vrot.lane.b32.xlu0 %v4668, 124
      %v5221 = vpop.permute.xlu0 %5220
      %5222 = vrot.lane.b32.xlu0 %v4669, 124
      %v5223 = vpop.permute.xlu0 %5222
      %5224 = vrot.lane.b32.xlu0 %v4670, 124
      %v5225 = vpop.permute.xlu0 %5224
      %5226 = vrot.lane.b32.xlu0 %v4671, 124
      %v5227 = vpop.permute.xlu0 %5226
      %5228 = vrot.lane.b32.xlu0 %v4672, 124
      %v5229 = vpop.permute.xlu0 %5228
      %5230 = vrot.lane.b32.xlu0 %v4673, 124
      %v5231 = vpop.permute.xlu0 %5230
      %5232 = vrot.lane.b32.xlu0 %v4674, 124
      %v5233 = vpop.permute.xlu0 %5232
      %5234 = vrot.lane.b32.xlu0 %v4675, 124
      %v5235 = vpop.permute.xlu0 %5234
      %5236 = vrot.lane.b32.xlu0 %v4676, 124
      %v5237 = vpop.permute.xlu0 %5236
      %5238 = vrot.lane.b32.xlu0 %v4677, 124
      %v5239 = vpop.permute.xlu0 %5238
      %5240 = vrot.lane.b32.xlu0 %v4678, 124
      %v5241 = vpop.permute.xlu0 %5240
      %5242 = vrot.lane.b32.xlu0 %v4679, 124
      %v5243 = vpop.permute.xlu0 %5242
      %5244 = vrot.lane.b32.xlu0 %v4680, 124
      %v5245 = vpop.permute.xlu0 %5244
      %5246 = vrot.lane.b32.xlu0 %v4681, 124
      %v5247 = vpop.permute.xlu0 %5246
      %5248 = vrot.lane.b32.xlu0 %v4682, 124
      %v5249 = vpop.permute.xlu0 %5248
      %5250 = vrot.lane.b32.xlu0 %v4683, 124
      %v5251 = vpop.permute.xlu0 %5250
      %5252 = vrot.lane.b32.xlu0 %v4684, 124
      %v5253 = vpop.permute.xlu0 %5252
      %5254 = vrot.lane.b32.xlu0 %v4685, 124
      %v5255 = vpop.permute.xlu0 %5254
      %5256 = vrot.lane.b32.xlu0 %v4686, 124
      %v5257 = vpop.permute.xlu0 %5256
      %5258 = vrot.lane.b32.xlu0 %v4687, 124
      %v5259 = vpop.permute.xlu0 %5258
      %5260 = vrot.lane.b32.xlu0 %v4688, 124
      %v5261 = vpop.permute.xlu0 %5260
      %vm5262 = vcmask 1014784
      %v5263 = vsel %vm5262, %v5207, %v5209
      %v5264 = vsel %vm5262, %v5209, %v5211
      %v5265 = vsel %vm5262, %v5211, %v5213
      %v5266 = vsel %vm5262, %v5215, %v5217
      %v5267 = vsel %vm5262, %v5217, %v5219
      %v5268 = vsel %vm5262, %v5219, %v5221
      %v5269 = vsel %vm5262, %v5223, %v5225
      %v5270 = vsel %vm5262, %v5225, %v5227
      %v5271 = vsel %vm5262, %v5227, %v5229
      %v5272 = vsel %vm5262, %v5231, %v5233
      %v5273 = vsel %vm5262, %v5233, %v5235
      %v5274 = vsel %vm5262, %v5235, %v5237
      %v5275 = vsel %vm5262, %v5239, %v5241
      %v5276 = vsel %vm5262, %v5241, %v5243
      %v5277 = vsel %vm5262, %v5243, %v5245
      %v5278 = vsel %vm5262, %v5247, %v5249
      %v5279 = vsel %vm5262, %v5249, %v5251
      %v5280 = vsel %vm5262, %v5251, %v5253
      %v5281 = vsel %vm5262, %v5255, %v5257
      %v5282 = vsel %vm5262, %v5257, %v5259
      %v5283 = vsel %vm5262, %v5259, %v5261
      %v5306 = vsel %vm968, %v5205, 0
      %5308 = vmatprep.subr.mxu0 0.0
      %5309 = vmatpush1.msra.mxu0 0.0
      %5310 = vmatprep.subr.mxu0 0.0
      %5311 = vmatpush1.msra.mxu0 0.0
      %5312 = vmatprep.subr.mxu0 0.0
      %5313 = vmatpush1.msra.mxu0 0.0
      %5314 = vmatprep.subr.mxu0 0.0
      %5315 = vmatpush1.msra.mxu0 0.0
      %5316 = vmatprep.subr.mxu0 0.0
      %5317 = vmatpush1.msra.mxu0 0.0
      %5318 = vmatprep.subr.mxu0 0.0
      %5319 = vmatpush1.msra.mxu0 0.0
      %5320 = vmatprep.subr.mxu0 0.0
      %5321 = vmatpush1.msra.mxu0 0.0
      %5322 = vmatprep.subr.mxu0 0.0
      %5323 = vmatpush1.msra.mxu0 0.0
      %5324 = vmatprep.subr.mxu0 0.0
      %5325 = vmatpush1.msra.mxu0 0.0
      %5326 = vmatprep.subr.mxu0 %v5282
      %5327 = vmatpush1.msra.mxu0 %v5281
      %5328 = vmatprep.subr.mxu0 %v5279
      %5329 = vmatpush1.msra.mxu0 %v5278
      %5330 = vmatprep.subr.mxu0 %v5276
      %5331 = vmatpush1.msra.mxu0 %v5275
      %5332 = vmatprep.subr.mxu0 %v5273
      %5333 = vmatpush1.msra.mxu0 %v5272
      %5334 = vmatprep.subr.mxu0 %v5270
      %5335 = vmatpush1.msra.mxu0 %v5269
      %5336 = vmatprep.subr.mxu0 %v5267
      %5337 = vmatpush1.msra.mxu0 %v5266
      %5338 = vmatprep.subr.mxu0 %v5264
      %5339 = vmatpush1.msra.mxu0 %v5263
      %5340 = vmatprep.subr.mxu0 0.0
      %5341 = vmatpush2.msra.mxu0 0.0
      %5342 = vmatprep.subr.mxu0 0.0
      %5343 = vmatpush2.msra.mxu0 0.0
      %5344 = vmatprep.subr.mxu0 0.0
      %5345 = vmatpush2.msra.mxu0 0.0
      %5346 = vmatprep.subr.mxu0 0.0
      %5347 = vmatpush2.msra.mxu0 0.0
      %5348 = vmatprep.subr.mxu0 0.0
      %5349 = vmatpush2.msra.mxu0 0.0
      %5350 = vmatprep.subr.mxu0 0.0
      %5351 = vmatpush2.msra.mxu0 0.0
      %5352 = vmatprep.subr.mxu0 0.0
      %5353 = vmatpush2.msra.mxu0 0.0
      %5354 = vmatprep.subr.mxu0 0.0
      %5355 = vmatpush2.msra.mxu0 0.0
      %5356 = vmatprep.subr.mxu0 0.0
      %5357 = vmatpush2.msra.mxu0 0.0
      %5358 = vmatprep.subr.mxu0 0.0
      %5359 = vmatpush2.msra.mxu0 0.0
      %5360 = vmatprep.subr.mxu0 0.0
      %5361 = vmatpush2.msra.mxu0 0.0
      %5362 = vmatprep.subr.mxu0 0.0
      %5363 = vmatpush2.msra.mxu0 0.0
      %5364 = vmatprep.subr.mxu0 0.0
      %5365 = vmatpush2.msra.mxu0 0.0
      %5366 = vmatprep.subr.mxu0 0.0
      %5367 = vmatpush2.msra.mxu0 0.0
      %5368 = vmatprep.subr.mxu0 0.0
      %5369 = vmatpush2.msra.mxu0 0.0
      %5370 = vmatprep.subr.mxu0 0.0
      %5371 = vmatpush2.msra.mxu0 0.0
      %5372 = vmatprep.mubr.f32.mxu0 0.0
      %5373 = vmatmul.mubr.f32.gmra.mxu0 %v5306
      %v5374 = vpop.f32.mrf.mxu0
      %v5375 = vadd.f32 0.0, %v5374
      %v5376 = vpop.f32.mrf.mxu0
      %v5377 = vadd.f32 0.0, %v5376
      %5378 = vdwg.mxu0
      %5379 = vmatprep.subr.mxu0 0.0
      %5380 = vmatpush1.msra.mxu0 0.0
      %5381 = vmatprep.subr.mxu0 0.0
      %5382 = vmatpush1.msra.mxu0 0.0
      %5383 = vmatprep.subr.mxu0 0.0
      %5384 = vmatpush1.msra.mxu0 0.0
      %5385 = vmatprep.subr.mxu0 0.0
      %5386 = vmatpush1.msra.mxu0 0.0
      %5387 = vmatprep.subr.mxu0 0.0
      %5388 = vmatpush1.msra.mxu0 0.0
      %5389 = vmatprep.subr.mxu0 0.0
      %5390 = vmatpush1.msra.mxu0 0.0
      %5391 = vmatprep.subr.mxu0 0.0
      %5392 = vmatpush1.msra.mxu0 0.0
      %5393 = vmatprep.subr.mxu0 0.0
      %5394 = vmatpush1.msra.mxu0 0.0
      %5395 = vmatprep.subr.mxu0 0.0
      %5396 = vmatpush1.msra.mxu0 0.0
      %5397 = vmatprep.subr.mxu0 0.0
      %5398 = vmatpush1.msra.mxu0 %v5283
      %5399 = vmatprep.subr.mxu0 0.0
      %5400 = vmatpush1.msra.mxu0 %v5280
      %5401 = vmatprep.subr.mxu0 0.0
      %5402 = vmatpush1.msra.mxu0 %v5277
      %5403 = vmatprep.subr.mxu0 0.0
      %5404 = vmatpush1.msra.mxu0 %v5274
      %5405 = vmatprep.subr.mxu0 0.0
      %5406 = vmatpush1.msra.mxu0 %v5271
      %5407 = vmatprep.subr.mxu0 0.0
      %5408 = vmatpush1.msra.mxu0 %v5268
      %5409 = vmatprep.subr.mxu0 0.0
      %5410 = vmatpush1.msra.mxu0 %v5265
      %5411 = vmatprep.subr.mxu0 0.0
      %5412 = vmatpush2.msra.mxu0 0.0
      %5413 = vmatprep.subr.mxu0 0.0
      %5414 = vmatpush2.msra.mxu0 0.0
      %5415 = vmatprep.subr.mxu0 0.0
      %5416 = vmatpush2.msra.mxu0 0.0
      %5417 = vmatprep.subr.mxu0 0.0
      %5418 = vmatpush2.msra.mxu0 0.0
      %5419 = vmatprep.subr.mxu0 0.0
      %5420 = vmatpush2.msra.mxu0 0.0
      %5421 = vmatprep.subr.mxu0 0.0
      %5422 = vmatpush2.msra.mxu0 0.0
      %5423 = vmatprep.subr.mxu0 0.0
      %5424 = vmatpush2.msra.mxu0 0.0
      %5425 = vmatprep.subr.mxu0 0.0
      %5426 = vmatpush2.msra.mxu0 0.0
      %5427 = vmatprep.subr.mxu0 0.0
      %5428 = vmatpush2.msra.mxu0 0.0
      %5429 = vmatprep.subr.mxu0 0.0
      %5430 = vmatpush2.msra.mxu0 0.0
      %5431 = vmatprep.subr.mxu0 0.0
      %5432 = vmatpush2.msra.mxu0 0.0
      %5433 = vmatprep.subr.mxu0 0.0
      %5434 = vmatpush2.msra.mxu0 0.0
      %5435 = vmatprep.subr.mxu0 0.0
      %5436 = vmatpush2.msra.mxu0 0.0
      %5437 = vmatprep.subr.mxu0 0.0
      %5438 = vmatpush2.msra.mxu0 0.0
      %5439 = vmatprep.subr.mxu0 0.0
      %5440 = vmatpush2.msra.mxu0 0.0
      %5441 = vmatprep.subr.mxu0 0.0
      %5442 = vmatpush2.msra.mxu0 0.0
      %5443 = vmatprep.mubr.f32.mxu0 0.0
      %5444 = vmatmul.mubr.f32.gmra.mxu0 %v5306
      %v5445 = vpop.f32.mrf.mxu0
      %v5446 = vadd.f32 0.0, %v5445
      %v5447 = vpop.f32.mrf.mxu0
      %5448 = vdwg.mxu0
      %v5449 = vadd.f32 %v5130, %v5375
      %v5450 = vadd.f32 %v5132, %v5377
      %v5451 = vadd.f32 %v5201, %v5446
      %s5452 = scalar_lea.vmem %s14, 12
      %v5453 = vld [vmem:[%s5452] sm:$0xf]
      %5454 = vrot.lane.b32.xlu0 %v4661, 123
      %v5455 = vpop.permute.xlu0 %5454
      %5456 = vrot.lane.b32.xlu0 %v4662, 123
      %v5457 = vpop.permute.xlu0 %5456
      %5458 = vrot.lane.b32.xlu0 %v4663, 123
      %v5459 = vpop.permute.xlu0 %5458
      %5460 = vrot.lane.b32.xlu0 %v4664, 123
      %v5461 = vpop.permute.xlu0 %5460
      %5462 = vrot.lane.b32.xlu0 %v4665, 123
      %v5463 = vpop.permute.xlu0 %5462
      %5464 = vrot.lane.b32.xlu0 %v4666, 123
      %v5465 = vpop.permute.xlu0 %5464
      %5466 = vrot.lane.b32.xlu0 %v4667, 123
      %v5467 = vpop.permute.xlu0 %5466
      %5468 = vrot.lane.b32.xlu0 %v4668, 123
      %v5469 = vpop.permute.xlu0 %5468
      %5470 = vrot.lane.b32.xlu0 %v4669, 123
      %v5471 = vpop.permute.xlu0 %5470
      %5472 = vrot.lane.b32.xlu0 %v4670, 123
      %v5473 = vpop.permute.xlu0 %5472
      %5474 = vrot.lane.b32.xlu0 %v4671, 123
      %v5475 = vpop.permute.xlu0 %5474
      %5476 = vrot.lane.b32.xlu0 %v4672, 123
      %v5477 = vpop.permute.xlu0 %5476
      %5478 = vrot.lane.b32.xlu0 %v4673, 123
      %v5479 = vpop.permute.xlu0 %5478
      %5480 = vrot.lane.b32.xlu0 %v4674, 123
      %v5481 = vpop.permute.xlu0 %5480
      %5482 = vrot.lane.b32.xlu0 %v4675, 123
      %v5483 = vpop.permute.xlu0 %5482
      %5484 = vrot.lane.b32.xlu0 %v4676, 123
      %v5485 = vpop.permute.xlu0 %5484
      %5486 = vrot.lane.b32.xlu0 %v4677, 123
      %v5487 = vpop.permute.xlu0 %5486
      %5488 = vrot.lane.b32.xlu0 %v4678, 123
      %v5489 = vpop.permute.xlu0 %5488
      %5490 = vrot.lane.b32.xlu0 %v4679, 123
      %v5491 = vpop.permute.xlu0 %5490
      %5492 = vrot.lane.b32.xlu0 %v4680, 123
      %v5493 = vpop.permute.xlu0 %5492
      %5494 = vrot.lane.b32.xlu0 %v4681, 123
      %v5495 = vpop.permute.xlu0 %5494
      %5496 = vrot.lane.b32.xlu0 %v4682, 123
      %v5497 = vpop.permute.xlu0 %5496
      %5498 = vrot.lane.b32.xlu0 %v4683, 123
      %v5499 = vpop.permute.xlu0 %5498
      %5500 = vrot.lane.b32.xlu0 %v4684, 123
      %v5501 = vpop.permute.xlu0 %5500
      %5502 = vrot.lane.b32.xlu0 %v4685, 123
      %v5503 = vpop.permute.xlu0 %5502
      %5504 = vrot.lane.b32.xlu0 %v4686, 123
      %v5505 = vpop.permute.xlu0 %5504
      %5506 = vrot.lane.b32.xlu0 %v4687, 123
      %v5507 = vpop.permute.xlu0 %5506
      %5508 = vrot.lane.b32.xlu0 %v4688, 123
      %v5509 = vpop.permute.xlu0 %5508
      %vm5510 = vcmask 1006592
      %v5511 = vsel %vm5510, %v5455, %v5457
      %v5512 = vsel %vm5510, %v5457, %v5459
      %v5513 = vsel %vm5510, %v5459, %v5461
      %v5514 = vsel %vm5510, %v5463, %v5465
      %v5515 = vsel %vm5510, %v5465, %v5467
      %v5516 = vsel %vm5510, %v5467, %v5469
      %v5517 = vsel %vm5510, %v5471, %v5473
      %v5518 = vsel %vm5510, %v5473, %v5475
      %v5519 = vsel %vm5510, %v5475, %v5477
      %v5520 = vsel %vm5510, %v5479, %v5481
      %v5521 = vsel %vm5510, %v5481, %v5483
      %v5522 = vsel %vm5510, %v5483, %v5485
      %v5523 = vsel %vm5510, %v5487, %v5489
      %v5524 = vsel %vm5510, %v5489, %v5491
      %v5525 = vsel %vm5510, %v5491, %v5493
      %v5526 = vsel %vm5510, %v5495, %v5497
      %v5527 = vsel %vm5510, %v5497, %v5499
      %v5528 = vsel %vm5510, %v5499, %v5501
      %v5529 = vsel %vm5510, %v5503, %v5505
      %v5530 = vsel %vm5510, %v5505, %v5507
      %v5531 = vsel %vm5510, %v5507, %v5509
      %v5554 = vsel %vm968, %v5453, 0
      %5556 = vmatprep.subr.mxu0 0.0
      %5557 = vmatpush1.msra.mxu0 0.0
      %5558 = vmatprep.subr.mxu0 0.0
      %5559 = vmatpush1.msra.mxu0 0.0
      %5560 = vmatprep.subr.mxu0 0.0
      %5561 = vmatpush1.msra.mxu0 0.0
      %5562 = vmatprep.subr.mxu0 0.0
      %5563 = vmatpush1.msra.mxu0 0.0
      %5564 = vmatprep.subr.mxu0 0.0
      %5565 = vmatpush1.msra.mxu0 0.0
      %5566 = vmatprep.subr.mxu0 0.0
      %5567 = vmatpush1.msra.mxu0 0.0
      %5568 = vmatprep.subr.mxu0 0.0
      %5569 = vmatpush1.msra.mxu0 0.0
      %5570 = vmatprep.subr.mxu0 0.0
      %5571 = vmatpush1.msra.mxu0 0.0
      %5572 = vmatprep.subr.mxu0 0.0
      %5573 = vmatpush1.msra.mxu0 0.0
      %5574 = vmatprep.subr.mxu0 %v5530
      %5575 = vmatpush1.msra.mxu0 %v5529
      %5576 = vmatprep.subr.mxu0 %v5527
      %5577 = vmatpush1.msra.mxu0 %v5526
      %5578 = vmatprep.subr.mxu0 %v5524
      %5579 = vmatpush1.msra.mxu0 %v5523
      %5580 = vmatprep.subr.mxu0 %v5521
      %5581 = vmatpush1.msra.mxu0 %v5520
      %5582 = vmatprep.subr.mxu0 %v5518
      %5583 = vmatpush1.msra.mxu0 %v5517
      %5584 = vmatprep.subr.mxu0 %v5515
      %5585 = vmatpush1.msra.mxu0 %v5514
      %5586 = vmatprep.subr.mxu0 %v5512
      %5587 = vmatpush1.msra.mxu0 %v5511
      %5588 = vmatprep.subr.mxu0 0.0
      %5589 = vmatpush2.msra.mxu0 0.0
      %5590 = vmatprep.subr.mxu0 0.0
      %5591 = vmatpush2.msra.mxu0 0.0
      %5592 = vmatprep.subr.mxu0 0.0
      %5593 = vmatpush2.msra.mxu0 0.0
      %5594 = vmatprep.subr.mxu0 0.0
      %5595 = vmatpush2.msra.mxu0 0.0
      %5596 = vmatprep.subr.mxu0 0.0
      %5597 = vmatpush2.msra.mxu0 0.0
      %5598 = vmatprep.subr.mxu0 0.0
      %5599 = vmatpush2.msra.mxu0 0.0
      %5600 = vmatprep.subr.mxu0 0.0
      %5601 = vmatpush2.msra.mxu0 0.0
      %5602 = vmatprep.subr.mxu0 0.0
      %5603 = vmatpush2.msra.mxu0 0.0
      %5604 = vmatprep.subr.mxu0 0.0
      %5605 = vmatpush2.msra.mxu0 0.0
      %5606 = vmatprep.subr.mxu0 0.0
      %5607 = vmatpush2.msra.mxu0 0.0
      %5608 = vmatprep.subr.mxu0 0.0
      %5609 = vmatpush2.msra.mxu0 0.0
      %5610 = vmatprep.subr.mxu0 0.0
      %5611 = vmatpush2.msra.mxu0 0.0
      %5612 = vmatprep.subr.mxu0 0.0
      %5613 = vmatpush2.msra.mxu0 0.0
      %5614 = vmatprep.subr.mxu0 0.0
      %5615 = vmatpush2.msra.mxu0 0.0
      %5616 = vmatprep.subr.mxu0 0.0
      %5617 = vmatpush2.msra.mxu0 0.0
      %5618 = vmatprep.subr.mxu0 0.0
      %5619 = vmatpush2.msra.mxu0 0.0
      %5620 = vmatprep.mubr.f32.mxu0 0.0
      %5621 = vmatmul.mubr.f32.gmra.mxu0 %v5554
      %v5622 = vpop.f32.mrf.mxu0
      %v5623 = vadd.f32 0.0, %v5622
      %v5624 = vpop.f32.mrf.mxu0
      %v5625 = vadd.f32 0.0, %v5624
      %5626 = vdwg.mxu0
      %5627 = vmatprep.subr.mxu0 0.0
      %5628 = vmatpush1.msra.mxu0 0.0
      %5629 = vmatprep.subr.mxu0 0.0
      %5630 = vmatpush1.msra.mxu0 0.0
      %5631 = vmatprep.subr.mxu0 0.0
      %5632 = vmatpush1.msra.mxu0 0.0
      %5633 = vmatprep.subr.mxu0 0.0
      %5634 = vmatpush1.msra.mxu0 0.0
      %5635 = vmatprep.subr.mxu0 0.0
      %5636 = vmatpush1.msra.mxu0 0.0
      %5637 = vmatprep.subr.mxu0 0.0
      %5638 = vmatpush1.msra.mxu0 0.0
      %5639 = vmatprep.subr.mxu0 0.0
      %5640 = vmatpush1.msra.mxu0 0.0
      %5641 = vmatprep.subr.mxu0 0.0
      %5642 = vmatpush1.msra.mxu0 0.0
      %5643 = vmatprep.subr.mxu0 0.0
      %5644 = vmatpush1.msra.mxu0 0.0
      %5645 = vmatprep.subr.mxu0 0.0
      %5646 = vmatpush1.msra.mxu0 %v5531
      %5647 = vmatprep.subr.mxu0 0.0
      %5648 = vmatpush1.msra.mxu0 %v5528
      %5649 = vmatprep.subr.mxu0 0.0
      %5650 = vmatpush1.msra.mxu0 %v5525
      %5651 = vmatprep.subr.mxu0 0.0
      %5652 = vmatpush1.msra.mxu0 %v5522
      %5653 = vmatprep.subr.mxu0 0.0
      %5654 = vmatpush1.msra.mxu0 %v5519
      %5655 = vmatprep.subr.mxu0 0.0
      %5656 = vmatpush1.msra.mxu0 %v5516
      %5657 = vmatprep.subr.mxu0 0.0
      %5658 = vmatpush1.msra.mxu0 %v5513
      %5659 = vmatprep.subr.mxu0 0.0
      %5660 = vmatpush2.msra.mxu0 0.0
      %5661 = vmatprep.subr.mxu0 0.0
      %5662 = vmatpush2.msra.mxu0 0.0
      %5663 = vmatprep.subr.mxu0 0.0
      %5664 = vmatpush2.msra.mxu0 0.0
      %5665 = vmatprep.subr.mxu0 0.0
      %5666 = vmatpush2.msra.mxu0 0.0
      %5667 = vmatprep.subr.mxu0 0.0
      %5668 = vmatpush2.msra.mxu0 0.0
      %5669 = vmatprep.subr.mxu0 0.0
      %5670 = vmatpush2.msra.mxu0 0.0
      %5671 = vmatprep.subr.mxu0 0.0
      %5672 = vmatpush2.msra.mxu0 0.0
      %5673 = vmatprep.subr.mxu0 0.0
      %5674 = vmatpush2.msra.mxu0 0.0
      %5675 = vmatprep.subr.mxu0 0.0
      %5676 = vmatpush2.msra.mxu0 0.0
      %5677 = vmatprep.subr.mxu0 0.0
      %5678 = vmatpush2.msra.mxu0 0.0
      %5679 = vmatprep.subr.mxu0 0.0
      %5680 = vmatpush2.msra.mxu0 0.0
      %5681 = vmatprep.subr.mxu0 0.0
      %5682 = vmatpush2.msra.mxu0 0.0
      %5683 = vmatprep.subr.mxu0 0.0
      %5684 = vmatpush2.msra.mxu0 0.0
      %5685 = vmatprep.subr.mxu0 0.0
      %5686 = vmatpush2.msra.mxu0 0.0
      %5687 = vmatprep.subr.mxu0 0.0
      %5688 = vmatpush2.msra.mxu0 0.0
      %5689 = vmatprep.subr.mxu0 0.0
      %5690 = vmatpush2.msra.mxu0 0.0
      %5691 = vmatprep.mubr.f32.mxu0 0.0
      %5692 = vmatmul.mubr.f32.gmra.mxu0 %v5554
      %v5693 = vpop.f32.mrf.mxu0
      %v5694 = vadd.f32 0.0, %v5693
      %v5695 = vpop.f32.mrf.mxu0
      %5696 = vdwg.mxu0
      %v5697 = vadd.f32 %v5449, %v5623
      %v5698 = vadd.f32 %v5450, %v5625
      %v5699 = vadd.f32 %v5451, %v5694
      %s5700 = scalar_lea.vmem %s14, 16
      %v5701 = vld [vmem:[%s5700] sm:$0xf]
      %5702 = vrot.lane.b32.xlu0 %v4661, 122
      %v5703 = vpop.permute.xlu0 %5702
      %5704 = vrot.lane.b32.xlu0 %v4662, 122
      %v5705 = vpop.permute.xlu0 %5704
      %5706 = vrot.lane.b32.xlu0 %v4663, 122
      %v5707 = vpop.permute.xlu0 %5706
      %5708 = vrot.lane.b32.xlu0 %v4664, 122
      %v5709 = vpop.permute.xlu0 %5708
      %5710 = vrot.lane.b32.xlu0 %v4665, 122
      %v5711 = vpop.permute.xlu0 %5710
      %5712 = vrot.lane.b32.xlu0 %v4666, 122
      %v5713 = vpop.permute.xlu0 %5712
      %5714 = vrot.lane.b32.xlu0 %v4667, 122
      %v5715 = vpop.permute.xlu0 %5714
      %5716 = vrot.lane.b32.xlu0 %v4668, 122
      %v5717 = vpop.permute.xlu0 %5716
      %5718 = vrot.lane.b32.xlu0 %v4669, 122
      %v5719 = vpop.permute.xlu0 %5718
      %5720 = vrot.lane.b32.xlu0 %v4670, 122
      %v5721 = vpop.permute.xlu0 %5720
      %5722 = vrot.lane.b32.xlu0 %v4671, 122
      %v5723 = vpop.permute.xlu0 %5722
      %5724 = vrot.lane.b32.xlu0 %v4672, 122
      %v5725 = vpop.permute.xlu0 %5724
      %5726 = vrot.lane.b32.xlu0 %v4673, 122
      %v5727 = vpop.permute.xlu0 %5726
      %5728 = vrot.lane.b32.xlu0 %v4674, 122
      %v5729 = vpop.permute.xlu0 %5728
      %5730 = vrot.lane.b32.xlu0 %v4675, 122
      %v5731 = vpop.permute.xlu0 %5730
      %5732 = vrot.lane.b32.xlu0 %v4676, 122
      %v5733 = vpop.permute.xlu0 %5732
      %5734 = vrot.lane.b32.xlu0 %v4677, 122
      %v5735 = vpop.permute.xlu0 %5734
      %5736 = vrot.lane.b32.xlu0 %v4678, 122
      %v5737 = vpop.permute.xlu0 %5736
      %5738 = vrot.lane.b32.xlu0 %v4679, 122
      %v5739 = vpop.permute.xlu0 %5738
      %5740 = vrot.lane.b32.xlu0 %v4680, 122
      %v5741 = vpop.permute.xlu0 %5740
      %5742 = vrot.lane.b32.xlu0 %v4681, 122
      %v5743 = vpop.permute.xlu0 %5742
      %5744 = vrot.lane.b32.xlu0 %v4682, 122
      %v5745 = vpop.permute.xlu0 %5744
      %5746 = vrot.lane.b32.xlu0 %v4683, 122
      %v5747 = vpop.permute.xlu0 %5746
      %5748 = vrot.lane.b32.xlu0 %v4684, 122
      %v5749 = vpop.permute.xlu0 %5748
      %5750 = vrot.lane.b32.xlu0 %v4685, 122
      %v5751 = vpop.permute.xlu0 %5750
      %5752 = vrot.lane.b32.xlu0 %v4686, 122
      %v5753 = vpop.permute.xlu0 %5752
      %5754 = vrot.lane.b32.xlu0 %v4687, 122
      %v5755 = vpop.permute.xlu0 %5754
      %5756 = vrot.lane.b32.xlu0 %v4688, 122
      %v5757 = vpop.permute.xlu0 %5756
      %vm5758 = vcmask 998400
      %v5759 = vsel %vm5758, %v5703, %v5705
      %v5760 = vsel %vm5758, %v5705, %v5707
      %v5761 = vsel %vm5758, %v5707, %v5709
      %v5762 = vsel %vm5758, %v5711, %v5713
      %v5763 = vsel %vm5758, %v5713, %v5715
      %v5764 = vsel %vm5758, %v5715, %v5717
      %v5765 = vsel %vm5758, %v5719, %v5721
      %v5766 = vsel %vm5758, %v5721, %v5723
      %v5767 = vsel %vm5758, %v5723, %v5725
      %v5768 = vsel %vm5758, %v5727, %v5729
      %v5769 = vsel %vm5758, %v5729, %v5731
      %v5770 = vsel %vm5758, %v5731, %v5733
      %v5771 = vsel %vm5758, %v5735, %v5737
      %v5772 = vsel %vm5758, %v5737, %v5739
      %v5773 = vsel %vm5758, %v5739, %v5741
      %v5774 = vsel %vm5758, %v5743, %v5745
      %v5775 = vsel %vm5758, %v5745, %v5747
      %v5776 = vsel %vm5758, %v5747, %v5749
      %v5777 = vsel %vm5758, %v5751, %v5753
      %v5778 = vsel %vm5758, %v5753, %v5755
      %v5779 = vsel %vm5758, %v5755, %v5757
      %v5802 = vsel %vm968, %v5701, 0
      %5804 = vmatprep.subr.mxu0 0.0
      %5805 = vmatpush1.msra.mxu0 0.0
      %5806 = vmatprep.subr.mxu0 0.0
      %5807 = vmatpush1.msra.mxu0 0.0
      %5808 = vmatprep.subr.mxu0 0.0
      %5809 = vmatpush1.msra.mxu0 0.0
      %5810 = vmatprep.subr.mxu0 0.0
      %5811 = vmatpush1.msra.mxu0 0.0
      %5812 = vmatprep.subr.mxu0 0.0
      %5813 = vmatpush1.msra.mxu0 0.0
      %5814 = vmatprep.subr.mxu0 0.0
      %5815 = vmatpush1.msra.mxu0 0.0
      %5816 = vmatprep.subr.mxu0 0.0
      %5817 = vmatpush1.msra.mxu0 0.0
      %5818 = vmatprep.subr.mxu0 0.0
      %5819 = vmatpush1.msra.mxu0 0.0
      %5820 = vmatprep.subr.mxu0 0.0
      %5821 = vmatpush1.msra.mxu0 0.0
      %5822 = vmatprep.subr.mxu0 %v5778
      %5823 = vmatpush1.msra.mxu0 %v5777
      %5824 = vmatprep.subr.mxu0 %v5775
      %5825 = vmatpush1.msra.mxu0 %v5774
      %5826 = vmatprep.subr.mxu0 %v5772
      %5827 = vmatpush1.msra.mxu0 %v5771
      %5828 = vmatprep.subr.mxu0 %v5769
      %5829 = vmatpush1.msra.mxu0 %v5768
      %5830 = vmatprep.subr.mxu0 %v5766
      %5831 = vmatpush1.msra.mxu0 %v5765
      %5832 = vmatprep.subr.mxu0 %v5763
      %5833 = vmatpush1.msra.mxu0 %v5762
      %5834 = vmatprep.subr.mxu0 %v5760
      %5835 = vmatpush1.msra.mxu0 %v5759
      %5836 = vmatprep.subr.mxu0 0.0
      %5837 = vmatpush2.msra.mxu0 0.0
      %5838 = vmatprep.subr.mxu0 0.0
      %5839 = vmatpush2.msra.mxu0 0.0
      %5840 = vmatprep.subr.mxu0 0.0
      %5841 = vmatpush2.msra.mxu0 0.0
      %5842 = vmatprep.subr.mxu0 0.0
      %5843 = vmatpush2.msra.mxu0 0.0
      %5844 = vmatprep.subr.mxu0 0.0
      %5845 = vmatpush2.msra.mxu0 0.0
      %5846 = vmatprep.subr.mxu0 0.0
      %5847 = vmatpush2.msra.mxu0 0.0
      %5848 = vmatprep.subr.mxu0 0.0
      %5849 = vmatpush2.msra.mxu0 0.0
      %5850 = vmatprep.subr.mxu0 0.0
      %5851 = vmatpush2.msra.mxu0 0.0
      %5852 = vmatprep.subr.mxu0 0.0
      %5853 = vmatpush2.msra.mxu0 0.0
      %5854 = vmatprep.subr.mxu0 0.0
      %5855 = vmatpush2.msra.mxu0 0.0
      %5856 = vmatprep.subr.mxu0 0.0
      %5857 = vmatpush2.msra.mxu0 0.0
      %5858 = vmatprep.subr.mxu0 0.0
      %5859 = vmatpush2.msra.mxu0 0.0
      %5860 = vmatprep.subr.mxu0 0.0
      %5861 = vmatpush2.msra.mxu0 0.0
      %5862 = vmatprep.subr.mxu0 0.0
      %5863 = vmatpush2.msra.mxu0 0.0
      %5864 = vmatprep.subr.mxu0 0.0
      %5865 = vmatpush2.msra.mxu0 0.0
      %5866 = vmatprep.subr.mxu0 0.0
      %5867 = vmatpush2.msra.mxu0 0.0
      %5868 = vmatprep.mubr.f32.mxu0 0.0
      %5869 = vmatmul.mubr.f32.gmra.mxu0 %v5802
      %v5870 = vpop.f32.mrf.mxu0
      %v5871 = vadd.f32 0.0, %v5870
      %v5872 = vpop.f32.mrf.mxu0
      %v5873 = vadd.f32 0.0, %v5872
      %5874 = vdwg.mxu0
      %5875 = vmatprep.subr.mxu0 0.0
      %5876 = vmatpush1.msra.mxu0 0.0
      %5877 = vmatprep.subr.mxu0 0.0
      %5878 = vmatpush1.msra.mxu0 0.0
      %5879 = vmatprep.subr.mxu0 0.0
      %5880 = vmatpush1.msra.mxu0 0.0
      %5881 = vmatprep.subr.mxu0 0.0
      %5882 = vmatpush1.msra.mxu0 0.0
      %5883 = vmatprep.subr.mxu0 0.0
      %5884 = vmatpush1.msra.mxu0 0.0
      %5885 = vmatprep.subr.mxu0 0.0
      %5886 = vmatpush1.msra.mxu0 0.0
      %5887 = vmatprep.subr.mxu0 0.0
      %5888 = vmatpush1.msra.mxu0 0.0
      %5889 = vmatprep.subr.mxu0 0.0
      %5890 = vmatpush1.msra.mxu0 0.0
      %5891 = vmatprep.subr.mxu0 0.0
      %5892 = vmatpush1.msra.mxu0 0.0
      %5893 = vmatprep.subr.mxu0 0.0
      %5894 = vmatpush1.msra.mxu0 %v5779
      %5895 = vmatprep.subr.mxu0 0.0
      %5896 = vmatpush1.msra.mxu0 %v5776
      %5897 = vmatprep.subr.mxu0 0.0
      %5898 = vmatpush1.msra.mxu0 %v5773
      %5899 = vmatprep.subr.mxu0 0.0
      %5900 = vmatpush1.msra.mxu0 %v5770
      %5901 = vmatprep.subr.mxu0 0.0
      %5902 = vmatpush1.msra.mxu0 %v5767
      %5903 = vmatprep.subr.mxu0 0.0
      %5904 = vmatpush1.msra.mxu0 %v5764
      %5905 = vmatprep.subr.mxu0 0.0
      %5906 = vmatpush1.msra.mxu0 %v5761
      %5907 = vmatprep.subr.mxu0 0.0
      %5908 = vmatpush2.msra.mxu0 0.0
      %5909 = vmatprep.subr.mxu0 0.0
      %5910 = vmatpush2.msra.mxu0 0.0
      %5911 = vmatprep.subr.mxu0 0.0
      %5912 = vmatpush2.msra.mxu0 0.0
      %5913 = vmatprep.subr.mxu0 0.0
      %5914 = vmatpush2.msra.mxu0 0.0
      %5915 = vmatprep.subr.mxu0 0.0
      %5916 = vmatpush2.msra.mxu0 0.0
      %5917 = vmatprep.subr.mxu0 0.0
      %5918 = vmatpush2.msra.mxu0 0.0
      %5919 = vmatprep.subr.mxu0 0.0
      %5920 = vmatpush2.msra.mxu0 0.0
      %5921 = vmatprep.subr.mxu0 0.0
      %5922 = vmatpush2.msra.mxu0 0.0
      %5923 = vmatprep.subr.mxu0 0.0
      %5924 = vmatpush2.msra.mxu0 0.0
      %5925 = vmatprep.subr.mxu0 0.0
      %5926 = vmatpush2.msra.mxu0 0.0
      %5927 = vmatprep.subr.mxu0 0.0
      %5928 = vmatpush2.msra.mxu0 0.0
      %5929 = vmatprep.subr.mxu0 0.0
      %5930 = vmatpush2.msra.mxu0 0.0
      %5931 = vmatprep.subr.mxu0 0.0
      %5932 = vmatpush2.msra.mxu0 0.0
      %5933 = vmatprep.subr.mxu0 0.0
      %5934 = vmatpush2.msra.mxu0 0.0
      %5935 = vmatprep.subr.mxu0 0.0
      %5936 = vmatpush2.msra.mxu0 0.0
      %5937 = vmatprep.subr.mxu0 0.0
      %5938 = vmatpush2.msra.mxu0 0.0
      %5939 = vmatprep.mubr.f32.mxu0 0.0
      %5940 = vmatmul.mubr.f32.gmra.mxu0 %v5802
      %v5941 = vpop.f32.mrf.mxu0
      %v5942 = vadd.f32 0.0, %v5941
      %v5943 = vpop.f32.mrf.mxu0
      %5944 = vdwg.mxu0
      %v5945 = vadd.f32 %v5697, %v5871
      %v5946 = vadd.f32 %v5698, %v5873
      %v5947 = vadd.f32 %v5699, %v5942
      %s5948 = scalar_lea.vmem %s14, 20
      %v5949 = vld [vmem:[%s5948] sm:$0xf]
      %5950 = vrot.lane.b32.xlu0 %v4661, 102
      %v5951 = vpop.permute.xlu0 %5950
      %5952 = vrot.lane.b32.xlu0 %v4662, 102
      %v5953 = vpop.permute.xlu0 %5952
      %5954 = vrot.lane.b32.xlu0 %v4663, 102
      %v5955 = vpop.permute.xlu0 %5954
      %5956 = vrot.lane.b32.xlu0 %v4664, 102
      %v5957 = vpop.permute.xlu0 %5956
      %5958 = vrot.lane.b32.xlu0 %v4665, 102
      %v5959 = vpop.permute.xlu0 %5958
      %5960 = vrot.lane.b32.xlu0 %v4666, 102
      %v5961 = vpop.permute.xlu0 %5960
      %5962 = vrot.lane.b32.xlu0 %v4667, 102
      %v5963 = vpop.permute.xlu0 %5962
      %5964 = vrot.lane.b32.xlu0 %v4668, 102
      %v5965 = vpop.permute.xlu0 %5964
      %5966 = vrot.lane.b32.xlu0 %v4669, 102
      %v5967 = vpop.permute.xlu0 %5966
      %5968 = vrot.lane.b32.xlu0 %v4670, 102
      %v5969 = vpop.permute.xlu0 %5968
      %5970 = vrot.lane.b32.xlu0 %v4671, 102
      %v5971 = vpop.permute.xlu0 %5970
      %5972 = vrot.lane.b32.xlu0 %v4672, 102
      %v5973 = vpop.permute.xlu0 %5972
      %5974 = vrot.lane.b32.xlu0 %v4673, 102
      %v5975 = vpop.permute.xlu0 %5974
      %5976 = vrot.lane.b32.xlu0 %v4674, 102
      %v5977 = vpop.permute.xlu0 %5976
      %5978 = vrot.lane.b32.xlu0 %v4675, 102
      %v5979 = vpop.permute.xlu0 %5978
      %5980 = vrot.lane.b32.xlu0 %v4676, 102
      %v5981 = vpop.permute.xlu0 %5980
      %5982 = vrot.lane.b32.xlu0 %v4677, 102
      %v5983 = vpop.permute.xlu0 %5982
      %5984 = vrot.lane.b32.xlu0 %v4678, 102
      %v5985 = vpop.permute.xlu0 %5984
      %5986 = vrot.lane.b32.xlu0 %v4679, 102
      %v5987 = vpop.permute.xlu0 %5986
      %5988 = vrot.lane.b32.xlu0 %v4680, 102
      %v5989 = vpop.permute.xlu0 %5988
      %5990 = vrot.lane.b32.xlu0 %v4681, 102
      %v5991 = vpop.permute.xlu0 %5990
      %5992 = vrot.lane.b32.xlu0 %v4682, 102
      %v5993 = vpop.permute.xlu0 %5992
      %5994 = vrot.lane.b32.xlu0 %v4683, 102
      %v5995 = vpop.permute.xlu0 %5994
      %5996 = vrot.lane.b32.xlu0 %v4684, 102
      %v5997 = vpop.permute.xlu0 %5996
      %5998 = vrot.lane.b32.xlu0 %v4685, 102
      %v5999 = vpop.permute.xlu0 %5998
      %6000 = vrot.lane.b32.xlu0 %v4686, 102
      %v6001 = vpop.permute.xlu0 %6000
      %6002 = vrot.lane.b32.xlu0 %v4687, 102
      %v6003 = vpop.permute.xlu0 %6002
      %6004 = vrot.lane.b32.xlu0 %v4688, 102
      %v6005 = vpop.permute.xlu0 %6004
      %v6006 = vsel %vm1372, %v5951, %v5953
      %v6007 = vsel %vm1372, %v5953, %v5955
      %v6008 = vsel %vm1372, %v5955, %v5957
      %v6009 = vsel %vm1372, %v5959, %v5961
      %v6010 = vsel %vm1372, %v5961, %v5963
      %v6011 = vsel %vm1372, %v5963, %v5965
      %v6012 = vsel %vm1372, %v5967, %v5969
      %v6013 = vsel %vm1372, %v5969, %v5971
      %v6014 = vsel %vm1372, %v5971, %v5973
      %v6015 = vsel %vm1372, %v5975, %v5977
      %v6016 = vsel %vm1372, %v5977, %v5979
      %v6017 = vsel %vm1372, %v5979, %v5981
      %v6018 = vsel %vm1372, %v5983, %v5985
      %v6019 = vsel %vm1372, %v5985, %v5987
      %v6020 = vsel %vm1372, %v5987, %v5989
      %v6021 = vsel %vm1372, %v5991, %v5993
      %v6022 = vsel %vm1372, %v5993, %v5995
      %v6023 = vsel %vm1372, %v5995, %v5997
      %v6024 = vsel %vm1372, %v5999, %v6001
      %v6025 = vsel %vm1372, %v6001, %v6003
      %v6026 = vsel %vm1372, %v6003, %v6005
      %v6049 = vsel %vm968, %v5949, 0
      %6051 = vmatprep.subr.mxu0 0.0
      %6052 = vmatpush1.msra.mxu0 0.0
      %6053 = vmatprep.subr.mxu0 0.0
      %6054 = vmatpush1.msra.mxu0 0.0
      %6055 = vmatprep.subr.mxu0 0.0
      %6056 = vmatpush1.msra.mxu0 0.0
      %6057 = vmatprep.subr.mxu0 0.0
      %6058 = vmatpush1.msra.mxu0 0.0
      %6059 = vmatprep.subr.mxu0 0.0
      %6060 = vmatpush1.msra.mxu0 0.0
      %6061 = vmatprep.subr.mxu0 0.0
      %6062 = vmatpush1.msra.mxu0 0.0
      %6063 = vmatprep.subr.mxu0 0.0
      %6064 = vmatpush1.msra.mxu0 0.0
      %6065 = vmatprep.subr.mxu0 0.0
      %6066 = vmatpush1.msra.mxu0 0.0
      %6067 = vmatprep.subr.mxu0 0.0
      %6068 = vmatpush1.msra.mxu0 0.0
      %6069 = vmatprep.subr.mxu0 %v6025
      %6070 = vmatpush1.msra.mxu0 %v6024
      %6071 = vmatprep.subr.mxu0 %v6022
      %6072 = vmatpush1.msra.mxu0 %v6021
      %6073 = vmatprep.subr.mxu0 %v6019
      %6074 = vmatpush1.msra.mxu0 %v6018
      %6075 = vmatprep.subr.mxu0 %v6016
      %6076 = vmatpush1.msra.mxu0 %v6015
      %6077 = vmatprep.subr.mxu0 %v6013
      %6078 = vmatpush1.msra.mxu0 %v6012
      %6079 = vmatprep.subr.mxu0 %v6010
      %6080 = vmatpush1.msra.mxu0 %v6009
      %6081 = vmatprep.subr.mxu0 %v6007
      %6082 = vmatpush1.msra.mxu0 %v6006
      %6083 = vmatprep.subr.mxu0 0.0
      %6084 = vmatpush2.msra.mxu0 0.0
      %6085 = vmatprep.subr.mxu0 0.0
      %6086 = vmatpush2.msra.mxu0 0.0
      %6087 = vmatprep.subr.mxu0 0.0
      %6088 = vmatpush2.msra.mxu0 0.0
      %6089 = vmatprep.subr.mxu0 0.0
      %6090 = vmatpush2.msra.mxu0 0.0
      %6091 = vmatprep.subr.mxu0 0.0
      %6092 = vmatpush2.msra.mxu0 0.0
      %6093 = vmatprep.subr.mxu0 0.0
      %6094 = vmatpush2.msra.mxu0 0.0
      %6095 = vmatprep.subr.mxu0 0.0
      %6096 = vmatpush2.msra.mxu0 0.0
      %6097 = vmatprep.subr.mxu0 0.0
      %6098 = vmatpush2.msra.mxu0 0.0
      %6099 = vmatprep.subr.mxu0 0.0
      %6100 = vmatpush2.msra.mxu0 0.0
      %6101 = vmatprep.subr.mxu0 0.0
      %6102 = vmatpush2.msra.mxu0 0.0
      %6103 = vmatprep.subr.mxu0 0.0
      %6104 = vmatpush2.msra.mxu0 0.0
      %6105 = vmatprep.subr.mxu0 0.0
      %6106 = vmatpush2.msra.mxu0 0.0
      %6107 = vmatprep.subr.mxu0 0.0
      %6108 = vmatpush2.msra.mxu0 0.0
      %6109 = vmatprep.subr.mxu0 0.0
      %6110 = vmatpush2.msra.mxu0 0.0
      %6111 = vmatprep.subr.mxu0 0.0
      %6112 = vmatpush2.msra.mxu0 0.0
      %6113 = vmatprep.subr.mxu0 0.0
      %6114 = vmatpush2.msra.mxu0 0.0
      %6115 = vmatprep.mubr.f32.mxu0 0.0
      %6116 = vmatmul.mubr.f32.gmra.mxu0 %v6049
      %v6117 = vpop.f32.mrf.mxu0
      %v6118 = vadd.f32 0.0, %v6117
      %v6119 = vpop.f32.mrf.mxu0
      %v6120 = vadd.f32 0.0, %v6119
      %6121 = vdwg.mxu0
      %6122 = vmatprep.subr.mxu0 0.0
      %6123 = vmatpush1.msra.mxu0 0.0
      %6124 = vmatprep.subr.mxu0 0.0
      %6125 = vmatpush1.msra.mxu0 0.0
      %6126 = vmatprep.subr.mxu0 0.0
      %6127 = vmatpush1.msra.mxu0 0.0
      %6128 = vmatprep.subr.mxu0 0.0
      %6129 = vmatpush1.msra.mxu0 0.0
      %6130 = vmatprep.subr.mxu0 0.0
      %6131 = vmatpush1.msra.mxu0 0.0
      %6132 = vmatprep.subr.mxu0 0.0
      %6133 = vmatpush1.msra.mxu0 0.0
      %6134 = vmatprep.subr.mxu0 0.0
      %6135 = vmatpush1.msra.mxu0 0.0
      %6136 = vmatprep.subr.mxu0 0.0
      %6137 = vmatpush1.msra.mxu0 0.0
      %6138 = vmatprep.subr.mxu0 0.0
      %6139 = vmatpush1.msra.mxu0 0.0
      %6140 = vmatprep.subr.mxu0 0.0
      %6141 = vmatpush1.msra.mxu0 %v6026
      %6142 = vmatprep.subr.mxu0 0.0
      %6143 = vmatpush1.msra.mxu0 %v6023
      %6144 = vmatprep.subr.mxu0 0.0
      %6145 = vmatpush1.msra.mxu0 %v6020
      %6146 = vmatprep.subr.mxu0 0.0
      %6147 = vmatpush1.msra.mxu0 %v6017
      %6148 = vmatprep.subr.mxu0 0.0
      %6149 = vmatpush1.msra.mxu0 %v6014
      %6150 = vmatprep.subr.mxu0 0.0
      %6151 = vmatpush1.msra.mxu0 %v6011
      %6152 = vmatprep.subr.mxu0 0.0
      %6153 = vmatpush1.msra.mxu0 %v6008
      %6154 = vmatprep.subr.mxu0 0.0
      %6155 = vmatpush2.msra.mxu0 0.0
      %6156 = vmatprep.subr.mxu0 0.0
      %6157 = vmatpush2.msra.mxu0 0.0
      %6158 = vmatprep.subr.mxu0 0.0
      %6159 = vmatpush2.msra.mxu0 0.0
      %6160 = vmatprep.subr.mxu0 0.0
      %6161 = vmatpush2.msra.mxu0 0.0
      %6162 = vmatprep.subr.mxu0 0.0
      %6163 = vmatpush2.msra.mxu0 0.0
      %6164 = vmatprep.subr.mxu0 0.0
      %6165 = vmatpush2.msra.mxu0 0.0
      %6166 = vmatprep.subr.mxu0 0.0
      %6167 = vmatpush2.msra.mxu0 0.0
      %6168 = vmatprep.subr.mxu0 0.0
      %6169 = vmatpush2.msra.mxu0 0.0
      %6170 = vmatprep.subr.mxu0 0.0
      %6171 = vmatpush2.msra.mxu0 0.0
      %6172 = vmatprep.subr.mxu0 0.0
      %6173 = vmatpush2.msra.mxu0 0.0
      %6174 = vmatprep.subr.mxu0 0.0
      %6175 = vmatpush2.msra.mxu0 0.0
      %6176 = vmatprep.subr.mxu0 0.0
      %6177 = vmatpush2.msra.mxu0 0.0
      %6178 = vmatprep.subr.mxu0 0.0
      %6179 = vmatpush2.msra.mxu0 0.0
      %6180 = vmatprep.subr.mxu0 0.0
      %6181 = vmatpush2.msra.mxu0 0.0
      %6182 = vmatprep.subr.mxu0 0.0
      %6183 = vmatpush2.msra.mxu0 0.0
      %6184 = vmatprep.subr.mxu0 0.0
      %6185 = vmatpush2.msra.mxu0 0.0
      %6186 = vmatprep.mubr.f32.mxu0 0.0
      %6187 = vmatmul.mubr.f32.gmra.mxu0 %v6049
      %v6188 = vpop.f32.mrf.mxu0
      %v6189 = vadd.f32 0.0, %v6188
      %v6190 = vpop.f32.mrf.mxu0
      %6191 = vdwg.mxu0
      %v6192 = vadd.f32 %v5945, %v6118
      %v6193 = vadd.f32 %v5946, %v6120
      %v6194 = vadd.f32 %v5947, %v6189
      %s6195 = scalar_lea.vmem %s14, 24
      %v6196 = vld [vmem:[%s6195] sm:$0xf]
      %6197 = vrot.lane.b32.xlu0 %v4661, 101
      %v6198 = vpop.permute.xlu0 %6197
      %6199 = vrot.lane.b32.xlu0 %v4662, 101
      %v6200 = vpop.permute.xlu0 %6199
      %6201 = vrot.lane.b32.xlu0 %v4663, 101
      %v6202 = vpop.permute.xlu0 %6201
      %6203 = vrot.lane.b32.xlu0 %v4664, 101
      %v6204 = vpop.permute.xlu0 %6203
      %6205 = vrot.lane.b32.xlu0 %v4665, 101
      %v6206 = vpop.permute.xlu0 %6205
      %6207 = vrot.lane.b32.xlu0 %v4666, 101
      %v6208 = vpop.permute.xlu0 %6207
      %6209 = vrot.lane.b32.xlu0 %v4667, 101
      %v6210 = vpop.permute.xlu0 %6209
      %6211 = vrot.lane.b32.xlu0 %v4668, 101
      %v6212 = vpop.permute.xlu0 %6211
      %6213 = vrot.lane.b32.xlu0 %v4669, 101
      %v6214 = vpop.permute.xlu0 %6213
      %6215 = vrot.lane.b32.xlu0 %v4670, 101
      %v6216 = vpop.permute.xlu0 %6215
      %6217 = vrot.lane.b32.xlu0 %v4671, 101
      %v6218 = vpop.permute.xlu0 %6217
      %6219 = vrot.lane.b32.xlu0 %v4672, 101
      %v6220 = vpop.permute.xlu0 %6219
      %6221 = vrot.lane.b32.xlu0 %v4673, 101
      %v6222 = vpop.permute.xlu0 %6221
      %6223 = vrot.lane.b32.xlu0 %v4674, 101
      %v6224 = vpop.permute.xlu0 %6223
      %6225 = vrot.lane.b32.xlu0 %v4675, 101
      %v6226 = vpop.permute.xlu0 %6225
      %6227 = vrot.lane.b32.xlu0 %v4676, 101
      %v6228 = vpop.permute.xlu0 %6227
      %6229 = vrot.lane.b32.xlu0 %v4677, 101
      %v6230 = vpop.permute.xlu0 %6229
      %6231 = vrot.lane.b32.xlu0 %v4678, 101
      %v6232 = vpop.permute.xlu0 %6231
      %6233 = vrot.lane.b32.xlu0 %v4679, 101
      %v6234 = vpop.permute.xlu0 %6233
      %6235 = vrot.lane.b32.xlu0 %v4680, 101
      %v6236 = vpop.permute.xlu0 %6235
      %6237 = vrot.lane.b32.xlu0 %v4681, 101
      %v6238 = vpop.permute.xlu0 %6237
      %6239 = vrot.lane.b32.xlu0 %v4682, 101
      %v6240 = vpop.permute.xlu0 %6239
      %6241 = vrot.lane.b32.xlu0 %v4683, 101
      %v6242 = vpop.permute.xlu0 %6241
      %6243 = vrot.lane.b32.xlu0 %v4684, 101
      %v6244 = vpop.permute.xlu0 %6243
      %6245 = vrot.lane.b32.xlu0 %v4685, 101
      %v6246 = vpop.permute.xlu0 %6245
      %6247 = vrot.lane.b32.xlu0 %v4686, 101
      %v6248 = vpop.permute.xlu0 %6247
      %6249 = vrot.lane.b32.xlu0 %v4687, 101
      %v6250 = vpop.permute.xlu0 %6249
      %6251 = vrot.lane.b32.xlu0 %v4688, 101
      %v6252 = vpop.permute.xlu0 %6251
      %v6253 = vsel %vm1618, %v6198, %v6200
      %v6254 = vsel %vm1618, %v6200, %v6202
      %v6255 = vsel %vm1618, %v6202, %v6204
      %v6256 = vsel %vm1618, %v6206, %v6208
      %v6257 = vsel %vm1618, %v6208, %v6210
      %v6258 = vsel %vm1618, %v6210, %v6212
      %v6259 = vsel %vm1618, %v6214, %v6216
      %v6260 = vsel %vm1618, %v6216, %v6218
      %v6261 = vsel %vm1618, %v6218, %v6220
      %v6262 = vsel %vm1618, %v6222, %v6224
      %v6263 = vsel %vm1618, %v6224, %v6226
      %v6264 = vsel %vm1618, %v6226, %v6228
      %v6265 = vsel %vm1618, %v6230, %v6232
      %v6266 = vsel %vm1618, %v6232, %v6234
      %v6267 = vsel %vm1618, %v6234, %v6236
      %v6268 = vsel %vm1618, %v6238, %v6240
      %v6269 = vsel %vm1618, %v6240, %v6242
      %v6270 = vsel %vm1618, %v6242, %v6244
      %v6271 = vsel %vm1618, %v6246, %v6248
      %v6272 = vsel %vm1618, %v6248, %v6250
      %v6273 = vsel %vm1618, %v6250, %v6252
      %v6296 = vsel %vm968, %v6196, 0
      %6298 = vmatprep.subr.mxu0 0.0
      %6299 = vmatpush1.msra.mxu0 0.0
      %6300 = vmatprep.subr.mxu0 0.0
      %6301 = vmatpush1.msra.mxu0 0.0
      %6302 = vmatprep.subr.mxu0 0.0
      %6303 = vmatpush1.msra.mxu0 0.0
      %6304 = vmatprep.subr.mxu0 0.0
      %6305 = vmatpush1.msra.mxu0 0.0
      %6306 = vmatprep.subr.mxu0 0.0
      %6307 = vmatpush1.msra.mxu0 0.0
      %6308 = vmatprep.subr.mxu0 0.0
      %6309 = vmatpush1.msra.mxu0 0.0
      %6310 = vmatprep.subr.mxu0 0.0
      %6311 = vmatpush1.msra.mxu0 0.0
      %6312 = vmatprep.subr.mxu0 0.0
      %6313 = vmatpush1.msra.mxu0 0.0
      %6314 = vmatprep.subr.mxu0 0.0
      %6315 = vmatpush1.msra.mxu0 0.0
      %6316 = vmatprep.subr.mxu0 %v6272
      %6317 = vmatpush1.msra.mxu0 %v6271
      %6318 = vmatprep.subr.mxu0 %v6269
      %6319 = vmatpush1.msra.mxu0 %v6268
      %6320 = vmatprep.subr.mxu0 %v6266
      %6321 = vmatpush1.msra.mxu0 %v6265
      %6322 = vmatprep.subr.mxu0 %v6263
      %6323 = vmatpush1.msra.mxu0 %v6262
      %6324 = vmatprep.subr.mxu0 %v6260
      %6325 = vmatpush1.msra.mxu0 %v6259
      %6326 = vmatprep.subr.mxu0 %v6257
      %6327 = vmatpush1.msra.mxu0 %v6256
      %6328 = vmatprep.subr.mxu0 %v6254
      %6329 = vmatpush1.msra.mxu0 %v6253
      %6330 = vmatprep.subr.mxu0 0.0
      %6331 = vmatpush2.msra.mxu0 0.0
      %6332 = vmatprep.subr.mxu0 0.0
      %6333 = vmatpush2.msra.mxu0 0.0
      %6334 = vmatprep.subr.mxu0 0.0
      %6335 = vmatpush2.msra.mxu0 0.0
      %6336 = vmatprep.subr.mxu0 0.0
      %6337 = vmatpush2.msra.mxu0 0.0
      %6338 = vmatprep.subr.mxu0 0.0
      %6339 = vmatpush2.msra.mxu0 0.0
      %6340 = vmatprep.subr.mxu0 0.0
      %6341 = vmatpush2.msra.mxu0 0.0
      %6342 = vmatprep.subr.mxu0 0.0
      %6343 = vmatpush2.msra.mxu0 0.0
      %6344 = vmatprep.subr.mxu0 0.0
      %6345 = vmatpush2.msra.mxu0 0.0
      %6346 = vmatprep.subr.mxu0 0.0
      %6347 = vmatpush2.msra.mxu0 0.0
      %6348 = vmatprep.subr.mxu0 0.0
      %6349 = vmatpush2.msra.mxu0 0.0
      %6350 = vmatprep.subr.mxu0 0.0
      %6351 = vmatpush2.msra.mxu0 0.0
      %6352 = vmatprep.subr.mxu0 0.0
      %6353 = vmatpush2.msra.mxu0 0.0
      %6354 = vmatprep.subr.mxu0 0.0
      %6355 = vmatpush2.msra.mxu0 0.0
      %6356 = vmatprep.subr.mxu0 0.0
      %6357 = vmatpush2.msra.mxu0 0.0
      %6358 = vmatprep.subr.mxu0 0.0
      %6359 = vmatpush2.msra.mxu0 0.0
      %6360 = vmatprep.subr.mxu0 0.0
      %6361 = vmatpush2.msra.mxu0 0.0
      %6362 = vmatprep.mubr.f32.mxu0 0.0
      %6363 = vmatmul.mubr.f32.gmra.mxu0 %v6296
      %v6364 = vpop.f32.mrf.mxu0
      %v6365 = vadd.f32 0.0, %v6364
      %v6366 = vpop.f32.mrf.mxu0
      %v6367 = vadd.f32 0.0, %v6366
      %6368 = vdwg.mxu0
      %6369 = vmatprep.subr.mxu0 0.0
      %6370 = vmatpush1.msra.mxu0 0.0
      %6371 = vmatprep.subr.mxu0 0.0
      %6372 = vmatpush1.msra.mxu0 0.0
      %6373 = vmatprep.subr.mxu0 0.0
      %6374 = vmatpush1.msra.mxu0 0.0
      %6375 = vmatprep.subr.mxu0 0.0
      %6376 = vmatpush1.msra.mxu0 0.0
      %6377 = vmatprep.subr.mxu0 0.0
      %6378 = vmatpush1.msra.mxu0 0.0
      %6379 = vmatprep.subr.mxu0 0.0
      %6380 = vmatpush1.msra.mxu0 0.0
      %6381 = vmatprep.subr.mxu0 0.0
      %6382 = vmatpush1.msra.mxu0 0.0
      %6383 = vmatprep.subr.mxu0 0.0
      %6384 = vmatpush1.msra.mxu0 0.0
      %6385 = vmatprep.subr.mxu0 0.0
      %6386 = vmatpush1.msra.mxu0 0.0
      %6387 = vmatprep.subr.mxu0 0.0
      %6388 = vmatpush1.msra.mxu0 %v6273
      %6389 = vmatprep.subr.mxu0 0.0
      %6390 = vmatpush1.msra.mxu0 %v6270
      %6391 = vmatprep.subr.mxu0 0.0
      %6392 = vmatpush1.msra.mxu0 %v6267
      %6393 = vmatprep.subr.mxu0 0.0
      %6394 = vmatpush1.msra.mxu0 %v6264
      %6395 = vmatprep.subr.mxu0 0.0
      %6396 = vmatpush1.msra.mxu0 %v6261
      %6397 = vmatprep.subr.mxu0 0.0
      %6398 = vmatpush1.msra.mxu0 %v6258
      %6399 = vmatprep.subr.mxu0 0.0
      %6400 = vmatpush1.msra.mxu0 %v6255
      %6401 = vmatprep.subr.mxu0 0.0
      %6402 = vmatpush2.msra.mxu0 0.0
      %6403 = vmatprep.subr.mxu0 0.0
      %6404 = vmatpush2.msra.mxu0 0.0
      %6405 = vmatprep.subr.mxu0 0.0
      %6406 = vmatpush2.msra.mxu0 0.0
      %6407 = vmatprep.subr.mxu0 0.0
      %6408 = vmatpush2.msra.mxu0 0.0
      %6409 = vmatprep.subr.mxu0 0.0
      %6410 = vmatpush2.msra.mxu0 0.0
      %6411 = vmatprep.subr.mxu0 0.0
      %6412 = vmatpush2.msra.mxu0 0.0
      %6413 = vmatprep.subr.mxu0 0.0
      %6414 = vmatpush2.msra.mxu0 0.0
      %6415 = vmatprep.subr.mxu0 0.0
      %6416 = vmatpush2.msra.mxu0 0.0
      %6417 = vmatprep.subr.mxu0 0.0
      %6418 = vmatpush2.msra.mxu0 0.0
      %6419 = vmatprep.subr.mxu0 0.0
      %6420 = vmatpush2.msra.mxu0 0.0
      %6421 = vmatprep.subr.mxu0 0.0
      %6422 = vmatpush2.msra.mxu0 0.0
      %6423 = vmatprep.subr.mxu0 0.0
      %6424 = vmatpush2.msra.mxu0 0.0
      %6425 = vmatprep.subr.mxu0 0.0
      %6426 = vmatpush2.msra.mxu0 0.0
      %6427 = vmatprep.subr.mxu0 0.0
      %6428 = vmatpush2.msra.mxu0 0.0
      %6429 = vmatprep.subr.mxu0 0.0
      %6430 = vmatpush2.msra.mxu0 0.0
      %6431 = vmatprep.subr.mxu0 0.0
      %6432 = vmatpush2.msra.mxu0 0.0
      %6433 = vmatprep.mubr.f32.mxu0 0.0
      %6434 = vmatmul.mubr.f32.gmra.mxu0 %v6296
      %v6435 = vpop.f32.mrf.mxu0
      %v6436 = vadd.f32 0.0, %v6435
      %v6437 = vpop.f32.mrf.mxu0
      %6438 = vdwg.mxu0
      %v6439 = vadd.f32 %v6192, %v6365
      %v6440 = vadd.f32 %v6193, %v6367
      %v6441 = vadd.f32 %v6194, %v6436
      %s6442 = scalar_lea.vmem %s14, 28
      %v6443 = vld [vmem:[%s6442] sm:$0xf]
      %6444 = vrot.lane.b32.xlu0 %v4661, 100
      %v6445 = vpop.permute.xlu0 %6444
      %6446 = vrot.lane.b32.xlu0 %v4662, 100
      %v6447 = vpop.permute.xlu0 %6446
      %6448 = vrot.lane.b32.xlu0 %v4663, 100
      %v6449 = vpop.permute.xlu0 %6448
      %6450 = vrot.lane.b32.xlu0 %v4664, 100
      %v6451 = vpop.permute.xlu0 %6450
      %6452 = vrot.lane.b32.xlu0 %v4665, 100
      %v6453 = vpop.permute.xlu0 %6452
      %6454 = vrot.lane.b32.xlu0 %v4666, 100
      %v6455 = vpop.permute.xlu0 %6454
      %6456 = vrot.lane.b32.xlu0 %v4667, 100
      %v6457 = vpop.permute.xlu0 %6456
      %6458 = vrot.lane.b32.xlu0 %v4668, 100
      %v6459 = vpop.permute.xlu0 %6458
      %6460 = vrot.lane.b32.xlu0 %v4669, 100
      %v6461 = vpop.permute.xlu0 %6460
      %6462 = vrot.lane.b32.xlu0 %v4670, 100
      %v6463 = vpop.permute.xlu0 %6462
      %6464 = vrot.lane.b32.xlu0 %v4671, 100
      %v6465 = vpop.permute.xlu0 %6464
      %6466 = vrot.lane.b32.xlu0 %v4672, 100
      %v6467 = vpop.permute.xlu0 %6466
      %6468 = vrot.lane.b32.xlu0 %v4673, 100
      %v6469 = vpop.permute.xlu0 %6468
      %6470 = vrot.lane.b32.xlu0 %v4674, 100
      %v6471 = vpop.permute.xlu0 %6470
      %6472 = vrot.lane.b32.xlu0 %v4675, 100
      %v6473 = vpop.permute.xlu0 %6472
      %6474 = vrot.lane.b32.xlu0 %v4676, 100
      %v6475 = vpop.permute.xlu0 %6474
      %6476 = vrot.lane.b32.xlu0 %v4677, 100
      %v6477 = vpop.permute.xlu0 %6476
      %6478 = vrot.lane.b32.xlu0 %v4678, 100
      %v6479 = vpop.permute.xlu0 %6478
      %6480 = vrot.lane.b32.xlu0 %v4679, 100
      %v6481 = vpop.permute.xlu0 %6480
      %6482 = vrot.lane.b32.xlu0 %v4680, 100
      %v6483 = vpop.permute.xlu0 %6482
      %6484 = vrot.lane.b32.xlu0 %v4681, 100
      %v6485 = vpop.permute.xlu0 %6484
      %6486 = vrot.lane.b32.xlu0 %v4682, 100
      %v6487 = vpop.permute.xlu0 %6486
      %6488 = vrot.lane.b32.xlu0 %v4683, 100
      %v6489 = vpop.permute.xlu0 %6488
      %6490 = vrot.lane.b32.xlu0 %v4684, 100
      %v6491 = vpop.permute.xlu0 %6490
      %6492 = vrot.lane.b32.xlu0 %v4685, 100
      %v6493 = vpop.permute.xlu0 %6492
      %6494 = vrot.lane.b32.xlu0 %v4686, 100
      %v6495 = vpop.permute.xlu0 %6494
      %6496 = vrot.lane.b32.xlu0 %v4687, 100
      %v6497 = vpop.permute.xlu0 %6496
      %6498 = vrot.lane.b32.xlu0 %v4688, 100
      %v6499 = vpop.permute.xlu0 %6498
      %vm6500 = vcmask 818176
      %v6501 = vsel %vm6500, %v6445, %v6447
      %v6502 = vsel %vm6500, %v6447, %v6449
      %v6503 = vsel %vm6500, %v6449, %v6451
      %v6504 = vsel %vm6500, %v6453, %v6455
      %v6505 = vsel %vm6500, %v6455, %v6457
      %v6506 = vsel %vm6500, %v6457, %v6459
      %v6507 = vsel %vm6500, %v6461, %v6463
      %v6508 = vsel %vm6500, %v6463, %v6465
      %v6509 = vsel %vm6500, %v6465, %v6467
      %v6510 = vsel %vm6500, %v6469, %v6471
      %v6511 = vsel %vm6500, %v6471, %v6473
      %v6512 = vsel %vm6500, %v6473, %v6475
      %v6513 = vsel %vm6500, %v6477, %v6479
      %v6514 = vsel %vm6500, %v6479, %v6481
      %v6515 = vsel %vm6500, %v6481, %v6483
      %v6516 = vsel %vm6500, %v6485, %v6487
      %v6517 = vsel %vm6500, %v6487, %v6489
      %v6518 = vsel %vm6500, %v6489, %v6491
      %v6519 = vsel %vm6500, %v6493, %v6495
      %v6520 = vsel %vm6500, %v6495, %v6497
      %v6521 = vsel %vm6500, %v6497, %v6499
      %v6544 = vsel %vm968, %v6443, 0
      %6546 = vmatprep.subr.mxu0 0.0
      %6547 = vmatpush1.msra.mxu0 0.0
      %6548 = vmatprep.subr.mxu0 0.0
      %6549 = vmatpush1.msra.mxu0 0.0
      %6550 = vmatprep.subr.mxu0 0.0
      %6551 = vmatpush1.msra.mxu0 0.0
      %6552 = vmatprep.subr.mxu0 0.0
      %6553 = vmatpush1.msra.mxu0 0.0
      %6554 = vmatprep.subr.mxu0 0.0
      %6555 = vmatpush1.msra.mxu0 0.0
      %6556 = vmatprep.subr.mxu0 0.0
      %6557 = vmatpush1.msra.mxu0 0.0
      %6558 = vmatprep.subr.mxu0 0.0
      %6559 = vmatpush1.msra.mxu0 0.0
      %6560 = vmatprep.subr.mxu0 0.0
      %6561 = vmatpush1.msra.mxu0 0.0
      %6562 = vmatprep.subr.mxu0 0.0
      %6563 = vmatpush1.msra.mxu0 0.0
      %6564 = vmatprep.subr.mxu0 %v6520
      %6565 = vmatpush1.msra.mxu0 %v6519
      %6566 = vmatprep.subr.mxu0 %v6517
      %6567 = vmatpush1.msra.mxu0 %v6516
      %6568 = vmatprep.subr.mxu0 %v6514
      %6569 = vmatpush1.msra.mxu0 %v6513
      %6570 = vmatprep.subr.mxu0 %v6511
      %6571 = vmatpush1.msra.mxu0 %v6510
      %6572 = vmatprep.subr.mxu0 %v6508
      %6573 = vmatpush1.msra.mxu0 %v6507
      %6574 = vmatprep.subr.mxu0 %v6505
      %6575 = vmatpush1.msra.mxu0 %v6504
      %6576 = vmatprep.subr.mxu0 %v6502
      %6577 = vmatpush1.msra.mxu0 %v6501
      %6578 = vmatprep.subr.mxu0 0.0
      %6579 = vmatpush2.msra.mxu0 0.0
      %6580 = vmatprep.subr.mxu0 0.0
      %6581 = vmatpush2.msra.mxu0 0.0
      %6582 = vmatprep.subr.mxu0 0.0
      %6583 = vmatpush2.msra.mxu0 0.0
      %6584 = vmatprep.subr.mxu0 0.0
      %6585 = vmatpush2.msra.mxu0 0.0
      %6586 = vmatprep.subr.mxu0 0.0
      %6587 = vmatpush2.msra.mxu0 0.0
      %6588 = vmatprep.subr.mxu0 0.0
      %6589 = vmatpush2.msra.mxu0 0.0
      %6590 = vmatprep.subr.mxu0 0.0
      %6591 = vmatpush2.msra.mxu0 0.0
      %6592 = vmatprep.subr.mxu0 0.0
      %6593 = vmatpush2.msra.mxu0 0.0
      %6594 = vmatprep.subr.mxu0 0.0
      %6595 = vmatpush2.msra.mxu0 0.0
      %6596 = vmatprep.subr.mxu0 0.0
      %6597 = vmatpush2.msra.mxu0 0.0
      %6598 = vmatprep.subr.mxu0 0.0
      %6599 = vmatpush2.msra.mxu0 0.0
      %6600 = vmatprep.subr.mxu0 0.0
      %6601 = vmatpush2.msra.mxu0 0.0
      %6602 = vmatprep.subr.mxu0 0.0
      %6603 = vmatpush2.msra.mxu0 0.0
      %6604 = vmatprep.subr.mxu0 0.0
      %6605 = vmatpush2.msra.mxu0 0.0
      %6606 = vmatprep.subr.mxu0 0.0
      %6607 = vmatpush2.msra.mxu0 0.0
      %6608 = vmatprep.subr.mxu0 0.0
      %6609 = vmatpush2.msra.mxu0 0.0
      %6610 = vmatprep.mubr.f32.mxu0 0.0
      %6611 = vmatmul.mubr.f32.gmra.mxu0 %v6544
      %v6612 = vpop.f32.mrf.mxu0
      %v6613 = vadd.f32 0.0, %v6612
      %v6614 = vpop.f32.mrf.mxu0
      %v6615 = vadd.f32 0.0, %v6614
      %6616 = vdwg.mxu0
      %6617 = vmatprep.subr.mxu0 0.0
      %6618 = vmatpush1.msra.mxu0 0.0
      %6619 = vmatprep.subr.mxu0 0.0
      %6620 = vmatpush1.msra.mxu0 0.0
      %6621 = vmatprep.subr.mxu0 0.0
      %6622 = vmatpush1.msra.mxu0 0.0
      %6623 = vmatprep.subr.mxu0 0.0
      %6624 = vmatpush1.msra.mxu0 0.0
      %6625 = vmatprep.subr.mxu0 0.0
      %6626 = vmatpush1.msra.mxu0 0.0
      %6627 = vmatprep.subr.mxu0 0.0
      %6628 = vmatpush1.msra.mxu0 0.0
      %6629 = vmatprep.subr.mxu0 0.0
      %6630 = vmatpush1.msra.mxu0 0.0
      %6631 = vmatprep.subr.mxu0 0.0
      %6632 = vmatpush1.msra.mxu0 0.0
      %6633 = vmatprep.subr.mxu0 0.0
      %6634 = vmatpush1.msra.mxu0 0.0
      %6635 = vmatprep.subr.mxu0 0.0
      %6636 = vmatpush1.msra.mxu0 %v6521
      %6637 = vmatprep.subr.mxu0 0.0
      %6638 = vmatpush1.msra.mxu0 %v6518
      %6639 = vmatprep.subr.mxu0 0.0
      %6640 = vmatpush1.msra.mxu0 %v6515
      %6641 = vmatprep.subr.mxu0 0.0
      %6642 = vmatpush1.msra.mxu0 %v6512
      %6643 = vmatprep.subr.mxu0 0.0
      %6644 = vmatpush1.msra.mxu0 %v6509
      %6645 = vmatprep.subr.mxu0 0.0
      %6646 = vmatpush1.msra.mxu0 %v6506
      %6647 = vmatprep.subr.mxu0 0.0
      %6648 = vmatpush1.msra.mxu0 %v6503
      %6649 = vmatprep.subr.mxu0 0.0
      %6650 = vmatpush2.msra.mxu0 0.0
      %6651 = vmatprep.subr.mxu0 0.0
      %6652 = vmatpush2.msra.mxu0 0.0
      %6653 = vmatprep.subr.mxu0 0.0
      %6654 = vmatpush2.msra.mxu0 0.0
      %6655 = vmatprep.subr.mxu0 0.0
      %6656 = vmatpush2.msra.mxu0 0.0
      %6657 = vmatprep.subr.mxu0 0.0
      %6658 = vmatpush2.msra.mxu0 0.0
      %6659 = vmatprep.subr.mxu0 0.0
      %6660 = vmatpush2.msra.mxu0 0.0
      %6661 = vmatprep.subr.mxu0 0.0
      %6662 = vmatpush2.msra.mxu0 0.0
      %6663 = vmatprep.subr.mxu0 0.0
      %6664 = vmatpush2.msra.mxu0 0.0
      %6665 = vmatprep.subr.mxu0 0.0
      %6666 = vmatpush2.msra.mxu0 0.0
      %6667 = vmatprep.subr.mxu0 0.0
      %6668 = vmatpush2.msra.mxu0 0.0
      %6669 = vmatprep.subr.mxu0 0.0
      %6670 = vmatpush2.msra.mxu0 0.0
      %6671 = vmatprep.subr.mxu0 0.0
      %6672 = vmatpush2.msra.mxu0 0.0
      %6673 = vmatprep.subr.mxu0 0.0
      %6674 = vmatpush2.msra.mxu0 0.0
      %6675 = vmatprep.subr.mxu0 0.0
      %6676 = vmatpush2.msra.mxu0 0.0
      %6677 = vmatprep.subr.mxu0 0.0
      %6678 = vmatpush2.msra.mxu0 0.0
      %6679 = vmatprep.subr.mxu0 0.0
      %6680 = vmatpush2.msra.mxu0 0.0
      %6681 = vmatprep.mubr.f32.mxu0 0.0
      %6682 = vmatmul.mubr.f32.gmra.mxu0 %v6544
      %v6683 = vpop.f32.mrf.mxu0
      %v6684 = vadd.f32 0.0, %v6683
      %v6685 = vpop.f32.mrf.mxu0
      %6686 = vdwg.mxu0
      %v6687 = vadd.f32 %v6439, %v6613
      %v6688 = vadd.f32 %v6440, %v6615
      %v6689 = vadd.f32 %v6441, %v6684
      %s6690 = scalar_lea.vmem %s14, 32
      %v6691 = vld [vmem:[%s6690] sm:$0xf]
      %6692 = vrot.lane.b32.xlu0 %v4661, 99
      %v6693 = vpop.permute.xlu0 %6692
      %6694 = vrot.lane.b32.xlu0 %v4662, 99
      %v6695 = vpop.permute.xlu0 %6694
      %6696 = vrot.lane.b32.xlu0 %v4663, 99
      %v6697 = vpop.permute.xlu0 %6696
      %6698 = vrot.lane.b32.xlu0 %v4664, 99
      %v6699 = vpop.permute.xlu0 %6698
      %6700 = vrot.lane.b32.xlu0 %v4665, 99
      %v6701 = vpop.permute.xlu0 %6700
      %6702 = vrot.lane.b32.xlu0 %v4666, 99
      %v6703 = vpop.permute.xlu0 %6702
      %6704 = vrot.lane.b32.xlu0 %v4667, 99
      %v6705 = vpop.permute.xlu0 %6704
      %6706 = vrot.lane.b32.xlu0 %v4668, 99
      %v6707 = vpop.permute.xlu0 %6706
      %6708 = vrot.lane.b32.xlu0 %v4669, 99
      %v6709 = vpop.permute.xlu0 %6708
      %6710 = vrot.lane.b32.xlu0 %v4670, 99
      %v6711 = vpop.permute.xlu0 %6710
      %6712 = vrot.lane.b32.xlu0 %v4671, 99
      %v6713 = vpop.permute.xlu0 %6712
      %6714 = vrot.lane.b32.xlu0 %v4672, 99
      %v6715 = vpop.permute.xlu0 %6714
      %6716 = vrot.lane.b32.xlu0 %v4673, 99
      %v6717 = vpop.permute.xlu0 %6716
      %6718 = vrot.lane.b32.xlu0 %v4674, 99
      %v6719 = vpop.permute.xlu0 %6718
      %6720 = vrot.lane.b32.xlu0 %v4675, 99
      %v6721 = vpop.permute.xlu0 %6720
      %6722 = vrot.lane.b32.xlu0 %v4676, 99
      %v6723 = vpop.permute.xlu0 %6722
      %6724 = vrot.lane.b32.xlu0 %v4677, 99
      %v6725 = vpop.permute.xlu0 %6724
      %6726 = vrot.lane.b32.xlu0 %v4678, 99
      %v6727 = vpop.permute.xlu0 %6726
      %6728 = vrot.lane.b32.xlu0 %v4679, 99
      %v6729 = vpop.permute.xlu0 %6728
      %6730 = vrot.lane.b32.xlu0 %v4680, 99
      %v6731 = vpop.permute.xlu0 %6730
      %6732 = vrot.lane.b32.xlu0 %v4681, 99
      %v6733 = vpop.permute.xlu0 %6732
      %6734 = vrot.lane.b32.xlu0 %v4682, 99
      %v6735 = vpop.permute.xlu0 %6734
      %6736 = vrot.lane.b32.xlu0 %v4683, 99
      %v6737 = vpop.permute.xlu0 %6736
      %6738 = vrot.lane.b32.xlu0 %v4684, 99
      %v6739 = vpop.permute.xlu0 %6738
      %6740 = vrot.lane.b32.xlu0 %v4685, 99
      %v6741 = vpop.permute.xlu0 %6740
      %6742 = vrot.lane.b32.xlu0 %v4686, 99
      %v6743 = vpop.permute.xlu0 %6742
      %6744 = vrot.lane.b32.xlu0 %v4687, 99
      %v6745 = vpop.permute.xlu0 %6744
      %6746 = vrot.lane.b32.xlu0 %v4688, 99
      %v6747 = vpop.permute.xlu0 %6746
      %vm6748 = vcmask 809984
      %v6749 = vsel %vm6748, %v6693, %v6695
      %v6750 = vsel %vm6748, %v6695, %v6697
      %v6751 = vsel %vm6748, %v6697, %v6699
      %v6752 = vsel %vm6748, %v6701, %v6703
      %v6753 = vsel %vm6748, %v6703, %v6705
      %v6754 = vsel %vm6748, %v6705, %v6707
      %v6755 = vsel %vm6748, %v6709, %v6711
      %v6756 = vsel %vm6748, %v6711, %v6713
      %v6757 = vsel %vm6748, %v6713, %v6715
      %v6758 = vsel %vm6748, %v6717, %v6719
      %v6759 = vsel %vm6748, %v6719, %v6721
      %v6760 = vsel %vm6748, %v6721, %v6723
      %v6761 = vsel %vm6748, %v6725, %v6727
      %v6762 = vsel %vm6748, %v6727, %v6729
      %v6763 = vsel %vm6748, %v6729, %v6731
      %v6764 = vsel %vm6748, %v6733, %v6735
      %v6765 = vsel %vm6748, %v6735, %v6737
      %v6766 = vsel %vm6748, %v6737, %v6739
      %v6767 = vsel %vm6748, %v6741, %v6743
      %v6768 = vsel %vm6748, %v6743, %v6745
      %v6769 = vsel %vm6748, %v6745, %v6747
      %v6792 = vsel %vm968, %v6691, 0
      %6794 = vmatprep.subr.mxu0 0.0
      %6795 = vmatpush1.msra.mxu0 0.0
      %6796 = vmatprep.subr.mxu0 0.0
      %6797 = vmatpush1.msra.mxu0 0.0
      %6798 = vmatprep.subr.mxu0 0.0
      %6799 = vmatpush1.msra.mxu0 0.0
      %6800 = vmatprep.subr.mxu0 0.0
      %6801 = vmatpush1.msra.mxu0 0.0
      %6802 = vmatprep.subr.mxu0 0.0
      %6803 = vmatpush1.msra.mxu0 0.0
      %6804 = vmatprep.subr.mxu0 0.0
      %6805 = vmatpush1.msra.mxu0 0.0
      %6806 = vmatprep.subr.mxu0 0.0
      %6807 = vmatpush1.msra.mxu0 0.0
      %6808 = vmatprep.subr.mxu0 0.0
      %6809 = vmatpush1.msra.mxu0 0.0
      %6810 = vmatprep.subr.mxu0 0.0
      %6811 = vmatpush1.msra.mxu0 0.0
      %6812 = vmatprep.subr.mxu0 %v6768
      %6813 = vmatpush1.msra.mxu0 %v6767
      %6814 = vmatprep.subr.mxu0 %v6765
      %6815 = vmatpush1.msra.mxu0 %v6764
      %6816 = vmatprep.subr.mxu0 %v6762
      %6817 = vmatpush1.msra.mxu0 %v6761
      %6818 = vmatprep.subr.mxu0 %v6759
      %6819 = vmatpush1.msra.mxu0 %v6758
      %6820 = vmatprep.subr.mxu0 %v6756
      %6821 = vmatpush1.msra.mxu0 %v6755
      %6822 = vmatprep.subr.mxu0 %v6753
      %6823 = vmatpush1.msra.mxu0 %v6752
      %6824 = vmatprep.subr.mxu0 %v6750
      %6825 = vmatpush1.msra.mxu0 %v6749
      %6826 = vmatprep.subr.mxu0 0.0
      %6827 = vmatpush2.msra.mxu0 0.0
      %6828 = vmatprep.subr.mxu0 0.0
      %6829 = vmatpush2.msra.mxu0 0.0
      %6830 = vmatprep.subr.mxu0 0.0
      %6831 = vmatpush2.msra.mxu0 0.0
      %6832 = vmatprep.subr.mxu0 0.0
      %6833 = vmatpush2.msra.mxu0 0.0
      %6834 = vmatprep.subr.mxu0 0.0
      %6835 = vmatpush2.msra.mxu0 0.0
      %6836 = vmatprep.subr.mxu0 0.0
      %6837 = vmatpush2.msra.mxu0 0.0
      %6838 = vmatprep.subr.mxu0 0.0
      %6839 = vmatpush2.msra.mxu0 0.0
      %6840 = vmatprep.subr.mxu0 0.0
      %6841 = vmatpush2.msra.mxu0 0.0
      %6842 = vmatprep.subr.mxu0 0.0
      %6843 = vmatpush2.msra.mxu0 0.0
      %6844 = vmatprep.subr.mxu0 0.0
      %6845 = vmatpush2.msra.mxu0 0.0
      %6846 = vmatprep.subr.mxu0 0.0
      %6847 = vmatpush2.msra.mxu0 0.0
      %6848 = vmatprep.subr.mxu0 0.0
      %6849 = vmatpush2.msra.mxu0 0.0
      %6850 = vmatprep.subr.mxu0 0.0
      %6851 = vmatpush2.msra.mxu0 0.0
      %6852 = vmatprep.subr.mxu0 0.0
      %6853 = vmatpush2.msra.mxu0 0.0
      %6854 = vmatprep.subr.mxu0 0.0
      %6855 = vmatpush2.msra.mxu0 0.0
      %6856 = vmatprep.subr.mxu0 0.0
      %6857 = vmatpush2.msra.mxu0 0.0
      %6858 = vmatprep.mubr.f32.mxu0 0.0
      %6859 = vmatmul.mubr.f32.gmra.mxu0 %v6792
      %v6860 = vpop.f32.mrf.mxu0
      %v6861 = vadd.f32 0.0, %v6860
      %v6862 = vpop.f32.mrf.mxu0
      %v6863 = vadd.f32 0.0, %v6862
      %6864 = vdwg.mxu0
      %6865 = vmatprep.subr.mxu0 0.0
      %6866 = vmatpush1.msra.mxu0 0.0
      %6867 = vmatprep.subr.mxu0 0.0
      %6868 = vmatpush1.msra.mxu0 0.0
      %6869 = vmatprep.subr.mxu0 0.0
      %6870 = vmatpush1.msra.mxu0 0.0
      %6871 = vmatprep.subr.mxu0 0.0
      %6872 = vmatpush1.msra.mxu0 0.0
      %6873 = vmatprep.subr.mxu0 0.0
      %6874 = vmatpush1.msra.mxu0 0.0
      %6875 = vmatprep.subr.mxu0 0.0
      %6876 = vmatpush1.msra.mxu0 0.0
      %6877 = vmatprep.subr.mxu0 0.0
      %6878 = vmatpush1.msra.mxu0 0.0
      %6879 = vmatprep.subr.mxu0 0.0
      %6880 = vmatpush1.msra.mxu0 0.0
      %6881 = vmatprep.subr.mxu0 0.0
      %6882 = vmatpush1.msra.mxu0 0.0
      %6883 = vmatprep.subr.mxu0 0.0
      %6884 = vmatpush1.msra.mxu0 %v6769
      %6885 = vmatprep.subr.mxu0 0.0
      %6886 = vmatpush1.msra.mxu0 %v6766
      %6887 = vmatprep.subr.mxu0 0.0
      %6888 = vmatpush1.msra.mxu0 %v6763
      %6889 = vmatprep.subr.mxu0 0.0
      %6890 = vmatpush1.msra.mxu0 %v6760
      %6891 = vmatprep.subr.mxu0 0.0
      %6892 = vmatpush1.msra.mxu0 %v6757
      %6893 = vmatprep.subr.mxu0 0.0
      %6894 = vmatpush1.msra.mxu0 %v6754
      %6895 = vmatprep.subr.mxu0 0.0
      %6896 = vmatpush1.msra.mxu0 %v6751
      %6897 = vmatprep.subr.mxu0 0.0
      %6898 = vmatpush2.msra.mxu0 0.0
      %6899 = vmatprep.subr.mxu0 0.0
      %6900 = vmatpush2.msra.mxu0 0.0
      %6901 = vmatprep.subr.mxu0 0.0
      %6902 = vmatpush2.msra.mxu0 0.0
      %6903 = vmatprep.subr.mxu0 0.0
      %6904 = vmatpush2.msra.mxu0 0.0
      %6905 = vmatprep.subr.mxu0 0.0
      %6906 = vmatpush2.msra.mxu0 0.0
      %6907 = vmatprep.subr.mxu0 0.0
      %6908 = vmatpush2.msra.mxu0 0.0
      %6909 = vmatprep.subr.mxu0 0.0
      %6910 = vmatpush2.msra.mxu0 0.0
      %6911 = vmatprep.subr.mxu0 0.0
      %6912 = vmatpush2.msra.mxu0 0.0
      %6913 = vmatprep.subr.mxu0 0.0
      %6914 = vmatpush2.msra.mxu0 0.0
      %6915 = vmatprep.subr.mxu0 0.0
      %6916 = vmatpush2.msra.mxu0 0.0
      %6917 = vmatprep.subr.mxu0 0.0
      %6918 = vmatpush2.msra.mxu0 0.0
      %6919 = vmatprep.subr.mxu0 0.0
      %6920 = vmatpush2.msra.mxu0 0.0
      %6921 = vmatprep.subr.mxu0 0.0
      %6922 = vmatpush2.msra.mxu0 0.0
      %6923 = vmatprep.subr.mxu0 0.0
      %6924 = vmatpush2.msra.mxu0 0.0
      %6925 = vmatprep.subr.mxu0 0.0
      %6926 = vmatpush2.msra.mxu0 0.0
      %6927 = vmatprep.subr.mxu0 0.0
      %6928 = vmatpush2.msra.mxu0 0.0
      %6929 = vmatprep.mubr.f32.mxu0 0.0
      %6930 = vmatmul.mubr.f32.gmra.mxu0 %v6792
      %v6931 = vpop.f32.mrf.mxu0
      %v6932 = vadd.f32 0.0, %v6931
      %v6933 = vpop.f32.mrf.mxu0
      %6934 = vdwg.mxu0
      %v6935 = vadd.f32 %v6687, %v6861
      %v6936 = vadd.f32 %v6688, %v6863
      %v6937 = vadd.f32 %v6689, %v6932
      %s6938 = scalar_lea.vmem %s14, 36
      %v6939 = vld [vmem:[%s6938] sm:$0xf]
      %6940 = vrot.lane.b32.xlu0 %v4661, 98
      %v6941 = vpop.permute.xlu0 %6940
      %6942 = vrot.lane.b32.xlu0 %v4662, 98
      %v6943 = vpop.permute.xlu0 %6942
      %6944 = vrot.lane.b32.xlu0 %v4663, 98
      %v6945 = vpop.permute.xlu0 %6944
      %6946 = vrot.lane.b32.xlu0 %v4664, 98
      %v6947 = vpop.permute.xlu0 %6946
      %6948 = vrot.lane.b32.xlu0 %v4665, 98
      %v6949 = vpop.permute.xlu0 %6948
      %6950 = vrot.lane.b32.xlu0 %v4666, 98
      %v6951 = vpop.permute.xlu0 %6950
      %6952 = vrot.lane.b32.xlu0 %v4667, 98
      %v6953 = vpop.permute.xlu0 %6952
      %6954 = vrot.lane.b32.xlu0 %v4668, 98
      %v6955 = vpop.permute.xlu0 %6954
      %6956 = vrot.lane.b32.xlu0 %v4669, 98
      %v6957 = vpop.permute.xlu0 %6956
      %6958 = vrot.lane.b32.xlu0 %v4670, 98
      %v6959 = vpop.permute.xlu0 %6958
      %6960 = vrot.lane.b32.xlu0 %v4671, 98
      %v6961 = vpop.permute.xlu0 %6960
      %6962 = vrot.lane.b32.xlu0 %v4672, 98
      %v6963 = vpop.permute.xlu0 %6962
      %6964 = vrot.lane.b32.xlu0 %v4673, 98
      %v6965 = vpop.permute.xlu0 %6964
      %6966 = vrot.lane.b32.xlu0 %v4674, 98
      %v6967 = vpop.permute.xlu0 %6966
      %6968 = vrot.lane.b32.xlu0 %v4675, 98
      %v6969 = vpop.permute.xlu0 %6968
      %6970 = vrot.lane.b32.xlu0 %v4676, 98
      %v6971 = vpop.permute.xlu0 %6970
      %6972 = vrot.lane.b32.xlu0 %v4677, 98
      %v6973 = vpop.permute.xlu0 %6972
      %6974 = vrot.lane.b32.xlu0 %v4678, 98
      %v6975 = vpop.permute.xlu0 %6974
      %6976 = vrot.lane.b32.xlu0 %v4679, 98
      %v6977 = vpop.permute.xlu0 %6976
      %6978 = vrot.lane.b32.xlu0 %v4680, 98
      %v6979 = vpop.permute.xlu0 %6978
      %6980 = vrot.lane.b32.xlu0 %v4681, 98
      %v6981 = vpop.permute.xlu0 %6980
      %6982 = vrot.lane.b32.xlu0 %v4682, 98
      %v6983 = vpop.permute.xlu0 %6982
      %6984 = vrot.lane.b32.xlu0 %v4683, 98
      %v6985 = vpop.permute.xlu0 %6984
      %6986 = vrot.lane.b32.xlu0 %v4684, 98
      %v6987 = vpop.permute.xlu0 %6986
      %6988 = vrot.lane.b32.xlu0 %v4685, 98
      %v6989 = vpop.permute.xlu0 %6988
      %6990 = vrot.lane.b32.xlu0 %v4686, 98
      %v6991 = vpop.permute.xlu0 %6990
      %6992 = vrot.lane.b32.xlu0 %v4687, 98
      %v6993 = vpop.permute.xlu0 %6992
      %6994 = vrot.lane.b32.xlu0 %v4688, 98
      %v6995 = vpop.permute.xlu0 %6994
      %vm6996 = vcmask 801792
      %v6997 = vsel %vm6996, %v6941, %v6943
      %v6998 = vsel %vm6996, %v6943, %v6945
      %v6999 = vsel %vm6996, %v6945, %v6947
      %v7000 = vsel %vm6996, %v6949, %v6951
      %v7001 = vsel %vm6996, %v6951, %v6953
      %v7002 = vsel %vm6996, %v6953, %v6955
      %v7003 = vsel %vm6996, %v6957, %v6959
      %v7004 = vsel %vm6996, %v6959, %v6961
      %v7005 = vsel %vm6996, %v6961, %v6963
      %v7006 = vsel %vm6996, %v6965, %v6967
      %v7007 = vsel %vm6996, %v6967, %v6969
      %v7008 = vsel %vm6996, %v6969, %v6971
      %v7009 = vsel %vm6996, %v6973, %v6975
      %v7010 = vsel %vm6996, %v6975, %v6977
      %v7011 = vsel %vm6996, %v6977, %v6979
      %v7012 = vsel %vm6996, %v6981, %v6983
      %v7013 = vsel %vm6996, %v6983, %v6985
      %v7014 = vsel %vm6996, %v6985, %v6987
      %v7015 = vsel %vm6996, %v6989, %v6991
      %v7016 = vsel %vm6996, %v6991, %v6993
      %v7017 = vsel %vm6996, %v6993, %v6995
      %v7040 = vsel %vm968, %v6939, 0
      %7042 = vmatprep.subr.mxu0 0.0
      %7043 = vmatpush1.msra.mxu0 0.0
      %7044 = vmatprep.subr.mxu0 0.0
      %7045 = vmatpush1.msra.mxu0 0.0
      %7046 = vmatprep.subr.mxu0 0.0
      %7047 = vmatpush1.msra.mxu0 0.0
      %7048 = vmatprep.subr.mxu0 0.0
      %7049 = vmatpush1.msra.mxu0 0.0
      %7050 = vmatprep.subr.mxu0 0.0
      %7051 = vmatpush1.msra.mxu0 0.0
      %7052 = vmatprep.subr.mxu0 0.0
      %7053 = vmatpush1.msra.mxu0 0.0
      %7054 = vmatprep.subr.mxu0 0.0
      %7055 = vmatpush1.msra.mxu0 0.0
      %7056 = vmatprep.subr.mxu0 0.0
      %7057 = vmatpush1.msra.mxu0 0.0
      %7058 = vmatprep.subr.mxu0 0.0
      %7059 = vmatpush1.msra.mxu0 0.0
      %7060 = vmatprep.subr.mxu0 %v7016
      %7061 = vmatpush1.msra.mxu0 %v7015
      %7062 = vmatprep.subr.mxu0 %v7013
      %7063 = vmatpush1.msra.mxu0 %v7012
      %7064 = vmatprep.subr.mxu0 %v7010
      %7065 = vmatpush1.msra.mxu0 %v7009
      %7066 = vmatprep.subr.mxu0 %v7007
      %7067 = vmatpush1.msra.mxu0 %v7006
      %7068 = vmatprep.subr.mxu0 %v7004
      %7069 = vmatpush1.msra.mxu0 %v7003
      %7070 = vmatprep.subr.mxu0 %v7001
      %7071 = vmatpush1.msra.mxu0 %v7000
      %7072 = vmatprep.subr.mxu0 %v6998
      %7073 = vmatpush1.msra.mxu0 %v6997
      %7074 = vmatprep.subr.mxu0 0.0
      %7075 = vmatpush2.msra.mxu0 0.0
      %7076 = vmatprep.subr.mxu0 0.0
      %7077 = vmatpush2.msra.mxu0 0.0
      %7078 = vmatprep.subr.mxu0 0.0
      %7079 = vmatpush2.msra.mxu0 0.0
      %7080 = vmatprep.subr.mxu0 0.0
      %7081 = vmatpush2.msra.mxu0 0.0
      %7082 = vmatprep.subr.mxu0 0.0
      %7083 = vmatpush2.msra.mxu0 0.0
      %7084 = vmatprep.subr.mxu0 0.0
      %7085 = vmatpush2.msra.mxu0 0.0
      %7086 = vmatprep.subr.mxu0 0.0
      %7087 = vmatpush2.msra.mxu0 0.0
      %7088 = vmatprep.subr.mxu0 0.0
      %7089 = vmatpush2.msra.mxu0 0.0
      %7090 = vmatprep.subr.mxu0 0.0
      %7091 = vmatpush2.msra.mxu0 0.0
      %7092 = vmatprep.subr.mxu0 0.0
      %7093 = vmatpush2.msra.mxu0 0.0
      %7094 = vmatprep.subr.mxu0 0.0
      %7095 = vmatpush2.msra.mxu0 0.0
      %7096 = vmatprep.subr.mxu0 0.0
      %7097 = vmatpush2.msra.mxu0 0.0
      %7098 = vmatprep.subr.mxu0 0.0
      %7099 = vmatpush2.msra.mxu0 0.0
      %7100 = vmatprep.subr.mxu0 0.0
      %7101 = vmatpush2.msra.mxu0 0.0
      %7102 = vmatprep.subr.mxu0 0.0
      %7103 = vmatpush2.msra.mxu0 0.0
      %7104 = vmatprep.subr.mxu0 0.0
      %7105 = vmatpush2.msra.mxu0 0.0
      %7106 = vmatprep.mubr.f32.mxu0 0.0
      %7107 = vmatmul.mubr.f32.gmra.mxu0 %v7040
      %v7108 = vpop.f32.mrf.mxu0
      %v7109 = vadd.f32 0.0, %v7108
      %v7110 = vpop.f32.mrf.mxu0
      %v7111 = vadd.f32 0.0, %v7110
      %7112 = vdwg.mxu0
      %7113 = vmatprep.subr.mxu0 0.0
      %7114 = vmatpush1.msra.mxu0 0.0
      %7115 = vmatprep.subr.mxu0 0.0
      %7116 = vmatpush1.msra.mxu0 0.0
      %7117 = vmatprep.subr.mxu0 0.0
      %7118 = vmatpush1.msra.mxu0 0.0
      %7119 = vmatprep.subr.mxu0 0.0
      %7120 = vmatpush1.msra.mxu0 0.0
      %7121 = vmatprep.subr.mxu0 0.0
      %7122 = vmatpush1.msra.mxu0 0.0
      %7123 = vmatprep.subr.mxu0 0.0
      %7124 = vmatpush1.msra.mxu0 0.0
      %7125 = vmatprep.subr.mxu0 0.0
      %7126 = vmatpush1.msra.mxu0 0.0
      %7127 = vmatprep.subr.mxu0 0.0
      %7128 = vmatpush1.msra.mxu0 0.0
      %7129 = vmatprep.subr.mxu0 0.0
      %7130 = vmatpush1.msra.mxu0 0.0
      %7131 = vmatprep.subr.mxu0 0.0
      %7132 = vmatpush1.msra.mxu0 %v7017
      %7133 = vmatprep.subr.mxu0 0.0
      %7134 = vmatpush1.msra.mxu0 %v7014
      %7135 = vmatprep.subr.mxu0 0.0
      %7136 = vmatpush1.msra.mxu0 %v7011
      %7137 = vmatprep.subr.mxu0 0.0
      %7138 = vmatpush1.msra.mxu0 %v7008
      %7139 = vmatprep.subr.mxu0 0.0
      %7140 = vmatpush1.msra.mxu0 %v7005
      %7141 = vmatprep.subr.mxu0 0.0
      %7142 = vmatpush1.msra.mxu0 %v7002
      %7143 = vmatprep.subr.mxu0 0.0
      %7144 = vmatpush1.msra.mxu0 %v6999
      %7145 = vmatprep.subr.mxu0 0.0
      %7146 = vmatpush2.msra.mxu0 0.0
      %7147 = vmatprep.subr.mxu0 0.0
      %7148 = vmatpush2.msra.mxu0 0.0
      %7149 = vmatprep.subr.mxu0 0.0
      %7150 = vmatpush2.msra.mxu0 0.0
      %7151 = vmatprep.subr.mxu0 0.0
      %7152 = vmatpush2.msra.mxu0 0.0
      %7153 = vmatprep.subr.mxu0 0.0
      %7154 = vmatpush2.msra.mxu0 0.0
      %7155 = vmatprep.subr.mxu0 0.0
      %7156 = vmatpush2.msra.mxu0 0.0
      %7157 = vmatprep.subr.mxu0 0.0
      %7158 = vmatpush2.msra.mxu0 0.0
      %7159 = vmatprep.subr.mxu0 0.0
      %7160 = vmatpush2.msra.mxu0 0.0
      %7161 = vmatprep.subr.mxu0 0.0
      %7162 = vmatpush2.msra.mxu0 0.0
      %7163 = vmatprep.subr.mxu0 0.0
      %7164 = vmatpush2.msra.mxu0 0.0
      %7165 = vmatprep.subr.mxu0 0.0
      %7166 = vmatpush2.msra.mxu0 0.0
      %7167 = vmatprep.subr.mxu0 0.0
      %7168 = vmatpush2.msra.mxu0 0.0
      %7169 = vmatprep.subr.mxu0 0.0
      %7170 = vmatpush2.msra.mxu0 0.0
      %7171 = vmatprep.subr.mxu0 0.0
      %7172 = vmatpush2.msra.mxu0 0.0
      %7173 = vmatprep.subr.mxu0 0.0
      %7174 = vmatpush2.msra.mxu0 0.0
      %7175 = vmatprep.subr.mxu0 0.0
      %7176 = vmatpush2.msra.mxu0 0.0
      %7177 = vmatprep.mubr.f32.mxu0 0.0
      %7178 = vmatmul.mubr.f32.gmra.mxu0 %v7040
      %v7179 = vpop.f32.mrf.mxu0
      %v7180 = vadd.f32 0.0, %v7179
      %v7181 = vpop.f32.mrf.mxu0
      %7182 = vdwg.mxu0
      %v7183 = vadd.f32 %v6935, %v7109
      %v7184 = vadd.f32 %v6936, %v7111
      %v7185 = vadd.f32 %v6937, %v7180
      %s7186 = scalar_lea.vmem %s14, 40
      %v7187 = vld [vmem:[%s7186] sm:$0xf]
      %7188 = vrot.lane.b32.xlu0 %v4661, 78
      %v7189 = vpop.permute.xlu0 %7188
      %7190 = vrot.lane.b32.xlu0 %v4662, 78
      %v7191 = vpop.permute.xlu0 %7190
      %7192 = vrot.lane.b32.xlu0 %v4663, 78
      %v7193 = vpop.permute.xlu0 %7192
      %7194 = vrot.lane.b32.xlu0 %v4664, 78
      %v7195 = vpop.permute.xlu0 %7194
      %7196 = vrot.lane.b32.xlu0 %v4665, 78
      %v7197 = vpop.permute.xlu0 %7196
      %7198 = vrot.lane.b32.xlu0 %v4666, 78
      %v7199 = vpop.permute.xlu0 %7198
      %7200 = vrot.lane.b32.xlu0 %v4667, 78
      %v7201 = vpop.permute.xlu0 %7200
      %7202 = vrot.lane.b32.xlu0 %v4668, 78
      %v7203 = vpop.permute.xlu0 %7202
      %7204 = vrot.lane.b32.xlu0 %v4669, 78
      %v7205 = vpop.permute.xlu0 %7204
      %7206 = vrot.lane.b32.xlu0 %v4670, 78
      %v7207 = vpop.permute.xlu0 %7206
      %7208 = vrot.lane.b32.xlu0 %v4671, 78
      %v7209 = vpop.permute.xlu0 %7208
      %7210 = vrot.lane.b32.xlu0 %v4672, 78
      %v7211 = vpop.permute.xlu0 %7210
      %7212 = vrot.lane.b32.xlu0 %v4673, 78
      %v7213 = vpop.permute.xlu0 %7212
      %7214 = vrot.lane.b32.xlu0 %v4674, 78
      %v7215 = vpop.permute.xlu0 %7214
      %7216 = vrot.lane.b32.xlu0 %v4675, 78
      %v7217 = vpop.permute.xlu0 %7216
      %7218 = vrot.lane.b32.xlu0 %v4676, 78
      %v7219 = vpop.permute.xlu0 %7218
      %7220 = vrot.lane.b32.xlu0 %v4677, 78
      %v7221 = vpop.permute.xlu0 %7220
      %7222 = vrot.lane.b32.xlu0 %v4678, 78
      %v7223 = vpop.permute.xlu0 %7222
      %7224 = vrot.lane.b32.xlu0 %v4679, 78
      %v7225 = vpop.permute.xlu0 %7224
      %7226 = vrot.lane.b32.xlu0 %v4680, 78
      %v7227 = vpop.permute.xlu0 %7226
      %7228 = vrot.lane.b32.xlu0 %v4681, 78
      %v7229 = vpop.permute.xlu0 %7228
      %7230 = vrot.lane.b32.xlu0 %v4682, 78
      %v7231 = vpop.permute.xlu0 %7230
      %7232 = vrot.lane.b32.xlu0 %v4683, 78
      %v7233 = vpop.permute.xlu0 %7232
      %7234 = vrot.lane.b32.xlu0 %v4684, 78
      %v7235 = vpop.permute.xlu0 %7234
      %7236 = vrot.lane.b32.xlu0 %v4685, 78
      %v7237 = vpop.permute.xlu0 %7236
      %7238 = vrot.lane.b32.xlu0 %v4686, 78
      %v7239 = vpop.permute.xlu0 %7238
      %7240 = vrot.lane.b32.xlu0 %v4687, 78
      %v7241 = vpop.permute.xlu0 %7240
      %7242 = vrot.lane.b32.xlu0 %v4688, 78
      %v7243 = vpop.permute.xlu0 %7242
      %v7244 = vsel %vm1453, %v7189, %v7191
      %v7245 = vsel %vm1453, %v7191, %v7193
      %v7246 = vsel %vm1453, %v7193, %v7195
      %v7247 = vsel %vm1453, %v7197, %v7199
      %v7248 = vsel %vm1453, %v7199, %v7201
      %v7249 = vsel %vm1453, %v7201, %v7203
      %v7250 = vsel %vm1453, %v7205, %v7207
      %v7251 = vsel %vm1453, %v7207, %v7209
      %v7252 = vsel %vm1453, %v7209, %v7211
      %v7253 = vsel %vm1453, %v7213, %v7215
      %v7254 = vsel %vm1453, %v7215, %v7217
      %v7255 = vsel %vm1453, %v7217, %v7219
      %v7256 = vsel %vm1453, %v7221, %v7223
      %v7257 = vsel %vm1453, %v7223, %v7225
      %v7258 = vsel %vm1453, %v7225, %v7227
      %v7259 = vsel %vm1453, %v7229, %v7231
      %v7260 = vsel %vm1453, %v7231, %v7233
      %v7261 = vsel %vm1453, %v7233, %v7235
      %v7262 = vsel %vm1453, %v7237, %v7239
      %v7263 = vsel %vm1453, %v7239, %v7241
      %v7264 = vsel %vm1453, %v7241, %v7243
      %v7287 = vsel %vm968, %v7187, 0
      %7289 = vmatprep.subr.mxu0 0.0
      %7290 = vmatpush1.msra.mxu0 0.0
      %7291 = vmatprep.subr.mxu0 0.0
      %7292 = vmatpush1.msra.mxu0 0.0
      %7293 = vmatprep.subr.mxu0 0.0
      %7294 = vmatpush1.msra.mxu0 0.0
      %7295 = vmatprep.subr.mxu0 0.0
      %7296 = vmatpush1.msra.mxu0 0.0
      %7297 = vmatprep.subr.mxu0 0.0
      %7298 = vmatpush1.msra.mxu0 0.0
      %7299 = vmatprep.subr.mxu0 0.0
      %7300 = vmatpush1.msra.mxu0 0.0
      %7301 = vmatprep.subr.mxu0 0.0
      %7302 = vmatpush1.msra.mxu0 0.0
      %7303 = vmatprep.subr.mxu0 0.0
      %7304 = vmatpush1.msra.mxu0 0.0
      %7305 = vmatprep.subr.mxu0 0.0
      %7306 = vmatpush1.msra.mxu0 0.0
      %7307 = vmatprep.subr.mxu0 %v7263
      %7308 = vmatpush1.msra.mxu0 %v7262
      %7309 = vmatprep.subr.mxu0 %v7260
      %7310 = vmatpush1.msra.mxu0 %v7259
      %7311 = vmatprep.subr.mxu0 %v7257
      %7312 = vmatpush1.msra.mxu0 %v7256
      %7313 = vmatprep.subr.mxu0 %v7254
      %7314 = vmatpush1.msra.mxu0 %v7253
      %7315 = vmatprep.subr.mxu0 %v7251
      %7316 = vmatpush1.msra.mxu0 %v7250
      %7317 = vmatprep.subr.mxu0 %v7248
      %7318 = vmatpush1.msra.mxu0 %v7247
      %7319 = vmatprep.subr.mxu0 %v7245
      %7320 = vmatpush1.msra.mxu0 %v7244
      %7321 = vmatprep.subr.mxu0 0.0
      %7322 = vmatpush2.msra.mxu0 0.0
      %7323 = vmatprep.subr.mxu0 0.0
      %7324 = vmatpush2.msra.mxu0 0.0
      %7325 = vmatprep.subr.mxu0 0.0
      %7326 = vmatpush2.msra.mxu0 0.0
      %7327 = vmatprep.subr.mxu0 0.0
      %7328 = vmatpush2.msra.mxu0 0.0
      %7329 = vmatprep.subr.mxu0 0.0
      %7330 = vmatpush2.msra.mxu0 0.0
      %7331 = vmatprep.subr.mxu0 0.0
      %7332 = vmatpush2.msra.mxu0 0.0
      %7333 = vmatprep.subr.mxu0 0.0
      %7334 = vmatpush2.msra.mxu0 0.0
      %7335 = vmatprep.subr.mxu0 0.0
      %7336 = vmatpush2.msra.mxu0 0.0
      %7337 = vmatprep.subr.mxu0 0.0
      %7338 = vmatpush2.msra.mxu0 0.0
      %7339 = vmatprep.subr.mxu0 0.0
      %7340 = vmatpush2.msra.mxu0 0.0
      %7341 = vmatprep.subr.mxu0 0.0
      %7342 = vmatpush2.msra.mxu0 0.0
      %7343 = vmatprep.subr.mxu0 0.0
      %7344 = vmatpush2.msra.mxu0 0.0
      %7345 = vmatprep.subr.mxu0 0.0
      %7346 = vmatpush2.msra.mxu0 0.0
      %7347 = vmatprep.subr.mxu0 0.0
      %7348 = vmatpush2.msra.mxu0 0.0
      %7349 = vmatprep.subr.mxu0 0.0
      %7350 = vmatpush2.msra.mxu0 0.0
      %7351 = vmatprep.subr.mxu0 0.0
      %7352 = vmatpush2.msra.mxu0 0.0
      %7353 = vmatprep.mubr.f32.mxu0 0.0
      %7354 = vmatmul.mubr.f32.gmra.mxu0 %v7287
      %v7355 = vpop.f32.mrf.mxu0
      %v7356 = vadd.f32 0.0, %v7355
      %v7357 = vpop.f32.mrf.mxu0
      %v7358 = vadd.f32 0.0, %v7357
      %7359 = vdwg.mxu0
      %7360 = vmatprep.subr.mxu0 0.0
      %7361 = vmatpush1.msra.mxu0 0.0
      %7362 = vmatprep.subr.mxu0 0.0
      %7363 = vmatpush1.msra.mxu0 0.0
      %7364 = vmatprep.subr.mxu0 0.0
      %7365 = vmatpush1.msra.mxu0 0.0
      %7366 = vmatprep.subr.mxu0 0.0
      %7367 = vmatpush1.msra.mxu0 0.0
      %7368 = vmatprep.subr.mxu0 0.0
      %7369 = vmatpush1.msra.mxu0 0.0
      %7370 = vmatprep.subr.mxu0 0.0
      %7371 = vmatpush1.msra.mxu0 0.0
      %7372 = vmatprep.subr.mxu0 0.0
      %7373 = vmatpush1.msra.mxu0 0.0
      %7374 = vmatprep.subr.mxu0 0.0
      %7375 = vmatpush1.msra.mxu0 0.0
      %7376 = vmatprep.subr.mxu0 0.0
      %7377 = vmatpush1.msra.mxu0 0.0
      %7378 = vmatprep.subr.mxu0 0.0
      %7379 = vmatpush1.msra.mxu0 %v7264
      %7380 = vmatprep.subr.mxu0 0.0
      %7381 = vmatpush1.msra.mxu0 %v7261
      %7382 = vmatprep.subr.mxu0 0.0
      %7383 = vmatpush1.msra.mxu0 %v7258
      %7384 = vmatprep.subr.mxu0 0.0
      %7385 = vmatpush1.msra.mxu0 %v7255
      %7386 = vmatprep.subr.mxu0 0.0
      %7387 = vmatpush1.msra.mxu0 %v7252
      %7388 = vmatprep.subr.mxu0 0.0
      %7389 = vmatpush1.msra.mxu0 %v7249
      %7390 = vmatprep.subr.mxu0 0.0
      %7391 = vmatpush1.msra.mxu0 %v7246
      %7392 = vmatprep.subr.mxu0 0.0
      %7393 = vmatpush2.msra.mxu0 0.0
      %7394 = vmatprep.subr.mxu0 0.0
      %7395 = vmatpush2.msra.mxu0 0.0
      %7396 = vmatprep.subr.mxu0 0.0
      %7397 = vmatpush2.msra.mxu0 0.0
      %7398 = vmatprep.subr.mxu0 0.0
      %7399 = vmatpush2.msra.mxu0 0.0
      %7400 = vmatprep.subr.mxu0 0.0
      %7401 = vmatpush2.msra.mxu0 0.0
      %7402 = vmatprep.subr.mxu0 0.0
      %7403 = vmatpush2.msra.mxu0 0.0
      %7404 = vmatprep.subr.mxu0 0.0
      %7405 = vmatpush2.msra.mxu0 0.0
      %7406 = vmatprep.subr.mxu0 0.0
      %7407 = vmatpush2.msra.mxu0 0.0
      %7408 = vmatprep.subr.mxu0 0.0
      %7409 = vmatpush2.msra.mxu0 0.0
      %7410 = vmatprep.subr.mxu0 0.0
      %7411 = vmatpush2.msra.mxu0 0.0
      %7412 = vmatprep.subr.mxu0 0.0
      %7413 = vmatpush2.msra.mxu0 0.0
      %7414 = vmatprep.subr.mxu0 0.0
      %7415 = vmatpush2.msra.mxu0 0.0
      %7416 = vmatprep.subr.mxu0 0.0
      %7417 = vmatpush2.msra.mxu0 0.0
      %7418 = vmatprep.subr.mxu0 0.0
      %7419 = vmatpush2.msra.mxu0 0.0
      %7420 = vmatprep.subr.mxu0 0.0
      %7421 = vmatpush2.msra.mxu0 0.0
      %7422 = vmatprep.subr.mxu0 0.0
      %7423 = vmatpush2.msra.mxu0 0.0
      %7424 = vmatprep.mubr.f32.mxu0 0.0
      %7425 = vmatmul.mubr.f32.gmra.mxu0 %v7287
      %v7426 = vpop.f32.mrf.mxu0
      %v7427 = vadd.f32 0.0, %v7426
      %v7428 = vpop.f32.mrf.mxu0
      %7429 = vdwg.mxu0
      %v7430 = vadd.f32 %v7183, %v7356
      %v7431 = vadd.f32 %v7184, %v7358
      %v7432 = vadd.f32 %v7185, %v7427
      %s7433 = scalar_lea.vmem %s14, 44
      %v7434 = vld [vmem:[%s7433] sm:$0xf]
      %7435 = vrot.lane.b32.xlu0 %v4661, 77
      %v7436 = vpop.permute.xlu0 %7435
      %7437 = vrot.lane.b32.xlu0 %v4662, 77
      %v7438 = vpop.permute.xlu0 %7437
      %7439 = vrot.lane.b32.xlu0 %v4663, 77
      %v7440 = vpop.permute.xlu0 %7439
      %7441 = vrot.lane.b32.xlu0 %v4664, 77
      %v7442 = vpop.permute.xlu0 %7441
      %7443 = vrot.lane.b32.xlu0 %v4665, 77
      %v7444 = vpop.permute.xlu0 %7443
      %7445 = vrot.lane.b32.xlu0 %v4666, 77
      %v7446 = vpop.permute.xlu0 %7445
      %7447 = vrot.lane.b32.xlu0 %v4667, 77
      %v7448 = vpop.permute.xlu0 %7447
      %7449 = vrot.lane.b32.xlu0 %v4668, 77
      %v7450 = vpop.permute.xlu0 %7449
      %7451 = vrot.lane.b32.xlu0 %v4669, 77
      %v7452 = vpop.permute.xlu0 %7451
      %7453 = vrot.lane.b32.xlu0 %v4670, 77
      %v7454 = vpop.permute.xlu0 %7453
      %7455 = vrot.lane.b32.xlu0 %v4671, 77
      %v7456 = vpop.permute.xlu0 %7455
      %7457 = vrot.lane.b32.xlu0 %v4672, 77
      %v7458 = vpop.permute.xlu0 %7457
      %7459 = vrot.lane.b32.xlu0 %v4673, 77
      %v7460 = vpop.permute.xlu0 %7459
      %7461 = vrot.lane.b32.xlu0 %v4674, 77
      %v7462 = vpop.permute.xlu0 %7461
      %7463 = vrot.lane.b32.xlu0 %v4675, 77
      %v7464 = vpop.permute.xlu0 %7463
      %7465 = vrot.lane.b32.xlu0 %v4676, 77
      %v7466 = vpop.permute.xlu0 %7465
      %7467 = vrot.lane.b32.xlu0 %v4677, 77
      %v7468 = vpop.permute.xlu0 %7467
      %7469 = vrot.lane.b32.xlu0 %v4678, 77
      %v7470 = vpop.permute.xlu0 %7469
      %7471 = vrot.lane.b32.xlu0 %v4679, 77
      %v7472 = vpop.permute.xlu0 %7471
      %7473 = vrot.lane.b32.xlu0 %v4680, 77
      %v7474 = vpop.permute.xlu0 %7473
      %7475 = vrot.lane.b32.xlu0 %v4681, 77
      %v7476 = vpop.permute.xlu0 %7475
      %7477 = vrot.lane.b32.xlu0 %v4682, 77
      %v7478 = vpop.permute.xlu0 %7477
      %7479 = vrot.lane.b32.xlu0 %v4683, 77
      %v7480 = vpop.permute.xlu0 %7479
      %7481 = vrot.lane.b32.xlu0 %v4684, 77
      %v7482 = vpop.permute.xlu0 %7481
      %7483 = vrot.lane.b32.xlu0 %v4685, 77
      %v7484 = vpop.permute.xlu0 %7483
      %7485 = vrot.lane.b32.xlu0 %v4686, 77
      %v7486 = vpop.permute.xlu0 %7485
      %7487 = vrot.lane.b32.xlu0 %v4687, 77
      %v7488 = vpop.permute.xlu0 %7487
      %7489 = vrot.lane.b32.xlu0 %v4688, 77
      %v7490 = vpop.permute.xlu0 %7489
      %vm7491 = vcmask 629760
      %v7492 = vsel %vm7491, %v7436, %v7438
      %v7493 = vsel %vm7491, %v7438, %v7440
      %v7494 = vsel %vm7491, %v7440, %v7442
      %v7495 = vsel %vm7491, %v7444, %v7446
      %v7496 = vsel %vm7491, %v7446, %v7448
      %v7497 = vsel %vm7491, %v7448, %v7450
      %v7498 = vsel %vm7491, %v7452, %v7454
      %v7499 = vsel %vm7491, %v7454, %v7456
      %v7500 = vsel %vm7491, %v7456, %v7458
      %v7501 = vsel %vm7491, %v7460, %v7462
      %v7502 = vsel %vm7491, %v7462, %v7464
      %v7503 = vsel %vm7491, %v7464, %v7466
      %v7504 = vsel %vm7491, %v7468, %v7470
      %v7505 = vsel %vm7491, %v7470, %v7472
      %v7506 = vsel %vm7491, %v7472, %v7474
      %v7507 = vsel %vm7491, %v7476, %v7478
      %v7508 = vsel %vm7491, %v7478, %v7480
      %v7509 = vsel %vm7491, %v7480, %v7482
      %v7510 = vsel %vm7491, %v7484, %v7486
      %v7511 = vsel %vm7491, %v7486, %v7488
      %v7512 = vsel %vm7491, %v7488, %v7490
      %v7535 = vsel %vm968, %v7434, 0
      %7537 = vmatprep.subr.mxu0 0.0
      %7538 = vmatpush1.msra.mxu0 0.0
      %7539 = vmatprep.subr.mxu0 0.0
      %7540 = vmatpush1.msra.mxu0 0.0
      %7541 = vmatprep.subr.mxu0 0.0
      %7542 = vmatpush1.msra.mxu0 0.0
      %7543 = vmatprep.subr.mxu0 0.0
      %7544 = vmatpush1.msra.mxu0 0.0
      %7545 = vmatprep.subr.mxu0 0.0
      %7546 = vmatpush1.msra.mxu0 0.0
      %7547 = vmatprep.subr.mxu0 0.0
      %7548 = vmatpush1.msra.mxu0 0.0
      %7549 = vmatprep.subr.mxu0 0.0
      %7550 = vmatpush1.msra.mxu0 0.0
      %7551 = vmatprep.subr.mxu0 0.0
      %7552 = vmatpush1.msra.mxu0 0.0
      %7553 = vmatprep.subr.mxu0 0.0
      %7554 = vmatpush1.msra.mxu0 0.0
      %7555 = vmatprep.subr.mxu0 %v7511
      %7556 = vmatpush1.msra.mxu0 %v7510
      %7557 = vmatprep.subr.mxu0 %v7508
      %7558 = vmatpush1.msra.mxu0 %v7507
      %7559 = vmatprep.subr.mxu0 %v7505
      %7560 = vmatpush1.msra.mxu0 %v7504
      %7561 = vmatprep.subr.mxu0 %v7502
      %7562 = vmatpush1.msra.mxu0 %v7501
      %7563 = vmatprep.subr.mxu0 %v7499
      %7564 = vmatpush1.msra.mxu0 %v7498
      %7565 = vmatprep.subr.mxu0 %v7496
      %7566 = vmatpush1.msra.mxu0 %v7495
      %7567 = vmatprep.subr.mxu0 %v7493
      %7568 = vmatpush1.msra.mxu0 %v7492
      %7569 = vmatprep.subr.mxu0 0.0
      %7570 = vmatpush2.msra.mxu0 0.0
      %7571 = vmatprep.subr.mxu0 0.0
      %7572 = vmatpush2.msra.mxu0 0.0
      %7573 = vmatprep.subr.mxu0 0.0
      %7574 = vmatpush2.msra.mxu0 0.0
      %7575 = vmatprep.subr.mxu0 0.0
      %7576 = vmatpush2.msra.mxu0 0.0
      %7577 = vmatprep.subr.mxu0 0.0
      %7578 = vmatpush2.msra.mxu0 0.0
      %7579 = vmatprep.subr.mxu0 0.0
      %7580 = vmatpush2.msra.mxu0 0.0
      %7581 = vmatprep.subr.mxu0 0.0
      %7582 = vmatpush2.msra.mxu0 0.0
      %7583 = vmatprep.subr.mxu0 0.0
      %7584 = vmatpush2.msra.mxu0 0.0
      %7585 = vmatprep.subr.mxu0 0.0
      %7586 = vmatpush2.msra.mxu0 0.0
      %7587 = vmatprep.subr.mxu0 0.0
      %7588 = vmatpush2.msra.mxu0 0.0
      %7589 = vmatprep.subr.mxu0 0.0
      %7590 = vmatpush2.msra.mxu0 0.0
      %7591 = vmatprep.subr.mxu0 0.0
      %7592 = vmatpush2.msra.mxu0 0.0
      %7593 = vmatprep.subr.mxu0 0.0
      %7594 = vmatpush2.msra.mxu0 0.0
      %7595 = vmatprep.subr.mxu0 0.0
      %7596 = vmatpush2.msra.mxu0 0.0
      %7597 = vmatprep.subr.mxu0 0.0
      %7598 = vmatpush2.msra.mxu0 0.0
      %7599 = vmatprep.subr.mxu0 0.0
      %7600 = vmatpush2.msra.mxu0 0.0
      %7601 = vmatprep.mubr.f32.mxu0 0.0
      %7602 = vmatmul.mubr.f32.gmra.mxu0 %v7535
      %v7603 = vpop.f32.mrf.mxu0
      %v7604 = vadd.f32 0.0, %v7603
      %v7605 = vpop.f32.mrf.mxu0
      %v7606 = vadd.f32 0.0, %v7605
      %7607 = vdwg.mxu0
      %7608 = vmatprep.subr.mxu0 0.0
      %7609 = vmatpush1.msra.mxu0 0.0
      %7610 = vmatprep.subr.mxu0 0.0
      %7611 = vmatpush1.msra.mxu0 0.0
      %7612 = vmatprep.subr.mxu0 0.0
      %7613 = vmatpush1.msra.mxu0 0.0
      %7614 = vmatprep.subr.mxu0 0.0
      %7615 = vmatpush1.msra.mxu0 0.0
      %7616 = vmatprep.subr.mxu0 0.0
      %7617 = vmatpush1.msra.mxu0 0.0
      %7618 = vmatprep.subr.mxu0 0.0
      %7619 = vmatpush1.msra.mxu0 0.0
      %7620 = vmatprep.subr.mxu0 0.0
      %7621 = vmatpush1.msra.mxu0 0.0
      %7622 = vmatprep.subr.mxu0 0.0
      %7623 = vmatpush1.msra.mxu0 0.0
      %7624 = vmatprep.subr.mxu0 0.0
      %7625 = vmatpush1.msra.mxu0 0.0
      %7626 = vmatprep.subr.mxu0 0.0
      %7627 = vmatpush1.msra.mxu0 %v7512
      %7628 = vmatprep.subr.mxu0 0.0
      %7629 = vmatpush1.msra.mxu0 %v7509
      %7630 = vmatprep.subr.mxu0 0.0
      %7631 = vmatpush1.msra.mxu0 %v7506
      %7632 = vmatprep.subr.mxu0 0.0
      %7633 = vmatpush1.msra.mxu0 %v7503
      %7634 = vmatprep.subr.mxu0 0.0
      %7635 = vmatpush1.msra.mxu0 %v7500
      %7636 = vmatprep.subr.mxu0 0.0
      %7637 = vmatpush1.msra.mxu0 %v7497
      %7638 = vmatprep.subr.mxu0 0.0
      %7639 = vmatpush1.msra.mxu0 %v7494
      %7640 = vmatprep.subr.mxu0 0.0
      %7641 = vmatpush2.msra.mxu0 0.0
      %7642 = vmatprep.subr.mxu0 0.0
      %7643 = vmatpush2.msra.mxu0 0.0
      %7644 = vmatprep.subr.mxu0 0.0
      %7645 = vmatpush2.msra.mxu0 0.0
      %7646 = vmatprep.subr.mxu0 0.0
      %7647 = vmatpush2.msra.mxu0 0.0
      %7648 = vmatprep.subr.mxu0 0.0
      %7649 = vmatpush2.msra.mxu0 0.0
      %7650 = vmatprep.subr.mxu0 0.0
      %7651 = vmatpush2.msra.mxu0 0.0
      %7652 = vmatprep.subr.mxu0 0.0
      %7653 = vmatpush2.msra.mxu0 0.0
      %7654 = vmatprep.subr.mxu0 0.0
      %7655 = vmatpush2.msra.mxu0 0.0
      %7656 = vmatprep.subr.mxu0 0.0
      %7657 = vmatpush2.msra.mxu0 0.0
      %7658 = vmatprep.subr.mxu0 0.0
      %7659 = vmatpush2.msra.mxu0 0.0
      %7660 = vmatprep.subr.mxu0 0.0
      %7661 = vmatpush2.msra.mxu0 0.0
      %7662 = vmatprep.subr.mxu0 0.0
      %7663 = vmatpush2.msra.mxu0 0.0
      %7664 = vmatprep.subr.mxu0 0.0
      %7665 = vmatpush2.msra.mxu0 0.0
      %7666 = vmatprep.subr.mxu0 0.0
      %7667 = vmatpush2.msra.mxu0 0.0
      %7668 = vmatprep.subr.mxu0 0.0
      %7669 = vmatpush2.msra.mxu0 0.0
      %7670 = vmatprep.subr.mxu0 0.0
      %7671 = vmatpush2.msra.mxu0 0.0
      %7672 = vmatprep.mubr.f32.mxu0 0.0
      %7673 = vmatmul.mubr.f32.gmra.mxu0 %v7535
      %v7674 = vpop.f32.mrf.mxu0
      %v7675 = vadd.f32 0.0, %v7674
      %v7676 = vpop.f32.mrf.mxu0
      %7677 = vdwg.mxu0
      %v7678 = vadd.f32 %v7430, %v7604
      %v7679 = vadd.f32 %v7431, %v7606
      %v7680 = vadd.f32 %v7432, %v7675
      %s7681 = scalar_lea.vmem %s14, 48
      %v7682 = vld [vmem:[%s7681] sm:$0xf]
      %7683 = vrot.lane.b32.xlu0 %v4661, 76
      %v7684 = vpop.permute.xlu0 %7683
      %7685 = vrot.lane.b32.xlu0 %v4662, 76
      %v7686 = vpop.permute.xlu0 %7685
      %7687 = vrot.lane.b32.xlu0 %v4663, 76
      %v7688 = vpop.permute.xlu0 %7687
      %7689 = vrot.lane.b32.xlu0 %v4664, 76
      %v7690 = vpop.permute.xlu0 %7689
      %7691 = vrot.lane.b32.xlu0 %v4665, 76
      %v7692 = vpop.permute.xlu0 %7691
      %7693 = vrot.lane.b32.xlu0 %v4666, 76
      %v7694 = vpop.permute.xlu0 %7693
      %7695 = vrot.lane.b32.xlu0 %v4667, 76
      %v7696 = vpop.permute.xlu0 %7695
      %7697 = vrot.lane.b32.xlu0 %v4668, 76
      %v7698 = vpop.permute.xlu0 %7697
      %7699 = vrot.lane.b32.xlu0 %v4669, 76
      %v7700 = vpop.permute.xlu0 %7699
      %7701 = vrot.lane.b32.xlu0 %v4670, 76
      %v7702 = vpop.permute.xlu0 %7701
      %7703 = vrot.lane.b32.xlu0 %v4671, 76
      %v7704 = vpop.permute.xlu0 %7703
      %7705 = vrot.lane.b32.xlu0 %v4672, 76
      %v7706 = vpop.permute.xlu0 %7705
      %7707 = vrot.lane.b32.xlu0 %v4673, 76
      %v7708 = vpop.permute.xlu0 %7707
      %7709 = vrot.lane.b32.xlu0 %v4674, 76
      %v7710 = vpop.permute.xlu0 %7709
      %7711 = vrot.lane.b32.xlu0 %v4675, 76
      %v7712 = vpop.permute.xlu0 %7711
      %7713 = vrot.lane.b32.xlu0 %v4676, 76
      %v7714 = vpop.permute.xlu0 %7713
      %7715 = vrot.lane.b32.xlu0 %v4677, 76
      %v7716 = vpop.permute.xlu0 %7715
      %7717 = vrot.lane.b32.xlu0 %v4678, 76
      %v7718 = vpop.permute.xlu0 %7717
      %7719 = vrot.lane.b32.xlu0 %v4679, 76
      %v7720 = vpop.permute.xlu0 %7719
      %7721 = vrot.lane.b32.xlu0 %v4680, 76
      %v7722 = vpop.permute.xlu0 %7721
      %7723 = vrot.lane.b32.xlu0 %v4681, 76
      %v7724 = vpop.permute.xlu0 %7723
      %7725 = vrot.lane.b32.xlu0 %v4682, 76
      %v7726 = vpop.permute.xlu0 %7725
      %7727 = vrot.lane.b32.xlu0 %v4683, 76
      %v7728 = vpop.permute.xlu0 %7727
      %7729 = vrot.lane.b32.xlu0 %v4684, 76
      %v7730 = vpop.permute.xlu0 %7729
      %7731 = vrot.lane.b32.xlu0 %v4685, 76
      %v7732 = vpop.permute.xlu0 %7731
      %7733 = vrot.lane.b32.xlu0 %v4686, 76
      %v7734 = vpop.permute.xlu0 %7733
      %7735 = vrot.lane.b32.xlu0 %v4687, 76
      %v7736 = vpop.permute.xlu0 %7735
      %7737 = vrot.lane.b32.xlu0 %v4688, 76
      %v7738 = vpop.permute.xlu0 %7737
      %v7739 = vsel %vm4156, %v7684, %v7686
      %v7740 = vsel %vm4156, %v7686, %v7688
      %v7741 = vsel %vm4156, %v7688, %v7690
      %v7742 = vsel %vm4156, %v7692, %v7694
      %v7743 = vsel %vm4156, %v7694, %v7696
      %v7744 = vsel %vm4156, %v7696, %v7698
      %v7745 = vsel %vm4156, %v7700, %v7702
      %v7746 = vsel %vm4156, %v7702, %v7704
      %v7747 = vsel %vm4156, %v7704, %v7706
      %v7748 = vsel %vm4156, %v7708, %v7710
      %v7749 = vsel %vm4156, %v7710, %v7712
      %v7750 = vsel %vm4156, %v7712, %v7714
      %v7751 = vsel %vm4156, %v7716, %v7718
      %v7752 = vsel %vm4156, %v7718, %v7720
      %v7753 = vsel %vm4156, %v7720, %v7722
      %v7754 = vsel %vm4156, %v7724, %v7726
      %v7755 = vsel %vm4156, %v7726, %v7728
      %v7756 = vsel %vm4156, %v7728, %v7730
      %v7757 = vsel %vm4156, %v7732, %v7734
      %v7758 = vsel %vm4156, %v7734, %v7736
      %v7759 = vsel %vm4156, %v7736, %v7738
      %v7782 = vsel %vm968, %v7682, 0
      %7784 = vmatprep.subr.mxu0 0.0
      %7785 = vmatpush1.msra.mxu0 0.0
      %7786 = vmatprep.subr.mxu0 0.0
      %7787 = vmatpush1.msra.mxu0 0.0
      %7788 = vmatprep.subr.mxu0 0.0
      %7789 = vmatpush1.msra.mxu0 0.0
      %7790 = vmatprep.subr.mxu0 0.0
      %7791 = vmatpush1.msra.mxu0 0.0
      %7792 = vmatprep.subr.mxu0 0.0
      %7793 = vmatpush1.msra.mxu0 0.0
      %7794 = vmatprep.subr.mxu0 0.0
      %7795 = vmatpush1.msra.mxu0 0.0
      %7796 = vmatprep.subr.mxu0 0.0
      %7797 = vmatpush1.msra.mxu0 0.0
      %7798 = vmatprep.subr.mxu0 0.0
      %7799 = vmatpush1.msra.mxu0 0.0
      %7800 = vmatprep.subr.mxu0 0.0
      %7801 = vmatpush1.msra.mxu0 0.0
      %7802 = vmatprep.subr.mxu0 %v7758
      %7803 = vmatpush1.msra.mxu0 %v7757
      %7804 = vmatprep.subr.mxu0 %v7755
      %7805 = vmatpush1.msra.mxu0 %v7754
      %7806 = vmatprep.subr.mxu0 %v7752
      %7807 = vmatpush1.msra.mxu0 %v7751
      %7808 = vmatprep.subr.mxu0 %v7749
      %7809 = vmatpush1.msra.mxu0 %v7748
      %7810 = vmatprep.subr.mxu0 %v7746
      %7811 = vmatpush1.msra.mxu0 %v7745
      %7812 = vmatprep.subr.mxu0 %v7743
      %7813 = vmatpush1.msra.mxu0 %v7742
      %7814 = vmatprep.subr.mxu0 %v7740
      %7815 = vmatpush1.msra.mxu0 %v7739
      %7816 = vmatprep.subr.mxu0 0.0
      %7817 = vmatpush2.msra.mxu0 0.0
      %7818 = vmatprep.subr.mxu0 0.0
      %7819 = vmatpush2.msra.mxu0 0.0
      %7820 = vmatprep.subr.mxu0 0.0
      %7821 = vmatpush2.msra.mxu0 0.0
      %7822 = vmatprep.subr.mxu0 0.0
      %7823 = vmatpush2.msra.mxu0 0.0
      %7824 = vmatprep.subr.mxu0 0.0
      %7825 = vmatpush2.msra.mxu0 0.0
      %7826 = vmatprep.subr.mxu0 0.0
      %7827 = vmatpush2.msra.mxu0 0.0
      %7828 = vmatprep.subr.mxu0 0.0
      %7829 = vmatpush2.msra.mxu0 0.0
      %7830 = vmatprep.subr.mxu0 0.0
      %7831 = vmatpush2.msra.mxu0 0.0
      %7832 = vmatprep.subr.mxu0 0.0
      %7833 = vmatpush2.msra.mxu0 0.0
      %7834 = vmatprep.subr.mxu0 0.0
      %7835 = vmatpush2.msra.mxu0 0.0
      %7836 = vmatprep.subr.mxu0 0.0
      %7837 = vmatpush2.msra.mxu0 0.0
      %7838 = vmatprep.subr.mxu0 0.0
      %7839 = vmatpush2.msra.mxu0 0.0
      %7840 = vmatprep.subr.mxu0 0.0
      %7841 = vmatpush2.msra.mxu0 0.0
      %7842 = vmatprep.subr.mxu0 0.0
      %7843 = vmatpush2.msra.mxu0 0.0
      %7844 = vmatprep.subr.mxu0 0.0
      %7845 = vmatpush2.msra.mxu0 0.0
      %7846 = vmatprep.subr.mxu0 0.0
      %7847 = vmatpush2.msra.mxu0 0.0
      %7848 = vmatprep.mubr.f32.mxu0 0.0
      %7849 = vmatmul.mubr.f32.gmra.mxu0 %v7782
      %v7850 = vpop.f32.mrf.mxu0
      %v7851 = vadd.f32 0.0, %v7850
      %v7852 = vpop.f32.mrf.mxu0
      %v7853 = vadd.f32 0.0, %v7852
      %7854 = vdwg.mxu0
      %7855 = vmatprep.subr.mxu0 0.0
      %7856 = vmatpush1.msra.mxu0 0.0
      %7857 = vmatprep.subr.mxu0 0.0
      %7858 = vmatpush1.msra.mxu0 0.0
      %7859 = vmatprep.subr.mxu0 0.0
      %7860 = vmatpush1.msra.mxu0 0.0
      %7861 = vmatprep.subr.mxu0 0.0
      %7862 = vmatpush1.msra.mxu0 0.0
      %7863 = vmatprep.subr.mxu0 0.0
      %7864 = vmatpush1.msra.mxu0 0.0
      %7865 = vmatprep.subr.mxu0 0.0
      %7866 = vmatpush1.msra.mxu0 0.0
      %7867 = vmatprep.subr.mxu0 0.0
      %7868 = vmatpush1.msra.mxu0 0.0
      %7869 = vmatprep.subr.mxu0 0.0
      %7870 = vmatpush1.msra.mxu0 0.0
      %7871 = vmatprep.subr.mxu0 0.0
      %7872 = vmatpush1.msra.mxu0 0.0
      %7873 = vmatprep.subr.mxu0 0.0
      %7874 = vmatpush1.msra.mxu0 %v7759
      %7875 = vmatprep.subr.mxu0 0.0
      %7876 = vmatpush1.msra.mxu0 %v7756
      %7877 = vmatprep.subr.mxu0 0.0
      %7878 = vmatpush1.msra.mxu0 %v7753
      %7879 = vmatprep.subr.mxu0 0.0
      %7880 = vmatpush1.msra.mxu0 %v7750
      %7881 = vmatprep.subr.mxu0 0.0
      %7882 = vmatpush1.msra.mxu0 %v7747
      %7883 = vmatprep.subr.mxu0 0.0
      %7884 = vmatpush1.msra.mxu0 %v7744
      %7885 = vmatprep.subr.mxu0 0.0
      %7886 = vmatpush1.msra.mxu0 %v7741
      %7887 = vmatprep.subr.mxu0 0.0
      %7888 = vmatpush2.msra.mxu0 0.0
      %7889 = vmatprep.subr.mxu0 0.0
      %7890 = vmatpush2.msra.mxu0 0.0
      %7891 = vmatprep.subr.mxu0 0.0
      %7892 = vmatpush2.msra.mxu0 0.0
      %7893 = vmatprep.subr.mxu0 0.0
      %7894 = vmatpush2.msra.mxu0 0.0
      %7895 = vmatprep.subr.mxu0 0.0
      %7896 = vmatpush2.msra.mxu0 0.0
      %7897 = vmatprep.subr.mxu0 0.0
      %7898 = vmatpush2.msra.mxu0 0.0
      %7899 = vmatprep.subr.mxu0 0.0
      %7900 = vmatpush2.msra.mxu0 0.0
      %7901 = vmatprep.subr.mxu0 0.0
      %7902 = vmatpush2.msra.mxu0 0.0
      %7903 = vmatprep.subr.mxu0 0.0
      %7904 = vmatpush2.msra.mxu0 0.0
      %7905 = vmatprep.subr.mxu0 0.0
      %7906 = vmatpush2.msra.mxu0 0.0
      %7907 = vmatprep.subr.mxu0 0.0
      %7908 = vmatpush2.msra.mxu0 0.0
      %7909 = vmatprep.subr.mxu0 0.0
      %7910 = vmatpush2.msra.mxu0 0.0
      %7911 = vmatprep.subr.mxu0 0.0
      %7912 = vmatpush2.msra.mxu0 0.0
      %7913 = vmatprep.subr.mxu0 0.0
      %7914 = vmatpush2.msra.mxu0 0.0
      %7915 = vmatprep.subr.mxu0 0.0
      %7916 = vmatpush2.msra.mxu0 0.0
      %7917 = vmatprep.subr.mxu0 0.0
      %7918 = vmatpush2.msra.mxu0 0.0
      %7919 = vmatprep.mubr.f32.mxu0 0.0
      %7920 = vmatmul.mubr.f32.gmra.mxu0 %v7782
      %v7921 = vpop.f32.mrf.mxu0
      %v7922 = vadd.f32 0.0, %v7921
      %v7923 = vpop.f32.mrf.mxu0
      %7924 = vdwg.mxu0
      %v7925 = vadd.f32 %v7678, %v7851
      %v7926 = vadd.f32 %v7679, %v7853
      %v7927 = vadd.f32 %v7680, %v7922
      %s7928 = scalar_lea.vmem %s14, 52
      %v7929 = vld [vmem:[%s7928] sm:$0xf]
      %7930 = vrot.lane.b32.xlu0 %v4661, 75
      %v7931 = vpop.permute.xlu0 %7930
      %7932 = vrot.lane.b32.xlu0 %v4662, 75
      %v7933 = vpop.permute.xlu0 %7932
      %7934 = vrot.lane.b32.xlu0 %v4663, 75
      %v7935 = vpop.permute.xlu0 %7934
      %7936 = vrot.lane.b32.xlu0 %v4664, 75
      %v7937 = vpop.permute.xlu0 %7936
      %7938 = vrot.lane.b32.xlu0 %v4665, 75
      %v7939 = vpop.permute.xlu0 %7938
      %7940 = vrot.lane.b32.xlu0 %v4666, 75
      %v7941 = vpop.permute.xlu0 %7940
      %7942 = vrot.lane.b32.xlu0 %v4667, 75
      %v7943 = vpop.permute.xlu0 %7942
      %7944 = vrot.lane.b32.xlu0 %v4668, 75
      %v7945 = vpop.permute.xlu0 %7944
      %7946 = vrot.lane.b32.xlu0 %v4669, 75
      %v7947 = vpop.permute.xlu0 %7946
      %7948 = vrot.lane.b32.xlu0 %v4670, 75
      %v7949 = vpop.permute.xlu0 %7948
      %7950 = vrot.lane.b32.xlu0 %v4671, 75
      %v7951 = vpop.permute.xlu0 %7950
      %7952 = vrot.lane.b32.xlu0 %v4672, 75
      %v7953 = vpop.permute.xlu0 %7952
      %7954 = vrot.lane.b32.xlu0 %v4673, 75
      %v7955 = vpop.permute.xlu0 %7954
      %7956 = vrot.lane.b32.xlu0 %v4674, 75
      %v7957 = vpop.permute.xlu0 %7956
      %7958 = vrot.lane.b32.xlu0 %v4675, 75
      %v7959 = vpop.permute.xlu0 %7958
      %7960 = vrot.lane.b32.xlu0 %v4676, 75
      %v7961 = vpop.permute.xlu0 %7960
      %7962 = vrot.lane.b32.xlu0 %v4677, 75
      %v7963 = vpop.permute.xlu0 %7962
      %7964 = vrot.lane.b32.xlu0 %v4678, 75
      %v7965 = vpop.permute.xlu0 %7964
      %7966 = vrot.lane.b32.xlu0 %v4679, 75
      %v7967 = vpop.permute.xlu0 %7966
      %7968 = vrot.lane.b32.xlu0 %v4680, 75
      %v7969 = vpop.permute.xlu0 %7968
      %7970 = vrot.lane.b32.xlu0 %v4681, 75
      %v7971 = vpop.permute.xlu0 %7970
      %7972 = vrot.lane.b32.xlu0 %v4682, 75
      %v7973 = vpop.permute.xlu0 %7972
      %7974 = vrot.lane.b32.xlu0 %v4683, 75
      %v7975 = vpop.permute.xlu0 %7974
      %7976 = vrot.lane.b32.xlu0 %v4684, 75
      %v7977 = vpop.permute.xlu0 %7976
      %7978 = vrot.lane.b32.xlu0 %v4685, 75
      %v7979 = vpop.permute.xlu0 %7978
      %7980 = vrot.lane.b32.xlu0 %v4686, 75
      %v7981 = vpop.permute.xlu0 %7980
      %7982 = vrot.lane.b32.xlu0 %v4687, 75
      %v7983 = vpop.permute.xlu0 %7982
      %7984 = vrot.lane.b32.xlu0 %v4688, 75
      %v7985 = vpop.permute.xlu0 %7984
      %vm7986 = vcmask 613376
      %v7987 = vsel %vm7986, %v7931, %v7933
      %v7988 = vsel %vm7986, %v7933, %v7935
      %v7989 = vsel %vm7986, %v7935, %v7937
      %v7990 = vsel %vm7986, %v7939, %v7941
      %v7991 = vsel %vm7986, %v7941, %v7943
      %v7992 = vsel %vm7986, %v7943, %v7945
      %v7993 = vsel %vm7986, %v7947, %v7949
      %v7994 = vsel %vm7986, %v7949, %v7951
      %v7995 = vsel %vm7986, %v7951, %v7953
      %v7996 = vsel %vm7986, %v7955, %v7957
      %v7997 = vsel %vm7986, %v7957, %v7959
      %v7998 = vsel %vm7986, %v7959, %v7961
      %v7999 = vsel %vm7986, %v7963, %v7965
      %v8000 = vsel %vm7986, %v7965, %v7967
      %v8001 = vsel %vm7986, %v7967, %v7969
      %v8002 = vsel %vm7986, %v7971, %v7973
      %v8003 = vsel %vm7986, %v7973, %v7975
      %v8004 = vsel %vm7986, %v7975, %v7977
      %v8005 = vsel %vm7986, %v7979, %v7981
      %v8006 = vsel %vm7986, %v7981, %v7983
      %v8007 = vsel %vm7986, %v7983, %v7985
      %v8030 = vsel %vm968, %v7929, 0
      %8032 = vmatprep.subr.mxu0 0.0
      %8033 = vmatpush1.msra.mxu0 0.0
      %8034 = vmatprep.subr.mxu0 0.0
      %8035 = vmatpush1.msra.mxu0 0.0
      %8036 = vmatprep.subr.mxu0 0.0
      %8037 = vmatpush1.msra.mxu0 0.0
      %8038 = vmatprep.subr.mxu0 0.0
      %8039 = vmatpush1.msra.mxu0 0.0
      %8040 = vmatprep.subr.mxu0 0.0
      %8041 = vmatpush1.msra.mxu0 0.0
      %8042 = vmatprep.subr.mxu0 0.0
      %8043 = vmatpush1.msra.mxu0 0.0
      %8044 = vmatprep.subr.mxu0 0.0
      %8045 = vmatpush1.msra.mxu0 0.0
      %8046 = vmatprep.subr.mxu0 0.0
      %8047 = vmatpush1.msra.mxu0 0.0
      %8048 = vmatprep.subr.mxu0 0.0
      %8049 = vmatpush1.msra.mxu0 0.0
      %8050 = vmatprep.subr.mxu0 %v8006
      %8051 = vmatpush1.msra.mxu0 %v8005
      %8052 = vmatprep.subr.mxu0 %v8003
      %8053 = vmatpush1.msra.mxu0 %v8002
      %8054 = vmatprep.subr.mxu0 %v8000
      %8055 = vmatpush1.msra.mxu0 %v7999
      %8056 = vmatprep.subr.mxu0 %v7997
      %8057 = vmatpush1.msra.mxu0 %v7996
      %8058 = vmatprep.subr.mxu0 %v7994
      %8059 = vmatpush1.msra.mxu0 %v7993
      %8060 = vmatprep.subr.mxu0 %v7991
      %8061 = vmatpush1.msra.mxu0 %v7990
      %8062 = vmatprep.subr.mxu0 %v7988
      %8063 = vmatpush1.msra.mxu0 %v7987
      %8064 = vmatprep.subr.mxu0 0.0
      %8065 = vmatpush2.msra.mxu0 0.0
      %8066 = vmatprep.subr.mxu0 0.0
      %8067 = vmatpush2.msra.mxu0 0.0
      %8068 = vmatprep.subr.mxu0 0.0
      %8069 = vmatpush2.msra.mxu0 0.0
      %8070 = vmatprep.subr.mxu0 0.0
      %8071 = vmatpush2.msra.mxu0 0.0
      %8072 = vmatprep.subr.mxu0 0.0
      %8073 = vmatpush2.msra.mxu0 0.0
      %8074 = vmatprep.subr.mxu0 0.0
      %8075 = vmatpush2.msra.mxu0 0.0
      %8076 = vmatprep.subr.mxu0 0.0
      %8077 = vmatpush2.msra.mxu0 0.0
      %8078 = vmatprep.subr.mxu0 0.0
      %8079 = vmatpush2.msra.mxu0 0.0
      %8080 = vmatprep.subr.mxu0 0.0
      %8081 = vmatpush2.msra.mxu0 0.0
      %8082 = vmatprep.subr.mxu0 0.0
      %8083 = vmatpush2.msra.mxu0 0.0
      %8084 = vmatprep.subr.mxu0 0.0
      %8085 = vmatpush2.msra.mxu0 0.0
      %8086 = vmatprep.subr.mxu0 0.0
      %8087 = vmatpush2.msra.mxu0 0.0
      %8088 = vmatprep.subr.mxu0 0.0
      %8089 = vmatpush2.msra.mxu0 0.0
      %8090 = vmatprep.subr.mxu0 0.0
      %8091 = vmatpush2.msra.mxu0 0.0
      %8092 = vmatprep.subr.mxu0 0.0
      %8093 = vmatpush2.msra.mxu0 0.0
      %8094 = vmatprep.subr.mxu0 0.0
      %8095 = vmatpush2.msra.mxu0 0.0
      %8096 = vmatprep.mubr.f32.mxu0 0.0
      %8097 = vmatmul.mubr.f32.gmra.mxu0 %v8030
      %v8098 = vpop.f32.mrf.mxu0
      %v8099 = vadd.f32 0.0, %v8098
      %v8100 = vpop.f32.mrf.mxu0
      %v8101 = vadd.f32 0.0, %v8100
      %8102 = vdwg.mxu0
      %8103 = vmatprep.subr.mxu0 0.0
      %8104 = vmatpush1.msra.mxu0 0.0
      %8105 = vmatprep.subr.mxu0 0.0
      %8106 = vmatpush1.msra.mxu0 0.0
      %8107 = vmatprep.subr.mxu0 0.0
      %8108 = vmatpush1.msra.mxu0 0.0
      %8109 = vmatprep.subr.mxu0 0.0
      %8110 = vmatpush1.msra.mxu0 0.0
      %8111 = vmatprep.subr.mxu0 0.0
      %8112 = vmatpush1.msra.mxu0 0.0
      %8113 = vmatprep.subr.mxu0 0.0
      %8114 = vmatpush1.msra.mxu0 0.0
      %8115 = vmatprep.subr.mxu0 0.0
      %8116 = vmatpush1.msra.mxu0 0.0
      %8117 = vmatprep.subr.mxu0 0.0
      %8118 = vmatpush1.msra.mxu0 0.0
      %8119 = vmatprep.subr.mxu0 0.0
      %8120 = vmatpush1.msra.mxu0 0.0
      %8121 = vmatprep.subr.mxu0 0.0
      %8122 = vmatpush1.msra.mxu0 %v8007
      %8123 = vmatprep.subr.mxu0 0.0
      %8124 = vmatpush1.msra.mxu0 %v8004
      %8125 = vmatprep.subr.mxu0 0.0
      %8126 = vmatpush1.msra.mxu0 %v8001
      %8127 = vmatprep.subr.mxu0 0.0
      %8128 = vmatpush1.msra.mxu0 %v7998
      %8129 = vmatprep.subr.mxu0 0.0
      %8130 = vmatpush1.msra.mxu0 %v7995
      %8131 = vmatprep.subr.mxu0 0.0
      %8132 = vmatpush1.msra.mxu0 %v7992
      %8133 = vmatprep.subr.mxu0 0.0
      %8134 = vmatpush1.msra.mxu0 %v7989
      %8135 = vmatprep.subr.mxu0 0.0
      %8136 = vmatpush2.msra.mxu0 0.0
      %8137 = vmatprep.subr.mxu0 0.0
      %8138 = vmatpush2.msra.mxu0 0.0
      %8139 = vmatprep.subr.mxu0 0.0
      %8140 = vmatpush2.msra.mxu0 0.0
      %8141 = vmatprep.subr.mxu0 0.0
      %8142 = vmatpush2.msra.mxu0 0.0
      %8143 = vmatprep.subr.mxu0 0.0
      %8144 = vmatpush2.msra.mxu0 0.0
      %8145 = vmatprep.subr.mxu0 0.0
      %8146 = vmatpush2.msra.mxu0 0.0
      %8147 = vmatprep.subr.mxu0 0.0
      %8148 = vmatpush2.msra.mxu0 0.0
      %8149 = vmatprep.subr.mxu0 0.0
      %8150 = vmatpush2.msra.mxu0 0.0
      %8151 = vmatprep.subr.mxu0 0.0
      %8152 = vmatpush2.msra.mxu0 0.0
      %8153 = vmatprep.subr.mxu0 0.0
      %8154 = vmatpush2.msra.mxu0 0.0
      %8155 = vmatprep.subr.mxu0 0.0
      %8156 = vmatpush2.msra.mxu0 0.0
      %8157 = vmatprep.subr.mxu0 0.0
      %8158 = vmatpush2.msra.mxu0 0.0
      %8159 = vmatprep.subr.mxu0 0.0
      %8160 = vmatpush2.msra.mxu0 0.0
      %8161 = vmatprep.subr.mxu0 0.0
      %8162 = vmatpush2.msra.mxu0 0.0
      %8163 = vmatprep.subr.mxu0 0.0
      %8164 = vmatpush2.msra.mxu0 0.0
      %8165 = vmatprep.subr.mxu0 0.0
      %8166 = vmatpush2.msra.mxu0 0.0
      %8167 = vmatprep.mubr.f32.mxu0 0.0
      %8168 = vmatmul.mubr.f32.gmra.mxu0 %v8030
      %v8169 = vpop.f32.mrf.mxu0
      %v8170 = vadd.f32 0.0, %v8169
      %v8171 = vpop.f32.mrf.mxu0
      %8172 = vdwg.mxu0
      %v8173 = vadd.f32 %v7925, %v8099
      %v8174 = vadd.f32 %v7926, %v8101
      %v8175 = vadd.f32 %v7927, %v8170
      %s8176 = scalar_lea.vmem %s14, 56
      %v8177 = vld [vmem:[%s8176] sm:$0xf]
      %8178 = vrot.lane.b32.xlu0 %v4661, 74
      %v8179 = vpop.permute.xlu0 %8178
      %8180 = vrot.lane.b32.xlu0 %v4662, 74
      %v8181 = vpop.permute.xlu0 %8180
      %8182 = vrot.lane.b32.xlu0 %v4663, 74
      %v8183 = vpop.permute.xlu0 %8182
      %8184 = vrot.lane.b32.xlu0 %v4664, 74
      %v8185 = vpop.permute.xlu0 %8184
      %8186 = vrot.lane.b32.xlu0 %v4665, 74
      %v8187 = vpop.permute.xlu0 %8186
      %8188 = vrot.lane.b32.xlu0 %v4666, 74
      %v8189 = vpop.permute.xlu0 %8188
      %8190 = vrot.lane.b32.xlu0 %v4667, 74
      %v8191 = vpop.permute.xlu0 %8190
      %8192 = vrot.lane.b32.xlu0 %v4668, 74
      %v8193 = vpop.permute.xlu0 %8192
      %8194 = vrot.lane.b32.xlu0 %v4669, 74
      %v8195 = vpop.permute.xlu0 %8194
      %8196 = vrot.lane.b32.xlu0 %v4670, 74
      %v8197 = vpop.permute.xlu0 %8196
      %8198 = vrot.lane.b32.xlu0 %v4671, 74
      %v8199 = vpop.permute.xlu0 %8198
      %8200 = vrot.lane.b32.xlu0 %v4672, 74
      %v8201 = vpop.permute.xlu0 %8200
      %8202 = vrot.lane.b32.xlu0 %v4673, 74
      %v8203 = vpop.permute.xlu0 %8202
      %8204 = vrot.lane.b32.xlu0 %v4674, 74
      %v8205 = vpop.permute.xlu0 %8204
      %8206 = vrot.lane.b32.xlu0 %v4675, 74
      %v8207 = vpop.permute.xlu0 %8206
      %8208 = vrot.lane.b32.xlu0 %v4676, 74
      %v8209 = vpop.permute.xlu0 %8208
      %8210 = vrot.lane.b32.xlu0 %v4677, 74
      %v8211 = vpop.permute.xlu0 %8210
      %8212 = vrot.lane.b32.xlu0 %v4678, 74
      %v8213 = vpop.permute.xlu0 %8212
      %8214 = vrot.lane.b32.xlu0 %v4679, 74
      %v8215 = vpop.permute.xlu0 %8214
      %8216 = vrot.lane.b32.xlu0 %v4680, 74
      %v8217 = vpop.permute.xlu0 %8216
      %8218 = vrot.lane.b32.xlu0 %v4681, 74
      %v8219 = vpop.permute.xlu0 %8218
      %8220 = vrot.lane.b32.xlu0 %v4682, 74
      %v8221 = vpop.permute.xlu0 %8220
      %8222 = vrot.lane.b32.xlu0 %v4683, 74
      %v8223 = vpop.permute.xlu0 %8222
      %8224 = vrot.lane.b32.xlu0 %v4684, 74
      %v8225 = vpop.permute.xlu0 %8224
      %8226 = vrot.lane.b32.xlu0 %v4685, 74
      %v8227 = vpop.permute.xlu0 %8226
      %8228 = vrot.lane.b32.xlu0 %v4686, 74
      %v8229 = vpop.permute.xlu0 %8228
      %8230 = vrot.lane.b32.xlu0 %v4687, 74
      %v8231 = vpop.permute.xlu0 %8230
      %8232 = vrot.lane.b32.xlu0 %v4688, 74
      %v8233 = vpop.permute.xlu0 %8232
      %vm8234 = vcmask 605184
      %v8235 = vsel %vm8234, %v8179, %v8181
      %v8236 = vsel %vm8234, %v8181, %v8183
      %v8237 = vsel %vm8234, %v8183, %v8185
      %v8238 = vsel %vm8234, %v8187, %v8189
      %v8239 = vsel %vm8234, %v8189, %v8191
      %v8240 = vsel %vm8234, %v8191, %v8193
      %v8241 = vsel %vm8234, %v8195, %v8197
      %v8242 = vsel %vm8234, %v8197, %v8199
      %v8243 = vsel %vm8234, %v8199, %v8201
      %v8244 = vsel %vm8234, %v8203, %v8205
      %v8245 = vsel %vm8234, %v8205, %v8207
      %v8246 = vsel %vm8234, %v8207, %v8209
      %v8247 = vsel %vm8234, %v8211, %v8213
      %v8248 = vsel %vm8234, %v8213, %v8215
      %v8249 = vsel %vm8234, %v8215, %v8217
      %v8250 = vsel %vm8234, %v8219, %v8221
      %v8251 = vsel %vm8234, %v8221, %v8223
      %v8252 = vsel %vm8234, %v8223, %v8225
      %v8253 = vsel %vm8234, %v8227, %v8229
      %v8254 = vsel %vm8234, %v8229, %v8231
      %v8255 = vsel %vm8234, %v8231, %v8233
      %v8278 = vsel %vm968, %v8177, 0
      %8280 = vmatprep.subr.mxu0 0.0
      %8281 = vmatpush1.msra.mxu0 0.0
      %8282 = vmatprep.subr.mxu0 0.0
      %8283 = vmatpush1.msra.mxu0 0.0
      %8284 = vmatprep.subr.mxu0 0.0
      %8285 = vmatpush1.msra.mxu0 0.0
      %8286 = vmatprep.subr.mxu0 0.0
      %8287 = vmatpush1.msra.mxu0 0.0
      %8288 = vmatprep.subr.mxu0 0.0
      %8289 = vmatpush1.msra.mxu0 0.0
      %8290 = vmatprep.subr.mxu0 0.0
      %8291 = vmatpush1.msra.mxu0 0.0
      %8292 = vmatprep.subr.mxu0 0.0
      %8293 = vmatpush1.msra.mxu0 0.0
      %8294 = vmatprep.subr.mxu0 0.0
      %8295 = vmatpush1.msra.mxu0 0.0
      %8296 = vmatprep.subr.mxu0 0.0
      %8297 = vmatpush1.msra.mxu0 0.0
      %8298 = vmatprep.subr.mxu0 %v8254
      %8299 = vmatpush1.msra.mxu0 %v8253
      %8300 = vmatprep.subr.mxu0 %v8251
      %8301 = vmatpush1.msra.mxu0 %v8250
      %8302 = vmatprep.subr.mxu0 %v8248
      %8303 = vmatpush1.msra.mxu0 %v8247
      %8304 = vmatprep.subr.mxu0 %v8245
      %8305 = vmatpush1.msra.mxu0 %v8244
      %8306 = vmatprep.subr.mxu0 %v8242
      %8307 = vmatpush1.msra.mxu0 %v8241
      %8308 = vmatprep.subr.mxu0 %v8239
      %8309 = vmatpush1.msra.mxu0 %v8238
      %8310 = vmatprep.subr.mxu0 %v8236
      %8311 = vmatpush1.msra.mxu0 %v8235
      %8312 = vmatprep.subr.mxu0 0.0
      %8313 = vmatpush2.msra.mxu0 0.0
      %8314 = vmatprep.subr.mxu0 0.0
      %8315 = vmatpush2.msra.mxu0 0.0
      %8316 = vmatprep.subr.mxu0 0.0
      %8317 = vmatpush2.msra.mxu0 0.0
      %8318 = vmatprep.subr.mxu0 0.0
      %8319 = vmatpush2.msra.mxu0 0.0
      %8320 = vmatprep.subr.mxu0 0.0
      %8321 = vmatpush2.msra.mxu0 0.0
      %8322 = vmatprep.subr.mxu0 0.0
      %8323 = vmatpush2.msra.mxu0 0.0
      %8324 = vmatprep.subr.mxu0 0.0
      %8325 = vmatpush2.msra.mxu0 0.0
      %8326 = vmatprep.subr.mxu0 0.0
      %8327 = vmatpush2.msra.mxu0 0.0
      %8328 = vmatprep.subr.mxu0 0.0
      %8329 = vmatpush2.msra.mxu0 0.0
      %8330 = vmatprep.subr.mxu0 0.0
      %8331 = vmatpush2.msra.mxu0 0.0
      %8332 = vmatprep.subr.mxu0 0.0
      %8333 = vmatpush2.msra.mxu0 0.0
      %8334 = vmatprep.subr.mxu0 0.0
      %8335 = vmatpush2.msra.mxu0 0.0
      %8336 = vmatprep.subr.mxu0 0.0
      %8337 = vmatpush2.msra.mxu0 0.0
      %8338 = vmatprep.subr.mxu0 0.0
      %8339 = vmatpush2.msra.mxu0 0.0
      %8340 = vmatprep.subr.mxu0 0.0
      %8341 = vmatpush2.msra.mxu0 0.0
      %8342 = vmatprep.subr.mxu0 0.0
      %8343 = vmatpush2.msra.mxu0 0.0
      %8344 = vmatprep.mubr.f32.mxu0 0.0
      %8345 = vmatmul.mubr.f32.gmra.mxu0 %v8278
      %v8346 = vpop.f32.mrf.mxu0
      %v8347 = vadd.f32 0.0, %v8346
      %v8348 = vpop.f32.mrf.mxu0
      %v8349 = vadd.f32 0.0, %v8348
      %8350 = vdwg.mxu0
      %8351 = vmatprep.subr.mxu0 0.0
      %8352 = vmatpush1.msra.mxu0 0.0
      %8353 = vmatprep.subr.mxu0 0.0
      %8354 = vmatpush1.msra.mxu0 0.0
      %8355 = vmatprep.subr.mxu0 0.0
      %8356 = vmatpush1.msra.mxu0 0.0
      %8357 = vmatprep.subr.mxu0 0.0
      %8358 = vmatpush1.msra.mxu0 0.0
      %8359 = vmatprep.subr.mxu0 0.0
      %8360 = vmatpush1.msra.mxu0 0.0
      %8361 = vmatprep.subr.mxu0 0.0
      %8362 = vmatpush1.msra.mxu0 0.0
      %8363 = vmatprep.subr.mxu0 0.0
      %8364 = vmatpush1.msra.mxu0 0.0
      %8365 = vmatprep.subr.mxu0 0.0
      %8366 = vmatpush1.msra.mxu0 0.0
      %8367 = vmatprep.subr.mxu0 0.0
      %8368 = vmatpush1.msra.mxu0 0.0
      %8369 = vmatprep.subr.mxu0 0.0
      %8370 = vmatpush1.msra.mxu0 %v8255
      %8371 = vmatprep.subr.mxu0 0.0
      %8372 = vmatpush1.msra.mxu0 %v8252
      %8373 = vmatprep.subr.mxu0 0.0
      %8374 = vmatpush1.msra.mxu0 %v8249
      %8375 = vmatprep.subr.mxu0 0.0
      %8376 = vmatpush1.msra.mxu0 %v8246
      %8377 = vmatprep.subr.mxu0 0.0
      %8378 = vmatpush1.msra.mxu0 %v8243
      %8379 = vmatprep.subr.mxu0 0.0
      %8380 = vmatpush1.msra.mxu0 %v8240
      %8381 = vmatprep.subr.mxu0 0.0
      %8382 = vmatpush1.msra.mxu0 %v8237
      %8383 = vmatprep.subr.mxu0 0.0
      %8384 = vmatpush2.msra.mxu0 0.0
      %8385 = vmatprep.subr.mxu0 0.0
      %8386 = vmatpush2.msra.mxu0 0.0
      %8387 = vmatprep.subr.mxu0 0.0
      %8388 = vmatpush2.msra.mxu0 0.0
      %8389 = vmatprep.subr.mxu0 0.0
      %8390 = vmatpush2.msra.mxu0 0.0
      %8391 = vmatprep.subr.mxu0 0.0
      %8392 = vmatpush2.msra.mxu0 0.0
      %8393 = vmatprep.subr.mxu0 0.0
      %8394 = vmatpush2.msra.mxu0 0.0
      %8395 = vmatprep.subr.mxu0 0.0
      %8396 = vmatpush2.msra.mxu0 0.0
      %8397 = vmatprep.subr.mxu0 0.0
      %8398 = vmatpush2.msra.mxu0 0.0
      %8399 = vmatprep.subr.mxu0 0.0
      %8400 = vmatpush2.msra.mxu0 0.0
      %8401 = vmatprep.subr.mxu0 0.0
      %8402 = vmatpush2.msra.mxu0 0.0
      %8403 = vmatprep.subr.mxu0 0.0
      %8404 = vmatpush2.msra.mxu0 0.0
      %8405 = vmatprep.subr.mxu0 0.0
      %8406 = vmatpush2.msra.mxu0 0.0
      %8407 = vmatprep.subr.mxu0 0.0
      %8408 = vmatpush2.msra.mxu0 0.0
      %8409 = vmatprep.subr.mxu0 0.0
      %8410 = vmatpush2.msra.mxu0 0.0
      %8411 = vmatprep.subr.mxu0 0.0
      %8412 = vmatpush2.msra.mxu0 0.0
      %8413 = vmatprep.subr.mxu0 0.0
      %8414 = vmatpush2.msra.mxu0 0.0
      %8415 = vmatprep.mubr.f32.mxu0 0.0
      %8416 = vmatmul.mubr.f32.gmra.mxu0 %v8278
      %v8417 = vpop.f32.mrf.mxu0
      %v8418 = vadd.f32 0.0, %v8417
      %v8419 = vpop.f32.mrf.mxu0
      %8420 = vdwg.mxu0
      %v8421 = vadd.f32 %v8173, %v8347
      %v8422 = vadd.f32 %v8174, %v8349
      %v8423 = vadd.f32 %v8175, %v8418
      %s8424 = scalar_lea.vmem %s14, 60
      %v8425 = vld [vmem:[%s8424] sm:$0xf]
      %8426 = vrot.lane.b32.xlu0 %v4661, 54
      %v8427 = vpop.permute.xlu0 %8426
      %8428 = vrot.lane.b32.xlu0 %v4662, 54
      %v8429 = vpop.permute.xlu0 %8428
      %8430 = vrot.lane.b32.xlu0 %v4663, 54
      %v8431 = vpop.permute.xlu0 %8430
      %8432 = vrot.lane.b32.xlu0 %v4664, 54
      %v8433 = vpop.permute.xlu0 %8432
      %8434 = vrot.lane.b32.xlu0 %v4665, 54
      %v8435 = vpop.permute.xlu0 %8434
      %8436 = vrot.lane.b32.xlu0 %v4666, 54
      %v8437 = vpop.permute.xlu0 %8436
      %8438 = vrot.lane.b32.xlu0 %v4667, 54
      %v8439 = vpop.permute.xlu0 %8438
      %8440 = vrot.lane.b32.xlu0 %v4668, 54
      %v8441 = vpop.permute.xlu0 %8440
      %8442 = vrot.lane.b32.xlu0 %v4669, 54
      %v8443 = vpop.permute.xlu0 %8442
      %8444 = vrot.lane.b32.xlu0 %v4670, 54
      %v8445 = vpop.permute.xlu0 %8444
      %8446 = vrot.lane.b32.xlu0 %v4671, 54
      %v8447 = vpop.permute.xlu0 %8446
      %8448 = vrot.lane.b32.xlu0 %v4672, 54
      %v8449 = vpop.permute.xlu0 %8448
      %8450 = vrot.lane.b32.xlu0 %v4673, 54
      %v8451 = vpop.permute.xlu0 %8450
      %8452 = vrot.lane.b32.xlu0 %v4674, 54
      %v8453 = vpop.permute.xlu0 %8452
      %8454 = vrot.lane.b32.xlu0 %v4675, 54
      %v8455 = vpop.permute.xlu0 %8454
      %8456 = vrot.lane.b32.xlu0 %v4676, 54
      %v8457 = vpop.permute.xlu0 %8456
      %8458 = vrot.lane.b32.xlu0 %v4677, 54
      %v8459 = vpop.permute.xlu0 %8458
      %8460 = vrot.lane.b32.xlu0 %v4678, 54
      %v8461 = vpop.permute.xlu0 %8460
      %8462 = vrot.lane.b32.xlu0 %v4679, 54
      %v8463 = vpop.permute.xlu0 %8462
      %8464 = vrot.lane.b32.xlu0 %v4680, 54
      %v8465 = vpop.permute.xlu0 %8464
      %8466 = vrot.lane.b32.xlu0 %v4681, 54
      %v8467 = vpop.permute.xlu0 %8466
      %8468 = vrot.lane.b32.xlu0 %v4682, 54
      %v8469 = vpop.permute.xlu0 %8468
      %8470 = vrot.lane.b32.xlu0 %v4683, 54
      %v8471 = vpop.permute.xlu0 %8470
      %8472 = vrot.lane.b32.xlu0 %v4684, 54
      %v8473 = vpop.permute.xlu0 %8472
      %8474 = vrot.lane.b32.xlu0 %v4685, 54
      %v8475 = vpop.permute.xlu0 %8474
      %8476 = vrot.lane.b32.xlu0 %v4686, 54
      %v8477 = vpop.permute.xlu0 %8476
      %8478 = vrot.lane.b32.xlu0 %v4687, 54
      %v8479 = vpop.permute.xlu0 %8478
      %8480 = vrot.lane.b32.xlu0 %v4688, 54
      %v8481 = vpop.permute.xlu0 %8480
      %vm8482 = vcmask 441344
      %v8483 = vsel %vm8482, %v8427, %v8429
      %v8484 = vsel %vm8482, %v8429, %v8431
      %v8485 = vsel %vm8482, %v8431, %v8433
      %v8486 = vsel %vm8482, %v8435, %v8437
      %v8487 = vsel %vm8482, %v8437, %v8439
      %v8488 = vsel %vm8482, %v8439, %v8441
      %v8489 = vsel %vm8482, %v8443, %v8445
      %v8490 = vsel %vm8482, %v8445, %v8447
      %v8491 = vsel %vm8482, %v8447, %v8449
      %v8492 = vsel %vm8482, %v8451, %v8453
      %v8493 = vsel %vm8482, %v8453, %v8455
      %v8494 = vsel %vm8482, %v8455, %v8457
      %v8495 = vsel %vm8482, %v8459, %v8461
      %v8496 = vsel %vm8482, %v8461, %v8463
      %v8497 = vsel %vm8482, %v8463, %v8465
      %v8498 = vsel %vm8482, %v8467, %v8469
      %v8499 = vsel %vm8482, %v8469, %v8471
      %v8500 = vsel %vm8482, %v8471, %v8473
      %v8501 = vsel %vm8482, %v8475, %v8477
      %v8502 = vsel %vm8482, %v8477, %v8479
      %v8503 = vsel %vm8482, %v8479, %v8481
      %v8526 = vsel %vm968, %v8425, 0
      %8528 = vmatprep.subr.mxu0 0.0
      %8529 = vmatpush1.msra.mxu0 0.0
      %8530 = vmatprep.subr.mxu0 0.0
      %8531 = vmatpush1.msra.mxu0 0.0
      %8532 = vmatprep.subr.mxu0 0.0
      %8533 = vmatpush1.msra.mxu0 0.0
      %8534 = vmatprep.subr.mxu0 0.0
      %8535 = vmatpush1.msra.mxu0 0.0
      %8536 = vmatprep.subr.mxu0 0.0
      %8537 = vmatpush1.msra.mxu0 0.0
      %8538 = vmatprep.subr.mxu0 0.0
      %8539 = vmatpush1.msra.mxu0 0.0
      %8540 = vmatprep.subr.mxu0 0.0
      %8541 = vmatpush1.msra.mxu0 0.0
      %8542 = vmatprep.subr.mxu0 0.0
      %8543 = vmatpush1.msra.mxu0 0.0
      %8544 = vmatprep.subr.mxu0 0.0
      %8545 = vmatpush1.msra.mxu0 0.0
      %8546 = vmatprep.subr.mxu0 %v8502
      %8547 = vmatpush1.msra.mxu0 %v8501
      %8548 = vmatprep.subr.mxu0 %v8499
      %8549 = vmatpush1.msra.mxu0 %v8498
      %8550 = vmatprep.subr.mxu0 %v8496
      %8551 = vmatpush1.msra.mxu0 %v8495
      %8552 = vmatprep.subr.mxu0 %v8493
      %8553 = vmatpush1.msra.mxu0 %v8492
      %8554 = vmatprep.subr.mxu0 %v8490
      %8555 = vmatpush1.msra.mxu0 %v8489
      %8556 = vmatprep.subr.mxu0 %v8487
      %8557 = vmatpush1.msra.mxu0 %v8486
      %8558 = vmatprep.subr.mxu0 %v8484
      %8559 = vmatpush1.msra.mxu0 %v8483
      %8560 = vmatprep.subr.mxu0 0.0
      %8561 = vmatpush2.msra.mxu0 0.0
      %8562 = vmatprep.subr.mxu0 0.0
      %8563 = vmatpush2.msra.mxu0 0.0
      %8564 = vmatprep.subr.mxu0 0.0
      %8565 = vmatpush2.msra.mxu0 0.0
      %8566 = vmatprep.subr.mxu0 0.0
      %8567 = vmatpush2.msra.mxu0 0.0
      %8568 = vmatprep.subr.mxu0 0.0
      %8569 = vmatpush2.msra.mxu0 0.0
      %8570 = vmatprep.subr.mxu0 0.0
      %8571 = vmatpush2.msra.mxu0 0.0
      %8572 = vmatprep.subr.mxu0 0.0
      %8573 = vmatpush2.msra.mxu0 0.0
      %8574 = vmatprep.subr.mxu0 0.0
      %8575 = vmatpush2.msra.mxu0 0.0
      %8576 = vmatprep.subr.mxu0 0.0
      %8577 = vmatpush2.msra.mxu0 0.0
      %8578 = vmatprep.subr.mxu0 0.0
      %8579 = vmatpush2.msra.mxu0 0.0
      %8580 = vmatprep.subr.mxu0 0.0
      %8581 = vmatpush2.msra.mxu0 0.0
      %8582 = vmatprep.subr.mxu0 0.0
      %8583 = vmatpush2.msra.mxu0 0.0
      %8584 = vmatprep.subr.mxu0 0.0
      %8585 = vmatpush2.msra.mxu0 0.0
      %8586 = vmatprep.subr.mxu0 0.0
      %8587 = vmatpush2.msra.mxu0 0.0
      %8588 = vmatprep.subr.mxu0 0.0
      %8589 = vmatpush2.msra.mxu0 0.0
      %8590 = vmatprep.subr.mxu0 0.0
      %8591 = vmatpush2.msra.mxu0 0.0
      %8592 = vmatprep.mubr.f32.mxu0 0.0
      %8593 = vmatmul.mubr.f32.gmra.mxu0 %v8526
      %v8594 = vpop.f32.mrf.mxu0
      %v8595 = vadd.f32 0.0, %v8594
      %v8596 = vpop.f32.mrf.mxu0
      %v8597 = vadd.f32 0.0, %v8596
      %8598 = vdwg.mxu0
      %8599 = vmatprep.subr.mxu0 0.0
      %8600 = vmatpush1.msra.mxu0 0.0
      %8601 = vmatprep.subr.mxu0 0.0
      %8602 = vmatpush1.msra.mxu0 0.0
      %8603 = vmatprep.subr.mxu0 0.0
      %8604 = vmatpush1.msra.mxu0 0.0
      %8605 = vmatprep.subr.mxu0 0.0
      %8606 = vmatpush1.msra.mxu0 0.0
      %8607 = vmatprep.subr.mxu0 0.0
      %8608 = vmatpush1.msra.mxu0 0.0
      %8609 = vmatprep.subr.mxu0 0.0
      %8610 = vmatpush1.msra.mxu0 0.0
      %8611 = vmatprep.subr.mxu0 0.0
      %8612 = vmatpush1.msra.mxu0 0.0
      %8613 = vmatprep.subr.mxu0 0.0
      %8614 = vmatpush1.msra.mxu0 0.0
      %8615 = vmatprep.subr.mxu0 0.0
      %8616 = vmatpush1.msra.mxu0 0.0
      %8617 = vmatprep.subr.mxu0 0.0
      %8618 = vmatpush1.msra.mxu0 %v8503
      %8619 = vmatprep.subr.mxu0 0.0
      %8620 = vmatpush1.msra.mxu0 %v8500
      %8621 = vmatprep.subr.mxu0 0.0
      %8622 = vmatpush1.msra.mxu0 %v8497
      %8623 = vmatprep.subr.mxu0 0.0
      %8624 = vmatpush1.msra.mxu0 %v8494
      %8625 = vmatprep.subr.mxu0 0.0
      %8626 = vmatpush1.msra.mxu0 %v8491
      %8627 = vmatprep.subr.mxu0 0.0
      %8628 = vmatpush1.msra.mxu0 %v8488
      %8629 = vmatprep.subr.mxu0 0.0
      %8630 = vmatpush1.msra.mxu0 %v8485
      %8631 = vmatprep.subr.mxu0 0.0
      %8632 = vmatpush2.msra.mxu0 0.0
      %8633 = vmatprep.subr.mxu0 0.0
      %8634 = vmatpush2.msra.mxu0 0.0
      %8635 = vmatprep.subr.mxu0 0.0
      %8636 = vmatpush2.msra.mxu0 0.0
      %8637 = vmatprep.subr.mxu0 0.0
      %8638 = vmatpush2.msra.mxu0 0.0
      %8639 = vmatprep.subr.mxu0 0.0
      %8640 = vmatpush2.msra.mxu0 0.0
      %8641 = vmatprep.subr.mxu0 0.0
      %8642 = vmatpush2.msra.mxu0 0.0
      %8643 = vmatprep.subr.mxu0 0.0
      %8644 = vmatpush2.msra.mxu0 0.0
      %8645 = vmatprep.subr.mxu0 0.0
      %8646 = vmatpush2.msra.mxu0 0.0
      %8647 = vmatprep.subr.mxu0 0.0
      %8648 = vmatpush2.msra.mxu0 0.0
      %8649 = vmatprep.subr.mxu0 0.0
      %8650 = vmatpush2.msra.mxu0 0.0
      %8651 = vmatprep.subr.mxu0 0.0
      %8652 = vmatpush2.msra.mxu0 0.0
      %8653 = vmatprep.subr.mxu0 0.0
      %8654 = vmatpush2.msra.mxu0 0.0
      %8655 = vmatprep.subr.mxu0 0.0
      %8656 = vmatpush2.msra.mxu0 0.0
      %8657 = vmatprep.subr.mxu0 0.0
      %8658 = vmatpush2.msra.mxu0 0.0
      %8659 = vmatprep.subr.mxu0 0.0
      %8660 = vmatpush2.msra.mxu0 0.0
      %8661 = vmatprep.subr.mxu0 0.0
      %8662 = vmatpush2.msra.mxu0 0.0
      %8663 = vmatprep.mubr.f32.mxu0 0.0
      %8664 = vmatmul.mubr.f32.gmra.mxu0 %v8526
      %v8665 = vpop.f32.mrf.mxu0
      %v8666 = vadd.f32 0.0, %v8665
      %v8667 = vpop.f32.mrf.mxu0
      %8668 = vdwg.mxu0
      %v8669 = vadd.f32 %v8421, %v8595
      %v8670 = vadd.f32 %v8422, %v8597
      %v8671 = vadd.f32 %v8423, %v8666
      %s8672 = scalar_lea.vmem %s14, 64
      %v8673 = vld [vmem:[%s8672] sm:$0xf]
      %8674 = vrot.lane.b32.xlu0 %v4661, 53
      %v8675 = vpop.permute.xlu0 %8674
      %8676 = vrot.lane.b32.xlu0 %v4662, 53
      %v8677 = vpop.permute.xlu0 %8676
      %8678 = vrot.lane.b32.xlu0 %v4663, 53
      %v8679 = vpop.permute.xlu0 %8678
      %8680 = vrot.lane.b32.xlu0 %v4664, 53
      %v8681 = vpop.permute.xlu0 %8680
      %8682 = vrot.lane.b32.xlu0 %v4665, 53
      %v8683 = vpop.permute.xlu0 %8682
      %8684 = vrot.lane.b32.xlu0 %v4666, 53
      %v8685 = vpop.permute.xlu0 %8684
      %8686 = vrot.lane.b32.xlu0 %v4667, 53
      %v8687 = vpop.permute.xlu0 %8686
      %8688 = vrot.lane.b32.xlu0 %v4668, 53
      %v8689 = vpop.permute.xlu0 %8688
      %8690 = vrot.lane.b32.xlu0 %v4669, 53
      %v8691 = vpop.permute.xlu0 %8690
      %8692 = vrot.lane.b32.xlu0 %v4670, 53
      %v8693 = vpop.permute.xlu0 %8692
      %8694 = vrot.lane.b32.xlu0 %v4671, 53
      %v8695 = vpop.permute.xlu0 %8694
      %8696 = vrot.lane.b32.xlu0 %v4672, 53
      %v8697 = vpop.permute.xlu0 %8696
      %8698 = vrot.lane.b32.xlu0 %v4673, 53
      %v8699 = vpop.permute.xlu0 %8698
      %8700 = vrot.lane.b32.xlu0 %v4674, 53
      %v8701 = vpop.permute.xlu0 %8700
      %8702 = vrot.lane.b32.xlu0 %v4675, 53
      %v8703 = vpop.permute.xlu0 %8702
      %8704 = vrot.lane.b32.xlu0 %v4676, 53
      %v8705 = vpop.permute.xlu0 %8704
      %8706 = vrot.lane.b32.xlu0 %v4677, 53
      %v8707 = vpop.permute.xlu0 %8706
      %8708 = vrot.lane.b32.xlu0 %v4678, 53
      %v8709 = vpop.permute.xlu0 %8708
      %8710 = vrot.lane.b32.xlu0 %v4679, 53
      %v8711 = vpop.permute.xlu0 %8710
      %8712 = vrot.lane.b32.xlu0 %v4680, 53
      %v8713 = vpop.permute.xlu0 %8712
      %8714 = vrot.lane.b32.xlu0 %v4681, 53
      %v8715 = vpop.permute.xlu0 %8714
      %8716 = vrot.lane.b32.xlu0 %v4682, 53
      %v8717 = vpop.permute.xlu0 %8716
      %8718 = vrot.lane.b32.xlu0 %v4683, 53
      %v8719 = vpop.permute.xlu0 %8718
      %8720 = vrot.lane.b32.xlu0 %v4684, 53
      %v8721 = vpop.permute.xlu0 %8720
      %8722 = vrot.lane.b32.xlu0 %v4685, 53
      %v8723 = vpop.permute.xlu0 %8722
      %8724 = vrot.lane.b32.xlu0 %v4686, 53
      %v8725 = vpop.permute.xlu0 %8724
      %8726 = vrot.lane.b32.xlu0 %v4687, 53
      %v8727 = vpop.permute.xlu0 %8726
      %8728 = vrot.lane.b32.xlu0 %v4688, 53
      %v8729 = vpop.permute.xlu0 %8728
      %vm8730 = vcmask 433152
      %v8731 = vsel %vm8730, %v8675, %v8677
      %v8732 = vsel %vm8730, %v8677, %v8679
      %v8733 = vsel %vm8730, %v8679, %v8681
      %v8734 = vsel %vm8730, %v8683, %v8685
      %v8735 = vsel %vm8730, %v8685, %v8687
      %v8736 = vsel %vm8730, %v8687, %v8689
      %v8737 = vsel %vm8730, %v8691, %v8693
      %v8738 = vsel %vm8730, %v8693, %v8695
      %v8739 = vsel %vm8730, %v8695, %v8697
      %v8740 = vsel %vm8730, %v8699, %v8701
      %v8741 = vsel %vm8730, %v8701, %v8703
      %v8742 = vsel %vm8730, %v8703, %v8705
      %v8743 = vsel %vm8730, %v8707, %v8709
      %v8744 = vsel %vm8730, %v8709, %v8711
      %v8745 = vsel %vm8730, %v8711, %v8713
      %v8746 = vsel %vm8730, %v8715, %v8717
      %v8747 = vsel %vm8730, %v8717, %v8719
      %v8748 = vsel %vm8730, %v8719, %v8721
      %v8749 = vsel %vm8730, %v8723, %v8725
      %v8750 = vsel %vm8730, %v8725, %v8727
      %v8751 = vsel %vm8730, %v8727, %v8729
      %v8774 = vsel %vm968, %v8673, 0
      %8776 = vmatprep.subr.mxu0 0.0
      %8777 = vmatpush1.msra.mxu0 0.0
      %8778 = vmatprep.subr.mxu0 0.0
      %8779 = vmatpush1.msra.mxu0 0.0
      %8780 = vmatprep.subr.mxu0 0.0
      %8781 = vmatpush1.msra.mxu0 0.0
      %8782 = vmatprep.subr.mxu0 0.0
      %8783 = vmatpush1.msra.mxu0 0.0
      %8784 = vmatprep.subr.mxu0 0.0
      %8785 = vmatpush1.msra.mxu0 0.0
      %8786 = vmatprep.subr.mxu0 0.0
      %8787 = vmatpush1.msra.mxu0 0.0
      %8788 = vmatprep.subr.mxu0 0.0
      %8789 = vmatpush1.msra.mxu0 0.0
      %8790 = vmatprep.subr.mxu0 0.0
      %8791 = vmatpush1.msra.mxu0 0.0
      %8792 = vmatprep.subr.mxu0 0.0
      %8793 = vmatpush1.msra.mxu0 0.0
      %8794 = vmatprep.subr.mxu0 %v8750
      %8795 = vmatpush1.msra.mxu0 %v8749
      %8796 = vmatprep.subr.mxu0 %v8747
      %8797 = vmatpush1.msra.mxu0 %v8746
      %8798 = vmatprep.subr.mxu0 %v8744
      %8799 = vmatpush1.msra.mxu0 %v8743
      %8800 = vmatprep.subr.mxu0 %v8741
      %8801 = vmatpush1.msra.mxu0 %v8740
      %8802 = vmatprep.subr.mxu0 %v8738
      %8803 = vmatpush1.msra.mxu0 %v8737
      %8804 = vmatprep.subr.mxu0 %v8735
      %8805 = vmatpush1.msra.mxu0 %v8734
      %8806 = vmatprep.subr.mxu0 %v8732
      %8807 = vmatpush1.msra.mxu0 %v8731
      %8808 = vmatprep.subr.mxu0 0.0
      %8809 = vmatpush2.msra.mxu0 0.0
      %8810 = vmatprep.subr.mxu0 0.0
      %8811 = vmatpush2.msra.mxu0 0.0
      %8812 = vmatprep.subr.mxu0 0.0
      %8813 = vmatpush2.msra.mxu0 0.0
      %8814 = vmatprep.subr.mxu0 0.0
      %8815 = vmatpush2.msra.mxu0 0.0
      %8816 = vmatprep.subr.mxu0 0.0
      %8817 = vmatpush2.msra.mxu0 0.0
      %8818 = vmatprep.subr.mxu0 0.0
      %8819 = vmatpush2.msra.mxu0 0.0
      %8820 = vmatprep.subr.mxu0 0.0
      %8821 = vmatpush2.msra.mxu0 0.0
      %8822 = vmatprep.subr.mxu0 0.0
      %8823 = vmatpush2.msra.mxu0 0.0
      %8824 = vmatprep.subr.mxu0 0.0
      %8825 = vmatpush2.msra.mxu0 0.0
      %8826 = vmatprep.subr.mxu0 0.0
      %8827 = vmatpush2.msra.mxu0 0.0
      %8828 = vmatprep.subr.mxu0 0.0
      %8829 = vmatpush2.msra.mxu0 0.0
      %8830 = vmatprep.subr.mxu0 0.0
      %8831 = vmatpush2.msra.mxu0 0.0
      %8832 = vmatprep.subr.mxu0 0.0
      %8833 = vmatpush2.msra.mxu0 0.0
      %8834 = vmatprep.subr.mxu0 0.0
      %8835 = vmatpush2.msra.mxu0 0.0
      %8836 = vmatprep.subr.mxu0 0.0
      %8837 = vmatpush2.msra.mxu0 0.0
      %8838 = vmatprep.subr.mxu0 0.0
      %8839 = vmatpush2.msra.mxu0 0.0
      %8840 = vmatprep.mubr.f32.mxu0 0.0
      %8841 = vmatmul.mubr.f32.gmra.mxu0 %v8774
      %v8842 = vpop.f32.mrf.mxu0
      %v8843 = vadd.f32 0.0, %v8842
      %v8844 = vpop.f32.mrf.mxu0
      %v8845 = vadd.f32 0.0, %v8844
      %8846 = vdwg.mxu0
      %8847 = vmatprep.subr.mxu0 0.0
      %8848 = vmatpush1.msra.mxu0 0.0
      %8849 = vmatprep.subr.mxu0 0.0
      %8850 = vmatpush1.msra.mxu0 0.0
      %8851 = vmatprep.subr.mxu0 0.0
      %8852 = vmatpush1.msra.mxu0 0.0
      %8853 = vmatprep.subr.mxu0 0.0
      %8854 = vmatpush1.msra.mxu0 0.0
      %8855 = vmatprep.subr.mxu0 0.0
      %8856 = vmatpush1.msra.mxu0 0.0
      %8857 = vmatprep.subr.mxu0 0.0
      %8858 = vmatpush1.msra.mxu0 0.0
      %8859 = vmatprep.subr.mxu0 0.0
      %8860 = vmatpush1.msra.mxu0 0.0
      %8861 = vmatprep.subr.mxu0 0.0
      %8862 = vmatpush1.msra.mxu0 0.0
      %8863 = vmatprep.subr.mxu0 0.0
      %8864 = vmatpush1.msra.mxu0 0.0
      %8865 = vmatprep.subr.mxu0 0.0
      %8866 = vmatpush1.msra.mxu0 %v8751
      %8867 = vmatprep.subr.mxu0 0.0
      %8868 = vmatpush1.msra.mxu0 %v8748
      %8869 = vmatprep.subr.mxu0 0.0
      %8870 = vmatpush1.msra.mxu0 %v8745
      %8871 = vmatprep.subr.mxu0 0.0
      %8872 = vmatpush1.msra.mxu0 %v8742
      %8873 = vmatprep.subr.mxu0 0.0
      %8874 = vmatpush1.msra.mxu0 %v8739
      %8875 = vmatprep.subr.mxu0 0.0
      %8876 = vmatpush1.msra.mxu0 %v8736
      %8877 = vmatprep.subr.mxu0 0.0
      %8878 = vmatpush1.msra.mxu0 %v8733
      %8879 = vmatprep.subr.mxu0 0.0
      %8880 = vmatpush2.msra.mxu0 0.0
      %8881 = vmatprep.subr.mxu0 0.0
      %8882 = vmatpush2.msra.mxu0 0.0
      %8883 = vmatprep.subr.mxu0 0.0
      %8884 = vmatpush2.msra.mxu0 0.0
      %8885 = vmatprep.subr.mxu0 0.0
      %8886 = vmatpush2.msra.mxu0 0.0
      %8887 = vmatprep.subr.mxu0 0.0
      %8888 = vmatpush2.msra.mxu0 0.0
      %8889 = vmatprep.subr.mxu0 0.0
      %8890 = vmatpush2.msra.mxu0 0.0
      %8891 = vmatprep.subr.mxu0 0.0
      %8892 = vmatpush2.msra.mxu0 0.0
      %8893 = vmatprep.subr.mxu0 0.0
      %8894 = vmatpush2.msra.mxu0 0.0
      %8895 = vmatprep.subr.mxu0 0.0
      %8896 = vmatpush2.msra.mxu0 0.0
      %8897 = vmatprep.subr.mxu0 0.0
      %8898 = vmatpush2.msra.mxu0 0.0
      %8899 = vmatprep.subr.mxu0 0.0
      %8900 = vmatpush2.msra.mxu0 0.0
      %8901 = vmatprep.subr.mxu0 0.0
      %8902 = vmatpush2.msra.mxu0 0.0
      %8903 = vmatprep.subr.mxu0 0.0
      %8904 = vmatpush2.msra.mxu0 0.0
      %8905 = vmatprep.subr.mxu0 0.0
      %8906 = vmatpush2.msra.mxu0 0.0
      %8907 = vmatprep.subr.mxu0 0.0
      %8908 = vmatpush2.msra.mxu0 0.0
      %8909 = vmatprep.subr.mxu0 0.0
      %8910 = vmatpush2.msra.mxu0 0.0
      %8911 = vmatprep.mubr.f32.mxu0 0.0
      %8912 = vmatmul.mubr.f32.gmra.mxu0 %v8774
      %v8913 = vpop.f32.mrf.mxu0
      %v8914 = vadd.f32 0.0, %v8913
      %v8915 = vpop.f32.mrf.mxu0
      %8916 = vdwg.mxu0
      %v8917 = vadd.f32 %v8669, %v8843
      %v8918 = vadd.f32 %v8670, %v8845
      %v8919 = vadd.f32 %v8671, %v8914
      %s8920 = scalar_lea.vmem %s14, 68
      %v8921 = vld [vmem:[%s8920] sm:$0xf]
      %8922 = vrot.lane.b32.xlu0 %v4661, 52
      %v8923 = vpop.permute.xlu0 %8922
      %8924 = vrot.lane.b32.xlu0 %v4662, 52
      %v8925 = vpop.permute.xlu0 %8924
      %8926 = vrot.lane.b32.xlu0 %v4663, 52
      %v8927 = vpop.permute.xlu0 %8926
      %8928 = vrot.lane.b32.xlu0 %v4664, 52
      %v8929 = vpop.permute.xlu0 %8928
      %8930 = vrot.lane.b32.xlu0 %v4665, 52
      %v8931 = vpop.permute.xlu0 %8930
      %8932 = vrot.lane.b32.xlu0 %v4666, 52
      %v8933 = vpop.permute.xlu0 %8932
      %8934 = vrot.lane.b32.xlu0 %v4667, 52
      %v8935 = vpop.permute.xlu0 %8934
      %8936 = vrot.lane.b32.xlu0 %v4668, 52
      %v8937 = vpop.permute.xlu0 %8936
      %8938 = vrot.lane.b32.xlu0 %v4669, 52
      %v8939 = vpop.permute.xlu0 %8938
      %8940 = vrot.lane.b32.xlu0 %v4670, 52
      %v8941 = vpop.permute.xlu0 %8940
      %8942 = vrot.lane.b32.xlu0 %v4671, 52
      %v8943 = vpop.permute.xlu0 %8942
      %8944 = vrot.lane.b32.xlu0 %v4672, 52
      %v8945 = vpop.permute.xlu0 %8944
      %8946 = vrot.lane.b32.xlu0 %v4673, 52
      %v8947 = vpop.permute.xlu0 %8946
      %8948 = vrot.lane.b32.xlu0 %v4674, 52
      %v8949 = vpop.permute.xlu0 %8948
      %8950 = vrot.lane.b32.xlu0 %v4675, 52
      %v8951 = vpop.permute.xlu0 %8950
      %8952 = vrot.lane.b32.xlu0 %v4676, 52
      %v8953 = vpop.permute.xlu0 %8952
      %8954 = vrot.lane.b32.xlu0 %v4677, 52
      %v8955 = vpop.permute.xlu0 %8954
      %8956 = vrot.lane.b32.xlu0 %v4678, 52
      %v8957 = vpop.permute.xlu0 %8956
      %8958 = vrot.lane.b32.xlu0 %v4679, 52
      %v8959 = vpop.permute.xlu0 %8958
      %8960 = vrot.lane.b32.xlu0 %v4680, 52
      %v8961 = vpop.permute.xlu0 %8960
      %8962 = vrot.lane.b32.xlu0 %v4681, 52
      %v8963 = vpop.permute.xlu0 %8962
      %8964 = vrot.lane.b32.xlu0 %v4682, 52
      %v8965 = vpop.permute.xlu0 %8964
      %8966 = vrot.lane.b32.xlu0 %v4683, 52
      %v8967 = vpop.permute.xlu0 %8966
      %8968 = vrot.lane.b32.xlu0 %v4684, 52
      %v8969 = vpop.permute.xlu0 %8968
      %8970 = vrot.lane.b32.xlu0 %v4685, 52
      %v8971 = vpop.permute.xlu0 %8970
      %8972 = vrot.lane.b32.xlu0 %v4686, 52
      %v8973 = vpop.permute.xlu0 %8972
      %8974 = vrot.lane.b32.xlu0 %v4687, 52
      %v8975 = vpop.permute.xlu0 %8974
      %8976 = vrot.lane.b32.xlu0 %v4688, 52
      %v8977 = vpop.permute.xlu0 %8976
      %v8978 = vsel %vm522, %v8923, %v8925
      %v8979 = vsel %vm522, %v8925, %v8927
      %v8980 = vsel %vm522, %v8927, %v8929
      %v8981 = vsel %vm522, %v8931, %v8933
      %v8982 = vsel %vm522, %v8933, %v8935
      %v8983 = vsel %vm522, %v8935, %v8937
      %v8984 = vsel %vm522, %v8939, %v8941
      %v8985 = vsel %vm522, %v8941, %v8943
      %v8986 = vsel %vm522, %v8943, %v8945
      %v8987 = vsel %vm522, %v8947, %v8949
      %v8988 = vsel %vm522, %v8949, %v8951
      %v8989 = vsel %vm522, %v8951, %v8953
      %v8990 = vsel %vm522, %v8955, %v8957
      %v8991 = vsel %vm522, %v8957, %v8959
      %v8992 = vsel %vm522, %v8959, %v8961
      %v8993 = vsel %vm522, %v8963, %v8965
      %v8994 = vsel %vm522, %v8965, %v8967
      %v8995 = vsel %vm522, %v8967, %v8969
      %v8996 = vsel %vm522, %v8971, %v8973
      %v8997 = vsel %vm522, %v8973, %v8975
      %v8998 = vsel %vm522, %v8975, %v8977
      %v9021 = vsel %vm968, %v8921, 0
      %9023 = vmatprep.subr.mxu0 0.0
      %9024 = vmatpush1.msra.mxu0 0.0
      %9025 = vmatprep.subr.mxu0 0.0
      %9026 = vmatpush1.msra.mxu0 0.0
      %9027 = vmatprep.subr.mxu0 0.0
      %9028 = vmatpush1.msra.mxu0 0.0
      %9029 = vmatprep.subr.mxu0 0.0
      %9030 = vmatpush1.msra.mxu0 0.0
      %9031 = vmatprep.subr.mxu0 0.0
      %9032 = vmatpush1.msra.mxu0 0.0
      %9033 = vmatprep.subr.mxu0 0.0
      %9034 = vmatpush1.msra.mxu0 0.0
      %9035 = vmatprep.subr.mxu0 0.0
      %9036 = vmatpush1.msra.mxu0 0.0
      %9037 = vmatprep.subr.mxu0 0.0
      %9038 = vmatpush1.msra.mxu0 0.0
      %9039 = vmatprep.subr.mxu0 0.0
      %9040 = vmatpush1.msra.mxu0 0.0
      %9041 = vmatprep.subr.mxu0 %v8997
      %9042 = vmatpush1.msra.mxu0 %v8996
      %9043 = vmatprep.subr.mxu0 %v8994
      %9044 = vmatpush1.msra.mxu0 %v8993
      %9045 = vmatprep.subr.mxu0 %v8991
      %9046 = vmatpush1.msra.mxu0 %v8990
      %9047 = vmatprep.subr.mxu0 %v8988
      %9048 = vmatpush1.msra.mxu0 %v8987
      %9049 = vmatprep.subr.mxu0 %v8985
      %9050 = vmatpush1.msra.mxu0 %v8984
      %9051 = vmatprep.subr.mxu0 %v8982
      %9052 = vmatpush1.msra.mxu0 %v8981
      %9053 = vmatprep.subr.mxu0 %v8979
      %9054 = vmatpush1.msra.mxu0 %v8978
      %9055 = vmatprep.subr.mxu0 0.0
      %9056 = vmatpush2.msra.mxu0 0.0
      %9057 = vmatprep.subr.mxu0 0.0
      %9058 = vmatpush2.msra.mxu0 0.0
      %9059 = vmatprep.subr.mxu0 0.0
      %9060 = vmatpush2.msra.mxu0 0.0
      %9061 = vmatprep.subr.mxu0 0.0
      %9062 = vmatpush2.msra.mxu0 0.0
      %9063 = vmatprep.subr.mxu0 0.0
      %9064 = vmatpush2.msra.mxu0 0.0
      %9065 = vmatprep.subr.mxu0 0.0
      %9066 = vmatpush2.msra.mxu0 0.0
      %9067 = vmatprep.subr.mxu0 0.0
      %9068 = vmatpush2.msra.mxu0 0.0
      %9069 = vmatprep.subr.mxu0 0.0
      %9070 = vmatpush2.msra.mxu0 0.0
      %9071 = vmatprep.subr.mxu0 0.0
      %9072 = vmatpush2.msra.mxu0 0.0
      %9073 = vmatprep.subr.mxu0 0.0
      %9074 = vmatpush2.msra.mxu0 0.0
      %9075 = vmatprep.subr.mxu0 0.0
      %9076 = vmatpush2.msra.mxu0 0.0
      %9077 = vmatprep.subr.mxu0 0.0
      %9078 = vmatpush2.msra.mxu0 0.0
      %9079 = vmatprep.subr.mxu0 0.0
      %9080 = vmatpush2.msra.mxu0 0.0
      %9081 = vmatprep.subr.mxu0 0.0
      %9082 = vmatpush2.msra.mxu0 0.0
      %9083 = vmatprep.subr.mxu0 0.0
      %9084 = vmatpush2.msra.mxu0 0.0
      %9085 = vmatprep.subr.mxu0 0.0
      %9086 = vmatpush2.msra.mxu0 0.0
      %9087 = vmatprep.mubr.f32.mxu0 0.0
      %9088 = vmatmul.mubr.f32.gmra.mxu0 %v9021
      %v9089 = vpop.f32.mrf.mxu0
      %v9090 = vadd.f32 0.0, %v9089
      %v9091 = vpop.f32.mrf.mxu0
      %v9092 = vadd.f32 0.0, %v9091
      %9093 = vdwg.mxu0
      %9094 = vmatprep.subr.mxu0 0.0
      %9095 = vmatpush1.msra.mxu0 0.0
      %9096 = vmatprep.subr.mxu0 0.0
      %9097 = vmatpush1.msra.mxu0 0.0
      %9098 = vmatprep.subr.mxu0 0.0
      %9099 = vmatpush1.msra.mxu0 0.0
      %9100 = vmatprep.subr.mxu0 0.0
      %9101 = vmatpush1.msra.mxu0 0.0
      %9102 = vmatprep.subr.mxu0 0.0
      %9103 = vmatpush1.msra.mxu0 0.0
      %9104 = vmatprep.subr.mxu0 0.0
      %9105 = vmatpush1.msra.mxu0 0.0
      %9106 = vmatprep.subr.mxu0 0.0
      %9107 = vmatpush1.msra.mxu0 0.0
      %9108 = vmatprep.subr.mxu0 0.0
      %9109 = vmatpush1.msra.mxu0 0.0
      %9110 = vmatprep.subr.mxu0 0.0
      %9111 = vmatpush1.msra.mxu0 0.0
      %9112 = vmatprep.subr.mxu0 0.0
      %9113 = vmatpush1.msra.mxu0 %v8998
      %9114 = vmatprep.subr.mxu0 0.0
      %9115 = vmatpush1.msra.mxu0 %v8995
      %9116 = vmatprep.subr.mxu0 0.0
      %9117 = vmatpush1.msra.mxu0 %v8992
      %9118 = vmatprep.subr.mxu0 0.0
      %9119 = vmatpush1.msra.mxu0 %v8989
      %9120 = vmatprep.subr.mxu0 0.0
      %9121 = vmatpush1.msra.mxu0 %v8986
      %9122 = vmatprep.subr.mxu0 0.0
      %9123 = vmatpush1.msra.mxu0 %v8983
      %9124 = vmatprep.subr.mxu0 0.0
      %9125 = vmatpush1.msra.mxu0 %v8980
      %9126 = vmatprep.subr.mxu0 0.0
      %9127 = vmatpush2.msra.mxu0 0.0
      %9128 = vmatprep.subr.mxu0 0.0
      %9129 = vmatpush2.msra.mxu0 0.0
      %9130 = vmatprep.subr.mxu0 0.0
      %9131 = vmatpush2.msra.mxu0 0.0
      %9132 = vmatprep.subr.mxu0 0.0
      %9133 = vmatpush2.msra.mxu0 0.0
      %9134 = vmatprep.subr.mxu0 0.0
      %9135 = vmatpush2.msra.mxu0 0.0
      %9136 = vmatprep.subr.mxu0 0.0
      %9137 = vmatpush2.msra.mxu0 0.0
      %9138 = vmatprep.subr.mxu0 0.0
      %9139 = vmatpush2.msra.mxu0 0.0
      %9140 = vmatprep.subr.mxu0 0.0
      %9141 = vmatpush2.msra.mxu0 0.0
      %9142 = vmatprep.subr.mxu0 0.0
      %9143 = vmatpush2.msra.mxu0 0.0
      %9144 = vmatprep.subr.mxu0 0.0
      %9145 = vmatpush2.msra.mxu0 0.0
      %9146 = vmatprep.subr.mxu0 0.0
      %9147 = vmatpush2.msra.mxu0 0.0
      %9148 = vmatprep.subr.mxu0 0.0
      %9149 = vmatpush2.msra.mxu0 0.0
      %9150 = vmatprep.subr.mxu0 0.0
      %9151 = vmatpush2.msra.mxu0 0.0
      %9152 = vmatprep.subr.mxu0 0.0
      %9153 = vmatpush2.msra.mxu0 0.0
      %9154 = vmatprep.subr.mxu0 0.0
      %9155 = vmatpush2.msra.mxu0 0.0
      %9156 = vmatprep.subr.mxu0 0.0
      %9157 = vmatpush2.msra.mxu0 0.0
      %9158 = vmatprep.mubr.f32.mxu0 0.0
      %9159 = vmatmul.mubr.f32.gmra.mxu0 %v9021
      %v9160 = vpop.f32.mrf.mxu0
      %v9161 = vadd.f32 0.0, %v9160
      %v9162 = vpop.f32.mrf.mxu0
      %9163 = vdwg.mxu0
      %v9164 = vadd.f32 %v8917, %v9090
      %v9165 = vadd.f32 %v8918, %v9092
      %v9166 = vadd.f32 %v8919, %v9161
      %s9167 = scalar_lea.vmem %s14, 72
      %v9168 = vld [vmem:[%s9167] sm:$0xf]
      %9169 = vrot.lane.b32.xlu0 %v4661, 51
      %v9170 = vpop.permute.xlu0 %9169
      %9171 = vrot.lane.b32.xlu0 %v4662, 51
      %v9172 = vpop.permute.xlu0 %9171
      %9173 = vrot.lane.b32.xlu0 %v4663, 51
      %v9174 = vpop.permute.xlu0 %9173
      %9175 = vrot.lane.b32.xlu0 %v4664, 51
      %v9176 = vpop.permute.xlu0 %9175
      %9177 = vrot.lane.b32.xlu0 %v4665, 51
      %v9178 = vpop.permute.xlu0 %9177
      %9179 = vrot.lane.b32.xlu0 %v4666, 51
      %v9180 = vpop.permute.xlu0 %9179
      %9181 = vrot.lane.b32.xlu0 %v4667, 51
      %v9182 = vpop.permute.xlu0 %9181
      %9183 = vrot.lane.b32.xlu0 %v4668, 51
      %v9184 = vpop.permute.xlu0 %9183
      %9185 = vrot.lane.b32.xlu0 %v4669, 51
      %v9186 = vpop.permute.xlu0 %9185
      %9187 = vrot.lane.b32.xlu0 %v4670, 51
      %v9188 = vpop.permute.xlu0 %9187
      %9189 = vrot.lane.b32.xlu0 %v4671, 51
      %v9190 = vpop.permute.xlu0 %9189
      %9191 = vrot.lane.b32.xlu0 %v4672, 51
      %v9192 = vpop.permute.xlu0 %9191
      %9193 = vrot.lane.b32.xlu0 %v4673, 51
      %v9194 = vpop.permute.xlu0 %9193
      %9195 = vrot.lane.b32.xlu0 %v4674, 51
      %v9196 = vpop.permute.xlu0 %9195
      %9197 = vrot.lane.b32.xlu0 %v4675, 51
      %v9198 = vpop.permute.xlu0 %9197
      %9199 = vrot.lane.b32.xlu0 %v4676, 51
      %v9200 = vpop.permute.xlu0 %9199
      %9201 = vrot.lane.b32.xlu0 %v4677, 51
      %v9202 = vpop.permute.xlu0 %9201
      %9203 = vrot.lane.b32.xlu0 %v4678, 51
      %v9204 = vpop.permute.xlu0 %9203
      %9205 = vrot.lane.b32.xlu0 %v4679, 51
      %v9206 = vpop.permute.xlu0 %9205
      %9207 = vrot.lane.b32.xlu0 %v4680, 51
      %v9208 = vpop.permute.xlu0 %9207
      %9209 = vrot.lane.b32.xlu0 %v4681, 51
      %v9210 = vpop.permute.xlu0 %9209
      %9211 = vrot.lane.b32.xlu0 %v4682, 51
      %v9212 = vpop.permute.xlu0 %9211
      %9213 = vrot.lane.b32.xlu0 %v4683, 51
      %v9214 = vpop.permute.xlu0 %9213
      %9215 = vrot.lane.b32.xlu0 %v4684, 51
      %v9216 = vpop.permute.xlu0 %9215
      %9217 = vrot.lane.b32.xlu0 %v4685, 51
      %v9218 = vpop.permute.xlu0 %9217
      %9219 = vrot.lane.b32.xlu0 %v4686, 51
      %v9220 = vpop.permute.xlu0 %9219
      %9221 = vrot.lane.b32.xlu0 %v4687, 51
      %v9222 = vpop.permute.xlu0 %9221
      %9223 = vrot.lane.b32.xlu0 %v4688, 51
      %v9224 = vpop.permute.xlu0 %9223
      %vm9225 = vcmask 416768
      %v9226 = vsel %vm9225, %v9170, %v9172
      %v9227 = vsel %vm9225, %v9172, %v9174
      %v9228 = vsel %vm9225, %v9174, %v9176
      %v9229 = vsel %vm9225, %v9178, %v9180
      %v9230 = vsel %vm9225, %v9180, %v9182
      %v9231 = vsel %vm9225, %v9182, %v9184
      %v9232 = vsel %vm9225, %v9186, %v9188
      %v9233 = vsel %vm9225, %v9188, %v9190
      %v9234 = vsel %vm9225, %v9190, %v9192
      %v9235 = vsel %vm9225, %v9194, %v9196
      %v9236 = vsel %vm9225, %v9196, %v9198
      %v9237 = vsel %vm9225, %v9198, %v9200
      %v9238 = vsel %vm9225, %v9202, %v9204
      %v9239 = vsel %vm9225, %v9204, %v9206
      %v9240 = vsel %vm9225, %v9206, %v9208
      %v9241 = vsel %vm9225, %v9210, %v9212
      %v9242 = vsel %vm9225, %v9212, %v9214
      %v9243 = vsel %vm9225, %v9214, %v9216
      %v9244 = vsel %vm9225, %v9218, %v9220
      %v9245 = vsel %vm9225, %v9220, %v9222
      %v9246 = vsel %vm9225, %v9222, %v9224
      %v9269 = vsel %vm968, %v9168, 0
      %9271 = vmatprep.subr.mxu0 0.0
      %9272 = vmatpush1.msra.mxu0 0.0
      %9273 = vmatprep.subr.mxu0 0.0
      %9274 = vmatpush1.msra.mxu0 0.0
      %9275 = vmatprep.subr.mxu0 0.0
      %9276 = vmatpush1.msra.mxu0 0.0
      %9277 = vmatprep.subr.mxu0 0.0
      %9278 = vmatpush1.msra.mxu0 0.0
      %9279 = vmatprep.subr.mxu0 0.0
      %9280 = vmatpush1.msra.mxu0 0.0
      %9281 = vmatprep.subr.mxu0 0.0
      %9282 = vmatpush1.msra.mxu0 0.0
      %9283 = vmatprep.subr.mxu0 0.0
      %9284 = vmatpush1.msra.mxu0 0.0
      %9285 = vmatprep.subr.mxu0 0.0
      %9286 = vmatpush1.msra.mxu0 0.0
      %9287 = vmatprep.subr.mxu0 0.0
      %9288 = vmatpush1.msra.mxu0 0.0
      %9289 = vmatprep.subr.mxu0 %v9245
      %9290 = vmatpush1.msra.mxu0 %v9244
      %9291 = vmatprep.subr.mxu0 %v9242
      %9292 = vmatpush1.msra.mxu0 %v9241
      %9293 = vmatprep.subr.mxu0 %v9239
      %9294 = vmatpush1.msra.mxu0 %v9238
      %9295 = vmatprep.subr.mxu0 %v9236
      %9296 = vmatpush1.msra.mxu0 %v9235
      %9297 = vmatprep.subr.mxu0 %v9233
      %9298 = vmatpush1.msra.mxu0 %v9232
      %9299 = vmatprep.subr.mxu0 %v9230
      %9300 = vmatpush1.msra.mxu0 %v9229
      %9301 = vmatprep.subr.mxu0 %v9227
      %9302 = vmatpush1.msra.mxu0 %v9226
      %9303 = vmatprep.subr.mxu0 0.0
      %9304 = vmatpush2.msra.mxu0 0.0
      %9305 = vmatprep.subr.mxu0 0.0
      %9306 = vmatpush2.msra.mxu0 0.0
      %9307 = vmatprep.subr.mxu0 0.0
      %9308 = vmatpush2.msra.mxu0 0.0
      %9309 = vmatprep.subr.mxu0 0.0
      %9310 = vmatpush2.msra.mxu0 0.0
      %9311 = vmatprep.subr.mxu0 0.0
      %9312 = vmatpush2.msra.mxu0 0.0
      %9313 = vmatprep.subr.mxu0 0.0
      %9314 = vmatpush2.msra.mxu0 0.0
      %9315 = vmatprep.subr.mxu0 0.0
      %9316 = vmatpush2.msra.mxu0 0.0
      %9317 = vmatprep.subr.mxu0 0.0
      %9318 = vmatpush2.msra.mxu0 0.0
      %9319 = vmatprep.subr.mxu0 0.0
      %9320 = vmatpush2.msra.mxu0 0.0
      %9321 = vmatprep.subr.mxu0 0.0
      %9322 = vmatpush2.msra.mxu0 0.0
      %9323 = vmatprep.subr.mxu0 0.0
      %9324 = vmatpush2.msra.mxu0 0.0
      %9325 = vmatprep.subr.mxu0 0.0
      %9326 = vmatpush2.msra.mxu0 0.0
      %9327 = vmatprep.subr.mxu0 0.0
      %9328 = vmatpush2.msra.mxu0 0.0
      %9329 = vmatprep.subr.mxu0 0.0
      %9330 = vmatpush2.msra.mxu0 0.0
      %9331 = vmatprep.subr.mxu0 0.0
      %9332 = vmatpush2.msra.mxu0 0.0
      %9333 = vmatprep.subr.mxu0 0.0
      %9334 = vmatpush2.msra.mxu0 0.0
      %9335 = vmatprep.mubr.f32.mxu0 0.0
      %9336 = vmatmul.mubr.f32.gmra.mxu0 %v9269
      %v9337 = vpop.f32.mrf.mxu0
      %v9338 = vadd.f32 0.0, %v9337
      %v9339 = vpop.f32.mrf.mxu0
      %v9340 = vadd.f32 0.0, %v9339
      %9341 = vdwg.mxu0
      %9342 = vmatprep.subr.mxu0 0.0
      %9343 = vmatpush1.msra.mxu0 0.0
      %9344 = vmatprep.subr.mxu0 0.0
      %9345 = vmatpush1.msra.mxu0 0.0
      %9346 = vmatprep.subr.mxu0 0.0
      %9347 = vmatpush1.msra.mxu0 0.0
      %9348 = vmatprep.subr.mxu0 0.0
      %9349 = vmatpush1.msra.mxu0 0.0
      %9350 = vmatprep.subr.mxu0 0.0
      %9351 = vmatpush1.msra.mxu0 0.0
      %9352 = vmatprep.subr.mxu0 0.0
      %9353 = vmatpush1.msra.mxu0 0.0
      %9354 = vmatprep.subr.mxu0 0.0
      %9355 = vmatpush1.msra.mxu0 0.0
      %9356 = vmatprep.subr.mxu0 0.0
      %9357 = vmatpush1.msra.mxu0 0.0
      %9358 = vmatprep.subr.mxu0 0.0
      %9359 = vmatpush1.msra.mxu0 0.0
      %9360 = vmatprep.subr.mxu0 0.0
      %9361 = vmatpush1.msra.mxu0 %v9246
      %9362 = vmatprep.subr.mxu0 0.0
      %9363 = vmatpush1.msra.mxu0 %v9243
      %9364 = vmatprep.subr.mxu0 0.0
      %9365 = vmatpush1.msra.mxu0 %v9240
      %9366 = vmatprep.subr.mxu0 0.0
      %9367 = vmatpush1.msra.mxu0 %v9237
      %9368 = vmatprep.subr.mxu0 0.0
      %9369 = vmatpush1.msra.mxu0 %v9234
      %9370 = vmatprep.subr.mxu0 0.0
      %9371 = vmatpush1.msra.mxu0 %v9231
      %9372 = vmatprep.subr.mxu0 0.0
      %9373 = vmatpush1.msra.mxu0 %v9228
      %9374 = vmatprep.subr.mxu0 0.0
      %9375 = vmatpush2.msra.mxu0 0.0
      %9376 = vmatprep.subr.mxu0 0.0
      %9377 = vmatpush2.msra.mxu0 0.0
      %9378 = vmatprep.subr.mxu0 0.0
      %9379 = vmatpush2.msra.mxu0 0.0
      %9380 = vmatprep.subr.mxu0 0.0
      %9381 = vmatpush2.msra.mxu0 0.0
      %9382 = vmatprep.subr.mxu0 0.0
      %9383 = vmatpush2.msra.mxu0 0.0
      %9384 = vmatprep.subr.mxu0 0.0
      %9385 = vmatpush2.msra.mxu0 0.0
      %9386 = vmatprep.subr.mxu0 0.0
      %9387 = vmatpush2.msra.mxu0 0.0
      %9388 = vmatprep.subr.mxu0 0.0
      %9389 = vmatpush2.msra.mxu0 0.0
      %9390 = vmatprep.subr.mxu0 0.0
      %9391 = vmatpush2.msra.mxu0 0.0
      %9392 = vmatprep.subr.mxu0 0.0
      %9393 = vmatpush2.msra.mxu0 0.0
      %9394 = vmatprep.subr.mxu0 0.0
      %9395 = vmatpush2.msra.mxu0 0.0
      %9396 = vmatprep.subr.mxu0 0.0
      %9397 = vmatpush2.msra.mxu0 0.0
      %9398 = vmatprep.subr.mxu0 0.0
      %9399 = vmatpush2.msra.mxu0 0.0
      %9400 = vmatprep.subr.mxu0 0.0
      %9401 = vmatpush2.msra.mxu0 0.0
      %9402 = vmatprep.subr.mxu0 0.0
      %9403 = vmatpush2.msra.mxu0 0.0
      %9404 = vmatprep.subr.mxu0 0.0
      %9405 = vmatpush2.msra.mxu0 0.0
      %9406 = vmatprep.mubr.f32.mxu0 0.0
      %9407 = vmatmul.mubr.f32.gmra.mxu0 %v9269
      %v9408 = vpop.f32.mrf.mxu0
      %v9409 = vadd.f32 0.0, %v9408
      %v9410 = vpop.f32.mrf.mxu0
      %9411 = vdwg.mxu0
      %v9412 = vadd.f32 %v9164, %v9338
      %v9413 = vadd.f32 %v9165, %v9340
      %v9414 = vadd.f32 %v9166, %v9409
      %s9415 = scalar_lea.vmem %s14, 76
      %v9416 = vld [vmem:[%s9415] sm:$0xf]
      %9417 = vrot.lane.b32.xlu0 %v4661, 50
      %v9418 = vpop.permute.xlu0 %9417
      %9419 = vrot.lane.b32.xlu0 %v4662, 50
      %v9420 = vpop.permute.xlu0 %9419
      %9421 = vrot.lane.b32.xlu0 %v4663, 50
      %v9422 = vpop.permute.xlu0 %9421
      %9423 = vrot.lane.b32.xlu0 %v4664, 50
      %v9424 = vpop.permute.xlu0 %9423
      %9425 = vrot.lane.b32.xlu0 %v4665, 50
      %v9426 = vpop.permute.xlu0 %9425
      %9427 = vrot.lane.b32.xlu0 %v4666, 50
      %v9428 = vpop.permute.xlu0 %9427
      %9429 = vrot.lane.b32.xlu0 %v4667, 50
      %v9430 = vpop.permute.xlu0 %9429
      %9431 = vrot.lane.b32.xlu0 %v4668, 50
      %v9432 = vpop.permute.xlu0 %9431
      %9433 = vrot.lane.b32.xlu0 %v4669, 50
      %v9434 = vpop.permute.xlu0 %9433
      %9435 = vrot.lane.b32.xlu0 %v4670, 50
      %v9436 = vpop.permute.xlu0 %9435
      %9437 = vrot.lane.b32.xlu0 %v4671, 50
      %v9438 = vpop.permute.xlu0 %9437
      %9439 = vrot.lane.b32.xlu0 %v4672, 50
      %v9440 = vpop.permute.xlu0 %9439
      %9441 = vrot.lane.b32.xlu0 %v4673, 50
      %v9442 = vpop.permute.xlu0 %9441
      %9443 = vrot.lane.b32.xlu0 %v4674, 50
      %v9444 = vpop.permute.xlu0 %9443
      %9445 = vrot.lane.b32.xlu0 %v4675, 50
      %v9446 = vpop.permute.xlu0 %9445
      %9447 = vrot.lane.b32.xlu0 %v4676, 50
      %v9448 = vpop.permute.xlu0 %9447
      %9449 = vrot.lane.b32.xlu0 %v4677, 50
      %v9450 = vpop.permute.xlu0 %9449
      %9451 = vrot.lane.b32.xlu0 %v4678, 50
      %v9452 = vpop.permute.xlu0 %9451
      %9453 = vrot.lane.b32.xlu0 %v4679, 50
      %v9454 = vpop.permute.xlu0 %9453
      %9455 = vrot.lane.b32.xlu0 %v4680, 50
      %v9456 = vpop.permute.xlu0 %9455
      %9457 = vrot.lane.b32.xlu0 %v4681, 50
      %v9458 = vpop.permute.xlu0 %9457
      %9459 = vrot.lane.b32.xlu0 %v4682, 50
      %v9460 = vpop.permute.xlu0 %9459
      %9461 = vrot.lane.b32.xlu0 %v4683, 50
      %v9462 = vpop.permute.xlu0 %9461
      %9463 = vrot.lane.b32.xlu0 %v4684, 50
      %v9464 = vpop.permute.xlu0 %9463
      %9465 = vrot.lane.b32.xlu0 %v4685, 50
      %v9466 = vpop.permute.xlu0 %9465
      %9467 = vrot.lane.b32.xlu0 %v4686, 50
      %v9468 = vpop.permute.xlu0 %9467
      %9469 = vrot.lane.b32.xlu0 %v4687, 50
      %v9470 = vpop.permute.xlu0 %9469
      %9471 = vrot.lane.b32.xlu0 %v4688, 50
      %v9472 = vpop.permute.xlu0 %9471
      %vm9473 = vcmask 408576
      %v9474 = vsel %vm9473, %v9418, %v9420
      %v9475 = vsel %vm9473, %v9420, %v9422
      %v9476 = vsel %vm9473, %v9422, %v9424
      %v9477 = vsel %vm9473, %v9426, %v9428
      %v9478 = vsel %vm9473, %v9428, %v9430
      %v9479 = vsel %vm9473, %v9430, %v9432
      %v9480 = vsel %vm9473, %v9434, %v9436
      %v9481 = vsel %vm9473, %v9436, %v9438
      %v9482 = vsel %vm9473, %v9438, %v9440
      %v9483 = vsel %vm9473, %v9442, %v9444
      %v9484 = vsel %vm9473, %v9444, %v9446
      %v9485 = vsel %vm9473, %v9446, %v9448
      %v9486 = vsel %vm9473, %v9450, %v9452
      %v9487 = vsel %vm9473, %v9452, %v9454
      %v9488 = vsel %vm9473, %v9454, %v9456
      %v9489 = vsel %vm9473, %v9458, %v9460
      %v9490 = vsel %vm9473, %v9460, %v9462
      %v9491 = vsel %vm9473, %v9462, %v9464
      %v9492 = vsel %vm9473, %v9466, %v9468
      %v9493 = vsel %vm9473, %v9468, %v9470
      %v9494 = vsel %vm9473, %v9470, %v9472
      %v9517 = vsel %vm968, %v9416, 0
      %9519 = vmatprep.subr.mxu0 0.0
      %9520 = vmatpush1.msra.mxu0 0.0
      %9521 = vmatprep.subr.mxu0 0.0
      %9522 = vmatpush1.msra.mxu0 0.0
      %9523 = vmatprep.subr.mxu0 0.0
      %9524 = vmatpush1.msra.mxu0 0.0
      %9525 = vmatprep.subr.mxu0 0.0
      %9526 = vmatpush1.msra.mxu0 0.0
      %9527 = vmatprep.subr.mxu0 0.0
      %9528 = vmatpush1.msra.mxu0 0.0
      %9529 = vmatprep.subr.mxu0 0.0
      %9530 = vmatpush1.msra.mxu0 0.0
      %9531 = vmatprep.subr.mxu0 0.0
      %9532 = vmatpush1.msra.mxu0 0.0
      %9533 = vmatprep.subr.mxu0 0.0
      %9534 = vmatpush1.msra.mxu0 0.0
      %9535 = vmatprep.subr.mxu0 0.0
      %9536 = vmatpush1.msra.mxu0 0.0
      %9537 = vmatprep.subr.mxu0 %v9493
      %9538 = vmatpush1.msra.mxu0 %v9492
      %9539 = vmatprep.subr.mxu0 %v9490
      %9540 = vmatpush1.msra.mxu0 %v9489
      %9541 = vmatprep.subr.mxu0 %v9487
      %9542 = vmatpush1.msra.mxu0 %v9486
      %9543 = vmatprep.subr.mxu0 %v9484
      %9544 = vmatpush1.msra.mxu0 %v9483
      %9545 = vmatprep.subr.mxu0 %v9481
      %9546 = vmatpush1.msra.mxu0 %v9480
      %9547 = vmatprep.subr.mxu0 %v9478
      %9548 = vmatpush1.msra.mxu0 %v9477
      %9549 = vmatprep.subr.mxu0 %v9475
      %9550 = vmatpush1.msra.mxu0 %v9474
      %9551 = vmatprep.subr.mxu0 0.0
      %9552 = vmatpush2.msra.mxu0 0.0
      %9553 = vmatprep.subr.mxu0 0.0
      %9554 = vmatpush2.msra.mxu0 0.0
      %9555 = vmatprep.subr.mxu0 0.0
      %9556 = vmatpush2.msra.mxu0 0.0
      %9557 = vmatprep.subr.mxu0 0.0
      %9558 = vmatpush2.msra.mxu0 0.0
      %9559 = vmatprep.subr.mxu0 0.0
      %9560 = vmatpush2.msra.mxu0 0.0
      %9561 = vmatprep.subr.mxu0 0.0
      %9562 = vmatpush2.msra.mxu0 0.0
      %9563 = vmatprep.subr.mxu0 0.0
      %9564 = vmatpush2.msra.mxu0 0.0
      %9565 = vmatprep.subr.mxu0 0.0
      %9566 = vmatpush2.msra.mxu0 0.0
      %9567 = vmatprep.subr.mxu0 0.0
      %9568 = vmatpush2.msra.mxu0 0.0
      %9569 = vmatprep.subr.mxu0 0.0
      %9570 = vmatpush2.msra.mxu0 0.0
      %9571 = vmatprep.subr.mxu0 0.0
      %9572 = vmatpush2.msra.mxu0 0.0
      %9573 = vmatprep.subr.mxu0 0.0
      %9574 = vmatpush2.msra.mxu0 0.0
      %9575 = vmatprep.subr.mxu0 0.0
      %9576 = vmatpush2.msra.mxu0 0.0
      %9577 = vmatprep.subr.mxu0 0.0
      %9578 = vmatpush2.msra.mxu0 0.0
      %9579 = vmatprep.subr.mxu0 0.0
      %9580 = vmatpush2.msra.mxu0 0.0
      %9581 = vmatprep.subr.mxu0 0.0
      %9582 = vmatpush2.msra.mxu0 0.0
      %9583 = vmatprep.mubr.f32.mxu0 0.0
      %9584 = vmatmul.mubr.f32.gmra.mxu0 %v9517
      %v9585 = vpop.f32.mrf.mxu0
      %v9586 = vadd.f32 0.0, %v9585
      %v9587 = vpop.f32.mrf.mxu0
      %v9588 = vadd.f32 0.0, %v9587
      %9589 = vdwg.mxu0
      %9590 = vmatprep.subr.mxu0 0.0
      %9591 = vmatpush1.msra.mxu0 0.0
      %9592 = vmatprep.subr.mxu0 0.0
      %9593 = vmatpush1.msra.mxu0 0.0
      %9594 = vmatprep.subr.mxu0 0.0
      %9595 = vmatpush1.msra.mxu0 0.0
      %9596 = vmatprep.subr.mxu0 0.0
      %9597 = vmatpush1.msra.mxu0 0.0
      %9598 = vmatprep.subr.mxu0 0.0
      %9599 = vmatpush1.msra.mxu0 0.0
      %9600 = vmatprep.subr.mxu0 0.0
      %9601 = vmatpush1.msra.mxu0 0.0
      %9602 = vmatprep.subr.mxu0 0.0
      %9603 = vmatpush1.msra.mxu0 0.0
      %9604 = vmatprep.subr.mxu0 0.0
      %9605 = vmatpush1.msra.mxu0 0.0
      %9606 = vmatprep.subr.mxu0 0.0
      %9607 = vmatpush1.msra.mxu0 0.0
      %9608 = vmatprep.subr.mxu0 0.0
      %9609 = vmatpush1.msra.mxu0 %v9494
      %9610 = vmatprep.subr.mxu0 0.0
      %9611 = vmatpush1.msra.mxu0 %v9491
      %9612 = vmatprep.subr.mxu0 0.0
      %9613 = vmatpush1.msra.mxu0 %v9488
      %9614 = vmatprep.subr.mxu0 0.0
      %9615 = vmatpush1.msra.mxu0 %v9485
      %9616 = vmatprep.subr.mxu0 0.0
      %9617 = vmatpush1.msra.mxu0 %v9482
      %9618 = vmatprep.subr.mxu0 0.0
      %9619 = vmatpush1.msra.mxu0 %v9479
      %9620 = vmatprep.subr.mxu0 0.0
      %9621 = vmatpush1.msra.mxu0 %v9476
      %9622 = vmatprep.subr.mxu0 0.0
      %9623 = vmatpush2.msra.mxu0 0.0
      %9624 = vmatprep.subr.mxu0 0.0
      %9625 = vmatpush2.msra.mxu0 0.0
      %9626 = vmatprep.subr.mxu0 0.0
      %9627 = vmatpush2.msra.mxu0 0.0
      %9628 = vmatprep.subr.mxu0 0.0
      %9629 = vmatpush2.msra.mxu0 0.0
      %9630 = vmatprep.subr.mxu0 0.0
      %9631 = vmatpush2.msra.mxu0 0.0
      %9632 = vmatprep.subr.mxu0 0.0
      %9633 = vmatpush2.msra.mxu0 0.0
      %9634 = vmatprep.subr.mxu0 0.0
      %9635 = vmatpush2.msra.mxu0 0.0
      %9636 = vmatprep.subr.mxu0 0.0
      %9637 = vmatpush2.msra.mxu0 0.0
      %9638 = vmatprep.subr.mxu0 0.0
      %9639 = vmatpush2.msra.mxu0 0.0
      %9640 = vmatprep.subr.mxu0 0.0
      %9641 = vmatpush2.msra.mxu0 0.0
      %9642 = vmatprep.subr.mxu0 0.0
      %9643 = vmatpush2.msra.mxu0 0.0
      %9644 = vmatprep.subr.mxu0 0.0
      %9645 = vmatpush2.msra.mxu0 0.0
      %9646 = vmatprep.subr.mxu0 0.0
      %9647 = vmatpush2.msra.mxu0 0.0
      %9648 = vmatprep.subr.mxu0 0.0
      %9649 = vmatpush2.msra.mxu0 0.0
      %9650 = vmatprep.subr.mxu0 0.0
      %9651 = vmatpush2.msra.mxu0 0.0
      %9652 = vmatprep.subr.mxu0 0.0
      %9653 = vmatpush2.msra.mxu0 0.0
      %9654 = vmatprep.mubr.f32.mxu0 0.0
      %9655 = vmatmul.mubr.f32.gmra.mxu0 %v9517
      %v9656 = vpop.f32.mrf.mxu0
      %v9657 = vadd.f32 0.0, %v9656
      %v9658 = vpop.f32.mrf.mxu0
      %9659 = vdwg.mxu0
      %v9660 = vadd.f32 %v9412, %v9586
      %v9661 = vadd.f32 %v9413, %v9588
      %v9662 = vadd.f32 %v9414, %v9657
      %s9663 = scalar_lea.vmem %s14, 80
      %v9664 = vld [vmem:[%s9663] sm:$0xf]
      %9665 = vrot.lane.b32.xlu0 %v4661, 30
      %v9666 = vpop.permute.xlu0 %9665
      %9667 = vrot.lane.b32.xlu0 %v4662, 30
      %v9668 = vpop.permute.xlu0 %9667
      %9669 = vrot.lane.b32.xlu0 %v4663, 30
      %v9670 = vpop.permute.xlu0 %9669
      %9671 = vrot.lane.b32.xlu0 %v4664, 30
      %v9672 = vpop.permute.xlu0 %9671
      %9673 = vrot.lane.b32.xlu0 %v4665, 30
      %v9674 = vpop.permute.xlu0 %9673
      %9675 = vrot.lane.b32.xlu0 %v4666, 30
      %v9676 = vpop.permute.xlu0 %9675
      %9677 = vrot.lane.b32.xlu0 %v4667, 30
      %v9678 = vpop.permute.xlu0 %9677
      %9679 = vrot.lane.b32.xlu0 %v4668, 30
      %v9680 = vpop.permute.xlu0 %9679
      %9681 = vrot.lane.b32.xlu0 %v4669, 30
      %v9682 = vpop.permute.xlu0 %9681
      %9683 = vrot.lane.b32.xlu0 %v4670, 30
      %v9684 = vpop.permute.xlu0 %9683
      %9685 = vrot.lane.b32.xlu0 %v4671, 30
      %v9686 = vpop.permute.xlu0 %9685
      %9687 = vrot.lane.b32.xlu0 %v4672, 30
      %v9688 = vpop.permute.xlu0 %9687
      %9689 = vrot.lane.b32.xlu0 %v4673, 30
      %v9690 = vpop.permute.xlu0 %9689
      %9691 = vrot.lane.b32.xlu0 %v4674, 30
      %v9692 = vpop.permute.xlu0 %9691
      %9693 = vrot.lane.b32.xlu0 %v4675, 30
      %v9694 = vpop.permute.xlu0 %9693
      %9695 = vrot.lane.b32.xlu0 %v4676, 30
      %v9696 = vpop.permute.xlu0 %9695
      %9697 = vrot.lane.b32.xlu0 %v4677, 30
      %v9698 = vpop.permute.xlu0 %9697
      %9699 = vrot.lane.b32.xlu0 %v4678, 30
      %v9700 = vpop.permute.xlu0 %9699
      %9701 = vrot.lane.b32.xlu0 %v4679, 30
      %v9702 = vpop.permute.xlu0 %9701
      %9703 = vrot.lane.b32.xlu0 %v4680, 30
      %v9704 = vpop.permute.xlu0 %9703
      %9705 = vrot.lane.b32.xlu0 %v4681, 30
      %v9706 = vpop.permute.xlu0 %9705
      %9707 = vrot.lane.b32.xlu0 %v4682, 30
      %v9708 = vpop.permute.xlu0 %9707
      %9709 = vrot.lane.b32.xlu0 %v4683, 30
      %v9710 = vpop.permute.xlu0 %9709
      %9711 = vrot.lane.b32.xlu0 %v4684, 30
      %v9712 = vpop.permute.xlu0 %9711
      %9713 = vrot.lane.b32.xlu0 %v4685, 30
      %v9714 = vpop.permute.xlu0 %9713
      %9715 = vrot.lane.b32.xlu0 %v4686, 30
      %v9716 = vpop.permute.xlu0 %9715
      %9717 = vrot.lane.b32.xlu0 %v4687, 30
      %v9718 = vpop.permute.xlu0 %9717
      %9719 = vrot.lane.b32.xlu0 %v4688, 30
      %v9720 = vpop.permute.xlu0 %9719
      %vm9721 = vcmask 244736
      %v9722 = vsel %vm9721, %v9666, %v9668
      %v9723 = vsel %vm9721, %v9668, %v9670
      %v9724 = vsel %vm9721, %v9670, %v9672
      %v9725 = vsel %vm9721, %v9674, %v9676
      %v9726 = vsel %vm9721, %v9676, %v9678
      %v9727 = vsel %vm9721, %v9678, %v9680
      %v9728 = vsel %vm9721, %v9682, %v9684
      %v9729 = vsel %vm9721, %v9684, %v9686
      %v9730 = vsel %vm9721, %v9686, %v9688
      %v9731 = vsel %vm9721, %v9690, %v9692
      %v9732 = vsel %vm9721, %v9692, %v9694
      %v9733 = vsel %vm9721, %v9694, %v9696
      %v9734 = vsel %vm9721, %v9698, %v9700
      %v9735 = vsel %vm9721, %v9700, %v9702
      %v9736 = vsel %vm9721, %v9702, %v9704
      %v9737 = vsel %vm9721, %v9706, %v9708
      %v9738 = vsel %vm9721, %v9708, %v9710
      %v9739 = vsel %vm9721, %v9710, %v9712
      %v9740 = vsel %vm9721, %v9714, %v9716
      %v9741 = vsel %vm9721, %v9716, %v9718
      %v9742 = vsel %vm9721, %v9718, %v9720
      %v9765 = vsel %vm968, %v9664, 0
      %9767 = vmatprep.subr.mxu0 0.0
      %9768 = vmatpush1.msra.mxu0 0.0
      %9769 = vmatprep.subr.mxu0 0.0
      %9770 = vmatpush1.msra.mxu0 0.0
      %9771 = vmatprep.subr.mxu0 0.0
      %9772 = vmatpush1.msra.mxu0 0.0
      %9773 = vmatprep.subr.mxu0 0.0
      %9774 = vmatpush1.msra.mxu0 0.0
      %9775 = vmatprep.subr.mxu0 0.0
      %9776 = vmatpush1.msra.mxu0 0.0
      %9777 = vmatprep.subr.mxu0 0.0
      %9778 = vmatpush1.msra.mxu0 0.0
      %9779 = vmatprep.subr.mxu0 0.0
      %9780 = vmatpush1.msra.mxu0 0.0
      %9781 = vmatprep.subr.mxu0 0.0
      %9782 = vmatpush1.msra.mxu0 0.0
      %9783 = vmatprep.subr.mxu0 0.0
      %9784 = vmatpush1.msra.mxu0 0.0
      %9785 = vmatprep.subr.mxu0 %v9741
      %9786 = vmatpush1.msra.mxu0 %v9740
      %9787 = vmatprep.subr.mxu0 %v9738
      %9788 = vmatpush1.msra.mxu0 %v9737
      %9789 = vmatprep.subr.mxu0 %v9735
      %9790 = vmatpush1.msra.mxu0 %v9734
      %9791 = vmatprep.subr.mxu0 %v9732
      %9792 = vmatpush1.msra.mxu0 %v9731
      %9793 = vmatprep.subr.mxu0 %v9729
      %9794 = vmatpush1.msra.mxu0 %v9728
      %9795 = vmatprep.subr.mxu0 %v9726
      %9796 = vmatpush1.msra.mxu0 %v9725
      %9797 = vmatprep.subr.mxu0 %v9723
      %9798 = vmatpush1.msra.mxu0 %v9722
      %9799 = vmatprep.subr.mxu0 0.0
      %9800 = vmatpush2.msra.mxu0 0.0
      %9801 = vmatprep.subr.mxu0 0.0
      %9802 = vmatpush2.msra.mxu0 0.0
      %9803 = vmatprep.subr.mxu0 0.0
      %9804 = vmatpush2.msra.mxu0 0.0
      %9805 = vmatprep.subr.mxu0 0.0
      %9806 = vmatpush2.msra.mxu0 0.0
      %9807 = vmatprep.subr.mxu0 0.0
      %9808 = vmatpush2.msra.mxu0 0.0
      %9809 = vmatprep.subr.mxu0 0.0
      %9810 = vmatpush2.msra.mxu0 0.0
      %9811 = vmatprep.subr.mxu0 0.0
      %9812 = vmatpush2.msra.mxu0 0.0
      %9813 = vmatprep.subr.mxu0 0.0
      %9814 = vmatpush2.msra.mxu0 0.0
      %9815 = vmatprep.subr.mxu0 0.0
      %9816 = vmatpush2.msra.mxu0 0.0
      %9817 = vmatprep.subr.mxu0 0.0
      %9818 = vmatpush2.msra.mxu0 0.0
      %9819 = vmatprep.subr.mxu0 0.0
      %9820 = vmatpush2.msra.mxu0 0.0
      %9821 = vmatprep.subr.mxu0 0.0
      %9822 = vmatpush2.msra.mxu0 0.0
      %9823 = vmatprep.subr.mxu0 0.0
      %9824 = vmatpush2.msra.mxu0 0.0
      %9825 = vmatprep.subr.mxu0 0.0
      %9826 = vmatpush2.msra.mxu0 0.0
      %9827 = vmatprep.subr.mxu0 0.0
      %9828 = vmatpush2.msra.mxu0 0.0
      %9829 = vmatprep.subr.mxu0 0.0
      %9830 = vmatpush2.msra.mxu0 0.0
      %9831 = vmatprep.mubr.f32.mxu0 0.0
      %9832 = vmatmul.mubr.f32.gmra.mxu0 %v9765
      %v9833 = vpop.f32.mrf.mxu0
      %v9834 = vadd.f32 0.0, %v9833
      %v9835 = vpop.f32.mrf.mxu0
      %v9836 = vadd.f32 0.0, %v9835
      %9837 = vdwg.mxu0
      %9838 = vmatprep.subr.mxu0 0.0
      %9839 = vmatpush1.msra.mxu0 0.0
      %9840 = vmatprep.subr.mxu0 0.0
      %9841 = vmatpush1.msra.mxu0 0.0
      %9842 = vmatprep.subr.mxu0 0.0
      %9843 = vmatpush1.msra.mxu0 0.0
      %9844 = vmatprep.subr.mxu0 0.0
      %9845 = vmatpush1.msra.mxu0 0.0
      %9846 = vmatprep.subr.mxu0 0.0
      %9847 = vmatpush1.msra.mxu0 0.0
      %9848 = vmatprep.subr.mxu0 0.0
      %9849 = vmatpush1.msra.mxu0 0.0
      %9850 = vmatprep.subr.mxu0 0.0
      %9851 = vmatpush1.msra.mxu0 0.0
      %9852 = vmatprep.subr.mxu0 0.0
      %9853 = vmatpush1.msra.mxu0 0.0
      %9854 = vmatprep.subr.mxu0 0.0
      %9855 = vmatpush1.msra.mxu0 0.0
      %9856 = vmatprep.subr.mxu0 0.0
      %9857 = vmatpush1.msra.mxu0 %v9742
      %9858 = vmatprep.subr.mxu0 0.0
      %9859 = vmatpush1.msra.mxu0 %v9739
      %9860 = vmatprep.subr.mxu0 0.0
      %9861 = vmatpush1.msra.mxu0 %v9736
      %9862 = vmatprep.subr.mxu0 0.0
      %9863 = vmatpush1.msra.mxu0 %v9733
      %9864 = vmatprep.subr.mxu0 0.0
      %9865 = vmatpush1.msra.mxu0 %v9730
      %9866 = vmatprep.subr.mxu0 0.0
      %9867 = vmatpush1.msra.mxu0 %v9727
      %9868 = vmatprep.subr.mxu0 0.0
      %9869 = vmatpush1.msra.mxu0 %v9724
      %9870 = vmatprep.subr.mxu0 0.0
      %9871 = vmatpush2.msra.mxu0 0.0
      %9872 = vmatprep.subr.mxu0 0.0
      %9873 = vmatpush2.msra.mxu0 0.0
      %9874 = vmatprep.subr.mxu0 0.0
      %9875 = vmatpush2.msra.mxu0 0.0
      %9876 = vmatprep.subr.mxu0 0.0
      %9877 = vmatpush2.msra.mxu0 0.0
      %9878 = vmatprep.subr.mxu0 0.0
      %9879 = vmatpush2.msra.mxu0 0.0
      %9880 = vmatprep.subr.mxu0 0.0
      %9881 = vmatpush2.msra.mxu0 0.0
      %9882 = vmatprep.subr.mxu0 0.0
      %9883 = vmatpush2.msra.mxu0 0.0
      %9884 = vmatprep.subr.mxu0 0.0
      %9885 = vmatpush2.msra.mxu0 0.0
      %9886 = vmatprep.subr.mxu0 0.0
      %9887 = vmatpush2.msra.mxu0 0.0
      %9888 = vmatprep.subr.mxu0 0.0
      %9889 = vmatpush2.msra.mxu0 0.0
      %9890 = vmatprep.subr.mxu0 0.0
      %9891 = vmatpush2.msra.mxu0 0.0
      %9892 = vmatprep.subr.mxu0 0.0
      %9893 = vmatpush2.msra.mxu0 0.0
      %9894 = vmatprep.subr.mxu0 0.0
      %9895 = vmatpush2.msra.mxu0 0.0
      %9896 = vmatprep.subr.mxu0 0.0
      %9897 = vmatpush2.msra.mxu0 0.0
      %9898 = vmatprep.subr.mxu0 0.0
      %9899 = vmatpush2.msra.mxu0 0.0
      %9900 = vmatprep.subr.mxu0 0.0
      %9901 = vmatpush2.msra.mxu0 0.0
      %9902 = vmatprep.mubr.f32.mxu0 0.0
      %9903 = vmatmul.mubr.f32.gmra.mxu0 %v9765
      %v9904 = vpop.f32.mrf.mxu0
      %v9905 = vadd.f32 0.0, %v9904
      %v9906 = vpop.f32.mrf.mxu0
      %9907 = vdwg.mxu0
      %v9908 = vadd.f32 %v9660, %v9834
      %v9909 = vadd.f32 %v9661, %v9836
      %v9910 = vadd.f32 %v9662, %v9905
      %s9911 = scalar_lea.vmem %s14, 84
      %v9912 = vld [vmem:[%s9911] sm:$0xf]
      %9913 = vrot.lane.b32.xlu0 %v4661, 29
      %v9914 = vpop.permute.xlu0 %9913
      %9915 = vrot.lane.b32.xlu0 %v4662, 29
      %v9916 = vpop.permute.xlu0 %9915
      %9917 = vrot.lane.b32.xlu0 %v4663, 29
      %v9918 = vpop.permute.xlu0 %9917
      %9919 = vrot.lane.b32.xlu0 %v4664, 29
      %v9920 = vpop.permute.xlu0 %9919
      %9921 = vrot.lane.b32.xlu0 %v4665, 29
      %v9922 = vpop.permute.xlu0 %9921
      %9923 = vrot.lane.b32.xlu0 %v4666, 29
      %v9924 = vpop.permute.xlu0 %9923
      %9925 = vrot.lane.b32.xlu0 %v4667, 29
      %v9926 = vpop.permute.xlu0 %9925
      %9927 = vrot.lane.b32.xlu0 %v4668, 29
      %v9928 = vpop.permute.xlu0 %9927
      %9929 = vrot.lane.b32.xlu0 %v4669, 29
      %v9930 = vpop.permute.xlu0 %9929
      %9931 = vrot.lane.b32.xlu0 %v4670, 29
      %v9932 = vpop.permute.xlu0 %9931
      %9933 = vrot.lane.b32.xlu0 %v4671, 29
      %v9934 = vpop.permute.xlu0 %9933
      %9935 = vrot.lane.b32.xlu0 %v4672, 29
      %v9936 = vpop.permute.xlu0 %9935
      %9937 = vrot.lane.b32.xlu0 %v4673, 29
      %v9938 = vpop.permute.xlu0 %9937
      %9939 = vrot.lane.b32.xlu0 %v4674, 29
      %v9940 = vpop.permute.xlu0 %9939
      %9941 = vrot.lane.b32.xlu0 %v4675, 29
      %v9942 = vpop.permute.xlu0 %9941
      %9943 = vrot.lane.b32.xlu0 %v4676, 29
      %v9944 = vpop.permute.xlu0 %9943
      %9945 = vrot.lane.b32.xlu0 %v4677, 29
      %v9946 = vpop.permute.xlu0 %9945
      %9947 = vrot.lane.b32.xlu0 %v4678, 29
      %v9948 = vpop.permute.xlu0 %9947
      %9949 = vrot.lane.b32.xlu0 %v4679, 29
      %v9950 = vpop.permute.xlu0 %9949
      %9951 = vrot.lane.b32.xlu0 %v4680, 29
      %v9952 = vpop.permute.xlu0 %9951
      %9953 = vrot.lane.b32.xlu0 %v4681, 29
      %v9954 = vpop.permute.xlu0 %9953
      %9955 = vrot.lane.b32.xlu0 %v4682, 29
      %v9956 = vpop.permute.xlu0 %9955
      %9957 = vrot.lane.b32.xlu0 %v4683, 29
      %v9958 = vpop.permute.xlu0 %9957
      %9959 = vrot.lane.b32.xlu0 %v4684, 29
      %v9960 = vpop.permute.xlu0 %9959
      %9961 = vrot.lane.b32.xlu0 %v4685, 29
      %v9962 = vpop.permute.xlu0 %9961
      %9963 = vrot.lane.b32.xlu0 %v4686, 29
      %v9964 = vpop.permute.xlu0 %9963
      %9965 = vrot.lane.b32.xlu0 %v4687, 29
      %v9966 = vpop.permute.xlu0 %9965
      %9967 = vrot.lane.b32.xlu0 %v4688, 29
      %v9968 = vpop.permute.xlu0 %9967
      %vm9969 = vcmask 236544
      %v9970 = vsel %vm9969, %v9914, %v9916
      %v9971 = vsel %vm9969, %v9916, %v9918
      %v9972 = vsel %vm9969, %v9918, %v9920
      %v9973 = vsel %vm9969, %v9922, %v9924
      %v9974 = vsel %vm9969, %v9924, %v9926
      %v9975 = vsel %vm9969, %v9926, %v9928
      %v9976 = vsel %vm9969, %v9930, %v9932
      %v9977 = vsel %vm9969, %v9932, %v9934
      %v9978 = vsel %vm9969, %v9934, %v9936
      %v9979 = vsel %vm9969, %v9938, %v9940
      %v9980 = vsel %vm9969, %v9940, %v9942
      %v9981 = vsel %vm9969, %v9942, %v9944
      %v9982 = vsel %vm9969, %v9946, %v9948
      %v9983 = vsel %vm9969, %v9948, %v9950
      %v9984 = vsel %vm9969, %v9950, %v9952
      %v9985 = vsel %vm9969, %v9954, %v9956
      %v9986 = vsel %vm9969, %v9956, %v9958
      %v9987 = vsel %vm9969, %v9958, %v9960
      %v9988 = vsel %vm9969, %v9962, %v9964
      %v9989 = vsel %vm9969, %v9964, %v9966
      %v9990 = vsel %vm9969, %v9966, %v9968
      %v10013 = vsel %vm968, %v9912, 0
      %10015 = vmatprep.subr.mxu0 0.0
      %10016 = vmatpush1.msra.mxu0 0.0
      %10017 = vmatprep.subr.mxu0 0.0
      %10018 = vmatpush1.msra.mxu0 0.0
      %10019 = vmatprep.subr.mxu0 0.0
      %10020 = vmatpush1.msra.mxu0 0.0
      %10021 = vmatprep.subr.mxu0 0.0
      %10022 = vmatpush1.msra.mxu0 0.0
      %10023 = vmatprep.subr.mxu0 0.0
      %10024 = vmatpush1.msra.mxu0 0.0
      %10025 = vmatprep.subr.mxu0 0.0
      %10026 = vmatpush1.msra.mxu0 0.0
      %10027 = vmatprep.subr.mxu0 0.0
      %10028 = vmatpush1.msra.mxu0 0.0
      %10029 = vmatprep.subr.mxu0 0.0
      %10030 = vmatpush1.msra.mxu0 0.0
      %10031 = vmatprep.subr.mxu0 0.0
      %10032 = vmatpush1.msra.mxu0 0.0
      %10033 = vmatprep.subr.mxu0 %v9989
      %10034 = vmatpush1.msra.mxu0 %v9988
      %10035 = vmatprep.subr.mxu0 %v9986
      %10036 = vmatpush1.msra.mxu0 %v9985
      %10037 = vmatprep.subr.mxu0 %v9983
      %10038 = vmatpush1.msra.mxu0 %v9982
      %10039 = vmatprep.subr.mxu0 %v9980
      %10040 = vmatpush1.msra.mxu0 %v9979
      %10041 = vmatprep.subr.mxu0 %v9977
      %10042 = vmatpush1.msra.mxu0 %v9976
      %10043 = vmatprep.subr.mxu0 %v9974
      %10044 = vmatpush1.msra.mxu0 %v9973
      %10045 = vmatprep.subr.mxu0 %v9971
      %10046 = vmatpush1.msra.mxu0 %v9970
      %10047 = vmatprep.subr.mxu0 0.0
      %10048 = vmatpush2.msra.mxu0 0.0
      %10049 = vmatprep.subr.mxu0 0.0
      %10050 = vmatpush2.msra.mxu0 0.0
      %10051 = vmatprep.subr.mxu0 0.0
      %10052 = vmatpush2.msra.mxu0 0.0
      %10053 = vmatprep.subr.mxu0 0.0
      %10054 = vmatpush2.msra.mxu0 0.0
      %10055 = vmatprep.subr.mxu0 0.0
      %10056 = vmatpush2.msra.mxu0 0.0
      %10057 = vmatprep.subr.mxu0 0.0
      %10058 = vmatpush2.msra.mxu0 0.0
      %10059 = vmatprep.subr.mxu0 0.0
      %10060 = vmatpush2.msra.mxu0 0.0
      %10061 = vmatprep.subr.mxu0 0.0
      %10062 = vmatpush2.msra.mxu0 0.0
      %10063 = vmatprep.subr.mxu0 0.0
      %10064 = vmatpush2.msra.mxu0 0.0
      %10065 = vmatprep.subr.mxu0 0.0
      %10066 = vmatpush2.msra.mxu0 0.0
      %10067 = vmatprep.subr.mxu0 0.0
      %10068 = vmatpush2.msra.mxu0 0.0
      %10069 = vmatprep.subr.mxu0 0.0
      %10070 = vmatpush2.msra.mxu0 0.0
      %10071 = vmatprep.subr.mxu0 0.0
      %10072 = vmatpush2.msra.mxu0 0.0
      %10073 = vmatprep.subr.mxu0 0.0
      %10074 = vmatpush2.msra.mxu0 0.0
      %10075 = vmatprep.subr.mxu0 0.0
      %10076 = vmatpush2.msra.mxu0 0.0
      %10077 = vmatprep.subr.mxu0 0.0
      %10078 = vmatpush2.msra.mxu0 0.0
      %10079 = vmatprep.mubr.f32.mxu0 0.0
      %10080 = vmatmul.mubr.f32.gmra.mxu0 %v10013
      %v10081 = vpop.f32.mrf.mxu0
      %v10082 = vadd.f32 0.0, %v10081
      %v10083 = vpop.f32.mrf.mxu0
      %v10084 = vadd.f32 0.0, %v10083
      %10085 = vdwg.mxu0
      %10086 = vmatprep.subr.mxu0 0.0
      %10087 = vmatpush1.msra.mxu0 0.0
      %10088 = vmatprep.subr.mxu0 0.0
      %10089 = vmatpush1.msra.mxu0 0.0
      %10090 = vmatprep.subr.mxu0 0.0
      %10091 = vmatpush1.msra.mxu0 0.0
      %10092 = vmatprep.subr.mxu0 0.0
      %10093 = vmatpush1.msra.mxu0 0.0
      %10094 = vmatprep.subr.mxu0 0.0
      %10095 = vmatpush1.msra.mxu0 0.0
      %10096 = vmatprep.subr.mxu0 0.0
      %10097 = vmatpush1.msra.mxu0 0.0
      %10098 = vmatprep.subr.mxu0 0.0
      %10099 = vmatpush1.msra.mxu0 0.0
      %10100 = vmatprep.subr.mxu0 0.0
      %10101 = vmatpush1.msra.mxu0 0.0
      %10102 = vmatprep.subr.mxu0 0.0
      %10103 = vmatpush1.msra.mxu0 0.0
      %10104 = vmatprep.subr.mxu0 0.0
      %10105 = vmatpush1.msra.mxu0 %v9990
      %10106 = vmatprep.subr.mxu0 0.0
      %10107 = vmatpush1.msra.mxu0 %v9987
      %10108 = vmatprep.subr.mxu0 0.0
      %10109 = vmatpush1.msra.mxu0 %v9984
      %10110 = vmatprep.subr.mxu0 0.0
      %10111 = vmatpush1.msra.mxu0 %v9981
      %10112 = vmatprep.subr.mxu0 0.0
      %10113 = vmatpush1.msra.mxu0 %v9978
      %10114 = vmatprep.subr.mxu0 0.0
      %10115 = vmatpush1.msra.mxu0 %v9975
      %10116 = vmatprep.subr.mxu0 0.0
      %10117 = vmatpush1.msra.mxu0 %v9972
      %10118 = vmatprep.subr.mxu0 0.0
      %10119 = vmatpush2.msra.mxu0 0.0
      %10120 = vmatprep.subr.mxu0 0.0
      %10121 = vmatpush2.msra.mxu0 0.0
      %10122 = vmatprep.subr.mxu0 0.0
      %10123 = vmatpush2.msra.mxu0 0.0
      %10124 = vmatprep.subr.mxu0 0.0
      %10125 = vmatpush2.msra.mxu0 0.0
      %10126 = vmatprep.subr.mxu0 0.0
      %10127 = vmatpush2.msra.mxu0 0.0
      %10128 = vmatprep.subr.mxu0 0.0
      %10129 = vmatpush2.msra.mxu0 0.0
      %10130 = vmatprep.subr.mxu0 0.0
      %10131 = vmatpush2.msra.mxu0 0.0
      %10132 = vmatprep.subr.mxu0 0.0
      %10133 = vmatpush2.msra.mxu0 0.0
      %10134 = vmatprep.subr.mxu0 0.0
      %10135 = vmatpush2.msra.mxu0 0.0
      %10136 = vmatprep.subr.mxu0 0.0
      %10137 = vmatpush2.msra.mxu0 0.0
      %10138 = vmatprep.subr.mxu0 0.0
      %10139 = vmatpush2.msra.mxu0 0.0
      %10140 = vmatprep.subr.mxu0 0.0
      %10141 = vmatpush2.msra.mxu0 0.0
      %10142 = vmatprep.subr.mxu0 0.0
      %10143 = vmatpush2.msra.mxu0 0.0
      %10144 = vmatprep.subr.mxu0 0.0
      %10145 = vmatpush2.msra.mxu0 0.0
      %10146 = vmatprep.subr.mxu0 0.0
      %10147 = vmatpush2.msra.mxu0 0.0
      %10148 = vmatprep.subr.mxu0 0.0
      %10149 = vmatpush2.msra.mxu0 0.0
      %10150 = vmatprep.mubr.f32.mxu0 0.0
      %10151 = vmatmul.mubr.f32.gmra.mxu0 %v10013
      %v10152 = vpop.f32.mrf.mxu0
      %v10153 = vadd.f32 0.0, %v10152
      %v10154 = vpop.f32.mrf.mxu0
      %10155 = vdwg.mxu0
      %v10156 = vadd.f32 %v9908, %v10082
      %v10157 = vadd.f32 %v9909, %v10084
      %v10158 = vadd.f32 %v9910, %v10153
      %s10159 = scalar_lea.vmem %s14, 88
      %v10160 = vld [vmem:[%s10159] sm:$0xf]
      %10161 = vrot.lane.b32.xlu0 %v4661, 28
      %v10162 = vpop.permute.xlu0 %10161
      %10163 = vrot.lane.b32.xlu0 %v4662, 28
      %v10164 = vpop.permute.xlu0 %10163
      %10165 = vrot.lane.b32.xlu0 %v4663, 28
      %v10166 = vpop.permute.xlu0 %10165
      %10167 = vrot.lane.b32.xlu0 %v4664, 28
      %v10168 = vpop.permute.xlu0 %10167
      %10169 = vrot.lane.b32.xlu0 %v4665, 28
      %v10170 = vpop.permute.xlu0 %10169
      %10171 = vrot.lane.b32.xlu0 %v4666, 28
      %v10172 = vpop.permute.xlu0 %10171
      %10173 = vrot.lane.b32.xlu0 %v4667, 28
      %v10174 = vpop.permute.xlu0 %10173
      %10175 = vrot.lane.b32.xlu0 %v4668, 28
      %v10176 = vpop.permute.xlu0 %10175
      %10177 = vrot.lane.b32.xlu0 %v4669, 28
      %v10178 = vpop.permute.xlu0 %10177
      %10179 = vrot.lane.b32.xlu0 %v4670, 28
      %v10180 = vpop.permute.xlu0 %10179
      %10181 = vrot.lane.b32.xlu0 %v4671, 28
      %v10182 = vpop.permute.xlu0 %10181
      %10183 = vrot.lane.b32.xlu0 %v4672, 28
      %v10184 = vpop.permute.xlu0 %10183
      %10185 = vrot.lane.b32.xlu0 %v4673, 28
      %v10186 = vpop.permute.xlu0 %10185
      %10187 = vrot.lane.b32.xlu0 %v4674, 28
      %v10188 = vpop.permute.xlu0 %10187
      %10189 = vrot.lane.b32.xlu0 %v4675, 28
      %v10190 = vpop.permute.xlu0 %10189
      %10191 = vrot.lane.b32.xlu0 %v4676, 28
      %v10192 = vpop.permute.xlu0 %10191
      %10193 = vrot.lane.b32.xlu0 %v4677, 28
      %v10194 = vpop.permute.xlu0 %10193
      %10195 = vrot.lane.b32.xlu0 %v4678, 28
      %v10196 = vpop.permute.xlu0 %10195
      %10197 = vrot.lane.b32.xlu0 %v4679, 28
      %v10198 = vpop.permute.xlu0 %10197
      %10199 = vrot.lane.b32.xlu0 %v4680, 28
      %v10200 = vpop.permute.xlu0 %10199
      %10201 = vrot.lane.b32.xlu0 %v4681, 28
      %v10202 = vpop.permute.xlu0 %10201
      %10203 = vrot.lane.b32.xlu0 %v4682, 28
      %v10204 = vpop.permute.xlu0 %10203
      %10205 = vrot.lane.b32.xlu0 %v4683, 28
      %v10206 = vpop.permute.xlu0 %10205
      %10207 = vrot.lane.b32.xlu0 %v4684, 28
      %v10208 = vpop.permute.xlu0 %10207
      %10209 = vrot.lane.b32.xlu0 %v4685, 28
      %v10210 = vpop.permute.xlu0 %10209
      %10211 = vrot.lane.b32.xlu0 %v4686, 28
      %v10212 = vpop.permute.xlu0 %10211
      %10213 = vrot.lane.b32.xlu0 %v4687, 28
      %v10214 = vpop.permute.xlu0 %10213
      %10215 = vrot.lane.b32.xlu0 %v4688, 28
      %v10216 = vpop.permute.xlu0 %10215
      %vm10217 = vcmask 228352
      %v10218 = vsel %vm10217, %v10162, %v10164
      %v10219 = vsel %vm10217, %v10164, %v10166
      %v10220 = vsel %vm10217, %v10166, %v10168
      %v10221 = vsel %vm10217, %v10170, %v10172
      %v10222 = vsel %vm10217, %v10172, %v10174
      %v10223 = vsel %vm10217, %v10174, %v10176
      %v10224 = vsel %vm10217, %v10178, %v10180
      %v10225 = vsel %vm10217, %v10180, %v10182
      %v10226 = vsel %vm10217, %v10182, %v10184
      %v10227 = vsel %vm10217, %v10186, %v10188
      %v10228 = vsel %vm10217, %v10188, %v10190
      %v10229 = vsel %vm10217, %v10190, %v10192
      %v10230 = vsel %vm10217, %v10194, %v10196
      %v10231 = vsel %vm10217, %v10196, %v10198
      %v10232 = vsel %vm10217, %v10198, %v10200
      %v10233 = vsel %vm10217, %v10202, %v10204
      %v10234 = vsel %vm10217, %v10204, %v10206
      %v10235 = vsel %vm10217, %v10206, %v10208
      %v10236 = vsel %vm10217, %v10210, %v10212
      %v10237 = vsel %vm10217, %v10212, %v10214
      %v10238 = vsel %vm10217, %v10214, %v10216
      %v10261 = vsel %vm968, %v10160, 0
      %10263 = vmatprep.subr.mxu0 0.0
      %10264 = vmatpush1.msra.mxu0 0.0
      %10265 = vmatprep.subr.mxu0 0.0
      %10266 = vmatpush1.msra.mxu0 0.0
      %10267 = vmatprep.subr.mxu0 0.0
      %10268 = vmatpush1.msra.mxu0 0.0
      %10269 = vmatprep.subr.mxu0 0.0
      %10270 = vmatpush1.msra.mxu0 0.0
      %10271 = vmatprep.subr.mxu0 0.0
      %10272 = vmatpush1.msra.mxu0 0.0
      %10273 = vmatprep.subr.mxu0 0.0
      %10274 = vmatpush1.msra.mxu0 0.0
      %10275 = vmatprep.subr.mxu0 0.0
      %10276 = vmatpush1.msra.mxu0 0.0
      %10277 = vmatprep.subr.mxu0 0.0
      %10278 = vmatpush1.msra.mxu0 0.0
      %10279 = vmatprep.subr.mxu0 0.0
      %10280 = vmatpush1.msra.mxu0 0.0
      %10281 = vmatprep.subr.mxu0 %v10237
      %10282 = vmatpush1.msra.mxu0 %v10236
      %10283 = vmatprep.subr.mxu0 %v10234
      %10284 = vmatpush1.msra.mxu0 %v10233
      %10285 = vmatprep.subr.mxu0 %v10231
      %10286 = vmatpush1.msra.mxu0 %v10230
      %10287 = vmatprep.subr.mxu0 %v10228
      %10288 = vmatpush1.msra.mxu0 %v10227
      %10289 = vmatprep.subr.mxu0 %v10225
      %10290 = vmatpush1.msra.mxu0 %v10224
      %10291 = vmatprep.subr.mxu0 %v10222
      %10292 = vmatpush1.msra.mxu0 %v10221
      %10293 = vmatprep.subr.mxu0 %v10219
      %10294 = vmatpush1.msra.mxu0 %v10218
      %10295 = vmatprep.subr.mxu0 0.0
      %10296 = vmatpush2.msra.mxu0 0.0
      %10297 = vmatprep.subr.mxu0 0.0
      %10298 = vmatpush2.msra.mxu0 0.0
      %10299 = vmatprep.subr.mxu0 0.0
      %10300 = vmatpush2.msra.mxu0 0.0
      %10301 = vmatprep.subr.mxu0 0.0
      %10302 = vmatpush2.msra.mxu0 0.0
      %10303 = vmatprep.subr.mxu0 0.0
      %10304 = vmatpush2.msra.mxu0 0.0
      %10305 = vmatprep.subr.mxu0 0.0
      %10306 = vmatpush2.msra.mxu0 0.0
      %10307 = vmatprep.subr.mxu0 0.0
      %10308 = vmatpush2.msra.mxu0 0.0
      %10309 = vmatprep.subr.mxu0 0.0
      %10310 = vmatpush2.msra.mxu0 0.0
      %10311 = vmatprep.subr.mxu0 0.0
      %10312 = vmatpush2.msra.mxu0 0.0
      %10313 = vmatprep.subr.mxu0 0.0
      %10314 = vmatpush2.msra.mxu0 0.0
      %10315 = vmatprep.subr.mxu0 0.0
      %10316 = vmatpush2.msra.mxu0 0.0
      %10317 = vmatprep.subr.mxu0 0.0
      %10318 = vmatpush2.msra.mxu0 0.0
      %10319 = vmatprep.subr.mxu0 0.0
      %10320 = vmatpush2.msra.mxu0 0.0
      %10321 = vmatprep.subr.mxu0 0.0
      %10322 = vmatpush2.msra.mxu0 0.0
      %10323 = vmatprep.subr.mxu0 0.0
      %10324 = vmatpush2.msra.mxu0 0.0
      %10325 = vmatprep.subr.mxu0 0.0
      %10326 = vmatpush2.msra.mxu0 0.0
      %10327 = vmatprep.mubr.f32.mxu0 0.0
      %10328 = vmatmul.mubr.f32.gmra.mxu0 %v10261
      %v10329 = vpop.f32.mrf.mxu0
      %v10330 = vadd.f32 0.0, %v10329
      %v10331 = vpop.f32.mrf.mxu0
      %v10332 = vadd.f32 0.0, %v10331
      %10333 = vdwg.mxu0
      %10334 = vmatprep.subr.mxu0 0.0
      %10335 = vmatpush1.msra.mxu0 0.0
      %10336 = vmatprep.subr.mxu0 0.0
      %10337 = vmatpush1.msra.mxu0 0.0
      %10338 = vmatprep.subr.mxu0 0.0
      %10339 = vmatpush1.msra.mxu0 0.0
      %10340 = vmatprep.subr.mxu0 0.0
      %10341 = vmatpush1.msra.mxu0 0.0
      %10342 = vmatprep.subr.mxu0 0.0
      %10343 = vmatpush1.msra.mxu0 0.0
      %10344 = vmatprep.subr.mxu0 0.0
      %10345 = vmatpush1.msra.mxu0 0.0
      %10346 = vmatprep.subr.mxu0 0.0
      %10347 = vmatpush1.msra.mxu0 0.0
      %10348 = vmatprep.subr.mxu0 0.0
      %10349 = vmatpush1.msra.mxu0 0.0
      %10350 = vmatprep.subr.mxu0 0.0
      %10351 = vmatpush1.msra.mxu0 0.0
      %10352 = vmatprep.subr.mxu0 0.0
      %10353 = vmatpush1.msra.mxu0 %v10238
      %10354 = vmatprep.subr.mxu0 0.0
      %10355 = vmatpush1.msra.mxu0 %v10235
      %10356 = vmatprep.subr.mxu0 0.0
      %10357 = vmatpush1.msra.mxu0 %v10232
      %10358 = vmatprep.subr.mxu0 0.0
      %10359 = vmatpush1.msra.mxu0 %v10229
      %10360 = vmatprep.subr.mxu0 0.0
      %10361 = vmatpush1.msra.mxu0 %v10226
      %10362 = vmatprep.subr.mxu0 0.0
      %10363 = vmatpush1.msra.mxu0 %v10223
      %10364 = vmatprep.subr.mxu0 0.0
      %10365 = vmatpush1.msra.mxu0 %v10220
      %10366 = vmatprep.subr.mxu0 0.0
      %10367 = vmatpush2.msra.mxu0 0.0
      %10368 = vmatprep.subr.mxu0 0.0
      %10369 = vmatpush2.msra.mxu0 0.0
      %10370 = vmatprep.subr.mxu0 0.0
      %10371 = vmatpush2.msra.mxu0 0.0
      %10372 = vmatprep.subr.mxu0 0.0
      %10373 = vmatpush2.msra.mxu0 0.0
      %10374 = vmatprep.subr.mxu0 0.0
      %10375 = vmatpush2.msra.mxu0 0.0
      %10376 = vmatprep.subr.mxu0 0.0
      %10377 = vmatpush2.msra.mxu0 0.0
      %10378 = vmatprep.subr.mxu0 0.0
      %10379 = vmatpush2.msra.mxu0 0.0
      %10380 = vmatprep.subr.mxu0 0.0
      %10381 = vmatpush2.msra.mxu0 0.0
      %10382 = vmatprep.subr.mxu0 0.0
      %10383 = vmatpush2.msra.mxu0 0.0
      %10384 = vmatprep.subr.mxu0 0.0
      %10385 = vmatpush2.msra.mxu0 0.0
      %10386 = vmatprep.subr.mxu0 0.0
      %10387 = vmatpush2.msra.mxu0 0.0
      %10388 = vmatprep.subr.mxu0 0.0
      %10389 = vmatpush2.msra.mxu0 0.0
      %10390 = vmatprep.subr.mxu0 0.0
      %10391 = vmatpush2.msra.mxu0 0.0
      %10392 = vmatprep.subr.mxu0 0.0
      %10393 = vmatpush2.msra.mxu0 0.0
      %10394 = vmatprep.subr.mxu0 0.0
      %10395 = vmatpush2.msra.mxu0 0.0
      %10396 = vmatprep.subr.mxu0 0.0
      %10397 = vmatpush2.msra.mxu0 0.0
      %10398 = vmatprep.mubr.f32.mxu0 0.0
      %10399 = vmatmul.mubr.f32.gmra.mxu0 %v10261
      %v10400 = vpop.f32.mrf.mxu0
      %v10401 = vadd.f32 0.0, %v10400
      %v10402 = vpop.f32.mrf.mxu0
      %10403 = vdwg.mxu0
      %v10404 = vadd.f32 %v10156, %v10330
      %v10405 = vadd.f32 %v10157, %v10332
      %v10406 = vadd.f32 %v10158, %v10401
      %s10407 = scalar_lea.vmem %s14, 92
      %v10408 = vld [vmem:[%s10407] sm:$0xf]
      %10409 = vrot.lane.b32.xlu0 %v4661, 27
      %v10410 = vpop.permute.xlu0 %10409
      %10411 = vrot.lane.b32.xlu0 %v4662, 27
      %v10412 = vpop.permute.xlu0 %10411
      %10413 = vrot.lane.b32.xlu0 %v4663, 27
      %v10414 = vpop.permute.xlu0 %10413
      %10415 = vrot.lane.b32.xlu0 %v4664, 27
      %v10416 = vpop.permute.xlu0 %10415
      %10417 = vrot.lane.b32.xlu0 %v4665, 27
      %v10418 = vpop.permute.xlu0 %10417
      %10419 = vrot.lane.b32.xlu0 %v4666, 27
      %v10420 = vpop.permute.xlu0 %10419
      %10421 = vrot.lane.b32.xlu0 %v4667, 27
      %v10422 = vpop.permute.xlu0 %10421
      %10423 = vrot.lane.b32.xlu0 %v4668, 27
      %v10424 = vpop.permute.xlu0 %10423
      %10425 = vrot.lane.b32.xlu0 %v4669, 27
      %v10426 = vpop.permute.xlu0 %10425
      %10427 = vrot.lane.b32.xlu0 %v4670, 27
      %v10428 = vpop.permute.xlu0 %10427
      %10429 = vrot.lane.b32.xlu0 %v4671, 27
      %v10430 = vpop.permute.xlu0 %10429
      %10431 = vrot.lane.b32.xlu0 %v4672, 27
      %v10432 = vpop.permute.xlu0 %10431
      %10433 = vrot.lane.b32.xlu0 %v4673, 27
      %v10434 = vpop.permute.xlu0 %10433
      %10435 = vrot.lane.b32.xlu0 %v4674, 27
      %v10436 = vpop.permute.xlu0 %10435
      %10437 = vrot.lane.b32.xlu0 %v4675, 27
      %v10438 = vpop.permute.xlu0 %10437
      %10439 = vrot.lane.b32.xlu0 %v4676, 27
      %v10440 = vpop.permute.xlu0 %10439
      %10441 = vrot.lane.b32.xlu0 %v4677, 27
      %v10442 = vpop.permute.xlu0 %10441
      %10443 = vrot.lane.b32.xlu0 %v4678, 27
      %v10444 = vpop.permute.xlu0 %10443
      %10445 = vrot.lane.b32.xlu0 %v4679, 27
      %v10446 = vpop.permute.xlu0 %10445
      %10447 = vrot.lane.b32.xlu0 %v4680, 27
      %v10448 = vpop.permute.xlu0 %10447
      %10449 = vrot.lane.b32.xlu0 %v4681, 27
      %v10450 = vpop.permute.xlu0 %10449
      %10451 = vrot.lane.b32.xlu0 %v4682, 27
      %v10452 = vpop.permute.xlu0 %10451
      %10453 = vrot.lane.b32.xlu0 %v4683, 27
      %v10454 = vpop.permute.xlu0 %10453
      %10455 = vrot.lane.b32.xlu0 %v4684, 27
      %v10456 = vpop.permute.xlu0 %10455
      %10457 = vrot.lane.b32.xlu0 %v4685, 27
      %v10458 = vpop.permute.xlu0 %10457
      %10459 = vrot.lane.b32.xlu0 %v4686, 27
      %v10460 = vpop.permute.xlu0 %10459
      %10461 = vrot.lane.b32.xlu0 %v4687, 27
      %v10462 = vpop.permute.xlu0 %10461
      %10463 = vrot.lane.b32.xlu0 %v4688, 27
      %v10464 = vpop.permute.xlu0 %10463
      %vm10465 = vcmask 220160
      %v10466 = vsel %vm10465, %v10410, %v10412
      %v10467 = vsel %vm10465, %v10412, %v10414
      %v10468 = vsel %vm10465, %v10414, %v10416
      %v10469 = vsel %vm10465, %v10418, %v10420
      %v10470 = vsel %vm10465, %v10420, %v10422
      %v10471 = vsel %vm10465, %v10422, %v10424
      %v10472 = vsel %vm10465, %v10426, %v10428
      %v10473 = vsel %vm10465, %v10428, %v10430
      %v10474 = vsel %vm10465, %v10430, %v10432
      %v10475 = vsel %vm10465, %v10434, %v10436
      %v10476 = vsel %vm10465, %v10436, %v10438
      %v10477 = vsel %vm10465, %v10438, %v10440
      %v10478 = vsel %vm10465, %v10442, %v10444
      %v10479 = vsel %vm10465, %v10444, %v10446
      %v10480 = vsel %vm10465, %v10446, %v10448
      %v10481 = vsel %vm10465, %v10450, %v10452
      %v10482 = vsel %vm10465, %v10452, %v10454
      %v10483 = vsel %vm10465, %v10454, %v10456
      %v10484 = vsel %vm10465, %v10458, %v10460
      %v10485 = vsel %vm10465, %v10460, %v10462
      %v10486 = vsel %vm10465, %v10462, %v10464
      %v10509 = vsel %vm968, %v10408, 0
      %10511 = vmatprep.subr.mxu0 0.0
      %10512 = vmatpush1.msra.mxu0 0.0
      %10513 = vmatprep.subr.mxu0 0.0
      %10514 = vmatpush1.msra.mxu0 0.0
      %10515 = vmatprep.subr.mxu0 0.0
      %10516 = vmatpush1.msra.mxu0 0.0
      %10517 = vmatprep.subr.mxu0 0.0
      %10518 = vmatpush1.msra.mxu0 0.0
      %10519 = vmatprep.subr.mxu0 0.0
      %10520 = vmatpush1.msra.mxu0 0.0
      %10521 = vmatprep.subr.mxu0 0.0
      %10522 = vmatpush1.msra.mxu0 0.0
      %10523 = vmatprep.subr.mxu0 0.0
      %10524 = vmatpush1.msra.mxu0 0.0
      %10525 = vmatprep.subr.mxu0 0.0
      %10526 = vmatpush1.msra.mxu0 0.0
      %10527 = vmatprep.subr.mxu0 0.0
      %10528 = vmatpush1.msra.mxu0 0.0
      %10529 = vmatprep.subr.mxu0 %v10485
      %10530 = vmatpush1.msra.mxu0 %v10484
      %10531 = vmatprep.subr.mxu0 %v10482
      %10532 = vmatpush1.msra.mxu0 %v10481
      %10533 = vmatprep.subr.mxu0 %v10479
      %10534 = vmatpush1.msra.mxu0 %v10478
      %10535 = vmatprep.subr.mxu0 %v10476
      %10536 = vmatpush1.msra.mxu0 %v10475
      %10537 = vmatprep.subr.mxu0 %v10473
      %10538 = vmatpush1.msra.mxu0 %v10472
      %10539 = vmatprep.subr.mxu0 %v10470
      %10540 = vmatpush1.msra.mxu0 %v10469
      %10541 = vmatprep.subr.mxu0 %v10467
      %10542 = vmatpush1.msra.mxu0 %v10466
      %10543 = vmatprep.subr.mxu0 0.0
      %10544 = vmatpush2.msra.mxu0 0.0
      %10545 = vmatprep.subr.mxu0 0.0
      %10546 = vmatpush2.msra.mxu0 0.0
      %10547 = vmatprep.subr.mxu0 0.0
      %10548 = vmatpush2.msra.mxu0 0.0
      %10549 = vmatprep.subr.mxu0 0.0
      %10550 = vmatpush2.msra.mxu0 0.0
      %10551 = vmatprep.subr.mxu0 0.0
      %10552 = vmatpush2.msra.mxu0 0.0
      %10553 = vmatprep.subr.mxu0 0.0
      %10554 = vmatpush2.msra.mxu0 0.0
      %10555 = vmatprep.subr.mxu0 0.0
      %10556 = vmatpush2.msra.mxu0 0.0
      %10557 = vmatprep.subr.mxu0 0.0
      %10558 = vmatpush2.msra.mxu0 0.0
      %10559 = vmatprep.subr.mxu0 0.0
      %10560 = vmatpush2.msra.mxu0 0.0
      %10561 = vmatprep.subr.mxu0 0.0
      %10562 = vmatpush2.msra.mxu0 0.0
      %10563 = vmatprep.subr.mxu0 0.0
      %10564 = vmatpush2.msra.mxu0 0.0
      %10565 = vmatprep.subr.mxu0 0.0
      %10566 = vmatpush2.msra.mxu0 0.0
      %10567 = vmatprep.subr.mxu0 0.0
      %10568 = vmatpush2.msra.mxu0 0.0
      %10569 = vmatprep.subr.mxu0 0.0
      %10570 = vmatpush2.msra.mxu0 0.0
      %10571 = vmatprep.subr.mxu0 0.0
      %10572 = vmatpush2.msra.mxu0 0.0
      %10573 = vmatprep.subr.mxu0 0.0
      %10574 = vmatpush2.msra.mxu0 0.0
      %10575 = vmatprep.mubr.f32.mxu0 0.0
      %10576 = vmatmul.mubr.f32.gmra.mxu0 %v10509
      %v10577 = vpop.f32.mrf.mxu0
      %v10578 = vadd.f32 0.0, %v10577
      %v10579 = vpop.f32.mrf.mxu0
      %v10580 = vadd.f32 0.0, %v10579
      %10581 = vdwg.mxu0
      %10582 = vmatprep.subr.mxu0 0.0
      %10583 = vmatpush1.msra.mxu0 0.0
      %10584 = vmatprep.subr.mxu0 0.0
      %10585 = vmatpush1.msra.mxu0 0.0
      %10586 = vmatprep.subr.mxu0 0.0
      %10587 = vmatpush1.msra.mxu0 0.0
      %10588 = vmatprep.subr.mxu0 0.0
      %10589 = vmatpush1.msra.mxu0 0.0
      %10590 = vmatprep.subr.mxu0 0.0
      %10591 = vmatpush1.msra.mxu0 0.0
      %10592 = vmatprep.subr.mxu0 0.0
      %10593 = vmatpush1.msra.mxu0 0.0
      %10594 = vmatprep.subr.mxu0 0.0
      %10595 = vmatpush1.msra.mxu0 0.0
      %10596 = vmatprep.subr.mxu0 0.0
      %10597 = vmatpush1.msra.mxu0 0.0
      %10598 = vmatprep.subr.mxu0 0.0
      %10599 = vmatpush1.msra.mxu0 0.0
      %10600 = vmatprep.subr.mxu0 0.0
      %10601 = vmatpush1.msra.mxu0 %v10486
      %10602 = vmatprep.subr.mxu0 0.0
      %10603 = vmatpush1.msra.mxu0 %v10483
      %10604 = vmatprep.subr.mxu0 0.0
      %10605 = vmatpush1.msra.mxu0 %v10480
      %10606 = vmatprep.subr.mxu0 0.0
      %10607 = vmatpush1.msra.mxu0 %v10477
      %10608 = vmatprep.subr.mxu0 0.0
      %10609 = vmatpush1.msra.mxu0 %v10474
      %10610 = vmatprep.subr.mxu0 0.0
      %10611 = vmatpush1.msra.mxu0 %v10471
      %10612 = vmatprep.subr.mxu0 0.0
      %10613 = vmatpush1.msra.mxu0 %v10468
      %10614 = vmatprep.subr.mxu0 0.0
      %10615 = vmatpush2.msra.mxu0 0.0
      %10616 = vmatprep.subr.mxu0 0.0
      %10617 = vmatpush2.msra.mxu0 0.0
      %10618 = vmatprep.subr.mxu0 0.0
      %10619 = vmatpush2.msra.mxu0 0.0
      %10620 = vmatprep.subr.mxu0 0.0
      %10621 = vmatpush2.msra.mxu0 0.0
      %10622 = vmatprep.subr.mxu0 0.0
      %10623 = vmatpush2.msra.mxu0 0.0
      %10624 = vmatprep.subr.mxu0 0.0
      %10625 = vmatpush2.msra.mxu0 0.0
      %10626 = vmatprep.subr.mxu0 0.0
      %10627 = vmatpush2.msra.mxu0 0.0
      %10628 = vmatprep.subr.mxu0 0.0
      %10629 = vmatpush2.msra.mxu0 0.0
      %10630 = vmatprep.subr.mxu0 0.0
      %10631 = vmatpush2.msra.mxu0 0.0
      %10632 = vmatprep.subr.mxu0 0.0
      %10633 = vmatpush2.msra.mxu0 0.0
      %10634 = vmatprep.subr.mxu0 0.0
      %10635 = vmatpush2.msra.mxu0 0.0
      %10636 = vmatprep.subr.mxu0 0.0
      %10637 = vmatpush2.msra.mxu0 0.0
      %10638 = vmatprep.subr.mxu0 0.0
      %10639 = vmatpush2.msra.mxu0 0.0
      %10640 = vmatprep.subr.mxu0 0.0
      %10641 = vmatpush2.msra.mxu0 0.0
      %10642 = vmatprep.subr.mxu0 0.0
      %10643 = vmatpush2.msra.mxu0 0.0
      %10644 = vmatprep.subr.mxu0 0.0
      %10645 = vmatpush2.msra.mxu0 0.0
      %10646 = vmatprep.mubr.f32.mxu0 0.0
      %10647 = vmatmul.mubr.f32.gmra.mxu0 %v10509
      %v10648 = vpop.f32.mrf.mxu0
      %v10649 = vadd.f32 0.0, %v10648
      %v10650 = vpop.f32.mrf.mxu0
      %10651 = vdwg.mxu0
      %v10652 = vadd.f32 %v10404, %v10578
      %v10653 = vadd.f32 %v10405, %v10580
      %v10654 = vadd.f32 %v10406, %v10649
      %s10655 = scalar_lea.vmem %s14, 96
      %v10656 = vld [vmem:[%s10655] sm:$0xf]
      %10657 = vrot.lane.b32.xlu0 %v4661, 26
      %v10658 = vpop.permute.xlu0 %10657
      %10659 = vrot.lane.b32.xlu0 %v4662, 26
      %v10660 = vpop.permute.xlu0 %10659
      %10661 = vrot.lane.b32.xlu0 %v4663, 26
      %v10662 = vpop.permute.xlu0 %10661
      %10663 = vrot.lane.b32.xlu0 %v4664, 26
      %v10664 = vpop.permute.xlu0 %10663
      %10665 = vrot.lane.b32.xlu0 %v4665, 26
      %v10666 = vpop.permute.xlu0 %10665
      %10667 = vrot.lane.b32.xlu0 %v4666, 26
      %v10668 = vpop.permute.xlu0 %10667
      %10669 = vrot.lane.b32.xlu0 %v4667, 26
      %v10670 = vpop.permute.xlu0 %10669
      %10671 = vrot.lane.b32.xlu0 %v4668, 26
      %v10672 = vpop.permute.xlu0 %10671
      %10673 = vrot.lane.b32.xlu0 %v4669, 26
      %v10674 = vpop.permute.xlu0 %10673
      %10675 = vrot.lane.b32.xlu0 %v4670, 26
      %v10676 = vpop.permute.xlu0 %10675
      %10677 = vrot.lane.b32.xlu0 %v4671, 26
      %v10678 = vpop.permute.xlu0 %10677
      %10679 = vrot.lane.b32.xlu0 %v4672, 26
      %v10680 = vpop.permute.xlu0 %10679
      %10681 = vrot.lane.b32.xlu0 %v4673, 26
      %v10682 = vpop.permute.xlu0 %10681
      %10683 = vrot.lane.b32.xlu0 %v4674, 26
      %v10684 = vpop.permute.xlu0 %10683
      %10685 = vrot.lane.b32.xlu0 %v4675, 26
      %v10686 = vpop.permute.xlu0 %10685
      %10687 = vrot.lane.b32.xlu0 %v4676, 26
      %v10688 = vpop.permute.xlu0 %10687
      %10689 = vrot.lane.b32.xlu0 %v4677, 26
      %v10690 = vpop.permute.xlu0 %10689
      %10691 = vrot.lane.b32.xlu0 %v4678, 26
      %v10692 = vpop.permute.xlu0 %10691
      %10693 = vrot.lane.b32.xlu0 %v4679, 26
      %v10694 = vpop.permute.xlu0 %10693
      %10695 = vrot.lane.b32.xlu0 %v4680, 26
      %v10696 = vpop.permute.xlu0 %10695
      %10697 = vrot.lane.b32.xlu0 %v4681, 26
      %v10698 = vpop.permute.xlu0 %10697
      %10699 = vrot.lane.b32.xlu0 %v4682, 26
      %v10700 = vpop.permute.xlu0 %10699
      %10701 = vrot.lane.b32.xlu0 %v4683, 26
      %v10702 = vpop.permute.xlu0 %10701
      %10703 = vrot.lane.b32.xlu0 %v4684, 26
      %v10704 = vpop.permute.xlu0 %10703
      %10705 = vrot.lane.b32.xlu0 %v4685, 26
      %v10706 = vpop.permute.xlu0 %10705
      %10707 = vrot.lane.b32.xlu0 %v4686, 26
      %v10708 = vpop.permute.xlu0 %10707
      %10709 = vrot.lane.b32.xlu0 %v4687, 26
      %v10710 = vpop.permute.xlu0 %10709
      %10711 = vrot.lane.b32.xlu0 %v4688, 26
      %v10712 = vpop.permute.xlu0 %10711
      %vm10713 = vcmask 211968
      %v10714 = vsel %vm10713, %v10658, %v10660
      %v10715 = vsel %vm10713, %v10660, %v10662
      %v10716 = vsel %vm10713, %v10662, %v10664
      %v10717 = vsel %vm10713, %v10666, %v10668
      %v10718 = vsel %vm10713, %v10668, %v10670
      %v10719 = vsel %vm10713, %v10670, %v10672
      %v10720 = vsel %vm10713, %v10674, %v10676
      %v10721 = vsel %vm10713, %v10676, %v10678
      %v10722 = vsel %vm10713, %v10678, %v10680
      %v10723 = vsel %vm10713, %v10682, %v10684
      %v10724 = vsel %vm10713, %v10684, %v10686
      %v10725 = vsel %vm10713, %v10686, %v10688
      %v10726 = vsel %vm10713, %v10690, %v10692
      %v10727 = vsel %vm10713, %v10692, %v10694
      %v10728 = vsel %vm10713, %v10694, %v10696
      %v10729 = vsel %vm10713, %v10698, %v10700
      %v10730 = vsel %vm10713, %v10700, %v10702
      %v10731 = vsel %vm10713, %v10702, %v10704
      %v10732 = vsel %vm10713, %v10706, %v10708
      %v10733 = vsel %vm10713, %v10708, %v10710
      %v10734 = vsel %vm10713, %v10710, %v10712
      %v10757 = vsel %vm968, %v10656, 0
      %10759 = vmatprep.subr.mxu0 0.0
      %10760 = vmatpush1.msra.mxu0 0.0
      %10761 = vmatprep.subr.mxu0 0.0
      %10762 = vmatpush1.msra.mxu0 0.0
      %10763 = vmatprep.subr.mxu0 0.0
      %10764 = vmatpush1.msra.mxu0 0.0
      %10765 = vmatprep.subr.mxu0 0.0
      %10766 = vmatpush1.msra.mxu0 0.0
      %10767 = vmatprep.subr.mxu0 0.0
      %10768 = vmatpush1.msra.mxu0 0.0
      %10769 = vmatprep.subr.mxu0 0.0
      %10770 = vmatpush1.msra.mxu0 0.0
      %10771 = vmatprep.subr.mxu0 0.0
      %10772 = vmatpush1.msra.mxu0 0.0
      %10773 = vmatprep.subr.mxu0 0.0
      %10774 = vmatpush1.msra.mxu0 0.0
      %10775 = vmatprep.subr.mxu0 0.0
      %10776 = vmatpush1.msra.mxu0 0.0
      %10777 = vmatprep.subr.mxu0 %v10733
      %10778 = vmatpush1.msra.mxu0 %v10732
      %10779 = vmatprep.subr.mxu0 %v10730
      %10780 = vmatpush1.msra.mxu0 %v10729
      %10781 = vmatprep.subr.mxu0 %v10727
      %10782 = vmatpush1.msra.mxu0 %v10726
      %10783 = vmatprep.subr.mxu0 %v10724
      %10784 = vmatpush1.msra.mxu0 %v10723
      %10785 = vmatprep.subr.mxu0 %v10721
      %10786 = vmatpush1.msra.mxu0 %v10720
      %10787 = vmatprep.subr.mxu0 %v10718
      %10788 = vmatpush1.msra.mxu0 %v10717
      %10789 = vmatprep.subr.mxu0 %v10715
      %10790 = vmatpush1.msra.mxu0 %v10714
      %10791 = vmatprep.subr.mxu0 0.0
      %10792 = vmatpush2.msra.mxu0 0.0
      %10793 = vmatprep.subr.mxu0 0.0
      %10794 = vmatpush2.msra.mxu0 0.0
      %10795 = vmatprep.subr.mxu0 0.0
      %10796 = vmatpush2.msra.mxu0 0.0
      %10797 = vmatprep.subr.mxu0 0.0
      %10798 = vmatpush2.msra.mxu0 0.0
      %10799 = vmatprep.subr.mxu0 0.0
      %10800 = vmatpush2.msra.mxu0 0.0
      %10801 = vmatprep.subr.mxu0 0.0
      %10802 = vmatpush2.msra.mxu0 0.0
      %10803 = vmatprep.subr.mxu0 0.0
      %10804 = vmatpush2.msra.mxu0 0.0
      %10805 = vmatprep.subr.mxu0 0.0
      %10806 = vmatpush2.msra.mxu0 0.0
      %10807 = vmatprep.subr.mxu0 0.0
      %10808 = vmatpush2.msra.mxu0 0.0
      %10809 = vmatprep.subr.mxu0 0.0
      %10810 = vmatpush2.msra.mxu0 0.0
      %10811 = vmatprep.subr.mxu0 0.0
      %10812 = vmatpush2.msra.mxu0 0.0
      %10813 = vmatprep.subr.mxu0 0.0
      %10814 = vmatpush2.msra.mxu0 0.0
      %10815 = vmatprep.subr.mxu0 0.0
      %10816 = vmatpush2.msra.mxu0 0.0
      %10817 = vmatprep.subr.mxu0 0.0
      %10818 = vmatpush2.msra.mxu0 0.0
      %10819 = vmatprep.subr.mxu0 0.0
      %10820 = vmatpush2.msra.mxu0 0.0
      %10821 = vmatprep.subr.mxu0 0.0
      %10822 = vmatpush2.msra.mxu0 0.0
      %10823 = vmatprep.mubr.f32.mxu0 0.0
      %10824 = vmatmul.mubr.f32.gmra.mxu0 %v10757
      %v10825 = vpop.f32.mrf.mxu0
      %v10826 = vadd.f32 0.0, %v10825
      %v10827 = vpop.f32.mrf.mxu0
      %v10828 = vadd.f32 0.0, %v10827
      %10829 = vdwg.mxu0
      %10830 = vmatprep.subr.mxu0 0.0
      %10831 = vmatpush1.msra.mxu0 0.0
      %10832 = vmatprep.subr.mxu0 0.0
      %10833 = vmatpush1.msra.mxu0 0.0
      %10834 = vmatprep.subr.mxu0 0.0
      %10835 = vmatpush1.msra.mxu0 0.0
      %10836 = vmatprep.subr.mxu0 0.0
      %10837 = vmatpush1.msra.mxu0 0.0
      %10838 = vmatprep.subr.mxu0 0.0
      %10839 = vmatpush1.msra.mxu0 0.0
      %10840 = vmatprep.subr.mxu0 0.0
      %10841 = vmatpush1.msra.mxu0 0.0
      %10842 = vmatprep.subr.mxu0 0.0
      %10843 = vmatpush1.msra.mxu0 0.0
      %10844 = vmatprep.subr.mxu0 0.0
      %10845 = vmatpush1.msra.mxu0 0.0
      %10846 = vmatprep.subr.mxu0 0.0
      %10847 = vmatpush1.msra.mxu0 0.0
      %10848 = vmatprep.subr.mxu0 0.0
      %10849 = vmatpush1.msra.mxu0 %v10734
      %10850 = vmatprep.subr.mxu0 0.0
      %10851 = vmatpush1.msra.mxu0 %v10731
      %10852 = vmatprep.subr.mxu0 0.0
      %10853 = vmatpush1.msra.mxu0 %v10728
      %10854 = vmatprep.subr.mxu0 0.0
      %10855 = vmatpush1.msra.mxu0 %v10725
      %10856 = vmatprep.subr.mxu0 0.0
      %10857 = vmatpush1.msra.mxu0 %v10722
      %10858 = vmatprep.subr.mxu0 0.0
      %10859 = vmatpush1.msra.mxu0 %v10719
      %10860 = vmatprep.subr.mxu0 0.0
      %10861 = vmatpush1.msra.mxu0 %v10716
      %10862 = vmatprep.subr.mxu0 0.0
      %10863 = vmatpush2.msra.mxu0 0.0
      %10864 = vmatprep.subr.mxu0 0.0
      %10865 = vmatpush2.msra.mxu0 0.0
      %10866 = vmatprep.subr.mxu0 0.0
      %10867 = vmatpush2.msra.mxu0 0.0
      %10868 = vmatprep.subr.mxu0 0.0
      %10869 = vmatpush2.msra.mxu0 0.0
      %10870 = vmatprep.subr.mxu0 0.0
      %10871 = vmatpush2.msra.mxu0 0.0
      %10872 = vmatprep.subr.mxu0 0.0
      %10873 = vmatpush2.msra.mxu0 0.0
      %10874 = vmatprep.subr.mxu0 0.0
      %10875 = vmatpush2.msra.mxu0 0.0
      %10876 = vmatprep.subr.mxu0 0.0
      %10877 = vmatpush2.msra.mxu0 0.0
      %10878 = vmatprep.subr.mxu0 0.0
      %10879 = vmatpush2.msra.mxu0 0.0
      %10880 = vmatprep.subr.mxu0 0.0
      %10881 = vmatpush2.msra.mxu0 0.0
      %10882 = vmatprep.subr.mxu0 0.0
      %10883 = vmatpush2.msra.mxu0 0.0
      %10884 = vmatprep.subr.mxu0 0.0
      %10885 = vmatpush2.msra.mxu0 0.0
      %10886 = vmatprep.subr.mxu0 0.0
      %10887 = vmatpush2.msra.mxu0 0.0
      %10888 = vmatprep.subr.mxu0 0.0
      %10889 = vmatpush2.msra.mxu0 0.0
      %10890 = vmatprep.subr.mxu0 0.0
      %10891 = vmatpush2.msra.mxu0 0.0
      %10892 = vmatprep.subr.mxu0 0.0
      %10893 = vmatpush2.msra.mxu0 0.0
      %10894 = vmatprep.mubr.f32.mxu0 0.0
      %10895 = vmatmul.mubr.f32.gmra.mxu0 %v10757
      %v10896 = vpop.f32.mrf.mxu0
      %v10897 = vadd.f32 0.0, %v10896
      %v10898 = vpop.f32.mrf.mxu0
      %10899 = vdwg.mxu0
      %v10900 = vadd.f32 %v10652, %v10826
      %v10901 = vadd.f32 %v10653, %v10828
      %v10902 = vadd.f32 %v10654, %v10897
      %v10903 = vld [vmem:[%s15] sm:$0xf]
      %10905 = vset.pattern.permute.xlu0 0
      %10906 = vperm.xlu0 %10905, %v10903
      %v10907 = vpop.permute.xlu0 %10906
      %v10909 = vadd.f32 %v10900, %v10907
      %v10910 = vadd.f32 %v10901, %v10907
      %v10911 = vadd.f32 %v10902, %v10907
      %v10914 = vcombine.low %v10909, %v10910
      %10916 = vst [vmem:[%s521] sm:$0xff] %v10914
      %10917 = vst [vmem:[%s521 + $0x8] sm:$0xf] %v10911
      %p10918 = scmp.lt.s32.totalorder %s27, 1
      %s10919 = scalar_select %p10918, %s27, 1
      %s10920 = smul.addr %s10919, 3
      %s10921 = smul.addr %s10920, 4
      %s10922 = scalar_lea.vmem %s16, %s10921
      // Predicated region
      $region85: #{fsrcnn_forward.1} parent=83 // pred_check
        %p10923 = pneg %p386
      $region86: #{fsrcnn_forward.1} parent=83 // pred_check_branch
        %10925 = sbr.rel (%p10923) target = $region88
      $region87: #{fsrcnn_forward.1} parent=83 // pred_region
        _
      $region88: #{fsrcnn_forward.1} parent=83 // pred_fallthru
        _
    $region84: #{fsrcnn_forward.1} parent=5 // pred_fallthru
      _
    %p10926 = scmp.le.s32.totalorder 2, %s22
    // Predicated region
    $region89: #{fsrcnn_forward.1} parent=5 // pred_check
      %p10927 = pneg %p10926
    $region90: #{fsrcnn_forward.1} parent=5 // pred_check_branch
      %10929 = sbr.rel (%p10927) target = $region92
    $region91: #{fsrcnn_forward.1} parent=5 // pred_region
      %s10930 = ssub.s32 %s22, 2
      // Predicated region
      $region93: #{fsrcnn_forward.1} parent=91 // pred_check
        %p10931 = pneg %p392
      $region94: #{fsrcnn_forward.1} parent=91 // pred_check_branch
        %10933 = sbr.rel (%p10931) target = $region96
      $region95: #{fsrcnn_forward.1} parent=91 // pred_region
        %p10934 = scmp.lt.s32.totalorder %s28, 1
        %s10935 = scalar_select %p10934, %s28, 1
        %s10936 = smul.addr %s10935, 3
        %s10937 = smul.addr %s10936, 4
        %s10938 = scalar_lea.vmem %s16, %s10937
      $region96: #{fsrcnn_forward.1} parent=91 // pred_fallthru
        _
    $region92: #{fsrcnn_forward.1} parent=5 // pred_fallthru
      _
  $region6: #{fsrcnn_forward.1} parent=0 // loop_footer
    %s26 = sadd.s32 1, %s22
  $region7: #{fsrcnn_forward.1} parent=0 // loop_footer_branch
    %21 = sbr.rel target = $region3
  $region8: #{fsrcnn_forward.1} parent=0 // loop_exit
    _

</llo_original>
